<compile_context>
chip_gen: v7x
topology: tpu7x:2x2x1
jax: 0.10.0
libtpu: 0.0.40
codegen_flags: <defaults>
</compile_context>

<pallas_src>
import numpy as np

import jax
import jax.numpy as jnp
from jax.experimental import pallas as pl
from jax.experimental.pallas import tpu as pltpu

# Architecture constants (fixed by the PyTorch module: fc1 expects 64*5*5).
H_IN = 28                    # input is (B, 1, 28, 28)
OH1, PH1 = 26, 13            # conv1 output height, pooled height
OH2, PH2 = 11, 5             # conv2 output height, pooled height
C1, C2 = 32, 64              # conv channel counts
L1 = PH1 * C1                # 416 = pooled conv1 row width (13 cols x 32 ch)
L2 = PH2 * C2                # 320 = pooled conv2 row width (5 cols x 64 ch)
FC_H = 128                   # fc1 width; also the padded fc2 lane width
N_CLS = 10

# Batched-execution layout constants.
TB = 8                       # images per grid step
RB1 = 32                     # per-image row block at the conv1 stage (28 -> 32)
RB2 = 16                     # per-image row block after pool1 (13 valid rows)
RB3 = 8                      # per-image row block after pool2 (5 valid rows)
K1 = 3 * H_IN                # 84  = K-stacked conv1 contraction depth
K2 = 3 * L1                  # 1248 = K-stacked conv2 contraction depth


# ----------------------------------------------------------------------------
# The fused Pallas kernel: one grid step == TB images, end to end in VMEM.
# ----------------------------------------------------------------------------
def _cnn_kernel(x_ref, t1e_ref, t1o_ref, b1_ref, r1_ref,
                t2e_ref, t2o_ref, b2_ref, r2_ref,
                s_ref, w1_ref, bf1_ref, w2_ref, bf2_ref, o_ref):
    f32, bf16 = jnp.float32, jnp.bfloat16

    # ---- conv1 + ReLU + 2x2 max-pool: TB x 28x28x1 -> TB x 13x13x32 ---------
    # x_ref rows: image b occupies sublanes [b*32, b*32+31] (rows 28..31 zero).
    xs = x_ref[...]                                               # (TB*32, 28) f32
    xcat = jnp.concatenate(                                       # K-stack 3 taps
        [xs, jnp.roll(xs, -1, axis=0), jnp.roll(xs, -2, axis=0)],
        axis=1).astype(bf16)                                      # (TB*32, 84)
    y1e = jnp.dot(xcat, t1e_ref[...], preferred_element_type=f32)  # even cols
    y1o = jnp.dot(xcat, t1o_ref[...], preferred_element_type=f32)  # odd cols
    yw1 = jnp.maximum(y1e, y1o)                                   # width-pooled (TB*32, 416)
    yr1 = jnp.maximum(yw1, jnp.roll(yw1, -1, axis=0))             # adjacent-row max
    # Block-diagonal compaction: pick rows b*32+2r, r=0..12  ->  (TB*16, 416).
    p1 = jnp.dot(r1_ref[...], yr1.astype(bf16), preferred_element_type=f32)
    # bias + ReLU commute with max-pool (bias constant over the window).
    p1 = jnp.maximum(p1 + b1_ref[...], 0.0)                       # (TB*16, 416)

    # ---- conv2 + ReLU + 2x2 max-pool: TB x 13x13x32 -> TB x 5x5x64 ----------
    p1cat = jnp.concatenate(
        [p1, jnp.roll(p1, -1, axis=0), jnp.roll(p1, -2, axis=0)],
        axis=1).astype(bf16)                                      # (TB*16, 1248)
    y2e = jnp.dot(p1cat, t2e_ref[...], preferred_element_type=f32)
    y2o = jnp.dot(p1cat, t2o_ref[...], preferred_element_type=f32)
    yw2 = jnp.maximum(y2e, y2o)                                   # (TB*16, 320)
    yr2 = jnp.maximum(yw2, jnp.roll(yw2, -1, axis=0))
    p2 = jnp.dot(r2_ref[...], yr2.astype(bf16), preferred_element_type=f32)
    p2 = jnp.maximum(p2 + b2_ref[...], 0.0)                       # (TB*8, 320)

    # ---- flatten + fc1 + ReLU + fc2 (batched over the TB images) ------------
    # TODO(synk): nn.Dropout(0.25) is identity in eval mode; training-mode
    # stochastic masking is not implemented.
    p2cat = jnp.concatenate(                                      # per-image flat row
        [p2] + [jnp.roll(p2, -r, axis=0) for r in range(1, PH2)],
        axis=1).astype(bf16)                                      # (TB*8, 1600)
    flat = jnp.dot(s_ref[...], p2cat, preferred_element_type=f32)  # gather rows b*8 -> (TB, 1600)
    h = jnp.dot(flat.astype(bf16), w1_ref[...],
                preferred_element_type=f32) + bf1_ref[...]
    h = jnp.maximum(h, 0.0)                                       # (TB, 128)
    logits = jnp.dot(h.astype(bf16), w2_ref[...],
                     preferred_element_type=f32) + bf2_ref[...]   # (TB, 128), cols 10..127 = bias pad
    o_ref[...] = logits.astype(o_ref.dtype)


# ----------------------------------------------------------------------------
# One-time weight re-layout (hoisted out of the per-call hot path).
# ----------------------------------------------------------------------------
def _conv_toeplitz(w, win, parity):
    """Per-tap Toeplitz matrices for a valid 3x3 conv in (row, col*Cin+ci) layout.

    Returns (kh, win*Cin, wsel*Cout) with T[di][wj*Cin+ci, j*Cout+co] =
    w[co, ci, di, (2j+parity) ...] so that sum_di rows[di:di+OH] @ T[di] yields
    the conv output restricted to columns 2j+parity (the even/odd column
    selection of the following 2x2 max-pool is folded in).
    """
    w = jnp.asarray(w, jnp.float32)
    cout, cin, kh, kw = w.shape
    wout = win - kw + 1
    wsel = wout // 2
    sel = np.zeros((win, wsel, kw), np.float32)
    for j in range(wsel):
        for dj in range(kw):
            sel[2 * j + parity + dj, j, dj] = 1.0
    sel = jnp.asarray(sel)
    mats = []
    for di in range(kh):
        t = jnp.einsum("wjd,ocd->wcjo", sel, w[:, :, di, :])
        mats.append(t.reshape(win * cin, wsel * cout))
    return jnp.stack(mats, axis=0)


def prepare_params(params):
    """Repack torch-layout params for the fused kernel (call once)."""
    f32, bf16 = jnp.float32, jnp.bfloat16
    w1 = jnp.asarray(params["conv1_w"], f32)
    b1 = jnp.asarray(params["conv1_b"], f32)
    w2 = jnp.asarray(params["conv2_w"], f32)
    b2 = jnp.asarray(params["conv2_b"], f32)
    fc1_w = jnp.asarray(params["fc1_w"], f32)
    fc1_b = jnp.asarray(params["fc1_b"], f32)
    fc2_w = jnp.asarray(params["fc2_w"], f32)
    fc2_b = jnp.asarray(params["fc2_b"], f32)

    # K-stacked Toeplitz conv matrices (3 vertical taps stacked along K).
    t1e = _conv_toeplitz(w1, H_IN, 0).reshape(K1, L1)     # (84, 416)
    t1o = _conv_toeplitz(w1, H_IN, 1).reshape(K1, L1)
    t2e = _conv_toeplitz(w2, PH1, 0).reshape(K2, L2)      # (1248, 320)
    t2o = _conv_toeplitz(w2, PH1, 1).reshape(K2, L2)

    # Block-diagonal 0/1 row-pool compaction selectors and the final row gather.
    r1 = np.zeros((TB * RB2, TB * RB1), np.float32)       # (128, 256)
    r2 = np.zeros((TB * RB3, TB * RB2), np.float32)       # (64, 128)
    s = np.zeros((TB, TB * RB3), np.float32)              # (8, 64)
    for b in range(TB):
        for r in range(PH1):
            r1[b * RB2 + r, b * RB1 + 2 * r] = 1.0
        for r in range(PH2):
            r2[b * RB3 + r, b * RB2 + 2 * r] = 1.0
        s[b, b * RB3] = 1.0

    # Fold the torch NCHW-flatten order of fc1 into a (1600, 128) weight so the
    # pooled (row, col*64+ch) layout feeds fc1 with no activation transpose.
    w1p = fc1_w.reshape(FC_H, C2, PH2, PH2).transpose(2, 3, 1, 0).reshape(PH2 * L2, FC_H)
    # fc2 padded to a lane-dense 128-wide output (cols 10..127 are exactly 0 + 0 bias).
    w2p = jnp.zeros((FC_H, FC_H), f32).at[:, :N_CLS].set(fc2_w.T)
    bf2 = jnp.zeros((1, FC_H), f32).at[0, :N_CLS].set(fc2_b)

    return {
        "t1e": t1e.astype(bf16), "t1o": t1o.astype(bf16),
        "b1": jnp.tile(b1, PH1).reshape(1, L1),
        "r1": jnp.asarray(r1, bf16),
        "t2e": t2e.astype(bf16), "t2o": t2o.astype(bf16),
        "b2": jnp.tile(b2, PH2).reshape(1, L2),
        "r2": jnp.asarray(r2, bf16),
        "s": jnp.asarray(s, bf16),
        "w1": w1p.astype(bf16),
        "bf1": fc1_b.reshape(1, FC_H),
        "w2": w2p.astype(bf16),
        "bf2": bf2,
    }


# ----------------------------------------------------------------------------
# Forward pass
# ----------------------------------------------------------------------------
def simple_cnn_forward(x_nchw, prep):
    """x_nchw: (B, 1, 28, 28) -> (B, 10) logits, using prepare_params() output."""
    B = x_nchw.shape[0]
    nb = (B + TB - 1) // TB
    b_pad = nb * TB

    x = x_nchw.reshape(B, H_IN, H_IN).astype(jnp.float32)
    # Pad batch to a multiple of TB and rows 28 -> 32 (sublane-aligned blocks),
    # then row-stack all images: (B_pad*32, 28).
    x = jnp.pad(x, ((0, b_pad - B), (0, RB1 - H_IN), (0, 0)))
    xs = x.reshape(b_pad * RB1, H_IN)

    out = pl.pallas_call(
        _cnn_kernel,
        out_shape=jax.ShapeDtypeStruct((b_pad, FC_H), jnp.float32),
        grid=(nb,),
        in_specs=[
            pl.BlockSpec((TB * RB1, H_IN), lambda i: (i, 0)),      # stacked image rows
            pl.BlockSpec((K1, L1), lambda i: (0, 0)),              # t1e
            pl.BlockSpec((K1, L1), lambda i: (0, 0)),              # t1o
            pl.BlockSpec((1, L1), lambda i: (0, 0)),               # b1
            pl.BlockSpec((TB * RB2, TB * RB1), lambda i: (0, 0)),  # r1
            pl.BlockSpec((K2, L2), lambda i: (0, 0)),              # t2e
            pl.BlockSpec((K2, L2), lambda i: (0, 0)),              # t2o
            pl.BlockSpec((1, L2), lambda i: (0, 0)),               # b2
            pl.BlockSpec((TB * RB3, TB * RB2), lambda i: (0, 0)),  # r2
            pl.BlockSpec((TB, TB * RB3), lambda i: (0, 0)),        # s
            pl.BlockSpec((PH2 * L2, FC_H), lambda i: (0, 0)),      # w1
            pl.BlockSpec((1, FC_H), lambda i: (0, 0)),             # bf1
            pl.BlockSpec((FC_H, FC_H), lambda i: (0, 0)),          # w2
            pl.BlockSpec((1, FC_H), lambda i: (0, 0)),             # bf2
        ],
        out_specs=pl.BlockSpec((TB, FC_H), lambda i: (i, 0)),
        compiler_params=pltpu.CompilerParams(
            dimension_semantics=("parallel",),
            vmem_limit_bytes=32 * 1024 * 1024),
    )(xs, prep["t1e"], prep["t1o"], prep["b1"], prep["r1"],
      prep["t2e"], prep["t2o"], prep["b2"], prep["r2"],
      prep["s"], prep["w1"], prep["bf1"], prep["w2"], prep["bf2"])

    return out[:B, :N_CLS]


# ----------------------------------------------------------------------------
# Torch-layout parameters + plain-JAX reference (for the self-check)
# ----------------------------------------------------------------------------
def init_params(key):
    ks = jax.random.split(key, 8)
    return {
        # torch layouts: conv (Cout, Cin, kh, kw); linear (out_features, in_features)
        "conv1_w": 0.1 * jax.random.normal(ks[0], (32, 1, 3, 3), jnp.float32),
        "conv1_b": 0.1 * jax.random.normal(ks[1], (32,), jnp.float32),
        "conv2_w": 0.05 * jax.random.normal(ks[2], (64, 32, 3, 3), jnp.float32),
        "conv2_b": 0.05 * jax.random.normal(ks[3], (64,), jnp.float32),
        "fc1_w": 0.02 * jax.random.normal(ks[4], (128, 64 * 5 * 5), jnp.float32),
        "fc1_b": 0.02 * jax.random.normal(ks[5], (128,), jnp.float32),
        "fc2_w": 0.05 * jax.random.normal(ks[6], (10, 128), jnp.float32),
        "fc2_b": 0.05 * jax.random.normal(ks[7], (10,), jnp.float32),
    }


def reference_forward(x_nchw, params):
    """Plain-JAX/XLA reference of SimpleCNN.forward (eval mode)."""
    hi = jax.lax.Precision.HIGHEST
    x = x_nchw.astype(jnp.float32)

    def conv_relu(x, w, b):
        y = jax.lax.conv_general_dilated(
            x, w, window_strides=(1, 1), padding="VALID",
            dimension_numbers=("NCHW", "OIHW", "NCHW"), precision=hi)
        return jax.nn.relu(y + b[None, :, None, None])

    def pool(x):
        return jax.lax.reduce_window(x, -jnp.inf, jax.lax.max,
                                     (1, 1, 2, 2), (1, 1, 2, 2), "VALID")

    y = pool(conv_relu(x, params["conv1_w"], params["conv1_b"]))
    y = pool(conv_relu(y, params["conv2_w"], params["conv2_b"]))
    y = y.reshape(y.shape[0], -1)                       # torch.flatten(x, 1), NCHW order
    y = jax.nn.relu(jnp.dot(y, params["fc1_w"].T, precision=hi) + params["fc1_b"])
    return jnp.dot(y, params["fc2_w"].T, precision=hi) + params["fc2_b"]


if __name__ == "__main__":
    key = jax.random.PRNGKey(0)
    k_x, k_p = jax.random.split(key)

    # MNIST-like input; 28x28 is required for fc1's 64*5*5 = 1600 input size.
    x = jax.random.normal(k_x, (2, 1, 28, 28), jnp.float32)
    params = init_params(k_p)
    prep = prepare_params(params)          # one-time weight re-layout (bf16)

    fwd = jax.jit(simple_cnn_forward)
    logits = fwd(x, prep)
    jax.block_until_ready(logits)

    assert logits.shape == (2, 10), logits.shape
    assert logits.dtype == jnp.float32

    # Numerical cross-check against the plain-JAX reference (loose tolerance:
    # weights are bf16 and the MXU accumulates bf16 operands into f32).
    ref = reference_forward(x, params)
    assert jnp.allclose(logits, ref, rtol=3e-2, atol=3e-2), \
        float(jnp.max(jnp.abs(logits - ref)))

    print("KERNEL_OK")
</pallas_src>

<mosaic_0001>
module attributes {stable_mosaic.version = 11 : i64} {
  func.func @_cnn_kernel(%arg0: i32, %arg1: memref<256x28xf32, #tpu.memory_space<vmem>>, %arg2: memref<84x416xbf16, #tpu.memory_space<vmem>>, %arg3: memref<84x416xbf16, #tpu.memory_space<vmem>>, %arg4: memref<1x416xf32, #tpu.memory_space<vmem>>, %arg5: memref<128x256xbf16, #tpu.memory_space<vmem>>, %arg6: memref<1248x320xbf16, #tpu.memory_space<vmem>>, %arg7: memref<1248x320xbf16, #tpu.memory_space<vmem>>, %arg8: memref<1x320xf32, #tpu.memory_space<vmem>>, %arg9: memref<64x128xbf16, #tpu.memory_space<vmem>>, %arg10: memref<8x64xbf16, #tpu.memory_space<vmem>>, %arg11: memref<1600x128xbf16, #tpu.memory_space<vmem>>, %arg12: memref<1x128xf32, #tpu.memory_space<vmem>>, %arg13: memref<128x128xbf16, #tpu.memory_space<vmem>>, %arg14: memref<1x128xf32, #tpu.memory_space<vmem>>, %arg15: memref<8x128xf32, #tpu.memory_space<vmem>>) attributes {dimension_semantics = [#tpu.dimension_semantics<parallel>], iteration_bounds = array<i64: 1>, scalar_prefetch = 0 : i64, scratch_operands = 0 : i64, tpu.core_type = #tpu.core_type<tc>, window_params = [{transform_indices = @transform_0, window_bounds = array<i64: 256, 28>}, {pipeline_mode = #tpu.pipeline_mode<synchronous>, transform_indices = @transform_1, window_bounds = array<i64: 84, 416>}, {pipeline_mode = #tpu.pipeline_mode<synchronous>, transform_indices = @transform_2, window_bounds = array<i64: 84, 416>}, {pipeline_mode = #tpu.pipeline_mode<synchronous>, transform_indices = @transform_3, window_bounds = array<i64: 1, 416>}, {pipeline_mode = #tpu.pipeline_mode<synchronous>, transform_indices = @transform_4, window_bounds = array<i64: 128, 256>}, {pipeline_mode = #tpu.pipeline_mode<synchronous>, transform_indices = @transform_5, window_bounds = array<i64: 1248, 320>}, {pipeline_mode = #tpu.pipeline_mode<synchronous>, transform_indices = @transform_6, window_bounds = array<i64: 1248, 320>}, {pipeline_mode = #tpu.pipeline_mode<synchronous>, transform_indices = @transform_7, window_bounds = array<i64: 1, 320>}, {pipeline_mode = #tpu.pipeline_mode<synchronous>, transform_indices = @transform_8, window_bounds = array<i64: 64, 128>}, {pipeline_mode = #tpu.pipeline_mode<synchronous>, transform_indices = @transform_9, window_bounds = array<i64: 8, 64>}, {pipeline_mode = #tpu.pipeline_mode<synchronous>, transform_indices = @transform_10, window_bounds = array<i64: 1600, 128>}, {pipeline_mode = #tpu.pipeline_mode<synchronous>, transform_indices = @transform_11, window_bounds = array<i64: 1, 128>}, {pipeline_mode = #tpu.pipeline_mode<synchronous>, transform_indices = @transform_12, window_bounds = array<i64: 128, 128>}, {pipeline_mode = #tpu.pipeline_mode<synchronous>, transform_indices = @transform_13, window_bounds = array<i64: 1, 128>}, {transform_indices = @transform_14, window_bounds = array<i64: 8, 128>}]} {
    %c0 = arith.constant 0 : index
    %c0_0 = arith.constant 0 : index
    %0 = vector.load %arg1[%c0, %c0_0] : memref<256x28xf32, #tpu.memory_space<vmem>>, vector<256x28xf32>
    %1 = vector.extract_strided_slice %0 {offsets = [1, 0], sizes = [255, 28], strides = [1, 1]} : vector<256x28xf32> to vector<255x28xf32>
    %2 = vector.extract_strided_slice %0 {offsets = [0, 0], sizes = [1, 28], strides = [1, 1]} : vector<256x28xf32> to vector<1x28xf32>
    %3 = tpu.concatenate %1, %2 in 0 : vector<255x28xf32>, vector<1x28xf32> -> vector<256x28xf32>
    %4 = vector.extract_strided_slice %0 {offsets = [2, 0], sizes = [254, 28], strides = [1, 1]} : vector<256x28xf32> to vector<254x28xf32>
    %5 = vector.extract_strided_slice %0 {offsets = [0, 0], sizes = [2, 28], strides = [1, 1]} : vector<256x28xf32> to vector<2x28xf32>
    %6 = tpu.concatenate %4, %5 in 0 : vector<254x28xf32>, vector<2x28xf32> -> vector<256x28xf32>
    %7 = tpu.concatenate %0, %3, %6 in 1 : vector<256x28xf32>, vector<256x28xf32>, vector<256x28xf32> -> vector<256x84xf32>
    %8 = arith.truncf %7 : vector<256x84xf32> to vector<256x84xbf16>
    %c0_1 = arith.constant 0 : index
    %c0_2 = arith.constant 0 : index
    %9 = vector.load %arg2[%c0_1, %c0_2] : memref<84x416xbf16, #tpu.memory_space<vmem>>, vector<84x416xbf16>
    %cst = arith.constant dense<0.000000e+00> : vector<256x416xf32>
    %10 = tpu.matmul %8, %9, %cst {dimension_numbers = #tpu.dot_dimension_numbers<[1], [0], [0], [1], [0, 0, 1, 1], [], []>} : vector<256x84xbf16>, vector<84x416xbf16>, vector<256x416xf32> -> vector<256x416xf32>
    %c0_3 = arith.constant 0 : index
    %c0_4 = arith.constant 0 : index
    %11 = vector.load %arg3[%c0_3, %c0_4] : memref<84x416xbf16, #tpu.memory_space<vmem>>, vector<84x416xbf16>
    %cst_5 = arith.constant dense<0.000000e+00> : vector<256x416xf32>
    %12 = tpu.matmul %8, %11, %cst_5 {dimension_numbers = #tpu.dot_dimension_numbers<[1], [0], [0], [1], [0, 0, 1, 1], [], []>} : vector<256x84xbf16>, vector<84x416xbf16>, vector<256x416xf32> -> vector<256x416xf32>
    %13 = arith.maximumf %10, %12 : vector<256x416xf32>
    %14 = vector.extract_strided_slice %13 {offsets = [1, 0], sizes = [255, 416], strides = [1, 1]} : vector<256x416xf32> to vector<255x416xf32>
    %15 = vector.extract_strided_slice %13 {offsets = [0, 0], sizes = [1, 416], strides = [1, 1]} : vector<256x416xf32> to vector<1x416xf32>
    %16 = tpu.concatenate %14, %15 in 0 : vector<255x416xf32>, vector<1x416xf32> -> vector<256x416xf32>
    %17 = arith.maximumf %13, %16 : vector<256x416xf32>
    %c0_6 = arith.constant 0 : index
    %c0_7 = arith.constant 0 : index
    %18 = vector.load %arg5[%c0_6, %c0_7] : memref<128x256xbf16, #tpu.memory_space<vmem>>, vector<128x256xbf16>
    %19 = arith.truncf %17 : vector<256x416xf32> to vector<256x416xbf16>
    %cst_8 = arith.constant dense<0.000000e+00> : vector<128x416xf32>
    %20 = tpu.matmul %18, %19, %cst_8 {dimension_numbers = #tpu.dot_dimension_numbers<[1], [0], [0], [1], [0, 0, 1, 1], [], []>} : vector<128x256xbf16>, vector<256x416xbf16>, vector<128x416xf32> -> vector<128x416xf32>
    %c0_9 = arith.constant 0 : index
    %c0_10 = arith.constant 0 : index
    %21 = vector.load %arg4[%c0_9, %c0_10] : memref<1x416xf32, #tpu.memory_space<vmem>>, vector<1x416xf32>
    %22 = vector.broadcast %21 : vector<1x416xf32> to vector<128x416xf32>
    %23 = arith.addf %20, %22 : vector<128x416xf32>
    %cst_11 = arith.constant 0.000000e+00 : f32
    %24 = vector.broadcast %cst_11 : f32 to vector<128x416xf32>
    %25 = arith.maximumf %23, %24 : vector<128x416xf32>
    %26 = vector.extract_strided_slice %25 {offsets = [1, 0], sizes = [127, 416], strides = [1, 1]} : vector<128x416xf32> to vector<127x416xf32>
    %27 = vector.extract_strided_slice %25 {offsets = [0, 0], sizes = [1, 416], strides = [1, 1]} : vector<128x416xf32> to vector<1x416xf32>
    %28 = tpu.concatenate %26, %27 in 0 : vector<127x416xf32>, vector<1x416xf32> -> vector<128x416xf32>
    %29 = vector.extract_strided_slice %25 {offsets = [2, 0], sizes = [126, 416], strides = [1, 1]} : vector<128x416xf32> to vector<126x416xf32>
    %30 = vector.extract_strided_slice %25 {offsets = [0, 0], sizes = [2, 416], strides = [1, 1]} : vector<128x416xf32> to vector<2x416xf32>
    %31 = tpu.concatenate %29, %30 in 0 : vector<126x416xf32>, vector<2x416xf32> -> vector<128x416xf32>
    %32 = tpu.concatenate %25, %28, %31 in 1 : vector<128x416xf32>, vector<128x416xf32>, vector<128x416xf32> -> vector<128x1248xf32>
    %33 = arith.truncf %32 : vector<128x1248xf32> to vector<128x1248xbf16>
    %c0_12 = arith.constant 0 : index
    %c0_13 = arith.constant 0 : index
    %34 = vector.load %arg6[%c0_12, %c0_13] : memref<1248x320xbf16, #tpu.memory_space<vmem>>, vector<1248x320xbf16>
    %cst_14 = arith.constant dense<0.000000e+00> : vector<128x320xf32>
    %35 = tpu.matmul %33, %34, %cst_14 {dimension_numbers = #tpu.dot_dimension_numbers<[1], [0], [0], [1], [0, 0, 1, 1], [], []>} : vector<128x1248xbf16>, vector<1248x320xbf16>, vector<128x320xf32> -> vector<128x320xf32>
    %c0_15 = arith.constant 0 : index
    %c0_16 = arith.constant 0 : index
    %36 = vector.load %arg7[%c0_15, %c0_16] : memref<1248x320xbf16, #tpu.memory_space<vmem>>, vector<1248x320xbf16>
    %cst_17 = arith.constant dense<0.000000e+00> : vector<128x320xf32>
    %37 = tpu.matmul %33, %36, %cst_17 {dimension_numbers = #tpu.dot_dimension_numbers<[1], [0], [0], [1], [0, 0, 1, 1], [], []>} : vector<128x1248xbf16>, vector<1248x320xbf16>, vector<128x320xf32> -> vector<128x320xf32>
    %38 = arith.maximumf %35, %37 : vector<128x320xf32>
    %39 = vector.extract_strided_slice %38 {offsets = [1, 0], sizes = [127, 320], strides = [1, 1]} : vector<128x320xf32> to vector<127x320xf32>
    %40 = vector.extract_strided_slice %38 {offsets = [0, 0], sizes = [1, 320], strides = [1, 1]} : vector<128x320xf32> to vector<1x320xf32>
    %41 = tpu.concatenate %39, %40 in 0 : vector<127x320xf32>, vector<1x320xf32> -> vector<128x320xf32>
    %42 = arith.maximumf %38, %41 : vector<128x320xf32>
    %c0_18 = arith.constant 0 : index
    %c0_19 = arith.constant 0 : index
    %43 = vector.load %arg9[%c0_18, %c0_19] : memref<64x128xbf16, #tpu.memory_space<vmem>>, vector<64x128xbf16>
    %44 = arith.truncf %42 : vector<128x320xf32> to vector<128x320xbf16>
    %cst_20 = arith.constant dense<0.000000e+00> : vector<64x320xf32>
    %45 = tpu.matmul %43, %44, %cst_20 {dimension_numbers = #tpu.dot_dimension_numbers<[1], [0], [0], [1], [0, 0, 1, 1], [], []>} : vector<64x128xbf16>, vector<128x320xbf16>, vector<64x320xf32> -> vector<64x320xf32>
    %c0_21 = arith.constant 0 : index
    %c0_22 = arith.constant 0 : index
    %46 = vector.load %arg8[%c0_21, %c0_22] : memref<1x320xf32, #tpu.memory_space<vmem>>, vector<1x320xf32>
    %47 = vector.broadcast %46 : vector<1x320xf32> to vector<64x320xf32>
    %48 = arith.addf %45, %47 : vector<64x320xf32>
    %cst_23 = arith.constant 0.000000e+00 : f32
    %49 = vector.broadcast %cst_23 : f32 to vector<64x320xf32>
    %50 = arith.maximumf %48, %49 : vector<64x320xf32>
    %51 = vector.extract_strided_slice %50 {offsets = [1, 0], sizes = [63, 320], strides = [1, 1]} : vector<64x320xf32> to vector<63x320xf32>
    %52 = vector.extract_strided_slice %50 {offsets = [0, 0], sizes = [1, 320], strides = [1, 1]} : vector<64x320xf32> to vector<1x320xf32>
    %53 = tpu.concatenate %51, %52 in 0 : vector<63x320xf32>, vector<1x320xf32> -> vector<64x320xf32>
    %54 = vector.extract_strided_slice %50 {offsets = [2, 0], sizes = [62, 320], strides = [1, 1]} : vector<64x320xf32> to vector<62x320xf32>
    %55 = vector.extract_strided_slice %50 {offsets = [0, 0], sizes = [2, 320], strides = [1, 1]} : vector<64x320xf32> to vector<2x320xf32>
    %56 = tpu.concatenate %54, %55 in 0 : vector<62x320xf32>, vector<2x320xf32> -> vector<64x320xf32>
    %57 = vector.extract_strided_slice %50 {offsets = [3, 0], sizes = [61, 320], strides = [1, 1]} : vector<64x320xf32> to vector<61x320xf32>
    %58 = vector.extract_strided_slice %50 {offsets = [0, 0], sizes = [3, 320], strides = [1, 1]} : vector<64x320xf32> to vector<3x320xf32>
    %59 = tpu.concatenate %57, %58 in 0 : vector<61x320xf32>, vector<3x320xf32> -> vector<64x320xf32>
    %60 = vector.extract_strided_slice %50 {offsets = [4, 0], sizes = [60, 320], strides = [1, 1]} : vector<64x320xf32> to vector<60x320xf32>
    %61 = vector.extract_strided_slice %50 {offsets = [0, 0], sizes = [4, 320], strides = [1, 1]} : vector<64x320xf32> to vector<4x320xf32>
    %62 = tpu.concatenate %60, %61 in 0 : vector<60x320xf32>, vector<4x320xf32> -> vector<64x320xf32>
    %63 = tpu.concatenate %50, %53, %56, %59, %62 in 1 : vector<64x320xf32>, vector<64x320xf32>, vector<64x320xf32>, vector<64x320xf32>, vector<64x320xf32> -> vector<64x1600xf32>
    %64 = arith.truncf %63 : vector<64x1600xf32> to vector<64x1600xbf16>
    %c0_24 = arith.constant 0 : index
    %c0_25 = arith.constant 0 : index
    %65 = vector.load %arg10[%c0_24, %c0_25] : memref<8x64xbf16, #tpu.memory_space<vmem>>, vector<8x64xbf16>
    %cst_26 = arith.constant dense<0.000000e+00> : vector<8x1600xf32>
    %66 = tpu.matmul %65, %64, %cst_26 {dimension_numbers = #tpu.dot_dimension_numbers<[1], [0], [0], [1], [0, 0, 1, 1], [], []>} : vector<8x64xbf16>, vector<64x1600xbf16>, vector<8x1600xf32> -> vector<8x1600xf32>
    %67 = arith.truncf %66 : vector<8x1600xf32> to vector<8x1600xbf16>
    %c0_27 = arith.constant 0 : index
    %c0_28 = arith.constant 0 : index
    %68 = vector.load %arg11[%c0_27, %c0_28] : memref<1600x128xbf16, #tpu.memory_space<vmem>>, vector<1600x128xbf16>
    %cst_29 = arith.constant dense<0.000000e+00> : vector<8x128xf32>
    %69 = tpu.matmul %67, %68, %cst_29 {dimension_numbers = #tpu.dot_dimension_numbers<[1], [0], [0], [1], [0, 0, 1, 1], [], []>} : vector<8x1600xbf16>, vector<1600x128xbf16>, vector<8x128xf32> -> vector<8x128xf32>
    %c0_30 = arith.constant 0 : index
    %c0_31 = arith.constant 0 : index
    %70 = vector.load %arg12[%c0_30, %c0_31] : memref<1x128xf32, #tpu.memory_space<vmem>>, vector<1x128xf32>
    %71 = vector.broadcast %70 : vector<1x128xf32> to vector<8x128xf32>
    %72 = arith.addf %69, %71 : vector<8x128xf32>
    %cst_32 = arith.constant 0.000000e+00 : f32
    %73 = vector.broadcast %cst_32 : f32 to vector<8x128xf32>
    %74 = arith.maximumf %72, %73 : vector<8x128xf32>
    %75 = arith.truncf %74 : vector<8x128xf32> to vector<8x128xbf16>
    %c0_33 = arith.constant 0 : index
    %c0_34 = arith.constant 0 : index
    %76 = vector.load %arg13[%c0_33, %c0_34] : memref<128x128xbf16, #tpu.memory_space<vmem>>, vector<128x128xbf16>
    %cst_35 = arith.constant dense<0.000000e+00> : vector<8x128xf32>
    %77 = tpu.matmul %75, %76, %cst_35 {dimension_numbers = #tpu.dot_dimension_numbers<[1], [0], [0], [1], [0, 0, 1, 1], [], []>} : vector<8x128xbf16>, vector<128x128xbf16>, vector<8x128xf32> -> vector<8x128xf32>
    %c0_36 = arith.constant 0 : index
    %c0_37 = arith.constant 0 : index
    %78 = vector.load %arg14[%c0_36, %c0_37] : memref<1x128xf32, #tpu.memory_space<vmem>>, vector<1x128xf32>
    %79 = vector.broadcast %78 : vector<1x128xf32> to vector<8x128xf32>
    %80 = arith.addf %77, %79 : vector<8x128xf32>
    %c0_38 = arith.constant 0 : index
    %c0_39 = arith.constant 0 : index
    %81 = vector.load %arg15[%c0_38, %c0_39] : memref<8x128xf32, #tpu.memory_space<vmem>>, vector<8x128xf32>
    tpu.vector_store %arg15[%c0_38, %c0_39], %80 {strides = array<i32>} : memref<8x128xf32, #tpu.memory_space<vmem>>, vector<8x128xf32>,
    return
  }
  func.func @transform_0(%arg0: i32) -> (i32, i32) {
    %c0_i32 = arith.constant 0 : i32
    %c0_i32_0 = arith.constant 0 : i32
    return %arg0, %c0_i32 : i32, i32
  }
  func.func @transform_1(%arg0: i32) -> (i32, i32) {
    %c0_i32 = arith.constant 0 : i32
    %c0_i32_0 = arith.constant 0 : i32
    %c0_i32_1 = arith.constant 0 : i32
    return %c0_i32, %c0_i32_0 : i32, i32
  }
  func.func @transform_2(%arg0: i32) -> (i32, i32) {
    %c0_i32 = arith.constant 0 : i32
    %c0_i32_0 = arith.constant 0 : i32
    %c0_i32_1 = arith.constant 0 : i32
    return %c0_i32, %c0_i32_0 : i32, i32
  }
  func.func @transform_3(%arg0: i32) -> (i32, i32) {
    %c0_i32 = arith.constant 0 : i32
    %c0_i32_0 = arith.constant 0 : i32
    %c0_i32_1 = arith.constant 0 : i32
    return %c0_i32, %c0_i32_0 : i32, i32
  }
  func.func @transform_4(%arg0: i32) -> (i32, i32) {
    %c0_i32 = arith.constant 0 : i32
    %c0_i32_0 = arith.constant 0 : i32
    %c0_i32_1 = arith.constant 0 : i32
    return %c0_i32, %c0_i32_0 : i32, i32
  }
  func.func @transform_5(%arg0: i32) -> (i32, i32) {
    %c0_i32 = arith.constant 0 : i32
    %c0_i32_0 = arith.constant 0 : i32
    %c0_i32_1 = arith.constant 0 : i32
    return %c0_i32, %c0_i32_0 : i32, i32
  }
  func.func @transform_6(%arg0: i32) -> (i32, i32) {
    %c0_i32 = arith.constant 0 : i32
    %c0_i32_0 = arith.constant 0 : i32
    %c0_i32_1 = arith.constant 0 : i32
    return %c0_i32, %c0_i32_0 : i32, i32
  }
  func.func @transform_7(%arg0: i32) -> (i32, i32) {
    %c0_i32 = arith.constant 0 : i32
    %c0_i32_0 = arith.constant 0 : i32
    %c0_i32_1 = arith.constant 0 : i32
    return %c0_i32, %c0_i32_0 : i32, i32
  }
  func.func @transform_8(%arg0: i32) -> (i32, i32) {
    %c0_i32 = arith.constant 0 : i32
    %c0_i32_0 = arith.constant 0 : i32
    %c0_i32_1 = arith.constant 0 : i32
    return %c0_i32, %c0_i32_0 : i32, i32
  }
  func.func @transform_9(%arg0: i32) -> (i32, i32) {
    %c0_i32 = arith.constant 0 : i32
    %c0_i32_0 = arith.constant 0 : i32
    %c0_i32_1 = arith.constant 0 : i32
    return %c0_i32, %c0_i32_0 : i32, i32
  }
  func.func @transform_10(%arg0: i32) -> (i32, i32) {
    %c0_i32 = arith.constant 0 : i32
    %c0_i32_0 = arith.constant 0 : i32
    %c0_i32_1 = arith.constant 0 : i32
    return %c0_i32, %c0_i32_0 : i32, i32
  }
  func.func @transform_11(%arg0: i32) -> (i32, i32) {
    %c0_i32 = arith.constant 0 : i32
    %c0_i32_0 = arith.constant 0 : i32
    %c0_i32_1 = arith.constant 0 : i32
    return %c0_i32, %c0_i32_0 : i32, i32
  }
  func.func @transform_12(%arg0: i32) -> (i32, i32) {
    %c0_i32 = arith.constant 0 : i32
    %c0_i32_0 = arith.constant 0 : i32
    %c0_i32_1 = arith.constant 0 : i32
    return %c0_i32, %c0_i32_0 : i32, i32
  }
  func.func @transform_13(%arg0: i32) -> (i32, i32) {
    %c0_i32 = arith.constant 0 : i32
    %c0_i32_0 = arith.constant 0 : i32
    %c0_i32_1 = arith.constant 0 : i32
    return %c0_i32, %c0_i32_0 : i32, i32
  }
  func.func @transform_14(%arg0: i32) -> (i32, i32) {
    %c0_i32 = arith.constant 0 : i32
    %c0_i32_0 = arith.constant 0 : i32
    return %arg0, %c0_i32 : i32, i32
  }
}

</mosaic_0001>

<llo_original>
// kernel: simple_cnn_forward.1
$region0: #{simple_cnn_forward.1}
  #allocation0 [shape = 'u32[]', space=smem, size = 0x4, offset = 0x4, fixed_abs, tag = 'smem constant byte address 0x4 - core index']
  #allocation1 [shape = 'u32[144,128]{1,0:T(1,128)}', space=vmem, size = 0x12000, scoped, tag = 'internal scratch']
  %s0 = inlined_call_operand.vmem [shape: f32[256,28], index: 0, kind: input, shape index: {}]
  %s1 = inlined_call_operand.vmem [shape: bf16[84,416], index: 1, kind: input, shape index: {}]
  %s2 = inlined_call_operand.vmem [shape: bf16[84,416], index: 2, kind: input, shape index: {}]
  %s3 = inlined_call_operand.vmem [shape: f32[1,416], index: 3, kind: input, shape index: {}]
  %s4 = inlined_call_operand.vmem [shape: bf16[128,256], index: 4, kind: input, shape index: {}]
  %s5 = inlined_call_operand.vmem [shape: bf16[1248,320], index: 5, kind: input, shape index: {}]
  %s6 = inlined_call_operand.vmem [shape: bf16[1248,320], index: 6, kind: input, shape index: {}]
  %s7 = inlined_call_operand.vmem [shape: f32[1,320], index: 7, kind: input, shape index: {}]
  %s8 = inlined_call_operand.vmem [shape: bf16[64,128], index: 8, kind: input, shape index: {}]
  %s9 = inlined_call_operand.vmem [shape: bf16[8,64], index: 9, kind: input, shape index: {}]
  %s10 = inlined_call_operand.vmem [shape: bf16[1600,128], index: 10, kind: input, shape index: {}]
  %s11 = inlined_call_operand.vmem [shape: f32[1,128], index: 11, kind: input, shape index: {}]
  %s12 = inlined_call_operand.vmem [shape: bf16[128,128], index: 12, kind: input, shape index: {}]
  %s13 = inlined_call_operand.vmem [shape: f32[1,128], index: 13, kind: input, shape index: {}]
  %s14 = inlined_call_operand.vmem [shape: f32[8,128], index: 14, kind: output, shape index: {}]
  %s15 = sld [smem:[#allocation0]]
  $region66: #{simple_cnn_forward.1} parent=0
    _
  %s17 = ssub.s32 1, %s15
  %s18 = scalar_select 0, %s17, %s15
  // Predicated region
  $region2: #{simple_cnn_forward.1} parent=0 // pred_check
    _
  $region3: #{simple_cnn_forward.1} parent=0 // pred_check_branch
    %20 = sbr.rel (0) target = $region5
  $region4: #{simple_cnn_forward.1} parent=0 // pred_region
    _
  $region5: #{simple_cnn_forward.1} parent=0 // pred_fallthru
    _
  // Predicated region
  $region6: #{simple_cnn_forward.1} parent=0 // pred_check
    _
  $region7: #{simple_cnn_forward.1} parent=0 // pred_check_branch
    %22 = sbr.rel (0) target = $region9
  $region8: #{simple_cnn_forward.1} parent=0 // pred_region
    _
  $region9: #{simple_cnn_forward.1} parent=0 // pred_fallthru
    _
  // Predicated region
  $region10: #{simple_cnn_forward.1} parent=0 // pred_check
    _
  $region11: #{simple_cnn_forward.1} parent=0 // pred_check_branch
    %24 = sbr.rel (0) target = $region13
  $region12: #{simple_cnn_forward.1} parent=0 // pred_region
    _
  $region13: #{simple_cnn_forward.1} parent=0 // pred_fallthru
    _
  // Predicated region
  $region14: #{simple_cnn_forward.1} parent=0 // pred_check
    _
  $region15: #{simple_cnn_forward.1} parent=0 // pred_check_branch
    %26 = sbr.rel (0) target = $region17
  $region16: #{simple_cnn_forward.1} parent=0 // pred_region
    _
  $region17: #{simple_cnn_forward.1} parent=0 // pred_fallthru
    _
  // Predicated region
  $region18: #{simple_cnn_forward.1} parent=0 // pred_check
    _
  $region19: #{simple_cnn_forward.1} parent=0 // pred_check_branch
    %28 = sbr.rel (0) target = $region21
  $region20: #{simple_cnn_forward.1} parent=0 // pred_region
    _
  $region21: #{simple_cnn_forward.1} parent=0 // pred_fallthru
    _
  // Predicated region
  $region22: #{simple_cnn_forward.1} parent=0 // pred_check
    _
  $region23: #{simple_cnn_forward.1} parent=0 // pred_check_branch
    %30 = sbr.rel (0) target = $region25
  $region24: #{simple_cnn_forward.1} parent=0 // pred_region
    _
  $region25: #{simple_cnn_forward.1} parent=0 // pred_fallthru
    _
  // Predicated region
  $region26: #{simple_cnn_forward.1} parent=0 // pred_check
    _
  $region27: #{simple_cnn_forward.1} parent=0 // pred_check_branch
    %32 = sbr.rel (0) target = $region29
  $region28: #{simple_cnn_forward.1} parent=0 // pred_region
    _
  $region29: #{simple_cnn_forward.1} parent=0 // pred_fallthru
    _
  // Predicated region
  $region30: #{simple_cnn_forward.1} parent=0 // pred_check
    _
  $region31: #{simple_cnn_forward.1} parent=0 // pred_check_branch
    %34 = sbr.rel (0) target = $region33
  $region32: #{simple_cnn_forward.1} parent=0 // pred_region
    _
  $region33: #{simple_cnn_forward.1} parent=0 // pred_fallthru
    _
  // Predicated region
  $region34: #{simple_cnn_forward.1} parent=0 // pred_check
    _
  $region35: #{simple_cnn_forward.1} parent=0 // pred_check_branch
    %36 = sbr.rel (0) target = $region37
  $region36: #{simple_cnn_forward.1} parent=0 // pred_region
    _
  $region37: #{simple_cnn_forward.1} parent=0 // pred_fallthru
    _
  // Predicated region
  $region38: #{simple_cnn_forward.1} parent=0 // pred_check
    _
  $region39: #{simple_cnn_forward.1} parent=0 // pred_check_branch
    %38 = sbr.rel (0) target = $region41
  $region40: #{simple_cnn_forward.1} parent=0 // pred_region
    _
  $region41: #{simple_cnn_forward.1} parent=0 // pred_fallthru
    _
  // Predicated region
  $region42: #{simple_cnn_forward.1} parent=0 // pred_check
    _
  $region43: #{simple_cnn_forward.1} parent=0 // pred_check_branch
    %40 = sbr.rel (0) target = $region45
  $region44: #{simple_cnn_forward.1} parent=0 // pred_region
    _
  $region45: #{simple_cnn_forward.1} parent=0 // pred_fallthru
    _
  // Predicated region
  $region46: #{simple_cnn_forward.1} parent=0 // pred_check
    _
  $region47: #{simple_cnn_forward.1} parent=0 // pred_check_branch
    %42 = sbr.rel (0) target = $region49
  $region48: #{simple_cnn_forward.1} parent=0 // pred_region
    _
  $region49: #{simple_cnn_forward.1} parent=0 // pred_fallthru
    _
  // Predicated region
  $region50: #{simple_cnn_forward.1} parent=0 // pred_check
    _
  $region51: #{simple_cnn_forward.1} parent=0 // pred_check_branch
    %44 = sbr.rel (0) target = $region53
  $region52: #{simple_cnn_forward.1} parent=0 // pred_region
    _
  $region53: #{simple_cnn_forward.1} parent=0 // pred_fallthru
    _
  // Predicated region
  $region54: #{simple_cnn_forward.1} parent=0 // pred_check
    _
  $region55: #{simple_cnn_forward.1} parent=0 // pred_check_branch
    %46 = sbr.rel (0) target = $region57
  $region56: #{simple_cnn_forward.1} parent=0 // pred_region
    _
  $region57: #{simple_cnn_forward.1} parent=0 // pred_fallthru
    _
  %v48 = vld [vmem:[%s0] sm:$0xff]
  %v49 = vld [vmem:[%s0 + $0x8] sm:$0xff]
  %v50 = vld [vmem:[%s0 + $0x10] sm:$0xff]
  %v51 = vld [vmem:[%s0 + $0x18] sm:$0xff]
  %v52 = vld [vmem:[%s0 + $0x20] sm:$0xff]
  %v53 = vld [vmem:[%s0 + $0x28] sm:$0xff]
  %v54 = vld [vmem:[%s0 + $0x30] sm:$0xff]
  %v55 = vld [vmem:[%s0 + $0x38] sm:$0xff]
  %v56 = vld [vmem:[%s0 + $0x40] sm:$0xff]
  %v57 = vld [vmem:[%s0 + $0x48] sm:$0xff]
  %v58 = vld [vmem:[%s0 + $0x50] sm:$0xff]
  %v59 = vld [vmem:[%s0 + $0x58] sm:$0xff]
  %v60 = vld [vmem:[%s0 + $0x60] sm:$0xff]
  %v61 = vld [vmem:[%s0 + $0x68] sm:$0xff]
  %v62 = vld [vmem:[%s0 + $0x70] sm:$0xff]
  %v63 = vld [vmem:[%s0 + $0x78] sm:$0xff]
  %v64 = vld [vmem:[%s0 + $0x80] sm:$0xff]
  %v65 = vld [vmem:[%s0 + $0x88] sm:$0xff]
  %v66 = vld [vmem:[%s0 + $0x90] sm:$0xff]
  %v67 = vld [vmem:[%s0 + $0x98] sm:$0xff]
  %v68 = vld [vmem:[%s0 + $0xa0] sm:$0xff]
  %v69 = vld [vmem:[%s0 + $0xa8] sm:$0xff]
  %v70 = vld [vmem:[%s0 + $0xb0] sm:$0xff]
  %v71 = vld [vmem:[%s0 + $0xb8] sm:$0xff]
  %v72 = vld [vmem:[%s0 + $0xc0] sm:$0xff]
  %v73 = vld [vmem:[%s0 + $0xc8] sm:$0xff]
  %v74 = vld [vmem:[%s0 + $0xd0] sm:$0xff]
  %v75 = vld [vmem:[%s0 + $0xd8] sm:$0xff]
  %v76 = vld [vmem:[%s0 + $0xe0] sm:$0xff]
  %v77 = vld [vmem:[%s0 + $0xe8] sm:$0xff]
  %v78 = vld [vmem:[%s0 + $0xf0] sm:$0xff]
  %v79 = vld [vmem:[%s0 + $0xf8] sm:$0xff]
  %vm112 = vcmask 1046528
  %v113 = vrot.slane %v48, 1
  %v114 = vrot.slane %v49, 1
  %v115 = vsel %vm112, %v113, %v114
  %v116 = vrot.slane %v50, 1
  %v117 = vsel %vm112, %v114, %v116
  %v118 = vrot.slane %v51, 1
  %v119 = vsel %vm112, %v116, %v118
  %v120 = vrot.slane %v52, 1
  %v121 = vsel %vm112, %v118, %v120
  %v122 = vrot.slane %v53, 1
  %v123 = vsel %vm112, %v120, %v122
  %v124 = vrot.slane %v54, 1
  %v125 = vsel %vm112, %v122, %v124
  %v126 = vrot.slane %v55, 1
  %v127 = vsel %vm112, %v124, %v126
  %v128 = vrot.slane %v56, 1
  %v129 = vsel %vm112, %v126, %v128
  %v130 = vrot.slane %v57, 1
  %v131 = vsel %vm112, %v128, %v130
  %v132 = vrot.slane %v58, 1
  %v133 = vsel %vm112, %v130, %v132
  %v134 = vrot.slane %v59, 1
  %v135 = vsel %vm112, %v132, %v134
  %v136 = vrot.slane %v60, 1
  %v137 = vsel %vm112, %v134, %v136
  %v138 = vrot.slane %v61, 1
  %v139 = vsel %vm112, %v136, %v138
  %v140 = vrot.slane %v62, 1
  %v141 = vsel %vm112, %v138, %v140
  %v142 = vrot.slane %v63, 1
  %v143 = vsel %vm112, %v140, %v142
  %v144 = vrot.slane %v64, 1
  %v145 = vsel %vm112, %v142, %v144
  %v146 = vrot.slane %v65, 1
  %v147 = vsel %vm112, %v144, %v146
  %v148 = vrot.slane %v66, 1
  %v149 = vsel %vm112, %v146, %v148
  %v150 = vrot.slane %v67, 1
  %v151 = vsel %vm112, %v148, %v150
  %v152 = vrot.slane %v68, 1
  %v153 = vsel %vm112, %v150, %v152
  %v154 = vrot.slane %v69, 1
  %v155 = vsel %vm112, %v152, %v154
  %v156 = vrot.slane %v70, 1
  %v157 = vsel %vm112, %v154, %v156
  %v158 = vrot.slane %v71, 1
  %v159 = vsel %vm112, %v156, %v158
  %v160 = vrot.slane %v72, 1
  %v161 = vsel %vm112, %v158, %v160
  %v162 = vrot.slane %v73, 1
  %v163 = vsel %vm112, %v160, %v162
  %v164 = vrot.slane %v74, 1
  %v165 = vsel %vm112, %v162, %v164
  %v166 = vrot.slane %v75, 1
  %v167 = vsel %vm112, %v164, %v166
  %v168 = vrot.slane %v76, 1
  %v169 = vsel %vm112, %v166, %v168
  %v170 = vrot.slane %v77, 1
  %v171 = vsel %vm112, %v168, %v170
  %v172 = vrot.slane %v78, 1
  %v173 = vsel %vm112, %v170, %v172
  %v174 = vrot.slane %v79, 1
  %v175 = vsel %vm112, %v172, %v174
  %v178 = vsel %vm112, %v174, %v113
  %vm179 = vcmask 1045504
  %v180 = vrot.slane %v48, 2
  %v181 = vrot.slane %v49, 2
  %v182 = vsel %vm179, %v180, %v181
  %v183 = vrot.slane %v50, 2
  %v184 = vsel %vm179, %v181, %v183
  %v185 = vrot.slane %v51, 2
  %v186 = vsel %vm179, %v183, %v185
  %v187 = vrot.slane %v52, 2
  %v188 = vsel %vm179, %v185, %v187
  %v189 = vrot.slane %v53, 2
  %v190 = vsel %vm179, %v187, %v189
  %v191 = vrot.slane %v54, 2
  %v192 = vsel %vm179, %v189, %v191
  %v193 = vrot.slane %v55, 2
  %v194 = vsel %vm179, %v191, %v193
  %v195 = vrot.slane %v56, 2
  %v196 = vsel %vm179, %v193, %v195
  %v197 = vrot.slane %v57, 2
  %v198 = vsel %vm179, %v195, %v197
  %v199 = vrot.slane %v58, 2
  %v200 = vsel %vm179, %v197, %v199
  %v201 = vrot.slane %v59, 2
  %v202 = vsel %vm179, %v199, %v201
  %v203 = vrot.slane %v60, 2
  %v204 = vsel %vm179, %v201, %v203
  %v205 = vrot.slane %v61, 2
  %v206 = vsel %vm179, %v203, %v205
  %v207 = vrot.slane %v62, 2
  %v208 = vsel %vm179, %v205, %v207
  %v209 = vrot.slane %v63, 2
  %v210 = vsel %vm179, %v207, %v209
  %v211 = vrot.slane %v64, 2
  %v212 = vsel %vm179, %v209, %v211
  %v213 = vrot.slane %v65, 2
  %v214 = vsel %vm179, %v211, %v213
  %v215 = vrot.slane %v66, 2
  %v216 = vsel %vm179, %v213, %v215
  %v217 = vrot.slane %v67, 2
  %v218 = vsel %vm179, %v215, %v217
  %v219 = vrot.slane %v68, 2
  %v220 = vsel %vm179, %v217, %v219
  %v221 = vrot.slane %v69, 2
  %v222 = vsel %vm179, %v219, %v221
  %v223 = vrot.slane %v70, 2
  %v224 = vsel %vm179, %v221, %v223
  %v225 = vrot.slane %v71, 2
  %v226 = vsel %vm179, %v223, %v225
  %v227 = vrot.slane %v72, 2
  %v228 = vsel %vm179, %v225, %v227
  %v229 = vrot.slane %v73, 2
  %v230 = vsel %vm179, %v227, %v229
  %v231 = vrot.slane %v74, 2
  %v232 = vsel %vm179, %v229, %v231
  %v233 = vrot.slane %v75, 2
  %v234 = vsel %vm179, %v231, %v233
  %v235 = vrot.slane %v76, 2
  %v236 = vsel %vm179, %v233, %v235
  %v237 = vrot.slane %v77, 2
  %v238 = vsel %vm179, %v235, %v237
  %v239 = vrot.slane %v78, 2
  %v240 = vsel %vm179, %v237, %v239
  %v241 = vrot.slane %v79, 2
  %v242 = vsel %vm179, %v239, %v241
  %v245 = vsel %vm179, %v241, %v180
  %247 = vrot.lane.b32.xlu0 %v115, 28
  %v248 = vpop.permute.xlu0 %247
  %249 = vrot.lane.b32.xlu0 %v117, 28
  %v250 = vpop.permute.xlu0 %249
  %251 = vrot.lane.b32.xlu0 %v119, 28
  %v252 = vpop.permute.xlu0 %251
  %253 = vrot.lane.b32.xlu0 %v121, 28
  %v254 = vpop.permute.xlu0 %253
  %255 = vrot.lane.b32.xlu0 %v123, 28
  %v256 = vpop.permute.xlu0 %255
  %257 = vrot.lane.b32.xlu0 %v125, 28
  %v258 = vpop.permute.xlu0 %257
  %259 = vrot.lane.b32.xlu0 %v127, 28
  %v260 = vpop.permute.xlu0 %259
  %261 = vrot.lane.b32.xlu0 %v129, 28
  %v262 = vpop.permute.xlu0 %261
  %263 = vrot.lane.b32.xlu0 %v131, 28
  %v264 = vpop.permute.xlu0 %263
  %265 = vrot.lane.b32.xlu0 %v133, 28
  %v266 = vpop.permute.xlu0 %265
  %267 = vrot.lane.b32.xlu0 %v135, 28
  %v268 = vpop.permute.xlu0 %267
  %269 = vrot.lane.b32.xlu0 %v137, 28
  %v270 = vpop.permute.xlu0 %269
  %271 = vrot.lane.b32.xlu0 %v139, 28
  %v272 = vpop.permute.xlu0 %271
  %273 = vrot.lane.b32.xlu0 %v141, 28
  %v274 = vpop.permute.xlu0 %273
  %275 = vrot.lane.b32.xlu0 %v143, 28
  %v276 = vpop.permute.xlu0 %275
  %277 = vrot.lane.b32.xlu0 %v145, 28
  %v278 = vpop.permute.xlu0 %277
  %279 = vrot.lane.b32.xlu0 %v147, 28
  %v280 = vpop.permute.xlu0 %279
  %281 = vrot.lane.b32.xlu0 %v149, 28
  %v282 = vpop.permute.xlu0 %281
  %283 = vrot.lane.b32.xlu0 %v151, 28
  %v284 = vpop.permute.xlu0 %283
  %285 = vrot.lane.b32.xlu0 %v153, 28
  %v286 = vpop.permute.xlu0 %285
  %287 = vrot.lane.b32.xlu0 %v155, 28
  %v288 = vpop.permute.xlu0 %287
  %289 = vrot.lane.b32.xlu0 %v157, 28
  %v290 = vpop.permute.xlu0 %289
  %291 = vrot.lane.b32.xlu0 %v159, 28
  %v292 = vpop.permute.xlu0 %291
  %293 = vrot.lane.b32.xlu0 %v161, 28
  %v294 = vpop.permute.xlu0 %293
  %295 = vrot.lane.b32.xlu0 %v163, 28
  %v296 = vpop.permute.xlu0 %295
  %297 = vrot.lane.b32.xlu0 %v165, 28
  %v298 = vpop.permute.xlu0 %297
  %299 = vrot.lane.b32.xlu0 %v167, 28
  %v300 = vpop.permute.xlu0 %299
  %301 = vrot.lane.b32.xlu0 %v169, 28
  %v302 = vpop.permute.xlu0 %301
  %303 = vrot.lane.b32.xlu0 %v171, 28
  %v304 = vpop.permute.xlu0 %303
  %305 = vrot.lane.b32.xlu0 %v173, 28
  %v306 = vpop.permute.xlu0 %305
  %307 = vrot.lane.b32.xlu0 %v175, 28
  %v308 = vpop.permute.xlu0 %307
  %309 = vrot.lane.b32.xlu0 %v178, 28
  %v310 = vpop.permute.xlu0 %309
  %344 = vrot.lane.b32.xlu0 %v182, 56
  %v345 = vpop.permute.xlu0 %344
  %346 = vrot.lane.b32.xlu0 %v184, 56
  %v347 = vpop.permute.xlu0 %346
  %348 = vrot.lane.b32.xlu0 %v186, 56
  %v349 = vpop.permute.xlu0 %348
  %350 = vrot.lane.b32.xlu0 %v188, 56
  %v351 = vpop.permute.xlu0 %350
  %352 = vrot.lane.b32.xlu0 %v190, 56
  %v353 = vpop.permute.xlu0 %352
  %354 = vrot.lane.b32.xlu0 %v192, 56
  %v355 = vpop.permute.xlu0 %354
  %356 = vrot.lane.b32.xlu0 %v194, 56
  %v357 = vpop.permute.xlu0 %356
  %358 = vrot.lane.b32.xlu0 %v196, 56
  %v359 = vpop.permute.xlu0 %358
  %360 = vrot.lane.b32.xlu0 %v198, 56
  %v361 = vpop.permute.xlu0 %360
  %362 = vrot.lane.b32.xlu0 %v200, 56
  %v363 = vpop.permute.xlu0 %362
  %364 = vrot.lane.b32.xlu0 %v202, 56
  %v365 = vpop.permute.xlu0 %364
  %366 = vrot.lane.b32.xlu0 %v204, 56
  %v367 = vpop.permute.xlu0 %366
  %368 = vrot.lane.b32.xlu0 %v206, 56
  %v369 = vpop.permute.xlu0 %368
  %370 = vrot.lane.b32.xlu0 %v208, 56
  %v371 = vpop.permute.xlu0 %370
  %372 = vrot.lane.b32.xlu0 %v210, 56
  %v373 = vpop.permute.xlu0 %372
  %374 = vrot.lane.b32.xlu0 %v212, 56
  %v375 = vpop.permute.xlu0 %374
  %376 = vrot.lane.b32.xlu0 %v214, 56
  %v377 = vpop.permute.xlu0 %376
  %378 = vrot.lane.b32.xlu0 %v216, 56
  %v379 = vpop.permute.xlu0 %378
  %380 = vrot.lane.b32.xlu0 %v218, 56
  %v381 = vpop.permute.xlu0 %380
  %382 = vrot.lane.b32.xlu0 %v220, 56
  %v383 = vpop.permute.xlu0 %382
  %384 = vrot.lane.b32.xlu0 %v222, 56
  %v385 = vpop.permute.xlu0 %384
  %386 = vrot.lane.b32.xlu0 %v224, 56
  %v387 = vpop.permute.xlu0 %386
  %388 = vrot.lane.b32.xlu0 %v226, 56
  %v389 = vpop.permute.xlu0 %388
  %390 = vrot.lane.b32.xlu0 %v228, 56
  %v391 = vpop.permute.xlu0 %390
  %392 = vrot.lane.b32.xlu0 %v230, 56
  %v393 = vpop.permute.xlu0 %392
  %394 = vrot.lane.b32.xlu0 %v232, 56
  %v395 = vpop.permute.xlu0 %394
  %396 = vrot.lane.b32.xlu0 %v234, 56
  %v397 = vpop.permute.xlu0 %396
  %398 = vrot.lane.b32.xlu0 %v236, 56
  %v399 = vpop.permute.xlu0 %398
  %400 = vrot.lane.b32.xlu0 %v238, 56
  %v401 = vpop.permute.xlu0 %400
  %402 = vrot.lane.b32.xlu0 %v240, 56
  %v403 = vpop.permute.xlu0 %402
  %404 = vrot.lane.b32.xlu0 %v242, 56
  %v405 = vpop.permute.xlu0 %404
  %406 = vrot.lane.b32.xlu0 %v245, 56
  %v407 = vpop.permute.xlu0 %406
  %vm440 = vcmask 228352
  %v441 = vsel %vm440, %v48, %v248
  %v442 = vsel %vm440, %v49, %v250
  %v443 = vsel %vm440, %v50, %v252
  %v444 = vsel %vm440, %v51, %v254
  %v445 = vsel %vm440, %v52, %v256
  %v446 = vsel %vm440, %v53, %v258
  %v447 = vsel %vm440, %v54, %v260
  %v448 = vsel %vm440, %v55, %v262
  %v449 = vsel %vm440, %v56, %v264
  %v450 = vsel %vm440, %v57, %v266
  %v451 = vsel %vm440, %v58, %v268
  %v452 = vsel %vm440, %v59, %v270
  %v453 = vsel %vm440, %v60, %v272
  %v454 = vsel %vm440, %v61, %v274
  %v455 = vsel %vm440, %v62, %v276
  %v456 = vsel %vm440, %v63, %v278
  %v457 = vsel %vm440, %v64, %v280
  %v458 = vsel %vm440, %v65, %v282
  %v459 = vsel %vm440, %v66, %v284
  %v460 = vsel %vm440, %v67, %v286
  %v461 = vsel %vm440, %v68, %v288
  %v462 = vsel %vm440, %v69, %v290
  %v463 = vsel %vm440, %v70, %v292
  %v464 = vsel %vm440, %v71, %v294
  %v465 = vsel %vm440, %v72, %v296
  %v466 = vsel %vm440, %v73, %v298
  %v467 = vsel %vm440, %v74, %v300
  %v468 = vsel %vm440, %v75, %v302
  %v469 = vsel %vm440, %v76, %v304
  %v470 = vsel %vm440, %v77, %v306
  %v471 = vsel %vm440, %v78, %v308
  %v472 = vsel %vm440, %v79, %v310
  %vm473 = vcmask 457728
  %v474 = vsel %vm473, %v441, %v345
  %v475 = vsel %vm473, %v442, %v347
  %v476 = vsel %vm473, %v443, %v349
  %v477 = vsel %vm473, %v444, %v351
  %v478 = vsel %vm473, %v445, %v353
  %v479 = vsel %vm473, %v446, %v355
  %v480 = vsel %vm473, %v447, %v357
  %v481 = vsel %vm473, %v448, %v359
  %v482 = vsel %vm473, %v449, %v361
  %v483 = vsel %vm473, %v450, %v363
  %v484 = vsel %vm473, %v451, %v365
  %v485 = vsel %vm473, %v452, %v367
  %v486 = vsel %vm473, %v453, %v369
  %v487 = vsel %vm473, %v454, %v371
  %v488 = vsel %vm473, %v455, %v373
  %v489 = vsel %vm473, %v456, %v375
  %v490 = vsel %vm473, %v457, %v377
  %v491 = vsel %vm473, %v458, %v379
  %v492 = vsel %vm473, %v459, %v381
  %v493 = vsel %vm473, %v460, %v383
  %v494 = vsel %vm473, %v461, %v385
  %v495 = vsel %vm473, %v462, %v387
  %v496 = vsel %vm473, %v463, %v389
  %v497 = vsel %vm473, %v464, %v391
  %v498 = vsel %vm473, %v465, %v393
  %v499 = vsel %vm473, %v466, %v395
  %v500 = vsel %vm473, %v467, %v397
  %v501 = vsel %vm473, %v468, %v399
  %v502 = vsel %vm473, %v469, %v401
  %v503 = vsel %vm473, %v470, %v403
  %v504 = vsel %vm473, %v471, %v405
  %v505 = vsel %vm473, %v472, %v407
  %v506 = vpack.c.bf16 %v475, %v474
  %v507 = vpack.c.bf16 %v477, %v476
  %v508 = vpack.c.bf16 %v479, %v478
  %v509 = vpack.c.bf16 %v481, %v480
  %v510 = vpack.c.bf16 %v483, %v482
  %v511 = vpack.c.bf16 %v485, %v484
  %v512 = vpack.c.bf16 %v487, %v486
  %v513 = vpack.c.bf16 %v489, %v488
  %v514 = vpack.c.bf16 %v491, %v490
  %v515 = vpack.c.bf16 %v493, %v492
  %v516 = vpack.c.bf16 %v495, %v494
  %v517 = vpack.c.bf16 %v497, %v496
  %v518 = vpack.c.bf16 %v499, %v498
  %v519 = vpack.c.bf16 %v501, %v500
  %v520 = vpack.c.bf16 %v503, %v502
  %v521 = vpack.c.bf16 %v505, %v504
  %v522 = vld [vmem:[%s1] sm:$0xff]
  %v523 = vld [vmem:[%s1 + $0x8] sm:$0xff]
  %v524 = vld [vmem:[%s1 + $0x10] sm:$0xff]
  %v525 = vld [vmem:[%s1 + $0x18] sm:$0xff]
  %v526 = vld [vmem:[%s1 + $0x20] sm:$0xff]
  %v527 = vld [vmem:[%s1 + $0x28] sm:$0xff]
  %v528 = vld [vmem:[%s1 + $0x30] sm:$0xff]
  %v529 = vld [vmem:[%s1 + $0x38] sm:$0xff]
  %v530 = vld [vmem:[%s1 + $0x40] sm:$0xff]
  %v531 = vld [vmem:[%s1 + $0x48] sm:$0xff]
  %v532 = vld [vmem:[%s1 + $0x50] sm:$0xff]
  %v533 = vld [vmem:[%s1 + $0x58] sm:$0xff]
  %v534 = vld [vmem:[%s1 + $0x60] sm:$0xff]
  %v535 = vld [vmem:[%s1 + $0x68] sm:$0xff]
  %v536 = vld [vmem:[%s1 + $0x70] sm:$0xff]
  %v537 = vld [vmem:[%s1 + $0x78] sm:$0xff]
  %v538 = vld [vmem:[%s1 + $0x80] sm:$0xff]
  %v539 = vld [vmem:[%s1 + $0x88] sm:$0xff]
  %v540 = vld [vmem:[%s1 + $0x90] sm:$0xff]
  %v541 = vld [vmem:[%s1 + $0x98] sm:$0xff]
  %v542 = vld [vmem:[%s1 + $0xa0] sm:$0x33]
  %v543 = vld [vmem:[%s1 + $0xa8] sm:$0x33]
  %v566 = vunpack.c.l.b16 %v522
  %v567 = vunpack.c.h.b16 %v522
  %v568 = vunpack.c.l.b16 %v523
  %v569 = vunpack.c.h.b16 %v523
  %v570 = vunpack.c.l.b16 %v524
  %v571 = vunpack.c.h.b16 %v524
  %v572 = vunpack.c.l.b16 %v525
  %v573 = vunpack.c.h.b16 %v525
  %v574 = vunpack.c.l.b16 %v526
  %v575 = vunpack.c.h.b16 %v526
  %v576 = vunpack.c.l.b16 %v527
  %v577 = vunpack.c.h.b16 %v527
  %v578 = vunpack.c.l.b16 %v528
  %v579 = vunpack.c.h.b16 %v528
  %v580 = vunpack.c.l.b16 %v529
  %v581 = vunpack.c.h.b16 %v529
  %v582 = vunpack.c.l.b16 %v530
  %v583 = vunpack.c.h.b16 %v530
  %v584 = vunpack.c.l.b16 %v531
  %v585 = vunpack.c.h.b16 %v531
  %v586 = vunpack.c.l.b16 %v532
  %v587 = vunpack.c.h.b16 %v532
  %v588 = vunpack.c.l.b16 %v533
  %v589 = vunpack.c.h.b16 %v533
  %v590 = vunpack.c.l.b16 %v534
  %v591 = vunpack.c.h.b16 %v534
  %v592 = vunpack.c.l.b16 %v535
  %v593 = vunpack.c.h.b16 %v535
  %v594 = vunpack.c.l.b16 %v536
  %v595 = vunpack.c.h.b16 %v536
  %v596 = vunpack.c.l.b16 %v537
  %v597 = vunpack.c.h.b16 %v537
  %v598 = vunpack.c.l.b16 %v538
  %v599 = vunpack.c.h.b16 %v538
  %v600 = vunpack.c.l.b16 %v539
  %v601 = vunpack.c.h.b16 %v539
  %v602 = vunpack.c.l.b16 %v540
  %v603 = vunpack.c.h.b16 %v540
  %v604 = vunpack.c.l.b16 %v541
  %v605 = vunpack.c.h.b16 %v541
  %v606 = vunpack.c.l.b16 %v542
  %v607 = vunpack.c.h.b16 %v542
  %v608 = vunpack.c.l.b16 %v543
  %v609 = vunpack.c.h.b16 %v543
  %v610 = vpack.c.b16 %v570, %v566
  %v611 = vpack.c.b16 %v571, %v567
  %v612 = vpack.c.b16 %v572, %v568
  %v613 = vpack.c.b16 %v573, %v569
  %v614 = vpack.c.b16 %v578, %v574
  %v615 = vpack.c.b16 %v579, %v575
  %v616 = vpack.c.b16 %v580, %v576
  %v617 = vpack.c.b16 %v581, %v577
  %v618 = vpack.c.b16 %v586, %v582
  %v619 = vpack.c.b16 %v587, %v583
  %v620 = vpack.c.b16 %v588, %v584
  %v621 = vpack.c.b16 %v589, %v585
  %v622 = vpack.c.b16 %v594, %v590
  %v623 = vpack.c.b16 %v595, %v591
  %v624 = vpack.c.b16 %v596, %v592
  %v625 = vpack.c.b16 %v597, %v593
  %v626 = vpack.c.b16 %v602, %v598
  %v627 = vpack.c.b16 %v603, %v599
  %v628 = vpack.c.b16 %v604, %v600
  %v629 = vpack.c.b16 %v605, %v601
  %v630 = vpack.c.b16 %v606, %v606
  %v631 = vpack.c.b16 %v607, %v607
  %v632 = vpack.c.b16 %v608, %v608
  %v633 = vpack.c.b16 %v609, %v609
  %vm654 = vcmask 687104
  %v656 = vsel %vm654, %v506, 0
  %v659 = vsel %vm654, %v507, 0
  %v662 = vsel %vm654, %v508, 0
  %v665 = vsel %vm654, %v509, 0
  %v668 = vsel %vm654, %v510, 0
  %v671 = vsel %vm654, %v511, 0
  %v674 = vsel %vm654, %v512, 0
  %v677 = vsel %vm654, %v513, 0
  %v680 = vsel %vm654, %v514, 0
  %v683 = vsel %vm654, %v515, 0
  %v686 = vsel %vm654, %v516, 0
  %v689 = vsel %vm654, %v517, 0
  %v692 = vsel %vm654, %v518, 0
  %v695 = vsel %vm654, %v519, 0
  %v698 = vsel %vm654, %v520, 0
  %v701 = vsel %vm654, %v521, 0
  %vm703 = vcmask 1041408
  %v705 = vsel %vm703, %v630, 0
  %v708 = vsel %vm703, %v631, 0
  %v711 = vsel %vm703, %v632, 0
  %v714 = vsel %vm703, %v633, 0
  %716 = vmatprep.subr.bf16.mxu0 %v611
  %717 = vmatpush1.bf16.msra.mxu0 %v610
  %718 = vmatprep.subr.bf16.mxu0 %v615
  %719 = vmatpush1.bf16.msra.mxu0 %v614
  %720 = vmatprep.subr.bf16.mxu0 %v619
  %721 = vmatpush1.bf16.msra.mxu0 %v618
  %722 = vmatprep.subr.bf16.mxu0 %v623
  %723 = vmatpush1.bf16.msra.mxu0 %v622
  %724 = vmatprep.subr.bf16.mxu0 %v627
  %725 = vmatpush1.bf16.msra.mxu0 %v626
  %726 = vmatprep.subr.bf16.mxu0 %v708
  %727 = vmatpush1.bf16.msra.mxu0 %v705
  %728 = vmatprep.subr.bf16.mxu0 0
  %729 = vmatpush1.bf16.msra.mxu0 0
  %730 = vmatprep.subr.bf16.mxu0 0
  %731 = vmatpush1.bf16.msra.mxu0 0
  %732 = vmatprep.subr.bf16.mxu0 0
  %733 = vmatpush1.bf16.msra.mxu0 0
  %734 = vmatprep.subr.bf16.mxu0 0
  %735 = vmatpush1.bf16.msra.mxu0 0
  %736 = vmatprep.subr.bf16.mxu0 0
  %737 = vmatpush1.bf16.msra.mxu0 0
  %738 = vmatprep.subr.bf16.mxu0 0
  %739 = vmatpush1.bf16.msra.mxu0 0
  %740 = vmatprep.subr.bf16.mxu0 0
  %741 = vmatpush1.bf16.msra.mxu0 0
  %742 = vmatprep.subr.bf16.mxu0 0
  %743 = vmatpush1.bf16.msra.mxu0 0
  %744 = vmatprep.subr.bf16.mxu0 0
  %745 = vmatpush1.bf16.msra.mxu0 0
  %746 = vmatprep.subr.bf16.mxu0 0
  %747 = vmatpush1.bf16.msra.mxu0 0
  %748 = vmatprep.mubr.bf16.mxu0 0
  %749 = vmatmul.mubr.bf16.gmra.mrb[0].mxu0 %v656
  %v750 = vpop.f32.mrb[0].mxu0
  %v751 = vadd.f32 0.0, %v750
  %v752 = vpop.f32.mrb[0].mxu0
  %v753 = vadd.f32 0.0, %v752
  %v754 = vpop.f32.mrb[0].mxu0
  %v755 = vadd.f32 0.0, %v754
  %v756 = vpop.f32.mrb[0].mxu0
  %v757 = vadd.f32 0.0, %v756
  %758 = vmatprep.mubr.bf16.mxu0 0
  %759 = vmatmul.mubr.bf16.gmra.mrb[0].mxu0 %v659
  %v760 = vpop.f32.mrb[0].mxu0
  %v761 = vadd.f32 0.0, %v760
  %v762 = vpop.f32.mrb[0].mxu0
  %v763 = vadd.f32 0.0, %v762
  %v764 = vpop.f32.mrb[0].mxu0
  %v765 = vadd.f32 0.0, %v764
  %v766 = vpop.f32.mrb[0].mxu0
  %v767 = vadd.f32 0.0, %v766
  %768 = vmatprep.mubr.bf16.mxu0 0
  %769 = vmatmul.mubr.bf16.gmra.mrb[0].mxu0 %v662
  %v770 = vpop.f32.mrb[0].mxu0
  %v771 = vadd.f32 0.0, %v770
  %v772 = vpop.f32.mrb[0].mxu0
  %v773 = vadd.f32 0.0, %v772
  %v774 = vpop.f32.mrb[0].mxu0
  %v775 = vadd.f32 0.0, %v774
  %v776 = vpop.f32.mrb[0].mxu0
  %v777 = vadd.f32 0.0, %v776
  %778 = vmatprep.mubr.bf16.mxu0 0
  %779 = vmatmul.mubr.bf16.gmra.mrb[0].mxu0 %v665
  %v780 = vpop.f32.mrb[0].mxu0
  %v781 = vadd.f32 0.0, %v780
  %v782 = vpop.f32.mrb[0].mxu0
  %v783 = vadd.f32 0.0, %v782
  %v784 = vpop.f32.mrb[0].mxu0
  %v785 = vadd.f32 0.0, %v784
  %v786 = vpop.f32.mrb[0].mxu0
  %v787 = vadd.f32 0.0, %v786
  %788 = vmatprep.mubr.bf16.mxu0 0
  %789 = vmatmul.mubr.bf16.gmra.mrb[0].mxu0 %v668
  %v790 = vpop.f32.mrb[0].mxu0
  %v791 = vadd.f32 0.0, %v790
  %v792 = vpop.f32.mrb[0].mxu0
  %v793 = vadd.f32 0.0, %v792
  %v794 = vpop.f32.mrb[0].mxu0
  %v795 = vadd.f32 0.0, %v794
  %v796 = vpop.f32.mrb[0].mxu0
  %v797 = vadd.f32 0.0, %v796
  %798 = vmatprep.mubr.bf16.mxu0 0
  %799 = vmatmul.mubr.bf16.gmra.mrb[0].mxu0 %v671
  %v800 = vpop.f32.mrb[0].mxu0
  %v801 = vadd.f32 0.0, %v800
  %v802 = vpop.f32.mrb[0].mxu0
  %v803 = vadd.f32 0.0, %v802
  %v804 = vpop.f32.mrb[0].mxu0
  %v805 = vadd.f32 0.0, %v804
  %v806 = vpop.f32.mrb[0].mxu0
  %v807 = vadd.f32 0.0, %v806
  %808 = vmatprep.mubr.bf16.mxu0 0
  %809 = vmatmul.mubr.bf16.gmra.mrb[0].mxu0 %v674
  %v810 = vpop.f32.mrb[0].mxu0
  %v811 = vadd.f32 0.0, %v810
  %v812 = vpop.f32.mrb[0].mxu0
  %v813 = vadd.f32 0.0, %v812
  %v814 = vpop.f32.mrb[0].mxu0
  %v815 = vadd.f32 0.0, %v814
  %v816 = vpop.f32.mrb[0].mxu0
  %v817 = vadd.f32 0.0, %v816
  %818 = vmatprep.mubr.bf16.mxu0 0
  %819 = vmatmul.mubr.bf16.gmra.mrb[0].mxu0 %v677
  %v820 = vpop.f32.mrb[0].mxu0
  %v821 = vadd.f32 0.0, %v820
  %v822 = vpop.f32.mrb[0].mxu0
  %v823 = vadd.f32 0.0, %v822
  %v824 = vpop.f32.mrb[0].mxu0
  %v825 = vadd.f32 0.0, %v824
  %v826 = vpop.f32.mrb[0].mxu0
  %v827 = vadd.f32 0.0, %v826
  %828 = vmatprep.mubr.bf16.mxu0 0
  %829 = vmatmul.mubr.bf16.gmra.mrb[0].mxu0 %v680
  %v830 = vpop.f32.mrb[0].mxu0
  %v831 = vadd.f32 0.0, %v830
  %v832 = vpop.f32.mrb[0].mxu0
  %v833 = vadd.f32 0.0, %v832
  %v834 = vpop.f32.mrb[0].mxu0
  %v835 = vadd.f32 0.0, %v834
  %v836 = vpop.f32.mrb[0].mxu0
  %v837 = vadd.f32 0.0, %v836
  %838 = vmatprep.mubr.bf16.mxu0 0
  %839 = vmatmul.mubr.bf16.gmra.mrb[0].mxu0 %v683
  %v840 = vpop.f32.mrb[0].mxu0
  %v841 = vadd.f32 0.0, %v840
  %v842 = vpop.f32.mrb[0].mxu0
  %v843 = vadd.f32 0.0, %v842
  %v844 = vpop.f32.mrb[0].mxu0
  %v845 = vadd.f32 0.0, %v844
  %v846 = vpop.f32.mrb[0].mxu0
  %v847 = vadd.f32 0.0, %v846
  %848 = vmatprep.mubr.bf16.mxu0 0
  %849 = vmatmul.mubr.bf16.gmra.mrb[0].mxu0 %v686
  %v850 = vpop.f32.mrb[0].mxu0
  %v851 = vadd.f32 0.0, %v850
  %v852 = vpop.f32.mrb[0].mxu0
  %v853 = vadd.f32 0.0, %v852
  %v854 = vpop.f32.mrb[0].mxu0
  %v855 = vadd.f32 0.0, %v854
  %v856 = vpop.f32.mrb[0].mxu0
  %v857 = vadd.f32 0.0, %v856
  %858 = vmatprep.mubr.bf16.mxu0 0
  %859 = vmatmul.mubr.bf16.gmra.mrb[0].mxu0 %v689
  %v860 = vpop.f32.mrb[0].mxu0
  %v861 = vadd.f32 0.0, %v860
  %v862 = vpop.f32.mrb[0].mxu0
  %v863 = vadd.f32 0.0, %v862
  %v864 = vpop.f32.mrb[0].mxu0
  %v865 = vadd.f32 0.0, %v864
  %v866 = vpop.f32.mrb[0].mxu0
  %v867 = vadd.f32 0.0, %v866
  %868 = vmatprep.mubr.bf16.mxu0 0
  %869 = vmatmul.mubr.bf16.gmra.mrb[0].mxu0 %v692
  %v870 = vpop.f32.mrb[0].mxu0
  %v871 = vadd.f32 0.0, %v870
  %v872 = vpop.f32.mrb[0].mxu0
  %v873 = vadd.f32 0.0, %v872
  %v874 = vpop.f32.mrb[0].mxu0
  %v875 = vadd.f32 0.0, %v874
  %v876 = vpop.f32.mrb[0].mxu0
  %v877 = vadd.f32 0.0, %v876
  %878 = vmatprep.mubr.bf16.mxu0 0
  %879 = vmatmul.mubr.bf16.gmra.mrb[0].mxu0 %v695
  %v880 = vpop.f32.mrb[0].mxu0
  %v881 = vadd.f32 0.0, %v880
  %v882 = vpop.f32.mrb[0].mxu0
  %v883 = vadd.f32 0.0, %v882
  %v884 = vpop.f32.mrb[0].mxu0
  %v885 = vadd.f32 0.0, %v884
  %v886 = vpop.f32.mrb[0].mxu0
  %v887 = vadd.f32 0.0, %v886
  %888 = vmatprep.mubr.bf16.mxu0 0
  %889 = vmatmul.mubr.bf16.gmra.mrb[0].mxu0 %v698
  %v890 = vpop.f32.mrb[0].mxu0
  %v891 = vadd.f32 0.0, %v890
  %v892 = vpop.f32.mrb[0].mxu0
  %v893 = vadd.f32 0.0, %v892
  %v894 = vpop.f32.mrb[0].mxu0
  %v895 = vadd.f32 0.0, %v894
  %v896 = vpop.f32.mrb[0].mxu0
  %v897 = vadd.f32 0.0, %v896
  %898 = vmatprep.mubr.bf16.mxu0 0
  %899 = vmatmul.mubr.bf16.gmra.mrb[0].mxu0 %v701
  %v900 = vpop.f32.mrb[0].mxu0
  %v901 = vadd.f32 0.0, %v900
  %v902 = vpop.f32.mrb[0].mxu0
  %v903 = vadd.f32 0.0, %v902
  %v904 = vpop.f32.mrb[0].mxu0
  %v905 = vadd.f32 0.0, %v904
  %v906 = vpop.f32.mrb[0].mxu0
  %v907 = vadd.f32 0.0, %v906
  %908 = vdwg.mxu0
  %909 = vmatprep.subr.bf16.mxu0 %v613
  %910 = vmatpush1.bf16.msra.mxu0 %v612
  %911 = vmatprep.subr.bf16.mxu0 %v617
  %912 = vmatpush1.bf16.msra.mxu0 %v616
  %913 = vmatprep.subr.bf16.mxu0 %v621
  %914 = vmatpush1.bf16.msra.mxu0 %v620
  %915 = vmatprep.subr.bf16.mxu0 %v625
  %916 = vmatpush1.bf16.msra.mxu0 %v624
  %917 = vmatprep.subr.bf16.mxu0 %v629
  %918 = vmatpush1.bf16.msra.mxu0 %v628
  %919 = vmatprep.subr.bf16.mxu0 %v714
  %920 = vmatpush1.bf16.msra.mxu0 %v711
  %921 = vmatprep.subr.bf16.mxu0 0
  %922 = vmatpush1.bf16.msra.mxu0 0
  %923 = vmatprep.subr.bf16.mxu0 0
  %924 = vmatpush1.bf16.msra.mxu0 0
  %925 = vmatprep.subr.bf16.mxu0 0
  %926 = vmatpush1.bf16.msra.mxu0 0
  %927 = vmatprep.subr.bf16.mxu0 0
  %928 = vmatpush1.bf16.msra.mxu0 0
  %929 = vmatprep.subr.bf16.mxu0 0
  %930 = vmatpush1.bf16.msra.mxu0 0
  %931 = vmatprep.subr.bf16.mxu0 0
  %932 = vmatpush1.bf16.msra.mxu0 0
  %933 = vmatprep.subr.bf16.mxu0 0
  %934 = vmatpush1.bf16.msra.mxu0 0
  %935 = vmatprep.subr.bf16.mxu0 0
  %936 = vmatpush1.bf16.msra.mxu0 0
  %937 = vmatprep.subr.bf16.mxu0 0
  %938 = vmatpush1.bf16.msra.mxu0 0
  %939 = vmatprep.subr.bf16.mxu0 0
  %940 = vmatpush1.bf16.msra.mxu0 0
  %941 = vmatprep.mubr.bf16.mxu0 0
  %942 = vmatmul.mubr.bf16.gmra.mrb[0].mxu0 %v656
  %v943 = vpop.f32.mrb[0].mxu0
  %v944 = vadd.f32 0.0, %v943
  %v945 = vpop.f32.mrb[0].mxu0
  %v946 = vadd.f32 0.0, %v945
  %v947 = vpop.f32.mrb[0].mxu0
  %v948 = vadd.f32 0.0, %v947
  %v949 = vpop.f32.mrb[0].mxu0
  %v950 = vadd.f32 0.0, %v949
  %951 = vmatprep.mubr.bf16.mxu0 0
  %952 = vmatmul.mubr.bf16.gmra.mrb[0].mxu0 %v659
  %v953 = vpop.f32.mrb[0].mxu0
  %v954 = vadd.f32 0.0, %v953
  %v955 = vpop.f32.mrb[0].mxu0
  %v956 = vadd.f32 0.0, %v955
  %v957 = vpop.f32.mrb[0].mxu0
  %v958 = vadd.f32 0.0, %v957
  %v959 = vpop.f32.mrb[0].mxu0
  %v960 = vadd.f32 0.0, %v959
  %961 = vmatprep.mubr.bf16.mxu0 0
  %962 = vmatmul.mubr.bf16.gmra.mrb[0].mxu0 %v662
  %v963 = vpop.f32.mrb[0].mxu0
  %v964 = vadd.f32 0.0, %v963
  %v965 = vpop.f32.mrb[0].mxu0
  %v966 = vadd.f32 0.0, %v965
  %v967 = vpop.f32.mrb[0].mxu0
  %v968 = vadd.f32 0.0, %v967
  %v969 = vpop.f32.mrb[0].mxu0
  %v970 = vadd.f32 0.0, %v969
  %971 = vmatprep.mubr.bf16.mxu0 0
  %972 = vmatmul.mubr.bf16.gmra.mrb[0].mxu0 %v665
  %v973 = vpop.f32.mrb[0].mxu0
  %v974 = vadd.f32 0.0, %v973
  %v975 = vpop.f32.mrb[0].mxu0
  %v976 = vadd.f32 0.0, %v975
  %v977 = vpop.f32.mrb[0].mxu0
  %v978 = vadd.f32 0.0, %v977
  %v979 = vpop.f32.mrb[0].mxu0
  %v980 = vadd.f32 0.0, %v979
  %981 = vmatprep.mubr.bf16.mxu0 0
  %982 = vmatmul.mubr.bf16.gmra.mrb[0].mxu0 %v668
  %v983 = vpop.f32.mrb[0].mxu0
  %v984 = vadd.f32 0.0, %v983
  %v985 = vpop.f32.mrb[0].mxu0
  %v986 = vadd.f32 0.0, %v985
  %v987 = vpop.f32.mrb[0].mxu0
  %v988 = vadd.f32 0.0, %v987
  %v989 = vpop.f32.mrb[0].mxu0
  %v990 = vadd.f32 0.0, %v989
  %991 = vmatprep.mubr.bf16.mxu0 0
  %992 = vmatmul.mubr.bf16.gmra.mrb[0].mxu0 %v671
  %v993 = vpop.f32.mrb[0].mxu0
  %v994 = vadd.f32 0.0, %v993
  %v995 = vpop.f32.mrb[0].mxu0
  %v996 = vadd.f32 0.0, %v995
  %v997 = vpop.f32.mrb[0].mxu0
  %v998 = vadd.f32 0.0, %v997
  %v999 = vpop.f32.mrb[0].mxu0
  %v1000 = vadd.f32 0.0, %v999
  %1001 = vmatprep.mubr.bf16.mxu0 0
  %1002 = vmatmul.mubr.bf16.gmra.mrb[0].mxu0 %v674
  %v1003 = vpop.f32.mrb[0].mxu0
  %v1004 = vadd.f32 0.0, %v1003
  %v1005 = vpop.f32.mrb[0].mxu0
  %v1006 = vadd.f32 0.0, %v1005
  %v1007 = vpop.f32.mrb[0].mxu0
  %v1008 = vadd.f32 0.0, %v1007
  %v1009 = vpop.f32.mrb[0].mxu0
  %v1010 = vadd.f32 0.0, %v1009
  %1011 = vmatprep.mubr.bf16.mxu0 0
  %1012 = vmatmul.mubr.bf16.gmra.mrb[0].mxu0 %v677
  %v1013 = vpop.f32.mrb[0].mxu0
  %v1014 = vadd.f32 0.0, %v1013
  %v1015 = vpop.f32.mrb[0].mxu0
  %v1016 = vadd.f32 0.0, %v1015
  %v1017 = vpop.f32.mrb[0].mxu0
  %v1018 = vadd.f32 0.0, %v1017
  %v1019 = vpop.f32.mrb[0].mxu0
  %v1020 = vadd.f32 0.0, %v1019
  %1021 = vmatprep.mubr.bf16.mxu0 0
  %1022 = vmatmul.mubr.bf16.gmra.mrb[0].mxu0 %v680
  %v1023 = vpop.f32.mrb[0].mxu0
  %v1024 = vadd.f32 0.0, %v1023
  %v1025 = vpop.f32.mrb[0].mxu0
  %v1026 = vadd.f32 0.0, %v1025
  %v1027 = vpop.f32.mrb[0].mxu0
  %v1028 = vadd.f32 0.0, %v1027
  %v1029 = vpop.f32.mrb[0].mxu0
  %v1030 = vadd.f32 0.0, %v1029
  %1031 = vmatprep.mubr.bf16.mxu0 0
  %1032 = vmatmul.mubr.bf16.gmra.mrb[0].mxu0 %v683
  %v1033 = vpop.f32.mrb[0].mxu0
  %v1034 = vadd.f32 0.0, %v1033
  %v1035 = vpop.f32.mrb[0].mxu0
  %v1036 = vadd.f32 0.0, %v1035
  %v1037 = vpop.f32.mrb[0].mxu0
  %v1038 = vadd.f32 0.0, %v1037
  %v1039 = vpop.f32.mrb[0].mxu0
  %v1040 = vadd.f32 0.0, %v1039
  %1041 = vmatprep.mubr.bf16.mxu0 0
  %1042 = vmatmul.mubr.bf16.gmra.mrb[0].mxu0 %v686
  %v1043 = vpop.f32.mrb[0].mxu0
  %v1044 = vadd.f32 0.0, %v1043
  %v1045 = vpop.f32.mrb[0].mxu0
  %v1046 = vadd.f32 0.0, %v1045
  %v1047 = vpop.f32.mrb[0].mxu0
  %v1048 = vadd.f32 0.0, %v1047
  %v1049 = vpop.f32.mrb[0].mxu0
  %v1050 = vadd.f32 0.0, %v1049
  %1051 = vmatprep.mubr.bf16.mxu0 0
  %1052 = vmatmul.mubr.bf16.gmra.mrb[0].mxu0 %v689
  %v1053 = vpop.f32.mrb[0].mxu0
  %v1054 = vadd.f32 0.0, %v1053
  %v1055 = vpop.f32.mrb[0].mxu0
  %v1056 = vadd.f32 0.0, %v1055
  %v1057 = vpop.f32.mrb[0].mxu0
  %v1058 = vadd.f32 0.0, %v1057
  %v1059 = vpop.f32.mrb[0].mxu0
  %v1060 = vadd.f32 0.0, %v1059
  %1061 = vmatprep.mubr.bf16.mxu0 0
  %1062 = vmatmul.mubr.bf16.gmra.mrb[0].mxu0 %v692
  %v1063 = vpop.f32.mrb[0].mxu0
  %v1064 = vadd.f32 0.0, %v1063
  %v1065 = vpop.f32.mrb[0].mxu0
  %v1066 = vadd.f32 0.0, %v1065
  %v1067 = vpop.f32.mrb[0].mxu0
  %v1068 = vadd.f32 0.0, %v1067
  %v1069 = vpop.f32.mrb[0].mxu0
  %v1070 = vadd.f32 0.0, %v1069
  %1071 = vmatprep.mubr.bf16.mxu0 0
  %1072 = vmatmul.mubr.bf16.gmra.mrb[0].mxu0 %v695
  %v1073 = vpop.f32.mrb[0].mxu0
  %v1074 = vadd.f32 0.0, %v1073
  %v1075 = vpop.f32.mrb[0].mxu0
  %v1076 = vadd.f32 0.0, %v1075
  %v1077 = vpop.f32.mrb[0].mxu0
  %v1078 = vadd.f32 0.0, %v1077
  %v1079 = vpop.f32.mrb[0].mxu0
  %v1080 = vadd.f32 0.0, %v1079
  %1081 = vmatprep.mubr.bf16.mxu0 0
  %1082 = vmatmul.mubr.bf16.gmra.mrb[0].mxu0 %v698
  %v1083 = vpop.f32.mrb[0].mxu0
  %v1084 = vadd.f32 0.0, %v1083
  %v1085 = vpop.f32.mrb[0].mxu0
  %v1086 = vadd.f32 0.0, %v1085
  %v1087 = vpop.f32.mrb[0].mxu0
  %v1088 = vadd.f32 0.0, %v1087
  %v1089 = vpop.f32.mrb[0].mxu0
  %v1090 = vadd.f32 0.0, %v1089
  %1091 = vmatprep.mubr.bf16.mxu0 0
  %1092 = vmatmul.mubr.bf16.gmra.mrb[0].mxu0 %v701
  %v1093 = vpop.f32.mrb[0].mxu0
  %v1094 = vadd.f32 0.0, %v1093
  %v1095 = vpop.f32.mrb[0].mxu0
  %v1096 = vadd.f32 0.0, %v1095
  %v1097 = vpop.f32.mrb[0].mxu0
  %v1098 = vadd.f32 0.0, %v1097
  %v1099 = vpop.f32.mrb[0].mxu0
  %v1100 = vadd.f32 0.0, %v1099
  %1101 = vdwg.mxu0
  %v1102 = vld [vmem:[%s2] sm:$0xff]
  %v1103 = vld [vmem:[%s2 + $0x8] sm:$0xff]
  %v1104 = vld [vmem:[%s2 + $0x10] sm:$0xff]
  %v1105 = vld [vmem:[%s2 + $0x18] sm:$0xff]
  %v1106 = vld [vmem:[%s2 + $0x20] sm:$0xff]
  %v1107 = vld [vmem:[%s2 + $0x28] sm:$0xff]
  %v1108 = vld [vmem:[%s2 + $0x30] sm:$0xff]
  %v1109 = vld [vmem:[%s2 + $0x38] sm:$0xff]
  %v1110 = vld [vmem:[%s2 + $0x40] sm:$0xff]
  %v1111 = vld [vmem:[%s2 + $0x48] sm:$0xff]
  %v1112 = vld [vmem:[%s2 + $0x50] sm:$0xff]
  %v1113 = vld [vmem:[%s2 + $0x58] sm:$0xff]
  %v1114 = vld [vmem:[%s2 + $0x60] sm:$0xff]
  %v1115 = vld [vmem:[%s2 + $0x68] sm:$0xff]
  %v1116 = vld [vmem:[%s2 + $0x70] sm:$0xff]
  %v1117 = vld [vmem:[%s2 + $0x78] sm:$0xff]
  %v1118 = vld [vmem:[%s2 + $0x80] sm:$0xff]
  %v1119 = vld [vmem:[%s2 + $0x88] sm:$0xff]
  %v1120 = vld [vmem:[%s2 + $0x90] sm:$0xff]
  %v1121 = vld [vmem:[%s2 + $0x98] sm:$0xff]
  %v1122 = vld [vmem:[%s2 + $0xa0] sm:$0x33]
  %v1123 = vld [vmem:[%s2 + $0xa8] sm:$0x33]
  %v1146 = vunpack.c.l.b16 %v1102
  %v1147 = vunpack.c.h.b16 %v1102
  %v1148 = vunpack.c.l.b16 %v1103
  %v1149 = vunpack.c.h.b16 %v1103
  %v1150 = vunpack.c.l.b16 %v1104
  %v1151 = vunpack.c.h.b16 %v1104
  %v1152 = vunpack.c.l.b16 %v1105
  %v1153 = vunpack.c.h.b16 %v1105
  %v1154 = vunpack.c.l.b16 %v1106
  %v1155 = vunpack.c.h.b16 %v1106
  %v1156 = vunpack.c.l.b16 %v1107
  %v1157 = vunpack.c.h.b16 %v1107
  %v1158 = vunpack.c.l.b16 %v1108
  %v1159 = vunpack.c.h.b16 %v1108
  %v1160 = vunpack.c.l.b16 %v1109
  %v1161 = vunpack.c.h.b16 %v1109
  %v1162 = vunpack.c.l.b16 %v1110
  %v1163 = vunpack.c.h.b16 %v1110
  %v1164 = vunpack.c.l.b16 %v1111
  %v1165 = vunpack.c.h.b16 %v1111
  %v1166 = vunpack.c.l.b16 %v1112
  %v1167 = vunpack.c.h.b16 %v1112
  %v1168 = vunpack.c.l.b16 %v1113
  %v1169 = vunpack.c.h.b16 %v1113
  %v1170 = vunpack.c.l.b16 %v1114
  %v1171 = vunpack.c.h.b16 %v1114
  %v1172 = vunpack.c.l.b16 %v1115
  %v1173 = vunpack.c.h.b16 %v1115
  %v1174 = vunpack.c.l.b16 %v1116
  %v1175 = vunpack.c.h.b16 %v1116
  %v1176 = vunpack.c.l.b16 %v1117
  %v1177 = vunpack.c.h.b16 %v1117
  %v1178 = vunpack.c.l.b16 %v1118
  %v1179 = vunpack.c.h.b16 %v1118
  %v1180 = vunpack.c.l.b16 %v1119
  %v1181 = vunpack.c.h.b16 %v1119
  %v1182 = vunpack.c.l.b16 %v1120
  %v1183 = vunpack.c.h.b16 %v1120
  %v1184 = vunpack.c.l.b16 %v1121
  %v1185 = vunpack.c.h.b16 %v1121
  %v1186 = vunpack.c.l.b16 %v1122
  %v1187 = vunpack.c.h.b16 %v1122
  %v1188 = vunpack.c.l.b16 %v1123
  %v1189 = vunpack.c.h.b16 %v1123
  %v1190 = vpack.c.b16 %v1150, %v1146
  %v1191 = vpack.c.b16 %v1151, %v1147
  %v1192 = vpack.c.b16 %v1152, %v1148
  %v1193 = vpack.c.b16 %v1153, %v1149
  %v1194 = vpack.c.b16 %v1158, %v1154
  %v1195 = vpack.c.b16 %v1159, %v1155
  %v1196 = vpack.c.b16 %v1160, %v1156
  %v1197 = vpack.c.b16 %v1161, %v1157
  %v1198 = vpack.c.b16 %v1166, %v1162
  %v1199 = vpack.c.b16 %v1167, %v1163
  %v1200 = vpack.c.b16 %v1168, %v1164
  %v1201 = vpack.c.b16 %v1169, %v1165
  %v1202 = vpack.c.b16 %v1174, %v1170
  %v1203 = vpack.c.b16 %v1175, %v1171
  %v1204 = vpack.c.b16 %v1176, %v1172
  %v1205 = vpack.c.b16 %v1177, %v1173
  %v1206 = vpack.c.b16 %v1182, %v1178
  %v1207 = vpack.c.b16 %v1183, %v1179
  %v1208 = vpack.c.b16 %v1184, %v1180
  %v1209 = vpack.c.b16 %v1185, %v1181
  %v1210 = vpack.c.b16 %v1186, %v1186
  %v1211 = vpack.c.b16 %v1187, %v1187
  %v1212 = vpack.c.b16 %v1188, %v1188
  %v1213 = vpack.c.b16 %v1189, %v1189
  %v1235 = vsel %vm703, %v1210, 0
  %v1238 = vsel %vm703, %v1211, 0
  %v1241 = vsel %vm703, %v1212, 0
  %v1244 = vsel %vm703, %v1213, 0
  %1246 = vmatprep.subr.bf16.mxu0 %v1191
  %1247 = vmatpush1.bf16.msra.mxu0 %v1190
  %1248 = vmatprep.subr.bf16.mxu0 %v1195
  %1249 = vmatpush1.bf16.msra.mxu0 %v1194
  %1250 = vmatprep.subr.bf16.mxu0 %v1199
  %1251 = vmatpush1.bf16.msra.mxu0 %v1198
  %1252 = vmatprep.subr.bf16.mxu0 %v1203
  %1253 = vmatpush1.bf16.msra.mxu0 %v1202
  %1254 = vmatprep.subr.bf16.mxu0 %v1207
  %1255 = vmatpush1.bf16.msra.mxu0 %v1206
  %1256 = vmatprep.subr.bf16.mxu0 %v1238
  %1257 = vmatpush1.bf16.msra.mxu0 %v1235
  %1258 = vmatprep.subr.bf16.mxu0 0
  %1259 = vmatpush1.bf16.msra.mxu0 0
  %1260 = vmatprep.subr.bf16.mxu0 0
  %1261 = vmatpush1.bf16.msra.mxu0 0
  %1262 = vmatprep.subr.bf16.mxu0 0
  %1263 = vmatpush1.bf16.msra.mxu0 0
  %1264 = vmatprep.subr.bf16.mxu0 0
  %1265 = vmatpush1.bf16.msra.mxu0 0
  %1266 = vmatprep.subr.bf16.mxu0 0
  %1267 = vmatpush1.bf16.msra.mxu0 0
  %1268 = vmatprep.subr.bf16.mxu0 0
  %1269 = vmatpush1.bf16.msra.mxu0 0
  %1270 = vmatprep.subr.bf16.mxu0 0
  %1271 = vmatpush1.bf16.msra.mxu0 0
  %1272 = vmatprep.subr.bf16.mxu0 0
  %1273 = vmatpush1.bf16.msra.mxu0 0
  %1274 = vmatprep.subr.bf16.mxu0 0
  %1275 = vmatpush1.bf16.msra.mxu0 0
  %1276 = vmatprep.subr.bf16.mxu0 0
  %1277 = vmatpush1.bf16.msra.mxu0 0
  %1278 = vmatprep.mubr.bf16.mxu0 0
  %1279 = vmatmul.mubr.bf16.gmra.mrb[0].mxu0 %v656
  %v1280 = vpop.f32.mrb[0].mxu0
  %v1281 = vadd.f32 0.0, %v1280
  %v1282 = vpop.f32.mrb[0].mxu0
  %v1283 = vadd.f32 0.0, %v1282
  %v1284 = vpop.f32.mrb[0].mxu0
  %v1285 = vadd.f32 0.0, %v1284
  %v1286 = vpop.f32.mrb[0].mxu0
  %v1287 = vadd.f32 0.0, %v1286
  %1288 = vmatprep.mubr.bf16.mxu0 0
  %1289 = vmatmul.mubr.bf16.gmra.mrb[0].mxu0 %v659
  %v1290 = vpop.f32.mrb[0].mxu0
  %v1291 = vadd.f32 0.0, %v1290
  %v1292 = vpop.f32.mrb[0].mxu0
  %v1293 = vadd.f32 0.0, %v1292
  %v1294 = vpop.f32.mrb[0].mxu0
  %v1295 = vadd.f32 0.0, %v1294
  %v1296 = vpop.f32.mrb[0].mxu0
  %v1297 = vadd.f32 0.0, %v1296
  %1298 = vmatprep.mubr.bf16.mxu0 0
  %1299 = vmatmul.mubr.bf16.gmra.mrb[0].mxu0 %v662
  %v1300 = vpop.f32.mrb[0].mxu0
  %v1301 = vadd.f32 0.0, %v1300
  %v1302 = vpop.f32.mrb[0].mxu0
  %v1303 = vadd.f32 0.0, %v1302
  %v1304 = vpop.f32.mrb[0].mxu0
  %v1305 = vadd.f32 0.0, %v1304
  %v1306 = vpop.f32.mrb[0].mxu0
  %v1307 = vadd.f32 0.0, %v1306
  %1308 = vmatprep.mubr.bf16.mxu0 0
  %1309 = vmatmul.mubr.bf16.gmra.mrb[0].mxu0 %v665
  %v1310 = vpop.f32.mrb[0].mxu0
  %v1311 = vadd.f32 0.0, %v1310
  %v1312 = vpop.f32.mrb[0].mxu0
  %v1313 = vadd.f32 0.0, %v1312
  %v1314 = vpop.f32.mrb[0].mxu0
  %v1315 = vadd.f32 0.0, %v1314
  %v1316 = vpop.f32.mrb[0].mxu0
  %v1317 = vadd.f32 0.0, %v1316
  %1318 = vmatprep.mubr.bf16.mxu0 0
  %1319 = vmatmul.mubr.bf16.gmra.mrb[0].mxu0 %v668
  %v1320 = vpop.f32.mrb[0].mxu0
  %v1321 = vadd.f32 0.0, %v1320
  %v1322 = vpop.f32.mrb[0].mxu0
  %v1323 = vadd.f32 0.0, %v1322
  %v1324 = vpop.f32.mrb[0].mxu0
  %v1325 = vadd.f32 0.0, %v1324
  %v1326 = vpop.f32.mrb[0].mxu0
  %v1327 = vadd.f32 0.0, %v1326
  %1328 = vmatprep.mubr.bf16.mxu0 0
  %1329 = vmatmul.mubr.bf16.gmra.mrb[0].mxu0 %v671
  %v1330 = vpop.f32.mrb[0].mxu0
  %v1331 = vadd.f32 0.0, %v1330
  %v1332 = vpop.f32.mrb[0].mxu0
  %v1333 = vadd.f32 0.0, %v1332
  %v1334 = vpop.f32.mrb[0].mxu0
  %v1335 = vadd.f32 0.0, %v1334
  %v1336 = vpop.f32.mrb[0].mxu0
  %v1337 = vadd.f32 0.0, %v1336
  %1338 = vmatprep.mubr.bf16.mxu0 0
  %1339 = vmatmul.mubr.bf16.gmra.mrb[0].mxu0 %v674
  %v1340 = vpop.f32.mrb[0].mxu0
  %v1341 = vadd.f32 0.0, %v1340
  %v1342 = vpop.f32.mrb[0].mxu0
  %v1343 = vadd.f32 0.0, %v1342
  %v1344 = vpop.f32.mrb[0].mxu0
  %v1345 = vadd.f32 0.0, %v1344
  %v1346 = vpop.f32.mrb[0].mxu0
  %v1347 = vadd.f32 0.0, %v1346
  %1348 = vmatprep.mubr.bf16.mxu0 0
  %1349 = vmatmul.mubr.bf16.gmra.mrb[0].mxu0 %v677
  %v1350 = vpop.f32.mrb[0].mxu0
  %v1351 = vadd.f32 0.0, %v1350
  %v1352 = vpop.f32.mrb[0].mxu0
  %v1353 = vadd.f32 0.0, %v1352
  %v1354 = vpop.f32.mrb[0].mxu0
  %v1355 = vadd.f32 0.0, %v1354
  %v1356 = vpop.f32.mrb[0].mxu0
  %v1357 = vadd.f32 0.0, %v1356
  %1358 = vmatprep.mubr.bf16.mxu0 0
  %1359 = vmatmul.mubr.bf16.gmra.mrb[0].mxu0 %v680
  %v1360 = vpop.f32.mrb[0].mxu0
  %v1361 = vadd.f32 0.0, %v1360
  %v1362 = vpop.f32.mrb[0].mxu0
  %v1363 = vadd.f32 0.0, %v1362
  %v1364 = vpop.f32.mrb[0].mxu0
  %v1365 = vadd.f32 0.0, %v1364
  %v1366 = vpop.f32.mrb[0].mxu0
  %v1367 = vadd.f32 0.0, %v1366
  %1368 = vmatprep.mubr.bf16.mxu0 0
  %1369 = vmatmul.mubr.bf16.gmra.mrb[0].mxu0 %v683
  %v1370 = vpop.f32.mrb[0].mxu0
  %v1371 = vadd.f32 0.0, %v1370
  %v1372 = vpop.f32.mrb[0].mxu0
  %v1373 = vadd.f32 0.0, %v1372
  %v1374 = vpop.f32.mrb[0].mxu0
  %v1375 = vadd.f32 0.0, %v1374
  %v1376 = vpop.f32.mrb[0].mxu0
  %v1377 = vadd.f32 0.0, %v1376
  %1378 = vmatprep.mubr.bf16.mxu0 0
  %1379 = vmatmul.mubr.bf16.gmra.mrb[0].mxu0 %v686
  %v1380 = vpop.f32.mrb[0].mxu0
  %v1381 = vadd.f32 0.0, %v1380
  %v1382 = vpop.f32.mrb[0].mxu0
  %v1383 = vadd.f32 0.0, %v1382
  %v1384 = vpop.f32.mrb[0].mxu0
  %v1385 = vadd.f32 0.0, %v1384
  %v1386 = vpop.f32.mrb[0].mxu0
  %v1387 = vadd.f32 0.0, %v1386
  %1388 = vmatprep.mubr.bf16.mxu0 0
  %1389 = vmatmul.mubr.bf16.gmra.mrb[0].mxu0 %v689
  %v1390 = vpop.f32.mrb[0].mxu0
  %v1391 = vadd.f32 0.0, %v1390
  %v1392 = vpop.f32.mrb[0].mxu0
  %v1393 = vadd.f32 0.0, %v1392
  %v1394 = vpop.f32.mrb[0].mxu0
  %v1395 = vadd.f32 0.0, %v1394
  %v1396 = vpop.f32.mrb[0].mxu0
  %v1397 = vadd.f32 0.0, %v1396
  %1398 = vmatprep.mubr.bf16.mxu0 0
  %1399 = vmatmul.mubr.bf16.gmra.mrb[0].mxu0 %v692
  %v1400 = vpop.f32.mrb[0].mxu0
  %v1401 = vadd.f32 0.0, %v1400
  %v1402 = vpop.f32.mrb[0].mxu0
  %v1403 = vadd.f32 0.0, %v1402
  %v1404 = vpop.f32.mrb[0].mxu0
  %v1405 = vadd.f32 0.0, %v1404
  %v1406 = vpop.f32.mrb[0].mxu0
  %v1407 = vadd.f32 0.0, %v1406
  %1408 = vmatprep.mubr.bf16.mxu0 0
  %1409 = vmatmul.mubr.bf16.gmra.mrb[0].mxu0 %v695
  %v1410 = vpop.f32.mrb[0].mxu0
  %v1411 = vadd.f32 0.0, %v1410
  %v1412 = vpop.f32.mrb[0].mxu0
  %v1413 = vadd.f32 0.0, %v1412
  %v1414 = vpop.f32.mrb[0].mxu0
  %v1415 = vadd.f32 0.0, %v1414
  %v1416 = vpop.f32.mrb[0].mxu0
  %v1417 = vadd.f32 0.0, %v1416
  %1418 = vmatprep.mubr.bf16.mxu0 0
  %1419 = vmatmul.mubr.bf16.gmra.mrb[0].mxu0 %v698
  %v1420 = vpop.f32.mrb[0].mxu0
  %v1421 = vadd.f32 0.0, %v1420
  %v1422 = vpop.f32.mrb[0].mxu0
  %v1423 = vadd.f32 0.0, %v1422
  %v1424 = vpop.f32.mrb[0].mxu0
  %v1425 = vadd.f32 0.0, %v1424
  %v1426 = vpop.f32.mrb[0].mxu0
  %v1427 = vadd.f32 0.0, %v1426
  %1428 = vmatprep.mubr.bf16.mxu0 0
  %1429 = vmatmul.mubr.bf16.gmra.mrb[0].mxu0 %v701
  %v1430 = vpop.f32.mrb[0].mxu0
  %v1431 = vadd.f32 0.0, %v1430
  %v1432 = vpop.f32.mrb[0].mxu0
  %v1433 = vadd.f32 0.0, %v1432
  %v1434 = vpop.f32.mrb[0].mxu0
  %v1435 = vadd.f32 0.0, %v1434
  %v1436 = vpop.f32.mrb[0].mxu0
  %v1437 = vadd.f32 0.0, %v1436
  %1438 = vdwg.mxu0
  %1439 = vmatprep.subr.bf16.mxu0 %v1193
  %1440 = vmatpush1.bf16.msra.mxu0 %v1192
  %1441 = vmatprep.subr.bf16.mxu0 %v1197
  %1442 = vmatpush1.bf16.msra.mxu0 %v1196
  %1443 = vmatprep.subr.bf16.mxu0 %v1201
  %1444 = vmatpush1.bf16.msra.mxu0 %v1200
  %1445 = vmatprep.subr.bf16.mxu0 %v1205
  %1446 = vmatpush1.bf16.msra.mxu0 %v1204
  %1447 = vmatprep.subr.bf16.mxu0 %v1209
  %1448 = vmatpush1.bf16.msra.mxu0 %v1208
  %1449 = vmatprep.subr.bf16.mxu0 %v1244
  %1450 = vmatpush1.bf16.msra.mxu0 %v1241
  %1451 = vmatprep.subr.bf16.mxu0 0
  %1452 = vmatpush1.bf16.msra.mxu0 0
  %1453 = vmatprep.subr.bf16.mxu0 0
  %1454 = vmatpush1.bf16.msra.mxu0 0
  %1455 = vmatprep.subr.bf16.mxu0 0
  %1456 = vmatpush1.bf16.msra.mxu0 0
  %1457 = vmatprep.subr.bf16.mxu0 0
  %1458 = vmatpush1.bf16.msra.mxu0 0
  %1459 = vmatprep.subr.bf16.mxu0 0
  %1460 = vmatpush1.bf16.msra.mxu0 0
  %1461 = vmatprep.subr.bf16.mxu0 0
  %1462 = vmatpush1.bf16.msra.mxu0 0
  %1463 = vmatprep.subr.bf16.mxu0 0
  %1464 = vmatpush1.bf16.msra.mxu0 0
  %1465 = vmatprep.subr.bf16.mxu0 0
  %1466 = vmatpush1.bf16.msra.mxu0 0
  %1467 = vmatprep.subr.bf16.mxu0 0
  %1468 = vmatpush1.bf16.msra.mxu0 0
  %1469 = vmatprep.subr.bf16.mxu0 0
  %1470 = vmatpush1.bf16.msra.mxu0 0
  %1471 = vmatprep.mubr.bf16.mxu0 0
  %1472 = vmatmul.mubr.bf16.gmra.mrb[0].mxu0 %v656
  %v1473 = vpop.f32.mrb[0].mxu0
  %v1474 = vadd.f32 0.0, %v1473
  %v1475 = vpop.f32.mrb[0].mxu0
  %v1476 = vadd.f32 0.0, %v1475
  %v1477 = vpop.f32.mrb[0].mxu0
  %v1478 = vadd.f32 0.0, %v1477
  %v1479 = vpop.f32.mrb[0].mxu0
  %v1480 = vadd.f32 0.0, %v1479
  %1481 = vmatprep.mubr.bf16.mxu0 0
  %1482 = vmatmul.mubr.bf16.gmra.mrb[0].mxu0 %v659
  %v1483 = vpop.f32.mrb[0].mxu0
  %v1484 = vadd.f32 0.0, %v1483
  %v1485 = vpop.f32.mrb[0].mxu0
  %v1486 = vadd.f32 0.0, %v1485
  %v1487 = vpop.f32.mrb[0].mxu0
  %v1488 = vadd.f32 0.0, %v1487
  %v1489 = vpop.f32.mrb[0].mxu0
  %v1490 = vadd.f32 0.0, %v1489
  %1491 = vmatprep.mubr.bf16.mxu0 0
  %1492 = vmatmul.mubr.bf16.gmra.mrb[0].mxu0 %v662
  %v1493 = vpop.f32.mrb[0].mxu0
  %v1494 = vadd.f32 0.0, %v1493
  %v1495 = vpop.f32.mrb[0].mxu0
  %v1496 = vadd.f32 0.0, %v1495
  %v1497 = vpop.f32.mrb[0].mxu0
  %v1498 = vadd.f32 0.0, %v1497
  %v1499 = vpop.f32.mrb[0].mxu0
  %v1500 = vadd.f32 0.0, %v1499
  %1501 = vmatprep.mubr.bf16.mxu0 0
  %1502 = vmatmul.mubr.bf16.gmra.mrb[0].mxu0 %v665
  %v1503 = vpop.f32.mrb[0].mxu0
  %v1504 = vadd.f32 0.0, %v1503
  %v1505 = vpop.f32.mrb[0].mxu0
  %v1506 = vadd.f32 0.0, %v1505
  %v1507 = vpop.f32.mrb[0].mxu0
  %v1508 = vadd.f32 0.0, %v1507
  %v1509 = vpop.f32.mrb[0].mxu0
  %v1510 = vadd.f32 0.0, %v1509
  %1511 = vmatprep.mubr.bf16.mxu0 0
  %1512 = vmatmul.mubr.bf16.gmra.mrb[0].mxu0 %v668
  %v1513 = vpop.f32.mrb[0].mxu0
  %v1514 = vadd.f32 0.0, %v1513
  %v1515 = vpop.f32.mrb[0].mxu0
  %v1516 = vadd.f32 0.0, %v1515
  %v1517 = vpop.f32.mrb[0].mxu0
  %v1518 = vadd.f32 0.0, %v1517
  %v1519 = vpop.f32.mrb[0].mxu0
  %v1520 = vadd.f32 0.0, %v1519
  %1521 = vmatprep.mubr.bf16.mxu0 0
  %1522 = vmatmul.mubr.bf16.gmra.mrb[0].mxu0 %v671
  %v1523 = vpop.f32.mrb[0].mxu0
  %v1524 = vadd.f32 0.0, %v1523
  %v1525 = vpop.f32.mrb[0].mxu0
  %v1526 = vadd.f32 0.0, %v1525
  %v1527 = vpop.f32.mrb[0].mxu0
  %v1528 = vadd.f32 0.0, %v1527
  %v1529 = vpop.f32.mrb[0].mxu0
  %v1530 = vadd.f32 0.0, %v1529
  %1531 = vmatprep.mubr.bf16.mxu0 0
  %1532 = vmatmul.mubr.bf16.gmra.mrb[0].mxu0 %v674
  %v1533 = vpop.f32.mrb[0].mxu0
  %v1534 = vadd.f32 0.0, %v1533
  %v1535 = vpop.f32.mrb[0].mxu0
  %v1536 = vadd.f32 0.0, %v1535
  %v1537 = vpop.f32.mrb[0].mxu0
  %v1538 = vadd.f32 0.0, %v1537
  %v1539 = vpop.f32.mrb[0].mxu0
  %v1540 = vadd.f32 0.0, %v1539
  %1541 = vmatprep.mubr.bf16.mxu0 0
  %1542 = vmatmul.mubr.bf16.gmra.mrb[0].mxu0 %v677
  %v1543 = vpop.f32.mrb[0].mxu0
  %v1544 = vadd.f32 0.0, %v1543
  %v1545 = vpop.f32.mrb[0].mxu0
  %v1546 = vadd.f32 0.0, %v1545
  %v1547 = vpop.f32.mrb[0].mxu0
  %v1548 = vadd.f32 0.0, %v1547
  %v1549 = vpop.f32.mrb[0].mxu0
  %v1550 = vadd.f32 0.0, %v1549
  %1551 = vmatprep.mubr.bf16.mxu0 0
  %1552 = vmatmul.mubr.bf16.gmra.mrb[0].mxu0 %v680
  %v1553 = vpop.f32.mrb[0].mxu0
  %v1554 = vadd.f32 0.0, %v1553
  %v1555 = vpop.f32.mrb[0].mxu0
  %v1556 = vadd.f32 0.0, %v1555
  %v1557 = vpop.f32.mrb[0].mxu0
  %v1558 = vadd.f32 0.0, %v1557
  %v1559 = vpop.f32.mrb[0].mxu0
  %v1560 = vadd.f32 0.0, %v1559
  %1561 = vmatprep.mubr.bf16.mxu0 0
  %1562 = vmatmul.mubr.bf16.gmra.mrb[0].mxu0 %v683
  %v1563 = vpop.f32.mrb[0].mxu0
  %v1564 = vadd.f32 0.0, %v1563
  %v1565 = vpop.f32.mrb[0].mxu0
  %v1566 = vadd.f32 0.0, %v1565
  %v1567 = vpop.f32.mrb[0].mxu0
  %v1568 = vadd.f32 0.0, %v1567
  %v1569 = vpop.f32.mrb[0].mxu0
  %v1570 = vadd.f32 0.0, %v1569
  %1571 = vmatprep.mubr.bf16.mxu0 0
  %1572 = vmatmul.mubr.bf16.gmra.mrb[0].mxu0 %v686
  %v1573 = vpop.f32.mrb[0].mxu0
  %v1574 = vadd.f32 0.0, %v1573
  %v1575 = vpop.f32.mrb[0].mxu0
  %v1576 = vadd.f32 0.0, %v1575
  %v1577 = vpop.f32.mrb[0].mxu0
  %v1578 = vadd.f32 0.0, %v1577
  %v1579 = vpop.f32.mrb[0].mxu0
  %v1580 = vadd.f32 0.0, %v1579
  %1581 = vmatprep.mubr.bf16.mxu0 0
  %1582 = vmatmul.mubr.bf16.gmra.mrb[0].mxu0 %v689
  %v1583 = vpop.f32.mrb[0].mxu0
  %v1584 = vadd.f32 0.0, %v1583
  %v1585 = vpop.f32.mrb[0].mxu0
  %v1586 = vadd.f32 0.0, %v1585
  %v1587 = vpop.f32.mrb[0].mxu0
  %v1588 = vadd.f32 0.0, %v1587
  %v1589 = vpop.f32.mrb[0].mxu0
  %v1590 = vadd.f32 0.0, %v1589
  %1591 = vmatprep.mubr.bf16.mxu0 0
  %1592 = vmatmul.mubr.bf16.gmra.mrb[0].mxu0 %v692
  %v1593 = vpop.f32.mrb[0].mxu0
  %v1594 = vadd.f32 0.0, %v1593
  %v1595 = vpop.f32.mrb[0].mxu0
  %v1596 = vadd.f32 0.0, %v1595
  %v1597 = vpop.f32.mrb[0].mxu0
  %v1598 = vadd.f32 0.0, %v1597
  %v1599 = vpop.f32.mrb[0].mxu0
  %v1600 = vadd.f32 0.0, %v1599
  %1601 = vmatprep.mubr.bf16.mxu0 0
  %1602 = vmatmul.mubr.bf16.gmra.mrb[0].mxu0 %v695
  %v1603 = vpop.f32.mrb[0].mxu0
  %v1604 = vadd.f32 0.0, %v1603
  %v1605 = vpop.f32.mrb[0].mxu0
  %v1606 = vadd.f32 0.0, %v1605
  %v1607 = vpop.f32.mrb[0].mxu0
  %v1608 = vadd.f32 0.0, %v1607
  %v1609 = vpop.f32.mrb[0].mxu0
  %v1610 = vadd.f32 0.0, %v1609
  %1611 = vmatprep.mubr.bf16.mxu0 0
  %1612 = vmatmul.mubr.bf16.gmra.mrb[0].mxu0 %v698
  %v1613 = vpop.f32.mrb[0].mxu0
  %v1614 = vadd.f32 0.0, %v1613
  %v1615 = vpop.f32.mrb[0].mxu0
  %v1616 = vadd.f32 0.0, %v1615
  %v1617 = vpop.f32.mrb[0].mxu0
  %v1618 = vadd.f32 0.0, %v1617
  %v1619 = vpop.f32.mrb[0].mxu0
  %v1620 = vadd.f32 0.0, %v1619
  %1621 = vmatprep.mubr.bf16.mxu0 0
  %1622 = vmatmul.mubr.bf16.gmra.mrb[0].mxu0 %v701
  %v1623 = vpop.f32.mrb[0].mxu0
  %v1624 = vadd.f32 0.0, %v1623
  %v1625 = vpop.f32.mrb[0].mxu0
  %v1626 = vadd.f32 0.0, %v1625
  %v1627 = vpop.f32.mrb[0].mxu0
  %v1628 = vadd.f32 0.0, %v1627
  %v1629 = vpop.f32.mrb[0].mxu0
  %v1630 = vadd.f32 0.0, %v1629
  %1631 = vdwg.mxu0
  %v1632 = vmax.f32 %v751, %v1281
  %v1633 = vmax.f32 %v753, %v1283
  %v1634 = vmax.f32 %v944, %v1474
  %v1635 = vmax.f32 %v946, %v1476
  %v1636 = vmax.f32 %v755, %v1285
  %v1637 = vmax.f32 %v757, %v1287
  %v1638 = vmax.f32 %v948, %v1478
  %v1639 = vmax.f32 %v950, %v1480
  %v1640 = vmax.f32 %v761, %v1291
  %v1641 = vmax.f32 %v763, %v1293
  %v1642 = vmax.f32 %v954, %v1484
  %v1643 = vmax.f32 %v956, %v1486
  %v1644 = vmax.f32 %v765, %v1295
  %v1645 = vmax.f32 %v767, %v1297
  %v1646 = vmax.f32 %v958, %v1488
  %v1647 = vmax.f32 %v960, %v1490
  %v1648 = vmax.f32 %v771, %v1301
  %v1649 = vmax.f32 %v773, %v1303
  %v1650 = vmax.f32 %v964, %v1494
  %v1651 = vmax.f32 %v966, %v1496
  %v1652 = vmax.f32 %v775, %v1305
  %v1653 = vmax.f32 %v777, %v1307
  %v1654 = vmax.f32 %v968, %v1498
  %v1655 = vmax.f32 %v970, %v1500
  %v1656 = vmax.f32 %v781, %v1311
  %v1657 = vmax.f32 %v783, %v1313
  %v1658 = vmax.f32 %v974, %v1504
  %v1659 = vmax.f32 %v976, %v1506
  %v1660 = vmax.f32 %v785, %v1315
  %v1661 = vmax.f32 %v787, %v1317
  %v1662 = vmax.f32 %v978, %v1508
  %v1663 = vmax.f32 %v980, %v1510
  %v1664 = vmax.f32 %v791, %v1321
  %v1665 = vmax.f32 %v793, %v1323
  %v1666 = vmax.f32 %v984, %v1514
  %v1667 = vmax.f32 %v986, %v1516
  %v1668 = vmax.f32 %v795, %v1325
  %v1669 = vmax.f32 %v797, %v1327
  %v1670 = vmax.f32 %v988, %v1518
  %v1671 = vmax.f32 %v990, %v1520
  %v1672 = vmax.f32 %v801, %v1331
  %v1673 = vmax.f32 %v803, %v1333
  %v1674 = vmax.f32 %v994, %v1524
  %v1675 = vmax.f32 %v996, %v1526
  %v1676 = vmax.f32 %v805, %v1335
  %v1677 = vmax.f32 %v807, %v1337
  %v1678 = vmax.f32 %v998, %v1528
  %v1679 = vmax.f32 %v1000, %v1530
  %v1680 = vmax.f32 %v811, %v1341
  %v1681 = vmax.f32 %v813, %v1343
  %v1682 = vmax.f32 %v1004, %v1534
  %v1683 = vmax.f32 %v1006, %v1536
  %v1684 = vmax.f32 %v815, %v1345
  %v1685 = vmax.f32 %v817, %v1347
  %v1686 = vmax.f32 %v1008, %v1538
  %v1687 = vmax.f32 %v1010, %v1540
  %v1688 = vmax.f32 %v821, %v1351
  %v1689 = vmax.f32 %v823, %v1353
  %v1690 = vmax.f32 %v1014, %v1544
  %v1691 = vmax.f32 %v1016, %v1546
  %v1692 = vmax.f32 %v825, %v1355
  %v1693 = vmax.f32 %v827, %v1357
  %v1694 = vmax.f32 %v1018, %v1548
  %v1695 = vmax.f32 %v1020, %v1550
  %v1696 = vmax.f32 %v831, %v1361
  %v1697 = vmax.f32 %v833, %v1363
  %v1698 = vmax.f32 %v1024, %v1554
  %v1699 = vmax.f32 %v1026, %v1556
  %v1700 = vmax.f32 %v835, %v1365
  %v1701 = vmax.f32 %v837, %v1367
  %v1702 = vmax.f32 %v1028, %v1558
  %v1703 = vmax.f32 %v1030, %v1560
  %v1704 = vmax.f32 %v841, %v1371
  %v1705 = vmax.f32 %v843, %v1373
  %v1706 = vmax.f32 %v1034, %v1564
  %v1707 = vmax.f32 %v1036, %v1566
  %v1708 = vmax.f32 %v845, %v1375
  %v1709 = vmax.f32 %v847, %v1377
  %v1710 = vmax.f32 %v1038, %v1568
  %v1711 = vmax.f32 %v1040, %v1570
  %v1712 = vmax.f32 %v851, %v1381
  %v1713 = vmax.f32 %v853, %v1383
  %v1714 = vmax.f32 %v1044, %v1574
  %v1715 = vmax.f32 %v1046, %v1576
  %v1716 = vmax.f32 %v855, %v1385
  %v1717 = vmax.f32 %v857, %v1387
  %v1718 = vmax.f32 %v1048, %v1578
  %v1719 = vmax.f32 %v1050, %v1580
  %v1720 = vmax.f32 %v861, %v1391
  %v1721 = vmax.f32 %v863, %v1393
  %v1722 = vmax.f32 %v1054, %v1584
  %v1723 = vmax.f32 %v1056, %v1586
  %v1724 = vmax.f32 %v865, %v1395
  %v1725 = vmax.f32 %v867, %v1397
  %v1726 = vmax.f32 %v1058, %v1588
  %v1727 = vmax.f32 %v1060, %v1590
  %v1728 = vmax.f32 %v871, %v1401
  %v1729 = vmax.f32 %v873, %v1403
  %v1730 = vmax.f32 %v1064, %v1594
  %v1731 = vmax.f32 %v1066, %v1596
  %v1732 = vmax.f32 %v875, %v1405
  %v1733 = vmax.f32 %v877, %v1407
  %v1734 = vmax.f32 %v1068, %v1598
  %v1735 = vmax.f32 %v1070, %v1600
  %v1736 = vmax.f32 %v881, %v1411
  %v1737 = vmax.f32 %v883, %v1413
  %v1738 = vmax.f32 %v1074, %v1604
  %v1739 = vmax.f32 %v1076, %v1606
  %v1740 = vmax.f32 %v885, %v1415
  %v1741 = vmax.f32 %v887, %v1417
  %v1742 = vmax.f32 %v1078, %v1608
  %v1743 = vmax.f32 %v1080, %v1610
  %v1744 = vmax.f32 %v891, %v1421
  %v1745 = vmax.f32 %v893, %v1423
  %v1746 = vmax.f32 %v1084, %v1614
  %v1747 = vmax.f32 %v1086, %v1616
  %v1748 = vmax.f32 %v895, %v1425
  %v1749 = vmax.f32 %v897, %v1427
  %v1750 = vmax.f32 %v1088, %v1618
  %v1751 = vmax.f32 %v1090, %v1620
  %v1752 = vmax.f32 %v901, %v1431
  %v1753 = vmax.f32 %v903, %v1433
  %v1754 = vmax.f32 %v1094, %v1624
  %v1755 = vmax.f32 %v1096, %v1626
  %v1756 = vmax.f32 %v905, %v1435
  %v1757 = vmax.f32 %v907, %v1437
  %v1758 = vmax.f32 %v1098, %v1628
  %v1759 = vmax.f32 %v1100, %v1630
  %v1888 = vrot.slane %v1632, 1
  %v1889 = vrot.slane %v1636, 1
  %v1890 = vsel %vm112, %v1888, %v1889
  %v1891 = vrot.slane %v1633, 1
  %v1892 = vrot.slane %v1637, 1
  %v1893 = vsel %vm112, %v1891, %v1892
  %v1894 = vrot.slane %v1634, 1
  %v1895 = vrot.slane %v1638, 1
  %v1896 = vsel %vm112, %v1894, %v1895
  %v1897 = vrot.slane %v1635, 1
  %v1898 = vrot.slane %v1639, 1
  %v1899 = vsel %vm112, %v1897, %v1898
  %v1900 = vrot.slane %v1640, 1
  %v1901 = vsel %vm112, %v1889, %v1900
  %v1902 = vrot.slane %v1641, 1
  %v1903 = vsel %vm112, %v1892, %v1902
  %v1904 = vrot.slane %v1642, 1
  %v1905 = vsel %vm112, %v1895, %v1904
  %v1906 = vrot.slane %v1643, 1
  %v1907 = vsel %vm112, %v1898, %v1906
  %v1908 = vrot.slane %v1644, 1
  %v1909 = vsel %vm112, %v1900, %v1908
  %v1910 = vrot.slane %v1645, 1
  %v1911 = vsel %vm112, %v1902, %v1910
  %v1912 = vrot.slane %v1646, 1
  %v1913 = vsel %vm112, %v1904, %v1912
  %v1914 = vrot.slane %v1647, 1
  %v1915 = vsel %vm112, %v1906, %v1914
  %v1916 = vrot.slane %v1648, 1
  %v1917 = vsel %vm112, %v1908, %v1916
  %v1918 = vrot.slane %v1649, 1
  %v1919 = vsel %vm112, %v1910, %v1918
  %v1920 = vrot.slane %v1650, 1
  %v1921 = vsel %vm112, %v1912, %v1920
  %v1922 = vrot.slane %v1651, 1
  %v1923 = vsel %vm112, %v1914, %v1922
  %v1924 = vrot.slane %v1652, 1
  %v1925 = vsel %vm112, %v1916, %v1924
  %v1926 = vrot.slane %v1653, 1
  %v1927 = vsel %vm112, %v1918, %v1926
  %v1928 = vrot.slane %v1654, 1
  %v1929 = vsel %vm112, %v1920, %v1928
  %v1930 = vrot.slane %v1655, 1
  %v1931 = vsel %vm112, %v1922, %v1930
  %v1932 = vrot.slane %v1656, 1
  %v1933 = vsel %vm112, %v1924, %v1932
  %v1934 = vrot.slane %v1657, 1
  %v1935 = vsel %vm112, %v1926, %v1934
  %v1936 = vrot.slane %v1658, 1
  %v1937 = vsel %vm112, %v1928, %v1936
  %v1938 = vrot.slane %v1659, 1
  %v1939 = vsel %vm112, %v1930, %v1938
  %v1940 = vrot.slane %v1660, 1
  %v1941 = vsel %vm112, %v1932, %v1940
  %v1942 = vrot.slane %v1661, 1
  %v1943 = vsel %vm112, %v1934, %v1942
  %v1944 = vrot.slane %v1662, 1
  %v1945 = vsel %vm112, %v1936, %v1944
  %v1946 = vrot.slane %v1663, 1
  %v1947 = vsel %vm112, %v1938, %v1946
  %v1948 = vrot.slane %v1664, 1
  %v1949 = vsel %vm112, %v1940, %v1948
  %v1950 = vrot.slane %v1665, 1
  %v1951 = vsel %vm112, %v1942, %v1950
  %v1952 = vrot.slane %v1666, 1
  %v1953 = vsel %vm112, %v1944, %v1952
  %v1954 = vrot.slane %v1667, 1
  %v1955 = vsel %vm112, %v1946, %v1954
  %v1956 = vrot.slane %v1668, 1
  %v1957 = vsel %vm112, %v1948, %v1956
  %v1958 = vrot.slane %v1669, 1
  %v1959 = vsel %vm112, %v1950, %v1958
  %v1960 = vrot.slane %v1670, 1
  %v1961 = vsel %vm112, %v1952, %v1960
  %v1962 = vrot.slane %v1671, 1
  %v1963 = vsel %vm112, %v1954, %v1962
  %v1964 = vrot.slane %v1672, 1
  %v1965 = vsel %vm112, %v1956, %v1964
  %v1966 = vrot.slane %v1673, 1
  %v1967 = vsel %vm112, %v1958, %v1966
  %v1968 = vrot.slane %v1674, 1
  %v1969 = vsel %vm112, %v1960, %v1968
  %v1970 = vrot.slane %v1675, 1
  %v1971 = vsel %vm112, %v1962, %v1970
  %v1972 = vrot.slane %v1676, 1
  %v1973 = vsel %vm112, %v1964, %v1972
  %v1974 = vrot.slane %v1677, 1
  %v1975 = vsel %vm112, %v1966, %v1974
  %v1976 = vrot.slane %v1678, 1
  %v1977 = vsel %vm112, %v1968, %v1976
  %v1978 = vrot.slane %v1679, 1
  %v1979 = vsel %vm112, %v1970, %v1978
  %v1980 = vrot.slane %v1680, 1
  %v1981 = vsel %vm112, %v1972, %v1980
  %v1982 = vrot.slane %v1681, 1
  %v1983 = vsel %vm112, %v1974, %v1982
  %v1984 = vrot.slane %v1682, 1
  %v1985 = vsel %vm112, %v1976, %v1984
  %v1986 = vrot.slane %v1683, 1
  %v1987 = vsel %vm112, %v1978, %v1986
  %v1988 = vrot.slane %v1684, 1
  %v1989 = vsel %vm112, %v1980, %v1988
  %v1990 = vrot.slane %v1685, 1
  %v1991 = vsel %vm112, %v1982, %v1990
  %v1992 = vrot.slane %v1686, 1
  %v1993 = vsel %vm112, %v1984, %v1992
  %v1994 = vrot.slane %v1687, 1
  %v1995 = vsel %vm112, %v1986, %v1994
  %v1996 = vrot.slane %v1688, 1
  %v1997 = vsel %vm112, %v1988, %v1996
  %v1998 = vrot.slane %v1689, 1
  %v1999 = vsel %vm112, %v1990, %v1998
  %v2000 = vrot.slane %v1690, 1
  %v2001 = vsel %vm112, %v1992, %v2000
  %v2002 = vrot.slane %v1691, 1
  %v2003 = vsel %vm112, %v1994, %v2002
  %v2004 = vrot.slane %v1692, 1
  %v2005 = vsel %vm112, %v1996, %v2004
  %v2006 = vrot.slane %v1693, 1
  %v2007 = vsel %vm112, %v1998, %v2006
  %v2008 = vrot.slane %v1694, 1
  %v2009 = vsel %vm112, %v2000, %v2008
  %v2010 = vrot.slane %v1695, 1
  %v2011 = vsel %vm112, %v2002, %v2010
  %v2012 = vrot.slane %v1696, 1
  %v2013 = vsel %vm112, %v2004, %v2012
  %v2014 = vrot.slane %v1697, 1
  %v2015 = vsel %vm112, %v2006, %v2014
  %v2016 = vrot.slane %v1698, 1
  %v2017 = vsel %vm112, %v2008, %v2016
  %v2018 = vrot.slane %v1699, 1
  %v2019 = vsel %vm112, %v2010, %v2018
  %v2020 = vrot.slane %v1700, 1
  %v2021 = vsel %vm112, %v2012, %v2020
  %v2022 = vrot.slane %v1701, 1
  %v2023 = vsel %vm112, %v2014, %v2022
  %v2024 = vrot.slane %v1702, 1
  %v2025 = vsel %vm112, %v2016, %v2024
  %v2026 = vrot.slane %v1703, 1
  %v2027 = vsel %vm112, %v2018, %v2026
  %v2028 = vrot.slane %v1704, 1
  %v2029 = vsel %vm112, %v2020, %v2028
  %v2030 = vrot.slane %v1705, 1
  %v2031 = vsel %vm112, %v2022, %v2030
  %v2032 = vrot.slane %v1706, 1
  %v2033 = vsel %vm112, %v2024, %v2032
  %v2034 = vrot.slane %v1707, 1
  %v2035 = vsel %vm112, %v2026, %v2034
  %v2036 = vrot.slane %v1708, 1
  %v2037 = vsel %vm112, %v2028, %v2036
  %v2038 = vrot.slane %v1709, 1
  %v2039 = vsel %vm112, %v2030, %v2038
  %v2040 = vrot.slane %v1710, 1
  %v2041 = vsel %vm112, %v2032, %v2040
  %v2042 = vrot.slane %v1711, 1
  %v2043 = vsel %vm112, %v2034, %v2042
  %v2044 = vrot.slane %v1712, 1
  %v2045 = vsel %vm112, %v2036, %v2044
  %v2046 = vrot.slane %v1713, 1
  %v2047 = vsel %vm112, %v2038, %v2046
  %v2048 = vrot.slane %v1714, 1
  %v2049 = vsel %vm112, %v2040, %v2048
  %v2050 = vrot.slane %v1715, 1
  %v2051 = vsel %vm112, %v2042, %v2050
  %v2052 = vrot.slane %v1716, 1
  %v2053 = vsel %vm112, %v2044, %v2052
  %v2054 = vrot.slane %v1717, 1
  %v2055 = vsel %vm112, %v2046, %v2054
  %v2056 = vrot.slane %v1718, 1
  %v2057 = vsel %vm112, %v2048, %v2056
  %v2058 = vrot.slane %v1719, 1
  %v2059 = vsel %vm112, %v2050, %v2058
  %v2060 = vrot.slane %v1720, 1
  %v2061 = vsel %vm112, %v2052, %v2060
  %v2062 = vrot.slane %v1721, 1
  %v2063 = vsel %vm112, %v2054, %v2062
  %v2064 = vrot.slane %v1722, 1
  %v2065 = vsel %vm112, %v2056, %v2064
  %v2066 = vrot.slane %v1723, 1
  %v2067 = vsel %vm112, %v2058, %v2066
  %v2068 = vrot.slane %v1724, 1
  %v2069 = vsel %vm112, %v2060, %v2068
  %v2070 = vrot.slane %v1725, 1
  %v2071 = vsel %vm112, %v2062, %v2070
  %v2072 = vrot.slane %v1726, 1
  %v2073 = vsel %vm112, %v2064, %v2072
  %v2074 = vrot.slane %v1727, 1
  %v2075 = vsel %vm112, %v2066, %v2074
  %v2076 = vrot.slane %v1728, 1
  %v2077 = vsel %vm112, %v2068, %v2076
  %v2078 = vrot.slane %v1729, 1
  %v2079 = vsel %vm112, %v2070, %v2078
  %v2080 = vrot.slane %v1730, 1
  %v2081 = vsel %vm112, %v2072, %v2080
  %v2082 = vrot.slane %v1731, 1
  %v2083 = vsel %vm112, %v2074, %v2082
  %v2084 = vrot.slane %v1732, 1
  %v2085 = vsel %vm112, %v2076, %v2084
  %v2086 = vrot.slane %v1733, 1
  %v2087 = vsel %vm112, %v2078, %v2086
  %v2088 = vrot.slane %v1734, 1
  %v2089 = vsel %vm112, %v2080, %v2088
  %v2090 = vrot.slane %v1735, 1
  %v2091 = vsel %vm112, %v2082, %v2090
  %v2092 = vrot.slane %v1736, 1
  %v2093 = vsel %vm112, %v2084, %v2092
  %v2094 = vrot.slane %v1737, 1
  %v2095 = vsel %vm112, %v2086, %v2094
  %v2096 = vrot.slane %v1738, 1
  %v2097 = vsel %vm112, %v2088, %v2096
  %v2098 = vrot.slane %v1739, 1
  %v2099 = vsel %vm112, %v2090, %v2098
  %v2100 = vrot.slane %v1740, 1
  %v2101 = vsel %vm112, %v2092, %v2100
  %v2102 = vrot.slane %v1741, 1
  %v2103 = vsel %vm112, %v2094, %v2102
  %v2104 = vrot.slane %v1742, 1
  %v2105 = vsel %vm112, %v2096, %v2104
  %v2106 = vrot.slane %v1743, 1
  %v2107 = vsel %vm112, %v2098, %v2106
  %v2108 = vrot.slane %v1744, 1
  %v2109 = vsel %vm112, %v2100, %v2108
  %v2110 = vrot.slane %v1745, 1
  %v2111 = vsel %vm112, %v2102, %v2110
  %v2112 = vrot.slane %v1746, 1
  %v2113 = vsel %vm112, %v2104, %v2112
  %v2114 = vrot.slane %v1747, 1
  %v2115 = vsel %vm112, %v2106, %v2114
  %v2116 = vrot.slane %v1748, 1
  %v2117 = vsel %vm112, %v2108, %v2116
  %v2118 = vrot.slane %v1749, 1
  %v2119 = vsel %vm112, %v2110, %v2118
  %v2120 = vrot.slane %v1750, 1
  %v2121 = vsel %vm112, %v2112, %v2120
  %v2122 = vrot.slane %v1751, 1
  %v2123 = vsel %vm112, %v2114, %v2122
  %v2124 = vrot.slane %v1752, 1
  %v2125 = vsel %vm112, %v2116, %v2124
  %v2126 = vrot.slane %v1753, 1
  %v2127 = vsel %vm112, %v2118, %v2126
  %v2128 = vrot.slane %v1754, 1
  %v2129 = vsel %vm112, %v2120, %v2128
  %v2130 = vrot.slane %v1755, 1
  %v2131 = vsel %vm112, %v2122, %v2130
  %v2132 = vrot.slane %v1756, 1
  %v2133 = vsel %vm112, %v2124, %v2132
  %v2134 = vrot.slane %v1757, 1
  %v2135 = vsel %vm112, %v2126, %v2134
  %v2136 = vrot.slane %v1758, 1
  %v2137 = vsel %vm112, %v2128, %v2136
  %v2138 = vrot.slane %v1759, 1
  %v2139 = vsel %vm112, %v2130, %v2138
  %v2272 = vsel %vm112, %v2132, %v1888
  %v2273 = vsel %vm112, %v2134, %v1891
  %v2274 = vsel %vm112, %v2136, %v1894
  %v2275 = vsel %vm112, %v2138, %v1897
  %v2276 = vmax.f32 %v1632, %v1890
  %v2277 = vmax.f32 %v1633, %v1893
  %v2278 = vmax.f32 %v1634, %v1896
  %v2279 = vmax.f32 %v1635, %v1899
  %v2280 = vmax.f32 %v1636, %v1901
  %v2281 = vmax.f32 %v1637, %v1903
  %v2282 = vmax.f32 %v1638, %v1905
  %v2283 = vmax.f32 %v1639, %v1907
  %v2284 = vmax.f32 %v1640, %v1909
  %v2285 = vmax.f32 %v1641, %v1911
  %v2286 = vmax.f32 %v1642, %v1913
  %v2287 = vmax.f32 %v1643, %v1915
  %v2288 = vmax.f32 %v1644, %v1917
  %v2289 = vmax.f32 %v1645, %v1919
  %v2290 = vmax.f32 %v1646, %v1921
  %v2291 = vmax.f32 %v1647, %v1923
  %v2292 = vmax.f32 %v1648, %v1925
  %v2293 = vmax.f32 %v1649, %v1927
  %v2294 = vmax.f32 %v1650, %v1929
  %v2295 = vmax.f32 %v1651, %v1931
  %v2296 = vmax.f32 %v1652, %v1933
  %v2297 = vmax.f32 %v1653, %v1935
  %v2298 = vmax.f32 %v1654, %v1937
  %v2299 = vmax.f32 %v1655, %v1939
  %v2300 = vmax.f32 %v1656, %v1941
  %v2301 = vmax.f32 %v1657, %v1943
  %v2302 = vmax.f32 %v1658, %v1945
  %v2303 = vmax.f32 %v1659, %v1947
  %v2304 = vmax.f32 %v1660, %v1949
  %v2305 = vmax.f32 %v1661, %v1951
  %v2306 = vmax.f32 %v1662, %v1953
  %v2307 = vmax.f32 %v1663, %v1955
  %v2308 = vmax.f32 %v1664, %v1957
  %v2309 = vmax.f32 %v1665, %v1959
  %v2310 = vmax.f32 %v1666, %v1961
  %v2311 = vmax.f32 %v1667, %v1963
  %v2312 = vmax.f32 %v1668, %v1965
  %v2313 = vmax.f32 %v1669, %v1967
  %v2314 = vmax.f32 %v1670, %v1969
  %v2315 = vmax.f32 %v1671, %v1971
  %v2316 = vmax.f32 %v1672, %v1973
  %v2317 = vmax.f32 %v1673, %v1975
  %v2318 = vmax.f32 %v1674, %v1977
  %v2319 = vmax.f32 %v1675, %v1979
  %v2320 = vmax.f32 %v1676, %v1981
  %v2321 = vmax.f32 %v1677, %v1983
  %v2322 = vmax.f32 %v1678, %v1985
  %v2323 = vmax.f32 %v1679, %v1987
  %v2324 = vmax.f32 %v1680, %v1989
  %v2325 = vmax.f32 %v1681, %v1991
  %v2326 = vmax.f32 %v1682, %v1993
  %v2327 = vmax.f32 %v1683, %v1995
  %v2328 = vmax.f32 %v1684, %v1997
  %v2329 = vmax.f32 %v1685, %v1999
  %v2330 = vmax.f32 %v1686, %v2001
  %v2331 = vmax.f32 %v1687, %v2003
  %v2332 = vmax.f32 %v1688, %v2005
  %v2333 = vmax.f32 %v1689, %v2007
  %v2334 = vmax.f32 %v1690, %v2009
  %v2335 = vmax.f32 %v1691, %v2011
  %v2336 = vmax.f32 %v1692, %v2013
  %v2337 = vmax.f32 %v1693, %v2015
  %v2338 = vmax.f32 %v1694, %v2017
  %v2339 = vmax.f32 %v1695, %v2019
  %v2340 = vmax.f32 %v1696, %v2021
  %v2341 = vmax.f32 %v1697, %v2023
  %v2342 = vmax.f32 %v1698, %v2025
  %v2343 = vmax.f32 %v1699, %v2027
  %v2344 = vmax.f32 %v1700, %v2029
  %v2345 = vmax.f32 %v1701, %v2031
  %v2346 = vmax.f32 %v1702, %v2033
  %v2347 = vmax.f32 %v1703, %v2035
  %v2348 = vmax.f32 %v1704, %v2037
  %v2349 = vmax.f32 %v1705, %v2039
  %v2350 = vmax.f32 %v1706, %v2041
  %v2351 = vmax.f32 %v1707, %v2043
  %v2352 = vmax.f32 %v1708, %v2045
  %v2353 = vmax.f32 %v1709, %v2047
  %v2354 = vmax.f32 %v1710, %v2049
  %v2355 = vmax.f32 %v1711, %v2051
  %v2356 = vmax.f32 %v1712, %v2053
  %v2357 = vmax.f32 %v1713, %v2055
  %v2358 = vmax.f32 %v1714, %v2057
  %v2359 = vmax.f32 %v1715, %v2059
  %v2360 = vmax.f32 %v1716, %v2061
  %v2361 = vmax.f32 %v1717, %v2063
  %v2362 = vmax.f32 %v1718, %v2065
  %v2363 = vmax.f32 %v1719, %v2067
  %v2364 = vmax.f32 %v1720, %v2069
  %v2365 = vmax.f32 %v1721, %v2071
  %v2366 = vmax.f32 %v1722, %v2073
  %v2367 = vmax.f32 %v1723, %v2075
  %v2368 = vmax.f32 %v1724, %v2077
  %v2369 = vmax.f32 %v1725, %v2079
  %v2370 = vmax.f32 %v1726, %v2081
  %v2371 = vmax.f32 %v1727, %v2083
  %v2372 = vmax.f32 %v1728, %v2085
  %v2373 = vmax.f32 %v1729, %v2087
  %v2374 = vmax.f32 %v1730, %v2089
  %v2375 = vmax.f32 %v1731, %v2091
  %v2376 = vmax.f32 %v1732, %v2093
  %v2377 = vmax.f32 %v1733, %v2095
  %v2378 = vmax.f32 %v1734, %v2097
  %v2379 = vmax.f32 %v1735, %v2099
  %v2380 = vmax.f32 %v1736, %v2101
  %v2381 = vmax.f32 %v1737, %v2103
  %v2382 = vmax.f32 %v1738, %v2105
  %v2383 = vmax.f32 %v1739, %v2107
  %v2384 = vmax.f32 %v1740, %v2109
  %v2385 = vmax.f32 %v1741, %v2111
  %v2386 = vmax.f32 %v1742, %v2113
  %v2387 = vmax.f32 %v1743, %v2115
  %v2388 = vmax.f32 %v1744, %v2117
  %v2389 = vmax.f32 %v1745, %v2119
  %v2390 = vmax.f32 %v1746, %v2121
  %v2391 = vmax.f32 %v1747, %v2123
  %v2392 = vmax.f32 %v1748, %v2125
  %v2393 = vmax.f32 %v1749, %v2127
  %v2394 = vmax.f32 %v1750, %v2129
  %v2395 = vmax.f32 %v1751, %v2131
  %v2396 = vmax.f32 %v1752, %v2133
  %v2397 = vmax.f32 %v1753, %v2135
  %v2398 = vmax.f32 %v1754, %v2137
  %v2399 = vmax.f32 %v1755, %v2139
  %v2400 = vmax.f32 %v1756, %v2272
  %v2401 = vmax.f32 %v1757, %v2273
  %v2402 = vmax.f32 %v1758, %v2274
  %v2403 = vmax.f32 %v1759, %v2275
  %v2404 = vld [vmem:[%s4] sm:$0xff]
  %v2405 = vld [vmem:[%s4 + $0x8] sm:$0xff]
  %v2406 = vld [vmem:[%s4 + $0x10] sm:$0xff]
  %v2407 = vld [vmem:[%s4 + $0x18] sm:$0xff]
  %v2408 = vld [vmem:[%s4 + $0x20] sm:$0xff]
  %v2409 = vld [vmem:[%s4 + $0x28] sm:$0xff]
  %v2410 = vld [vmem:[%s4 + $0x30] sm:$0xff]
  %v2411 = vld [vmem:[%s4 + $0x38] sm:$0xff]
  %v2412 = vld [vmem:[%s4 + $0x40] sm:$0xff]
  %v2413 = vld [vmem:[%s4 + $0x48] sm:$0xff]
  %v2414 = vld [vmem:[%s4 + $0x50] sm:$0xff]
  %v2415 = vld [vmem:[%s4 + $0x58] sm:$0xff]
  %v2416 = vld [vmem:[%s4 + $0x60] sm:$0xff]
  %v2417 = vld [vmem:[%s4 + $0x68] sm:$0xff]
  %v2418 = vld [vmem:[%s4 + $0x70] sm:$0xff]
  %v2419 = vld [vmem:[%s4 + $0x78] sm:$0xff]
  %v2420 = vpack.c.bf16 %v2280, %v2276
  %v2421 = vpack.c.bf16 %v2281, %v2277
  %v2422 = vpack.c.bf16 %v2282, %v2278
  %v2423 = vpack.c.bf16 %v2283, %v2279
  %v2424 = vpack.c.bf16 %v2288, %v2284
  %v2425 = vpack.c.bf16 %v2289, %v2285
  %v2426 = vpack.c.bf16 %v2290, %v2286
  %v2427 = vpack.c.bf16 %v2291, %v2287
  %v2428 = vpack.c.bf16 %v2296, %v2292
  %v2429 = vpack.c.bf16 %v2297, %v2293
  %v2430 = vpack.c.bf16 %v2298, %v2294
  %v2431 = vpack.c.bf16 %v2299, %v2295
  %v2432 = vpack.c.bf16 %v2304, %v2300
  %v2433 = vpack.c.bf16 %v2305, %v2301
  %v2434 = vpack.c.bf16 %v2306, %v2302
  %v2435 = vpack.c.bf16 %v2307, %v2303
  %v2436 = vpack.c.bf16 %v2312, %v2308
  %v2437 = vpack.c.bf16 %v2313, %v2309
  %v2438 = vpack.c.bf16 %v2314, %v2310
  %v2439 = vpack.c.bf16 %v2315, %v2311
  %v2440 = vpack.c.bf16 %v2320, %v2316
  %v2441 = vpack.c.bf16 %v2321, %v2317
  %v2442 = vpack.c.bf16 %v2322, %v2318
  %v2443 = vpack.c.bf16 %v2323, %v2319
  %v2444 = vpack.c.bf16 %v2328, %v2324
  %v2445 = vpack.c.bf16 %v2329, %v2325
  %v2446 = vpack.c.bf16 %v2330, %v2326
  %v2447 = vpack.c.bf16 %v2331, %v2327
  %v2448 = vpack.c.bf16 %v2336, %v2332
  %v2449 = vpack.c.bf16 %v2337, %v2333
  %v2450 = vpack.c.bf16 %v2338, %v2334
  %v2451 = vpack.c.bf16 %v2339, %v2335
  %v2452 = vpack.c.bf16 %v2344, %v2340
  %v2453 = vpack.c.bf16 %v2345, %v2341
  %v2454 = vpack.c.bf16 %v2346, %v2342
  %v2455 = vpack.c.bf16 %v2347, %v2343
  %v2456 = vpack.c.bf16 %v2352, %v2348
  %v2457 = vpack.c.bf16 %v2353, %v2349
  %v2458 = vpack.c.bf16 %v2354, %v2350
  %v2459 = vpack.c.bf16 %v2355, %v2351
  %v2460 = vpack.c.bf16 %v2360, %v2356
  %v2461 = vpack.c.bf16 %v2361, %v2357
  %v2462 = vpack.c.bf16 %v2362, %v2358
  %v2463 = vpack.c.bf16 %v2363, %v2359
  %v2464 = vpack.c.bf16 %v2368, %v2364
  %v2465 = vpack.c.bf16 %v2369, %v2365
  %v2466 = vpack.c.bf16 %v2370, %v2366
  %v2467 = vpack.c.bf16 %v2371, %v2367
  %v2468 = vpack.c.bf16 %v2376, %v2372
  %v2469 = vpack.c.bf16 %v2377, %v2373
  %v2470 = vpack.c.bf16 %v2378, %v2374
  %v2471 = vpack.c.bf16 %v2379, %v2375
  %v2472 = vpack.c.bf16 %v2384, %v2380
  %v2473 = vpack.c.bf16 %v2385, %v2381
  %v2474 = vpack.c.bf16 %v2386, %v2382
  %v2475 = vpack.c.bf16 %v2387, %v2383
  %v2476 = vpack.c.bf16 %v2392, %v2388
  %v2477 = vpack.c.bf16 %v2393, %v2389
  %v2478 = vpack.c.bf16 %v2394, %v2390
  %v2479 = vpack.c.bf16 %v2395, %v2391
  %v2480 = vpack.c.bf16 %v2400, %v2396
  %v2481 = vpack.c.bf16 %v2401, %v2397
  %v2482 = vpack.c.bf16 %v2402, %v2398
  %v2483 = vpack.c.bf16 %v2403, %v2399
  %v2484 = vld [vmem:[%s3] sm:$0xf]
  %v2486 = vlaneseq
  %v2487 = vshrl.u32 %v2486, 7
  %v2488 = vsub.s32 0, %v2487
  %v2489 = vrot.slane %v2484, %v2488
  %v2490 = vlaneseq
  %v2491 = vshrl.u32 %v2490, 7
  %v2492 = vsub.s32 1, %v2491
  %v2493 = vrot.slane %v2484, %v2492
  %v2494 = vlaneseq
  %v2495 = vshrl.u32 %v2494, 7
  %v2496 = vsub.s32 2, %v2495
  %v2497 = vrot.slane %v2484, %v2496
  %v2498 = vlaneseq
  %v2499 = vshrl.u32 %v2498, 7
  %v2500 = vsub.s32 3, %v2499
  %v2501 = vrot.slane %v2484, %v2500
  %v2522 = vunpack.c.l.b16 %v2404
  %v2523 = vunpack.c.h.b16 %v2404
  %v2524 = vunpack.c.l.b16 %v2405
  %v2525 = vunpack.c.h.b16 %v2405
  %v2526 = vunpack.c.l.b16 %v2406
  %v2527 = vunpack.c.h.b16 %v2406
  %v2528 = vunpack.c.l.b16 %v2407
  %v2529 = vunpack.c.h.b16 %v2407
  %v2530 = vunpack.c.l.b16 %v2408
  %v2531 = vunpack.c.h.b16 %v2408
  %v2532 = vunpack.c.l.b16 %v2409
  %v2533 = vunpack.c.h.b16 %v2409
  %v2534 = vunpack.c.l.b16 %v2410
  %v2535 = vunpack.c.h.b16 %v2410
  %v2536 = vunpack.c.l.b16 %v2411
  %v2537 = vunpack.c.h.b16 %v2411
  %v2538 = vunpack.c.l.b16 %v2412
  %v2539 = vunpack.c.h.b16 %v2412
  %v2540 = vunpack.c.l.b16 %v2413
  %v2541 = vunpack.c.h.b16 %v2413
  %v2542 = vunpack.c.l.b16 %v2414
  %v2543 = vunpack.c.h.b16 %v2414
  %v2544 = vunpack.c.l.b16 %v2415
  %v2545 = vunpack.c.h.b16 %v2415
  %v2546 = vunpack.c.l.b16 %v2416
  %v2547 = vunpack.c.h.b16 %v2416
  %v2548 = vunpack.c.l.b16 %v2417
  %v2549 = vunpack.c.h.b16 %v2417
  %v2550 = vunpack.c.l.b16 %v2418
  %v2551 = vunpack.c.h.b16 %v2418
  %v2552 = vunpack.c.l.b16 %v2419
  %v2553 = vunpack.c.h.b16 %v2419
  %v2554 = vpack.c.b16 %v2524, %v2522
  %v2555 = vpack.c.b16 %v2525, %v2523
  %v2556 = vpack.c.b16 %v2528, %v2526
  %v2557 = vpack.c.b16 %v2529, %v2527
  %v2558 = vpack.c.b16 %v2532, %v2530
  %v2559 = vpack.c.b16 %v2533, %v2531
  %v2560 = vpack.c.b16 %v2536, %v2534
  %v2561 = vpack.c.b16 %v2537, %v2535
  %v2562 = vpack.c.b16 %v2540, %v2538
  %v2563 = vpack.c.b16 %v2541, %v2539
  %v2564 = vpack.c.b16 %v2544, %v2542
  %v2565 = vpack.c.b16 %v2545, %v2543
  %v2566 = vpack.c.b16 %v2548, %v2546
  %v2567 = vpack.c.b16 %v2549, %v2547
  %v2568 = vpack.c.b16 %v2552, %v2550
  %v2569 = vpack.c.b16 %v2553, %v2551
  %2586 = vmatprep.subr.bf16.mxu0 %v2421
  %2587 = vmatpush1.bf16.msra.mxu0 %v2420
  %2588 = vmatprep.subr.bf16.mxu0 %v2425
  %2589 = vmatpush1.bf16.msra.mxu0 %v2424
  %2590 = vmatprep.subr.bf16.mxu0 %v2429
  %2591 = vmatpush1.bf16.msra.mxu0 %v2428
  %2592 = vmatprep.subr.bf16.mxu0 %v2433
  %2593 = vmatpush1.bf16.msra.mxu0 %v2432
  %2594 = vmatprep.subr.bf16.mxu0 %v2437
  %2595 = vmatpush1.bf16.msra.mxu0 %v2436
  %2596 = vmatprep.subr.bf16.mxu0 %v2441
  %2597 = vmatpush1.bf16.msra.mxu0 %v2440
  %2598 = vmatprep.subr.bf16.mxu0 %v2445
  %2599 = vmatpush1.bf16.msra.mxu0 %v2444
  %2600 = vmatprep.subr.bf16.mxu0 %v2449
  %2601 = vmatpush1.bf16.msra.mxu0 %v2448
  %2602 = vmatprep.subr.bf16.mxu0 %v2453
  %2603 = vmatpush1.bf16.msra.mxu0 %v2452
  %2604 = vmatprep.subr.bf16.mxu0 %v2457
  %2605 = vmatpush1.bf16.msra.mxu0 %v2456
  %2606 = vmatprep.subr.bf16.mxu0 %v2461
  %2607 = vmatpush1.bf16.msra.mxu0 %v2460
  %2608 = vmatprep.subr.bf16.mxu0 %v2465
  %2609 = vmatpush1.bf16.msra.mxu0 %v2464
  %2610 = vmatprep.subr.bf16.mxu0 %v2469
  %2611 = vmatpush1.bf16.msra.mxu0 %v2468
  %2612 = vmatprep.subr.bf16.mxu0 %v2473
  %2613 = vmatpush1.bf16.msra.mxu0 %v2472
  %2614 = vmatprep.subr.bf16.mxu0 %v2477
  %2615 = vmatpush1.bf16.msra.mxu0 %v2476
  %2616 = vmatprep.subr.bf16.mxu0 %v2481
  %2617 = vmatpush1.bf16.msra.mxu0 %v2480
  %2618 = vmatprep.mubr.bf16.mxu0 %v2555
  %2619 = vmatmul.mubr.bf16.gmra.mrb[0].mxu0 %v2554
  %v2620 = vpop.f32.mrb[0].mxu0
  %v2621 = vadd.f32 %v2489, %v2620
  %v2622 = vpop.f32.mrb[0].mxu0
  %v2623 = vadd.f32 %v2493, %v2622
  %v2624 = vpop.f32.mrb[0].mxu0
  %v2625 = vadd.f32 %v2489, %v2624
  %v2626 = vpop.f32.mrb[0].mxu0
  %v2627 = vadd.f32 %v2493, %v2626
  %2628 = vmatprep.mubr.bf16.mxu0 %v2557
  %2629 = vmatmul.mubr.bf16.gmra.mrb[0].mxu0 %v2556
  %v2630 = vpop.f32.mrb[0].mxu0
  %v2631 = vadd.f32 %v2489, %v2630
  %v2632 = vpop.f32.mrb[0].mxu0
  %v2633 = vadd.f32 %v2493, %v2632
  %v2634 = vpop.f32.mrb[0].mxu0
  %v2635 = vadd.f32 %v2489, %v2634
  %v2636 = vpop.f32.mrb[0].mxu0
  %v2637 = vadd.f32 %v2493, %v2636
  %2638 = vmatprep.mubr.bf16.mxu0 %v2559
  %2639 = vmatmul.mubr.bf16.gmra.mrb[0].mxu0 %v2558
  %v2640 = vpop.f32.mrb[0].mxu0
  %v2641 = vadd.f32 %v2489, %v2640
  %v2642 = vpop.f32.mrb[0].mxu0
  %v2643 = vadd.f32 %v2493, %v2642
  %v2644 = vpop.f32.mrb[0].mxu0
  %v2645 = vadd.f32 %v2489, %v2644
  %v2646 = vpop.f32.mrb[0].mxu0
  %v2647 = vadd.f32 %v2493, %v2646
  %2648 = vmatprep.mubr.bf16.mxu0 %v2561
  %2649 = vmatmul.mubr.bf16.gmra.mrb[0].mxu0 %v2560
  %v2650 = vpop.f32.mrb[0].mxu0
  %v2651 = vadd.f32 %v2489, %v2650
  %v2652 = vpop.f32.mrb[0].mxu0
  %v2653 = vadd.f32 %v2493, %v2652
  %v2654 = vpop.f32.mrb[0].mxu0
  %v2655 = vadd.f32 %v2489, %v2654
  %v2656 = vpop.f32.mrb[0].mxu0
  %v2657 = vadd.f32 %v2493, %v2656
  %2658 = vmatprep.mubr.bf16.mxu0 %v2563
  %2659 = vmatmul.mubr.bf16.gmra.mrb[0].mxu0 %v2562
  %v2660 = vpop.f32.mrb[0].mxu0
  %v2661 = vadd.f32 %v2489, %v2660
  %v2662 = vpop.f32.mrb[0].mxu0
  %v2663 = vadd.f32 %v2493, %v2662
  %v2664 = vpop.f32.mrb[0].mxu0
  %v2665 = vadd.f32 %v2489, %v2664
  %v2666 = vpop.f32.mrb[0].mxu0
  %v2667 = vadd.f32 %v2493, %v2666
  %2668 = vmatprep.mubr.bf16.mxu0 %v2565
  %2669 = vmatmul.mubr.bf16.gmra.mrb[0].mxu0 %v2564
  %v2670 = vpop.f32.mrb[0].mxu0
  %v2671 = vadd.f32 %v2489, %v2670
  %v2672 = vpop.f32.mrb[0].mxu0
  %v2673 = vadd.f32 %v2493, %v2672
  %v2674 = vpop.f32.mrb[0].mxu0
  %v2675 = vadd.f32 %v2489, %v2674
  %v2676 = vpop.f32.mrb[0].mxu0
  %v2677 = vadd.f32 %v2493, %v2676
  %2678 = vmatprep.mubr.bf16.mxu0 %v2567
  %2679 = vmatmul.mubr.bf16.gmra.mrb[0].mxu0 %v2566
  %v2680 = vpop.f32.mrb[0].mxu0
  %v2681 = vadd.f32 %v2489, %v2680
  %v2682 = vpop.f32.mrb[0].mxu0
  %v2683 = vadd.f32 %v2493, %v2682
  %v2684 = vpop.f32.mrb[0].mxu0
  %v2685 = vadd.f32 %v2489, %v2684
  %v2686 = vpop.f32.mrb[0].mxu0
  %v2687 = vadd.f32 %v2493, %v2686
  %2688 = vmatprep.mubr.bf16.mxu0 %v2569
  %2689 = vmatmul.mubr.bf16.gmra.mrb[0].mxu0 %v2568
  %v2690 = vpop.f32.mrb[0].mxu0
  %v2691 = vadd.f32 %v2489, %v2690
  %v2692 = vpop.f32.mrb[0].mxu0
  %v2693 = vadd.f32 %v2493, %v2692
  %v2694 = vpop.f32.mrb[0].mxu0
  %v2695 = vadd.f32 %v2489, %v2694
  %v2696 = vpop.f32.mrb[0].mxu0
  %v2697 = vadd.f32 %v2493, %v2696
  %2698 = vdwg.mxu0
  %2699 = vmatprep.subr.bf16.mxu0 %v2423
  %2700 = vmatpush1.bf16.msra.mxu0 %v2422
  %2701 = vmatprep.subr.bf16.mxu0 %v2427
  %2702 = vmatpush1.bf16.msra.mxu0 %v2426
  %2703 = vmatprep.subr.bf16.mxu0 %v2431
  %2704 = vmatpush1.bf16.msra.mxu0 %v2430
  %2705 = vmatprep.subr.bf16.mxu0 %v2435
  %2706 = vmatpush1.bf16.msra.mxu0 %v2434
  %2707 = vmatprep.subr.bf16.mxu0 %v2439
  %2708 = vmatpush1.bf16.msra.mxu0 %v2438
  %2709 = vmatprep.subr.bf16.mxu0 %v2443
  %2710 = vmatpush1.bf16.msra.mxu0 %v2442
  %2711 = vmatprep.subr.bf16.mxu0 %v2447
  %2712 = vmatpush1.bf16.msra.mxu0 %v2446
  %2713 = vmatprep.subr.bf16.mxu0 %v2451
  %2714 = vmatpush1.bf16.msra.mxu0 %v2450
  %2715 = vmatprep.subr.bf16.mxu0 %v2455
  %2716 = vmatpush1.bf16.msra.mxu0 %v2454
  %2717 = vmatprep.subr.bf16.mxu0 %v2459
  %2718 = vmatpush1.bf16.msra.mxu0 %v2458
  %2719 = vmatprep.subr.bf16.mxu0 %v2463
  %2720 = vmatpush1.bf16.msra.mxu0 %v2462
  %2721 = vmatprep.subr.bf16.mxu0 %v2467
  %2722 = vmatpush1.bf16.msra.mxu0 %v2466
  %2723 = vmatprep.subr.bf16.mxu0 %v2471
  %2724 = vmatpush1.bf16.msra.mxu0 %v2470
  %2725 = vmatprep.subr.bf16.mxu0 %v2475
  %2726 = vmatpush1.bf16.msra.mxu0 %v2474
  %2727 = vmatprep.subr.bf16.mxu0 %v2479
  %2728 = vmatpush1.bf16.msra.mxu0 %v2478
  %2729 = vmatprep.subr.bf16.mxu0 %v2483
  %2730 = vmatpush1.bf16.msra.mxu0 %v2482
  %2731 = vmatprep.mubr.bf16.mxu0 %v2555
  %2732 = vmatmul.mubr.bf16.gmra.mrb[0].mxu0 %v2554
  %v2733 = vpop.f32.mrb[0].mxu0
  %v2734 = vadd.f32 %v2497, %v2733
  %v2735 = vpop.f32.mrb[0].mxu0
  %v2736 = vadd.f32 %v2501, %v2735
  %v2737 = vpop.f32.mrb[0].mxu0
  %v2738 = vadd.f32 %v2497, %v2737
  %v2739 = vpop.f32.mrb[0].mxu0
  %v2740 = vadd.f32 %v2501, %v2739
  %2741 = vmatprep.mubr.bf16.mxu0 %v2557
  %2742 = vmatmul.mubr.bf16.gmra.mrb[0].mxu0 %v2556
  %v2743 = vpop.f32.mrb[0].mxu0
  %v2744 = vadd.f32 %v2497, %v2743
  %v2745 = vpop.f32.mrb[0].mxu0
  %v2746 = vadd.f32 %v2501, %v2745
  %v2747 = vpop.f32.mrb[0].mxu0
  %v2748 = vadd.f32 %v2497, %v2747
  %v2749 = vpop.f32.mrb[0].mxu0
  %v2750 = vadd.f32 %v2501, %v2749
  %2751 = vmatprep.mubr.bf16.mxu0 %v2559
  %2752 = vmatmul.mubr.bf16.gmra.mrb[0].mxu0 %v2558
  %v2753 = vpop.f32.mrb[0].mxu0
  %v2754 = vadd.f32 %v2497, %v2753
  %v2755 = vpop.f32.mrb[0].mxu0
  %v2756 = vadd.f32 %v2501, %v2755
  %v2757 = vpop.f32.mrb[0].mxu0
  %v2758 = vadd.f32 %v2497, %v2757
  %v2759 = vpop.f32.mrb[0].mxu0
  %v2760 = vadd.f32 %v2501, %v2759
  %2761 = vmatprep.mubr.bf16.mxu0 %v2561
  %2762 = vmatmul.mubr.bf16.gmra.mrb[0].mxu0 %v2560
  %v2763 = vpop.f32.mrb[0].mxu0
  %v2764 = vadd.f32 %v2497, %v2763
  %v2765 = vpop.f32.mrb[0].mxu0
  %v2766 = vadd.f32 %v2501, %v2765
  %v2767 = vpop.f32.mrb[0].mxu0
  %v2768 = vadd.f32 %v2497, %v2767
  %v2769 = vpop.f32.mrb[0].mxu0
  %v2770 = vadd.f32 %v2501, %v2769
  %2771 = vmatprep.mubr.bf16.mxu0 %v2563
  %2772 = vmatmul.mubr.bf16.gmra.mrb[0].mxu0 %v2562
  %v2773 = vpop.f32.mrb[0].mxu0
  %v2774 = vadd.f32 %v2497, %v2773
  %v2775 = vpop.f32.mrb[0].mxu0
  %v2776 = vadd.f32 %v2501, %v2775
  %v2777 = vpop.f32.mrb[0].mxu0
  %v2778 = vadd.f32 %v2497, %v2777
  %v2779 = vpop.f32.mrb[0].mxu0
  %v2780 = vadd.f32 %v2501, %v2779
  %2781 = vmatprep.mubr.bf16.mxu0 %v2565
  %2782 = vmatmul.mubr.bf16.gmra.mrb[0].mxu0 %v2564
  %v2783 = vpop.f32.mrb[0].mxu0
  %v2784 = vadd.f32 %v2497, %v2783
  %v2785 = vpop.f32.mrb[0].mxu0
  %v2786 = vadd.f32 %v2501, %v2785
  %v2787 = vpop.f32.mrb[0].mxu0
  %v2788 = vadd.f32 %v2497, %v2787
  %v2789 = vpop.f32.mrb[0].mxu0
  %v2790 = vadd.f32 %v2501, %v2789
  %2791 = vmatprep.mubr.bf16.mxu0 %v2567
  %2792 = vmatmul.mubr.bf16.gmra.mrb[0].mxu0 %v2566
  %v2793 = vpop.f32.mrb[0].mxu0
  %v2794 = vadd.f32 %v2497, %v2793
  %v2795 = vpop.f32.mrb[0].mxu0
  %v2796 = vadd.f32 %v2501, %v2795
  %v2797 = vpop.f32.mrb[0].mxu0
  %v2798 = vadd.f32 %v2497, %v2797
  %v2799 = vpop.f32.mrb[0].mxu0
  %v2800 = vadd.f32 %v2501, %v2799
  %2801 = vmatprep.mubr.bf16.mxu0 %v2569
  %2802 = vmatmul.mubr.bf16.gmra.mrb[0].mxu0 %v2568
  %v2803 = vpop.f32.mrb[0].mxu0
  %v2804 = vadd.f32 %v2497, %v2803
  %v2805 = vpop.f32.mrb[0].mxu0
  %v2806 = vadd.f32 %v2501, %v2805
  %v2807 = vpop.f32.mrb[0].mxu0
  %v2808 = vadd.f32 %v2497, %v2807
  %v2809 = vpop.f32.mrb[0].mxu0
  %v2810 = vadd.f32 %v2501, %v2809
  %2811 = vdwg.mxu0
  %v2812 = vmax.f32 %v2621, 0.0
  %v2813 = vmax.f32 %v2623, 0.0
  %v2814 = vmax.f32 %v2734, 0.0
  %v2815 = vmax.f32 %v2736, 0.0
  %v2816 = vmax.f32 %v2625, 0.0
  %v2817 = vmax.f32 %v2627, 0.0
  %v2818 = vmax.f32 %v2738, 0.0
  %v2819 = vmax.f32 %v2740, 0.0
  %v2820 = vmax.f32 %v2631, 0.0
  %v2821 = vmax.f32 %v2633, 0.0
  %v2822 = vmax.f32 %v2744, 0.0
  %v2823 = vmax.f32 %v2746, 0.0
  %v2824 = vmax.f32 %v2635, 0.0
  %v2825 = vmax.f32 %v2637, 0.0
  %v2826 = vmax.f32 %v2748, 0.0
  %v2827 = vmax.f32 %v2750, 0.0
  %v2828 = vmax.f32 %v2641, 0.0
  %v2829 = vmax.f32 %v2643, 0.0
  %v2830 = vmax.f32 %v2754, 0.0
  %v2831 = vmax.f32 %v2756, 0.0
  %v2832 = vmax.f32 %v2645, 0.0
  %v2833 = vmax.f32 %v2647, 0.0
  %v2834 = vmax.f32 %v2758, 0.0
  %v2835 = vmax.f32 %v2760, 0.0
  %v2836 = vmax.f32 %v2651, 0.0
  %v2837 = vmax.f32 %v2653, 0.0
  %v2838 = vmax.f32 %v2764, 0.0
  %v2839 = vmax.f32 %v2766, 0.0
  %v2840 = vmax.f32 %v2655, 0.0
  %v2841 = vmax.f32 %v2657, 0.0
  %v2842 = vmax.f32 %v2768, 0.0
  %v2843 = vmax.f32 %v2770, 0.0
  %v2844 = vmax.f32 %v2661, 0.0
  %v2845 = vmax.f32 %v2663, 0.0
  %v2846 = vmax.f32 %v2774, 0.0
  %v2847 = vmax.f32 %v2776, 0.0
  %v2848 = vmax.f32 %v2665, 0.0
  %v2849 = vmax.f32 %v2667, 0.0
  %v2850 = vmax.f32 %v2778, 0.0
  %v2851 = vmax.f32 %v2780, 0.0
  %v2852 = vmax.f32 %v2671, 0.0
  %v2853 = vmax.f32 %v2673, 0.0
  %v2854 = vmax.f32 %v2784, 0.0
  %v2855 = vmax.f32 %v2786, 0.0
  %v2856 = vmax.f32 %v2675, 0.0
  %v2857 = vmax.f32 %v2677, 0.0
  %v2858 = vmax.f32 %v2788, 0.0
  %v2859 = vmax.f32 %v2790, 0.0
  %v2860 = vmax.f32 %v2681, 0.0
  %v2861 = vmax.f32 %v2683, 0.0
  %v2862 = vmax.f32 %v2794, 0.0
  %v2863 = vmax.f32 %v2796, 0.0
  %v2864 = vmax.f32 %v2685, 0.0
  %v2865 = vmax.f32 %v2687, 0.0
  %v2866 = vmax.f32 %v2798, 0.0
  %v2867 = vmax.f32 %v2800, 0.0
  %v2868 = vmax.f32 %v2691, 0.0
  %v2869 = vmax.f32 %v2693, 0.0
  %v2870 = vmax.f32 %v2804, 0.0
  %v2871 = vmax.f32 %v2806, 0.0
  %v2872 = vmax.f32 %v2695, 0.0
  %v2873 = vmax.f32 %v2697, 0.0
  %v2874 = vmax.f32 %v2808, 0.0
  %v2875 = vmax.f32 %v2810, 0.0
  %v2940 = vrot.slane %v2812, 1
  %v2941 = vrot.slane %v2816, 1
  %v2942 = vsel %vm112, %v2940, %v2941
  %v2943 = vrot.slane %v2813, 1
  %v2944 = vrot.slane %v2817, 1
  %v2945 = vsel %vm112, %v2943, %v2944
  %v2946 = vrot.slane %v2814, 1
  %v2947 = vrot.slane %v2818, 1
  %v2948 = vsel %vm112, %v2946, %v2947
  %v2949 = vrot.slane %v2815, 1
  %v2950 = vrot.slane %v2819, 1
  %v2951 = vsel %vm112, %v2949, %v2950
  %v2952 = vrot.slane %v2820, 1
  %v2953 = vsel %vm112, %v2941, %v2952
  %v2954 = vrot.slane %v2821, 1
  %v2955 = vsel %vm112, %v2944, %v2954
  %v2956 = vrot.slane %v2822, 1
  %v2957 = vsel %vm112, %v2947, %v2956
  %v2958 = vrot.slane %v2823, 1
  %v2959 = vsel %vm112, %v2950, %v2958
  %v2960 = vrot.slane %v2824, 1
  %v2961 = vsel %vm112, %v2952, %v2960
  %v2962 = vrot.slane %v2825, 1
  %v2963 = vsel %vm112, %v2954, %v2962
  %v2964 = vrot.slane %v2826, 1
  %v2965 = vsel %vm112, %v2956, %v2964
  %v2966 = vrot.slane %v2827, 1
  %v2967 = vsel %vm112, %v2958, %v2966
  %v2968 = vrot.slane %v2828, 1
  %v2969 = vsel %vm112, %v2960, %v2968
  %v2970 = vrot.slane %v2829, 1
  %v2971 = vsel %vm112, %v2962, %v2970
  %v2972 = vrot.slane %v2830, 1
  %v2973 = vsel %vm112, %v2964, %v2972
  %v2974 = vrot.slane %v2831, 1
  %v2975 = vsel %vm112, %v2966, %v2974
  %v2976 = vrot.slane %v2832, 1
  %v2977 = vsel %vm112, %v2968, %v2976
  %v2978 = vrot.slane %v2833, 1
  %v2979 = vsel %vm112, %v2970, %v2978
  %v2980 = vrot.slane %v2834, 1
  %v2981 = vsel %vm112, %v2972, %v2980
  %v2982 = vrot.slane %v2835, 1
  %v2983 = vsel %vm112, %v2974, %v2982
  %v2984 = vrot.slane %v2836, 1
  %v2985 = vsel %vm112, %v2976, %v2984
  %v2986 = vrot.slane %v2837, 1
  %v2987 = vsel %vm112, %v2978, %v2986
  %v2988 = vrot.slane %v2838, 1
  %v2989 = vsel %vm112, %v2980, %v2988
  %v2990 = vrot.slane %v2839, 1
  %v2991 = vsel %vm112, %v2982, %v2990
  %v2992 = vrot.slane %v2840, 1
  %v2993 = vsel %vm112, %v2984, %v2992
  %v2994 = vrot.slane %v2841, 1
  %v2995 = vsel %vm112, %v2986, %v2994
  %v2996 = vrot.slane %v2842, 1
  %v2997 = vsel %vm112, %v2988, %v2996
  %v2998 = vrot.slane %v2843, 1
  %v2999 = vsel %vm112, %v2990, %v2998
  %v3000 = vrot.slane %v2844, 1
  %v3001 = vsel %vm112, %v2992, %v3000
  %v3002 = vrot.slane %v2845, 1
  %v3003 = vsel %vm112, %v2994, %v3002
  %v3004 = vrot.slane %v2846, 1
  %v3005 = vsel %vm112, %v2996, %v3004
  %v3006 = vrot.slane %v2847, 1
  %v3007 = vsel %vm112, %v2998, %v3006
  %v3008 = vrot.slane %v2848, 1
  %v3009 = vsel %vm112, %v3000, %v3008
  %v3010 = vrot.slane %v2849, 1
  %v3011 = vsel %vm112, %v3002, %v3010
  %v3012 = vrot.slane %v2850, 1
  %v3013 = vsel %vm112, %v3004, %v3012
  %v3014 = vrot.slane %v2851, 1
  %v3015 = vsel %vm112, %v3006, %v3014
  %v3016 = vrot.slane %v2852, 1
  %v3017 = vsel %vm112, %v3008, %v3016
  %v3018 = vrot.slane %v2853, 1
  %v3019 = vsel %vm112, %v3010, %v3018
  %v3020 = vrot.slane %v2854, 1
  %v3021 = vsel %vm112, %v3012, %v3020
  %v3022 = vrot.slane %v2855, 1
  %v3023 = vsel %vm112, %v3014, %v3022
  %v3024 = vrot.slane %v2856, 1
  %v3025 = vsel %vm112, %v3016, %v3024
  %v3026 = vrot.slane %v2857, 1
  %v3027 = vsel %vm112, %v3018, %v3026
  %v3028 = vrot.slane %v2858, 1
  %v3029 = vsel %vm112, %v3020, %v3028
  %v3030 = vrot.slane %v2859, 1
  %v3031 = vsel %vm112, %v3022, %v3030
  %v3032 = vrot.slane %v2860, 1
  %v3033 = vsel %vm112, %v3024, %v3032
  %v3034 = vrot.slane %v2861, 1
  %v3035 = vsel %vm112, %v3026, %v3034
  %v3036 = vrot.slane %v2862, 1
  %v3037 = vsel %vm112, %v3028, %v3036
  %v3038 = vrot.slane %v2863, 1
  %v3039 = vsel %vm112, %v3030, %v3038
  %v3040 = vrot.slane %v2864, 1
  %v3041 = vsel %vm112, %v3032, %v3040
  %v3042 = vrot.slane %v2865, 1
  %v3043 = vsel %vm112, %v3034, %v3042
  %v3044 = vrot.slane %v2866, 1
  %v3045 = vsel %vm112, %v3036, %v3044
  %v3046 = vrot.slane %v2867, 1
  %v3047 = vsel %vm112, %v3038, %v3046
  %v3048 = vrot.slane %v2868, 1
  %v3049 = vsel %vm112, %v3040, %v3048
  %v3050 = vrot.slane %v2869, 1
  %v3051 = vsel %vm112, %v3042, %v3050
  %v3052 = vrot.slane %v2870, 1
  %v3053 = vsel %vm112, %v3044, %v3052
  %v3054 = vrot.slane %v2871, 1
  %v3055 = vsel %vm112, %v3046, %v3054
  %v3056 = vrot.slane %v2872, 1
  %v3057 = vsel %vm112, %v3048, %v3056
  %v3058 = vrot.slane %v2873, 1
  %v3059 = vsel %vm112, %v3050, %v3058
  %v3060 = vrot.slane %v2874, 1
  %v3061 = vsel %vm112, %v3052, %v3060
  %v3062 = vrot.slane %v2875, 1
  %v3063 = vsel %vm112, %v3054, %v3062
  %v3072 = vsel %vm112, %v3056, %v2940
  %v3073 = vsel %vm112, %v3058, %v2943
  %v3074 = vsel %vm112, %v3060, %v2946
  %v3075 = vsel %vm112, %v3062, %v2949
  %v3076 = vrot.slane %v2812, 2
  %v3077 = vrot.slane %v2816, 2
  %v3078 = vsel %vm179, %v3076, %v3077
  %v3079 = vrot.slane %v2813, 2
  %v3080 = vrot.slane %v2817, 2
  %v3081 = vsel %vm179, %v3079, %v3080
  %v3082 = vrot.slane %v2814, 2
  %v3083 = vrot.slane %v2818, 2
  %v3084 = vsel %vm179, %v3082, %v3083
  %v3085 = vrot.slane %v2815, 2
  %v3086 = vrot.slane %v2819, 2
  %v3087 = vsel %vm179, %v3085, %v3086
  %v3088 = vrot.slane %v2820, 2
  %v3089 = vsel %vm179, %v3077, %v3088
  %v3090 = vrot.slane %v2821, 2
  %v3091 = vsel %vm179, %v3080, %v3090
  %v3092 = vrot.slane %v2822, 2
  %v3093 = vsel %vm179, %v3083, %v3092
  %v3094 = vrot.slane %v2823, 2
  %v3095 = vsel %vm179, %v3086, %v3094
  %v3096 = vrot.slane %v2824, 2
  %v3097 = vsel %vm179, %v3088, %v3096
  %v3098 = vrot.slane %v2825, 2
  %v3099 = vsel %vm179, %v3090, %v3098
  %v3100 = vrot.slane %v2826, 2
  %v3101 = vsel %vm179, %v3092, %v3100
  %v3102 = vrot.slane %v2827, 2
  %v3103 = vsel %vm179, %v3094, %v3102
  %v3104 = vrot.slane %v2828, 2
  %v3105 = vsel %vm179, %v3096, %v3104
  %v3106 = vrot.slane %v2829, 2
  %v3107 = vsel %vm179, %v3098, %v3106
  %v3108 = vrot.slane %v2830, 2
  %v3109 = vsel %vm179, %v3100, %v3108
  %v3110 = vrot.slane %v2831, 2
  %v3111 = vsel %vm179, %v3102, %v3110
  %v3112 = vrot.slane %v2832, 2
  %v3113 = vsel %vm179, %v3104, %v3112
  %v3114 = vrot.slane %v2833, 2
  %v3115 = vsel %vm179, %v3106, %v3114
  %v3116 = vrot.slane %v2834, 2
  %v3117 = vsel %vm179, %v3108, %v3116
  %v3118 = vrot.slane %v2835, 2
  %v3119 = vsel %vm179, %v3110, %v3118
  %v3120 = vrot.slane %v2836, 2
  %v3121 = vsel %vm179, %v3112, %v3120
  %v3122 = vrot.slane %v2837, 2
  %v3123 = vsel %vm179, %v3114, %v3122
  %v3124 = vrot.slane %v2838, 2
  %v3125 = vsel %vm179, %v3116, %v3124
  %v3126 = vrot.slane %v2839, 2
  %v3127 = vsel %vm179, %v3118, %v3126
  %v3128 = vrot.slane %v2840, 2
  %v3129 = vsel %vm179, %v3120, %v3128
  %v3130 = vrot.slane %v2841, 2
  %v3131 = vsel %vm179, %v3122, %v3130
  %v3132 = vrot.slane %v2842, 2
  %v3133 = vsel %vm179, %v3124, %v3132
  %v3134 = vrot.slane %v2843, 2
  %v3135 = vsel %vm179, %v3126, %v3134
  %v3136 = vrot.slane %v2844, 2
  %v3137 = vsel %vm179, %v3128, %v3136
  %v3138 = vrot.slane %v2845, 2
  %v3139 = vsel %vm179, %v3130, %v3138
  %v3140 = vrot.slane %v2846, 2
  %v3141 = vsel %vm179, %v3132, %v3140
  %v3142 = vrot.slane %v2847, 2
  %v3143 = vsel %vm179, %v3134, %v3142
  %v3144 = vrot.slane %v2848, 2
  %v3145 = vsel %vm179, %v3136, %v3144
  %v3146 = vrot.slane %v2849, 2
  %v3147 = vsel %vm179, %v3138, %v3146
  %v3148 = vrot.slane %v2850, 2
  %v3149 = vsel %vm179, %v3140, %v3148
  %v3150 = vrot.slane %v2851, 2
  %v3151 = vsel %vm179, %v3142, %v3150
  %v3152 = vrot.slane %v2852, 2
  %v3153 = vsel %vm179, %v3144, %v3152
  %v3154 = vrot.slane %v2853, 2
  %v3155 = vsel %vm179, %v3146, %v3154
  %v3156 = vrot.slane %v2854, 2
  %v3157 = vsel %vm179, %v3148, %v3156
  %v3158 = vrot.slane %v2855, 2
  %v3159 = vsel %vm179, %v3150, %v3158
  %v3160 = vrot.slane %v2856, 2
  %v3161 = vsel %vm179, %v3152, %v3160
  %v3162 = vrot.slane %v2857, 2
  %v3163 = vsel %vm179, %v3154, %v3162
  %v3164 = vrot.slane %v2858, 2
  %v3165 = vsel %vm179, %v3156, %v3164
  %v3166 = vrot.slane %v2859, 2
  %v3167 = vsel %vm179, %v3158, %v3166
  %v3168 = vrot.slane %v2860, 2
  %v3169 = vsel %vm179, %v3160, %v3168
  %v3170 = vrot.slane %v2861, 2
  %v3171 = vsel %vm179, %v3162, %v3170
  %v3172 = vrot.slane %v2862, 2
  %v3173 = vsel %vm179, %v3164, %v3172
  %v3174 = vrot.slane %v2863, 2
  %v3175 = vsel %vm179, %v3166, %v3174
  %v3176 = vrot.slane %v2864, 2
  %v3177 = vsel %vm179, %v3168, %v3176
  %v3178 = vrot.slane %v2865, 2
  %v3179 = vsel %vm179, %v3170, %v3178
  %v3180 = vrot.slane %v2866, 2
  %v3181 = vsel %vm179, %v3172, %v3180
  %v3182 = vrot.slane %v2867, 2
  %v3183 = vsel %vm179, %v3174, %v3182
  %v3184 = vrot.slane %v2868, 2
  %v3185 = vsel %vm179, %v3176, %v3184
  %v3186 = vrot.slane %v2869, 2
  %v3187 = vsel %vm179, %v3178, %v3186
  %v3188 = vrot.slane %v2870, 2
  %v3189 = vsel %vm179, %v3180, %v3188
  %v3190 = vrot.slane %v2871, 2
  %v3191 = vsel %vm179, %v3182, %v3190
  %v3192 = vrot.slane %v2872, 2
  %v3193 = vsel %vm179, %v3184, %v3192
  %v3194 = vrot.slane %v2873, 2
  %v3195 = vsel %vm179, %v3186, %v3194
  %v3196 = vrot.slane %v2874, 2
  %v3197 = vsel %vm179, %v3188, %v3196
  %v3198 = vrot.slane %v2875, 2
  %v3199 = vsel %vm179, %v3190, %v3198
  %v3208 = vsel %vm179, %v3192, %v3076
  %v3209 = vsel %vm179, %v3194, %v3079
  %v3210 = vsel %vm179, %v3196, %v3082
  %v3211 = vsel %vm179, %v3198, %v3085
  %3216 = vrot.lane.b32.xlu0 %v2942, 32
  %v3217 = vpop.permute.xlu0 %3216
  %3218 = vrot.lane.b32.xlu0 %v2945, 32
  %v3219 = vpop.permute.xlu0 %3218
  %3220 = vrot.lane.b32.xlu0 %v2948, 32
  %v3221 = vpop.permute.xlu0 %3220
  %3222 = vrot.lane.b32.xlu0 %v2951, 32
  %v3223 = vpop.permute.xlu0 %3222
  %3224 = vrot.lane.b32.xlu0 %v2953, 32
  %v3225 = vpop.permute.xlu0 %3224
  %3226 = vrot.lane.b32.xlu0 %v2955, 32
  %v3227 = vpop.permute.xlu0 %3226
  %3228 = vrot.lane.b32.xlu0 %v2957, 32
  %v3229 = vpop.permute.xlu0 %3228
  %3230 = vrot.lane.b32.xlu0 %v2959, 32
  %v3231 = vpop.permute.xlu0 %3230
  %3232 = vrot.lane.b32.xlu0 %v2961, 32
  %v3233 = vpop.permute.xlu0 %3232
  %3234 = vrot.lane.b32.xlu0 %v2963, 32
  %v3235 = vpop.permute.xlu0 %3234
  %3236 = vrot.lane.b32.xlu0 %v2965, 32
  %v3237 = vpop.permute.xlu0 %3236
  %3238 = vrot.lane.b32.xlu0 %v2967, 32
  %v3239 = vpop.permute.xlu0 %3238
  %3240 = vrot.lane.b32.xlu0 %v2969, 32
  %v3241 = vpop.permute.xlu0 %3240
  %3242 = vrot.lane.b32.xlu0 %v2971, 32
  %v3243 = vpop.permute.xlu0 %3242
  %3244 = vrot.lane.b32.xlu0 %v2973, 32
  %v3245 = vpop.permute.xlu0 %3244
  %3246 = vrot.lane.b32.xlu0 %v2975, 32
  %v3247 = vpop.permute.xlu0 %3246
  %3248 = vrot.lane.b32.xlu0 %v2977, 32
  %v3249 = vpop.permute.xlu0 %3248
  %3250 = vrot.lane.b32.xlu0 %v2979, 32
  %v3251 = vpop.permute.xlu0 %3250
  %3252 = vrot.lane.b32.xlu0 %v2981, 32
  %v3253 = vpop.permute.xlu0 %3252
  %3254 = vrot.lane.b32.xlu0 %v2983, 32
  %v3255 = vpop.permute.xlu0 %3254
  %3256 = vrot.lane.b32.xlu0 %v2985, 32
  %v3257 = vpop.permute.xlu0 %3256
  %3258 = vrot.lane.b32.xlu0 %v2987, 32
  %v3259 = vpop.permute.xlu0 %3258
  %3260 = vrot.lane.b32.xlu0 %v2989, 32
  %v3261 = vpop.permute.xlu0 %3260
  %3262 = vrot.lane.b32.xlu0 %v2991, 32
  %v3263 = vpop.permute.xlu0 %3262
  %3264 = vrot.lane.b32.xlu0 %v2993, 32
  %v3265 = vpop.permute.xlu0 %3264
  %3266 = vrot.lane.b32.xlu0 %v2995, 32
  %v3267 = vpop.permute.xlu0 %3266
  %3268 = vrot.lane.b32.xlu0 %v2997, 32
  %v3269 = vpop.permute.xlu0 %3268
  %3270 = vrot.lane.b32.xlu0 %v2999, 32
  %v3271 = vpop.permute.xlu0 %3270
  %3272 = vrot.lane.b32.xlu0 %v3001, 32
  %v3273 = vpop.permute.xlu0 %3272
  %3274 = vrot.lane.b32.xlu0 %v3003, 32
  %v3275 = vpop.permute.xlu0 %3274
  %3276 = vrot.lane.b32.xlu0 %v3005, 32
  %v3277 = vpop.permute.xlu0 %3276
  %3278 = vrot.lane.b32.xlu0 %v3007, 32
  %v3279 = vpop.permute.xlu0 %3278
  %3280 = vrot.lane.b32.xlu0 %v3009, 32
  %v3281 = vpop.permute.xlu0 %3280
  %3282 = vrot.lane.b32.xlu0 %v3011, 32
  %v3283 = vpop.permute.xlu0 %3282
  %3284 = vrot.lane.b32.xlu0 %v3013, 32
  %v3285 = vpop.permute.xlu0 %3284
  %3286 = vrot.lane.b32.xlu0 %v3015, 32
  %v3287 = vpop.permute.xlu0 %3286
  %3288 = vrot.lane.b32.xlu0 %v3017, 32
  %v3289 = vpop.permute.xlu0 %3288
  %3290 = vrot.lane.b32.xlu0 %v3019, 32
  %v3291 = vpop.permute.xlu0 %3290
  %3292 = vrot.lane.b32.xlu0 %v3021, 32
  %v3293 = vpop.permute.xlu0 %3292
  %3294 = vrot.lane.b32.xlu0 %v3023, 32
  %v3295 = vpop.permute.xlu0 %3294
  %3296 = vrot.lane.b32.xlu0 %v3025, 32
  %v3297 = vpop.permute.xlu0 %3296
  %3298 = vrot.lane.b32.xlu0 %v3027, 32
  %v3299 = vpop.permute.xlu0 %3298
  %3300 = vrot.lane.b32.xlu0 %v3029, 32
  %v3301 = vpop.permute.xlu0 %3300
  %3302 = vrot.lane.b32.xlu0 %v3031, 32
  %v3303 = vpop.permute.xlu0 %3302
  %3304 = vrot.lane.b32.xlu0 %v3033, 32
  %v3305 = vpop.permute.xlu0 %3304
  %3306 = vrot.lane.b32.xlu0 %v3035, 32
  %v3307 = vpop.permute.xlu0 %3306
  %3308 = vrot.lane.b32.xlu0 %v3037, 32
  %v3309 = vpop.permute.xlu0 %3308
  %3310 = vrot.lane.b32.xlu0 %v3039, 32
  %v3311 = vpop.permute.xlu0 %3310
  %3312 = vrot.lane.b32.xlu0 %v3041, 32
  %v3313 = vpop.permute.xlu0 %3312
  %3314 = vrot.lane.b32.xlu0 %v3043, 32
  %v3315 = vpop.permute.xlu0 %3314
  %3316 = vrot.lane.b32.xlu0 %v3045, 32
  %v3317 = vpop.permute.xlu0 %3316
  %3318 = vrot.lane.b32.xlu0 %v3047, 32
  %v3319 = vpop.permute.xlu0 %3318
  %3320 = vrot.lane.b32.xlu0 %v3049, 32
  %v3321 = vpop.permute.xlu0 %3320
  %3322 = vrot.lane.b32.xlu0 %v3051, 32
  %v3323 = vpop.permute.xlu0 %3322
  %3324 = vrot.lane.b32.xlu0 %v3053, 32
  %v3325 = vpop.permute.xlu0 %3324
  %3326 = vrot.lane.b32.xlu0 %v3055, 32
  %v3327 = vpop.permute.xlu0 %3326
  %3328 = vrot.lane.b32.xlu0 %v3057, 32
  %v3329 = vpop.permute.xlu0 %3328
  %3330 = vrot.lane.b32.xlu0 %v3059, 32
  %v3331 = vpop.permute.xlu0 %3330
  %3332 = vrot.lane.b32.xlu0 %v3061, 32
  %v3333 = vpop.permute.xlu0 %3332
  %3334 = vrot.lane.b32.xlu0 %v3063, 32
  %v3335 = vpop.permute.xlu0 %3334
  %3336 = vrot.lane.b32.xlu0 %v3072, 32
  %v3337 = vpop.permute.xlu0 %3336
  %3338 = vrot.lane.b32.xlu0 %v3073, 32
  %v3339 = vpop.permute.xlu0 %3338
  %3340 = vrot.lane.b32.xlu0 %v3074, 32
  %v3341 = vpop.permute.xlu0 %3340
  %3342 = vrot.lane.b32.xlu0 %v3075, 32
  %v3343 = vpop.permute.xlu0 %3342
  %vm3344 = vcmask 261120
  %v3345 = vsel %vm3344, %v3217, %v3219
  %v3346 = vsel %vm3344, %v3219, %v3221
  %v3347 = vsel %vm3344, %v3221, %v3223
  %v3348 = vsel %vm3344, %v3225, %v3227
  %v3349 = vsel %vm3344, %v3227, %v3229
  %v3350 = vsel %vm3344, %v3229, %v3231
  %v3351 = vsel %vm3344, %v3233, %v3235
  %v3352 = vsel %vm3344, %v3235, %v3237
  %v3353 = vsel %vm3344, %v3237, %v3239
  %v3354 = vsel %vm3344, %v3241, %v3243
  %v3355 = vsel %vm3344, %v3243, %v3245
  %v3356 = vsel %vm3344, %v3245, %v3247
  %v3357 = vsel %vm3344, %v3249, %v3251
  %v3358 = vsel %vm3344, %v3251, %v3253
  %v3359 = vsel %vm3344, %v3253, %v3255
  %v3360 = vsel %vm3344, %v3257, %v3259
  %v3361 = vsel %vm3344, %v3259, %v3261
  %v3362 = vsel %vm3344, %v3261, %v3263
  %v3363 = vsel %vm3344, %v3265, %v3267
  %v3364 = vsel %vm3344, %v3267, %v3269
  %v3365 = vsel %vm3344, %v3269, %v3271
  %v3366 = vsel %vm3344, %v3273, %v3275
  %v3367 = vsel %vm3344, %v3275, %v3277
  %v3368 = vsel %vm3344, %v3277, %v3279
  %v3369 = vsel %vm3344, %v3281, %v3283
  %v3370 = vsel %vm3344, %v3283, %v3285
  %v3371 = vsel %vm3344, %v3285, %v3287
  %v3372 = vsel %vm3344, %v3289, %v3291
  %v3373 = vsel %vm3344, %v3291, %v3293
  %v3374 = vsel %vm3344, %v3293, %v3295
  %v3375 = vsel %vm3344, %v3297, %v3299
  %v3376 = vsel %vm3344, %v3299, %v3301
  %v3377 = vsel %vm3344, %v3301, %v3303
  %v3378 = vsel %vm3344, %v3305, %v3307
  %v3379 = vsel %vm3344, %v3307, %v3309
  %v3380 = vsel %vm3344, %v3309, %v3311
  %v3381 = vsel %vm3344, %v3313, %v3315
  %v3382 = vsel %vm3344, %v3315, %v3317
  %v3383 = vsel %vm3344, %v3317, %v3319
  %v3384 = vsel %vm3344, %v3321, %v3323
  %v3385 = vsel %vm3344, %v3323, %v3325
  %v3386 = vsel %vm3344, %v3325, %v3327
  %v3387 = vsel %vm3344, %v3329, %v3331
  %v3388 = vsel %vm3344, %v3331, %v3333
  %v3389 = vsel %vm3344, %v3333, %v3335
  %v3390 = vsel %vm3344, %v3337, %v3339
  %v3391 = vsel %vm3344, %v3339, %v3341
  %v3392 = vsel %vm3344, %v3341, %v3343
  %3461 = vrot.lane.b32.xlu0 %v3078, 64
  %v3462 = vpop.permute.xlu0 %3461
  %3463 = vrot.lane.b32.xlu0 %v3081, 64
  %v3464 = vpop.permute.xlu0 %3463
  %3465 = vrot.lane.b32.xlu0 %v3084, 64
  %v3466 = vpop.permute.xlu0 %3465
  %3467 = vrot.lane.b32.xlu0 %v3087, 64
  %v3468 = vpop.permute.xlu0 %3467
  %3469 = vrot.lane.b32.xlu0 %v3089, 64
  %v3470 = vpop.permute.xlu0 %3469
  %3471 = vrot.lane.b32.xlu0 %v3091, 64
  %v3472 = vpop.permute.xlu0 %3471
  %3473 = vrot.lane.b32.xlu0 %v3093, 64
  %v3474 = vpop.permute.xlu0 %3473
  %3475 = vrot.lane.b32.xlu0 %v3095, 64
  %v3476 = vpop.permute.xlu0 %3475
  %3477 = vrot.lane.b32.xlu0 %v3097, 64
  %v3478 = vpop.permute.xlu0 %3477
  %3479 = vrot.lane.b32.xlu0 %v3099, 64
  %v3480 = vpop.permute.xlu0 %3479
  %3481 = vrot.lane.b32.xlu0 %v3101, 64
  %v3482 = vpop.permute.xlu0 %3481
  %3483 = vrot.lane.b32.xlu0 %v3103, 64
  %v3484 = vpop.permute.xlu0 %3483
  %3485 = vrot.lane.b32.xlu0 %v3105, 64
  %v3486 = vpop.permute.xlu0 %3485
  %3487 = vrot.lane.b32.xlu0 %v3107, 64
  %v3488 = vpop.permute.xlu0 %3487
  %3489 = vrot.lane.b32.xlu0 %v3109, 64
  %v3490 = vpop.permute.xlu0 %3489
  %3491 = vrot.lane.b32.xlu0 %v3111, 64
  %v3492 = vpop.permute.xlu0 %3491
  %3493 = vrot.lane.b32.xlu0 %v3113, 64
  %v3494 = vpop.permute.xlu0 %3493
  %3495 = vrot.lane.b32.xlu0 %v3115, 64
  %v3496 = vpop.permute.xlu0 %3495
  %3497 = vrot.lane.b32.xlu0 %v3117, 64
  %v3498 = vpop.permute.xlu0 %3497
  %3499 = vrot.lane.b32.xlu0 %v3119, 64
  %v3500 = vpop.permute.xlu0 %3499
  %3501 = vrot.lane.b32.xlu0 %v3121, 64
  %v3502 = vpop.permute.xlu0 %3501
  %3503 = vrot.lane.b32.xlu0 %v3123, 64
  %v3504 = vpop.permute.xlu0 %3503
  %3505 = vrot.lane.b32.xlu0 %v3125, 64
  %v3506 = vpop.permute.xlu0 %3505
  %3507 = vrot.lane.b32.xlu0 %v3127, 64
  %v3508 = vpop.permute.xlu0 %3507
  %3509 = vrot.lane.b32.xlu0 %v3129, 64
  %v3510 = vpop.permute.xlu0 %3509
  %3511 = vrot.lane.b32.xlu0 %v3131, 64
  %v3512 = vpop.permute.xlu0 %3511
  %3513 = vrot.lane.b32.xlu0 %v3133, 64
  %v3514 = vpop.permute.xlu0 %3513
  %3515 = vrot.lane.b32.xlu0 %v3135, 64
  %v3516 = vpop.permute.xlu0 %3515
  %3517 = vrot.lane.b32.xlu0 %v3137, 64
  %v3518 = vpop.permute.xlu0 %3517
  %3519 = vrot.lane.b32.xlu0 %v3139, 64
  %v3520 = vpop.permute.xlu0 %3519
  %3521 = vrot.lane.b32.xlu0 %v3141, 64
  %v3522 = vpop.permute.xlu0 %3521
  %3523 = vrot.lane.b32.xlu0 %v3143, 64
  %v3524 = vpop.permute.xlu0 %3523
  %3525 = vrot.lane.b32.xlu0 %v3145, 64
  %v3526 = vpop.permute.xlu0 %3525
  %3527 = vrot.lane.b32.xlu0 %v3147, 64
  %v3528 = vpop.permute.xlu0 %3527
  %3529 = vrot.lane.b32.xlu0 %v3149, 64
  %v3530 = vpop.permute.xlu0 %3529
  %3531 = vrot.lane.b32.xlu0 %v3151, 64
  %v3532 = vpop.permute.xlu0 %3531
  %3533 = vrot.lane.b32.xlu0 %v3153, 64
  %v3534 = vpop.permute.xlu0 %3533
  %3535 = vrot.lane.b32.xlu0 %v3155, 64
  %v3536 = vpop.permute.xlu0 %3535
  %3537 = vrot.lane.b32.xlu0 %v3157, 64
  %v3538 = vpop.permute.xlu0 %3537
  %3539 = vrot.lane.b32.xlu0 %v3159, 64
  %v3540 = vpop.permute.xlu0 %3539
  %3541 = vrot.lane.b32.xlu0 %v3161, 64
  %v3542 = vpop.permute.xlu0 %3541
  %3543 = vrot.lane.b32.xlu0 %v3163, 64
  %v3544 = vpop.permute.xlu0 %3543
  %3545 = vrot.lane.b32.xlu0 %v3165, 64
  %v3546 = vpop.permute.xlu0 %3545
  %3547 = vrot.lane.b32.xlu0 %v3167, 64
  %v3548 = vpop.permute.xlu0 %3547
  %3549 = vrot.lane.b32.xlu0 %v3169, 64
  %v3550 = vpop.permute.xlu0 %3549
  %3551 = vrot.lane.b32.xlu0 %v3171, 64
  %v3552 = vpop.permute.xlu0 %3551
  %3553 = vrot.lane.b32.xlu0 %v3173, 64
  %v3554 = vpop.permute.xlu0 %3553
  %3555 = vrot.lane.b32.xlu0 %v3175, 64
  %v3556 = vpop.permute.xlu0 %3555
  %3557 = vrot.lane.b32.xlu0 %v3177, 64
  %v3558 = vpop.permute.xlu0 %3557
  %3559 = vrot.lane.b32.xlu0 %v3179, 64
  %v3560 = vpop.permute.xlu0 %3559
  %3561 = vrot.lane.b32.xlu0 %v3181, 64
  %v3562 = vpop.permute.xlu0 %3561
  %3563 = vrot.lane.b32.xlu0 %v3183, 64
  %v3564 = vpop.permute.xlu0 %3563
  %3565 = vrot.lane.b32.xlu0 %v3185, 64
  %v3566 = vpop.permute.xlu0 %3565
  %3567 = vrot.lane.b32.xlu0 %v3187, 64
  %v3568 = vpop.permute.xlu0 %3567
  %3569 = vrot.lane.b32.xlu0 %v3189, 64
  %v3570 = vpop.permute.xlu0 %3569
  %3571 = vrot.lane.b32.xlu0 %v3191, 64
  %v3572 = vpop.permute.xlu0 %3571
  %3573 = vrot.lane.b32.xlu0 %v3193, 64
  %v3574 = vpop.permute.xlu0 %3573
  %3575 = vrot.lane.b32.xlu0 %v3195, 64
  %v3576 = vpop.permute.xlu0 %3575
  %3577 = vrot.lane.b32.xlu0 %v3197, 64
  %v3578 = vpop.permute.xlu0 %3577
  %3579 = vrot.lane.b32.xlu0 %v3199, 64
  %v3580 = vpop.permute.xlu0 %3579
  %3581 = vrot.lane.b32.xlu0 %v3208, 64
  %v3582 = vpop.permute.xlu0 %3581
  %3583 = vrot.lane.b32.xlu0 %v3209, 64
  %v3584 = vpop.permute.xlu0 %3583
  %3585 = vrot.lane.b32.xlu0 %v3210, 64
  %v3586 = vpop.permute.xlu0 %3585
  %3587 = vrot.lane.b32.xlu0 %v3211, 64
  %v3588 = vpop.permute.xlu0 %3587
  %vm3589 = vcmask 523264
  %v3590 = vsel %vm3589, %v3462, %v3464
  %v3591 = vsel %vm3589, %v3464, %v3466
  %v3592 = vsel %vm3589, %v3466, %v3468
  %v3593 = vsel %vm3589, %v3470, %v3472
  %v3594 = vsel %vm3589, %v3472, %v3474
  %v3595 = vsel %vm3589, %v3474, %v3476
  %v3596 = vsel %vm3589, %v3478, %v3480
  %v3597 = vsel %vm3589, %v3480, %v3482
  %v3598 = vsel %vm3589, %v3482, %v3484
  %v3599 = vsel %vm3589, %v3486, %v3488
  %v3600 = vsel %vm3589, %v3488, %v3490
  %v3601 = vsel %vm3589, %v3490, %v3492
  %v3602 = vsel %vm3589, %v3494, %v3496
  %v3603 = vsel %vm3589, %v3496, %v3498
  %v3604 = vsel %vm3589, %v3498, %v3500
  %v3605 = vsel %vm3589, %v3502, %v3504
  %v3606 = vsel %vm3589, %v3504, %v3506
  %v3607 = vsel %vm3589, %v3506, %v3508
  %v3608 = vsel %vm3589, %v3510, %v3512
  %v3609 = vsel %vm3589, %v3512, %v3514
  %v3610 = vsel %vm3589, %v3514, %v3516
  %v3611 = vsel %vm3589, %v3518, %v3520
  %v3612 = vsel %vm3589, %v3520, %v3522
  %v3613 = vsel %vm3589, %v3522, %v3524
  %v3614 = vsel %vm3589, %v3526, %v3528
  %v3615 = vsel %vm3589, %v3528, %v3530
  %v3616 = vsel %vm3589, %v3530, %v3532
  %v3617 = vsel %vm3589, %v3534, %v3536
  %v3618 = vsel %vm3589, %v3536, %v3538
  %v3619 = vsel %vm3589, %v3538, %v3540
  %v3620 = vsel %vm3589, %v3542, %v3544
  %v3621 = vsel %vm3589, %v3544, %v3546
  %v3622 = vsel %vm3589, %v3546, %v3548
  %v3623 = vsel %vm3589, %v3550, %v3552
  %v3624 = vsel %vm3589, %v3552, %v3554
  %v3625 = vsel %vm3589, %v3554, %v3556
  %v3626 = vsel %vm3589, %v3558, %v3560
  %v3627 = vsel %vm3589, %v3560, %v3562
  %v3628 = vsel %vm3589, %v3562, %v3564
  %v3629 = vsel %vm3589, %v3566, %v3568
  %v3630 = vsel %vm3589, %v3568, %v3570
  %v3631 = vsel %vm3589, %v3570, %v3572
  %v3632 = vsel %vm3589, %v3574, %v3576
  %v3633 = vsel %vm3589, %v3576, %v3578
  %v3634 = vsel %vm3589, %v3578, %v3580
  %v3635 = vsel %vm3589, %v3582, %v3584
  %v3636 = vsel %vm3589, %v3584, %v3586
  %v3637 = vsel %vm3589, %v3586, %v3588
  %v3702 = vsel %vm3344, %v2815, %v3217
  %v3703 = vsel %vm3344, %v2819, %v3225
  %v3704 = vsel %vm3344, %v2823, %v3233
  %v3705 = vsel %vm3344, %v2827, %v3241
  %v3706 = vsel %vm3344, %v2831, %v3249
  %v3707 = vsel %vm3344, %v2835, %v3257
  %v3708 = vsel %vm3344, %v2839, %v3265
  %v3709 = vsel %vm3344, %v2843, %v3273
  %v3710 = vsel %vm3344, %v2847, %v3281
  %v3711 = vsel %vm3344, %v2851, %v3289
  %v3712 = vsel %vm3344, %v2855, %v3297
  %v3713 = vsel %vm3344, %v2859, %v3305
  %v3714 = vsel %vm3344, %v2863, %v3313
  %v3715 = vsel %vm3344, %v2867, %v3321
  %v3716 = vsel %vm3344, %v2871, %v3329
  %v3717 = vsel %vm3344, %v2875, %v3337
  %v3718 = vsel %vm3589, %v3347, %v3462
  %v3719 = vsel %vm3589, %v3350, %v3470
  %v3720 = vsel %vm3589, %v3353, %v3478
  %v3721 = vsel %vm3589, %v3356, %v3486
  %v3722 = vsel %vm3589, %v3359, %v3494
  %v3723 = vsel %vm3589, %v3362, %v3502
  %v3724 = vsel %vm3589, %v3365, %v3510
  %v3725 = vsel %vm3589, %v3368, %v3518
  %v3726 = vsel %vm3589, %v3371, %v3526
  %v3727 = vsel %vm3589, %v3374, %v3534
  %v3728 = vsel %vm3589, %v3377, %v3542
  %v3729 = vsel %vm3589, %v3380, %v3550
  %v3730 = vsel %vm3589, %v3383, %v3558
  %v3731 = vsel %vm3589, %v3386, %v3566
  %v3732 = vsel %vm3589, %v3389, %v3574
  %v3733 = vsel %vm3589, %v3392, %v3582
  %v3734 = vpack.c.bf16 %v2816, %v2812
  %v3735 = vpack.c.bf16 %v2817, %v2813
  %v3736 = vpack.c.bf16 %v2818, %v2814
  %v3737 = vpack.c.bf16 %v3703, %v3702
  %v3738 = vpack.c.bf16 %v3348, %v3345
  %v3739 = vpack.c.bf16 %v3349, %v3346
  %v3740 = vpack.c.bf16 %v3719, %v3718
  %v3741 = vpack.c.bf16 %v3593, %v3590
  %v3742 = vpack.c.bf16 %v3594, %v3591
  %v3743 = vpack.c.bf16 %v3595, %v3592
  %v3744 = vpack.c.bf16 %v2824, %v2820
  %v3745 = vpack.c.bf16 %v2825, %v2821
  %v3746 = vpack.c.bf16 %v2826, %v2822
  %v3747 = vpack.c.bf16 %v3705, %v3704
  %v3748 = vpack.c.bf16 %v3354, %v3351
  %v3749 = vpack.c.bf16 %v3355, %v3352
  %v3750 = vpack.c.bf16 %v3721, %v3720
  %v3751 = vpack.c.bf16 %v3599, %v3596
  %v3752 = vpack.c.bf16 %v3600, %v3597
  %v3753 = vpack.c.bf16 %v3601, %v3598
  %v3754 = vpack.c.bf16 %v2832, %v2828
  %v3755 = vpack.c.bf16 %v2833, %v2829
  %v3756 = vpack.c.bf16 %v2834, %v2830
  %v3757 = vpack.c.bf16 %v3707, %v3706
  %v3758 = vpack.c.bf16 %v3360, %v3357
  %v3759 = vpack.c.bf16 %v3361, %v3358
  %v3760 = vpack.c.bf16 %v3723, %v3722
  %v3761 = vpack.c.bf16 %v3605, %v3602
  %v3762 = vpack.c.bf16 %v3606, %v3603
  %v3763 = vpack.c.bf16 %v3607, %v3604
  %v3764 = vpack.c.bf16 %v2840, %v2836
  %v3765 = vpack.c.bf16 %v2841, %v2837
  %v3766 = vpack.c.bf16 %v2842, %v2838
  %v3767 = vpack.c.bf16 %v3709, %v3708
  %v3768 = vpack.c.bf16 %v3366, %v3363
  %v3769 = vpack.c.bf16 %v3367, %v3364
  %v3770 = vpack.c.bf16 %v3725, %v3724
  %v3771 = vpack.c.bf16 %v3611, %v3608
  %v3772 = vpack.c.bf16 %v3612, %v3609
  %v3773 = vpack.c.bf16 %v3613, %v3610
  %v3774 = vpack.c.bf16 %v2848, %v2844
  %v3775 = vpack.c.bf16 %v2849, %v2845
  %v3776 = vpack.c.bf16 %v2850, %v2846
  %v3777 = vpack.c.bf16 %v3711, %v3710
  %v3778 = vpack.c.bf16 %v3372, %v3369
  %v3779 = vpack.c.bf16 %v3373, %v3370
  %v3780 = vpack.c.bf16 %v3727, %v3726
  %v3781 = vpack.c.bf16 %v3617, %v3614
  %v3782 = vpack.c.bf16 %v3618, %v3615
  %v3783 = vpack.c.bf16 %v3619, %v3616
  %v3784 = vpack.c.bf16 %v2856, %v2852
  %v3785 = vpack.c.bf16 %v2857, %v2853
  %v3786 = vpack.c.bf16 %v2858, %v2854
  %v3787 = vpack.c.bf16 %v3713, %v3712
  %v3788 = vpack.c.bf16 %v3378, %v3375
  %v3789 = vpack.c.bf16 %v3379, %v3376
  %v3790 = vpack.c.bf16 %v3729, %v3728
  %v3791 = vpack.c.bf16 %v3623, %v3620
  %v3792 = vpack.c.bf16 %v3624, %v3621
  %v3793 = vpack.c.bf16 %v3625, %v3622
  %v3794 = vpack.c.bf16 %v2864, %v2860
  %v3795 = vpack.c.bf16 %v2865, %v2861
  %v3796 = vpack.c.bf16 %v2866, %v2862
  %v3797 = vpack.c.bf16 %v3715, %v3714
  %v3798 = vpack.c.bf16 %v3384, %v3381
  %v3799 = vpack.c.bf16 %v3385, %v3382
  %v3800 = vpack.c.bf16 %v3731, %v3730
  %v3801 = vpack.c.bf16 %v3629, %v3626
  %v3802 = vpack.c.bf16 %v3630, %v3627
  %v3803 = vpack.c.bf16 %v3631, %v3628
  %v3804 = vpack.c.bf16 %v2872, %v2868
  %v3805 = vpack.c.bf16 %v2873, %v2869
  %v3806 = vpack.c.bf16 %v2874, %v2870
  %v3807 = vpack.c.bf16 %v3717, %v3716
  %v3808 = vpack.c.bf16 %v3390, %v3387
  %v3809 = vpack.c.bf16 %v3391, %v3388
  %v3810 = vpack.c.bf16 %v3733, %v3732
  %v3811 = vpack.c.bf16 %v3635, %v3632
  %v3812 = vpack.c.bf16 %v3636, %v3633
  %v3813 = vpack.c.bf16 %v3637, %v3634
  %v3814 = vld [vmem:[%s5] sm:$0xff]
  %v3815 = vld [vmem:[%s5 + $0x8] sm:$0xf]
  %v3816 = vld [vmem:[%s5 + $0xc] sm:$0xff]
  %v3817 = vld [vmem:[%s5 + $0x14] sm:$0xf]
  %v3818 = vld [vmem:[%s5 + $0x18] sm:$0xff]
  %v3819 = vld [vmem:[%s5 + $0x20] sm:$0xf]
  %v3820 = vld [vmem:[%s5 + $0x24] sm:$0xff]
  %v3821 = vld [vmem:[%s5 + $0x2c] sm:$0xf]
  %v3822 = vld [vmem:[%s5 + $0x30] sm:$0xff]
  %v3823 = vld [vmem:[%s5 + $0x38] sm:$0xf]
  %v3824 = vld [vmem:[%s5 + $0x3c] sm:$0xff]
  %v3825 = vld [vmem:[%s5 + $0x44] sm:$0xf]
  %v3826 = vld [vmem:[%s5 + $0x48] sm:$0xff]
  %v3827 = vld [vmem:[%s5 + $0x50] sm:$0xf]
  %v3828 = vld [vmem:[%s5 + $0x54] sm:$0xff]
  %v3829 = vld [vmem:[%s5 + $0x5c] sm:$0xf]
  %v3830 = vld [vmem:[%s5 + $0x60] sm:$0xff]
  %v3831 = vld [vmem:[%s5 + $0x68] sm:$0xf]
  %v3832 = vld [vmem:[%s5 + $0x6c] sm:$0xff]
  %v3833 = vld [vmem:[%s5 + $0x74] sm:$0xf]
  %v3834 = vld [vmem:[%s5 + $0x78] sm:$0xff]
  %v3835 = vld [vmem:[%s5 + $0x80] sm:$0xf]
  %v3836 = vld [vmem:[%s5 + $0x84] sm:$0xff]
  %v3837 = vld [vmem:[%s5 + $0x8c] sm:$0xf]
  %v3838 = vld [vmem:[%s5 + $0x90] sm:$0xff]
  %v3839 = vld [vmem:[%s5 + $0x98] sm:$0xf]
  %v3840 = vld [vmem:[%s5 + $0x9c] sm:$0xff]
  %v3841 = vld [vmem:[%s5 + $0xa4] sm:$0xf]
  %v3842 = vld [vmem:[%s5 + $0xa8] sm:$0xff]
  %v3843 = vld [vmem:[%s5 + $0xb0] sm:$0xf]
  %v3844 = vld [vmem:[%s5 + $0xb4] sm:$0xff]
  %v3845 = vld [vmem:[%s5 + $0xbc] sm:$0xf]
  %v3846 = vld [vmem:[%s5 + $0xc0] sm:$0xff]
  %v3847 = vld [vmem:[%s5 + $0xc8] sm:$0xf]
  %v3848 = vld [vmem:[%s5 + $0xcc] sm:$0xff]
  %v3849 = vld [vmem:[%s5 + $0xd4] sm:$0xf]
  %v3850 = vld [vmem:[%s5 + $0xd8] sm:$0xff]
  %v3851 = vld [vmem:[%s5 + $0xe0] sm:$0xf]
  %v3852 = vld [vmem:[%s5 + $0xe4] sm:$0xff]
  %v3853 = vld [vmem:[%s5 + $0xec] sm:$0xf]
  %v3854 = vld [vmem:[%s5 + $0xf0] sm:$0xff]
  %v3855 = vld [vmem:[%s5 + $0xf8] sm:$0xf]
  %v3856 = vld [vmem:[%s5 + $0xfc] sm:$0xff]
  %v3857 = vld [vmem:[%s5 + $0x104] sm:$0xf]
  %v3858 = vld [vmem:[%s5 + $0x108] sm:$0xff]
  %v3859 = vld [vmem:[%s5 + $0x110] sm:$0xf]
  %v3860 = vld [vmem:[%s5 + $0x114] sm:$0xff]
  %v3861 = vld [vmem:[%s5 + $0x11c] sm:$0xf]
  %v3862 = vld [vmem:[%s5 + $0x120] sm:$0xff]
  %v3863 = vld [vmem:[%s5 + $0x128] sm:$0xf]
  %v3864 = vld [vmem:[%s5 + $0x12c] sm:$0xff]
  %v3865 = vld [vmem:[%s5 + $0x134] sm:$0xf]
  %v3866 = vld [vmem:[%s5 + $0x138] sm:$0xff]
  %v3867 = vld [vmem:[%s5 + $0x140] sm:$0xf]
  %v3868 = vld [vmem:[%s5 + $0x144] sm:$0xff]
  %v3869 = vld [vmem:[%s5 + $0x14c] sm:$0xf]
  %v3870 = vld [vmem:[%s5 + $0x150] sm:$0xff]
  %v3871 = vld [vmem:[%s5 + $0x158] sm:$0xf]
  %v3872 = vld [vmem:[%s5 + $0x15c] sm:$0xff]
  %v3873 = vld [vmem:[%s5 + $0x164] sm:$0xf]
  %v3874 = vld [vmem:[%s5 + $0x168] sm:$0xff]
  %v3875 = vld [vmem:[%s5 + $0x170] sm:$0xf]
  %v3876 = vld [vmem:[%s5 + $0x174] sm:$0xff]
  %v3877 = vld [vmem:[%s5 + $0x17c] sm:$0xf]
  %v3878 = vld [vmem:[%s5 + $0x180] sm:$0xff]
  %v3879 = vld [vmem:[%s5 + $0x188] sm:$0xf]
  %v3880 = vld [vmem:[%s5 + $0x18c] sm:$0xff]
  %v3881 = vld [vmem:[%s5 + $0x194] sm:$0xf]
  %v3882 = vld [vmem:[%s5 + $0x198] sm:$0xff]
  %v3883 = vld [vmem:[%s5 + $0x1a0] sm:$0xf]
  %v3884 = vld [vmem:[%s5 + $0x1a4] sm:$0xff]
  %v3885 = vld [vmem:[%s5 + $0x1ac] sm:$0xf]
  %v3886 = vld [vmem:[%s5 + $0x1b0] sm:$0xff]
  %v3887 = vld [vmem:[%s5 + $0x1b8] sm:$0xf]
  %v3888 = vld [vmem:[%s5 + $0x1bc] sm:$0xff]
  %v3889 = vld [vmem:[%s5 + $0x1c4] sm:$0xf]
  %v3890 = vld [vmem:[%s5 + $0x1c8] sm:$0xff]
  %v3891 = vld [vmem:[%s5 + $0x1d0] sm:$0xf]
  %v3892 = vld [vmem:[%s5 + $0x1d4] sm:$0xff]
  %v3893 = vld [vmem:[%s5 + $0x1dc] sm:$0xf]
  %v3894 = vld [vmem:[%s5 + $0x1e0] sm:$0xff]
  %v3895 = vld [vmem:[%s5 + $0x1e8] sm:$0xf]
  %v3896 = vld [vmem:[%s5 + $0x1ec] sm:$0xff]
  %v3897 = vld [vmem:[%s5 + $0x1f4] sm:$0xf]
  %v3898 = vld [vmem:[%s5 + $0x1f8] sm:$0xff]
  %v3899 = vld [vmem:[%s5 + $0x200] sm:$0xf]
  %v3900 = vld [vmem:[%s5 + $0x204] sm:$0xff]
  %v3901 = vld [vmem:[%s5 + $0x20c] sm:$0xf]
  %v3902 = vld [vmem:[%s5 + $0x210] sm:$0xff]
  %v3903 = vld [vmem:[%s5 + $0x218] sm:$0xf]
  %v3904 = vld [vmem:[%s5 + $0x21c] sm:$0xff]
  %v3905 = vld [vmem:[%s5 + $0x224] sm:$0xf]
  %v3906 = vld [vmem:[%s5 + $0x228] sm:$0xff]
  %v3907 = vld [vmem:[%s5 + $0x230] sm:$0xf]
  %v3908 = vld [vmem:[%s5 + $0x234] sm:$0xff]
  %v3909 = vld [vmem:[%s5 + $0x23c] sm:$0xf]
  %v3910 = vld [vmem:[%s5 + $0x240] sm:$0xff]
  %v3911 = vld [vmem:[%s5 + $0x248] sm:$0xf]
  %v3912 = vld [vmem:[%s5 + $0x24c] sm:$0xff]
  %v3913 = vld [vmem:[%s5 + $0x254] sm:$0xf]
  %v3914 = vld [vmem:[%s5 + $0x258] sm:$0xff]
  %v3915 = vld [vmem:[%s5 + $0x260] sm:$0xf]
  %v3916 = vld [vmem:[%s5 + $0x264] sm:$0xff]
  %v3917 = vld [vmem:[%s5 + $0x26c] sm:$0xf]
  %v3918 = vld [vmem:[%s5 + $0x270] sm:$0xff]
  %v3919 = vld [vmem:[%s5 + $0x278] sm:$0xf]
  %v3920 = vld [vmem:[%s5 + $0x27c] sm:$0xff]
  %v3921 = vld [vmem:[%s5 + $0x284] sm:$0xf]
  %v3922 = vld [vmem:[%s5 + $0x288] sm:$0xff]
  %v3923 = vld [vmem:[%s5 + $0x290] sm:$0xf]
  %v3924 = vld [vmem:[%s5 + $0x294] sm:$0xff]
  %v3925 = vld [vmem:[%s5 + $0x29c] sm:$0xf]
  %v3926 = vld [vmem:[%s5 + $0x2a0] sm:$0xff]
  %v3927 = vld [vmem:[%s5 + $0x2a8] sm:$0xf]
  %v3928 = vld [vmem:[%s5 + $0x2ac] sm:$0xff]
  %v3929 = vld [vmem:[%s5 + $0x2b4] sm:$0xf]
  %v3930 = vld [vmem:[%s5 + $0x2b8] sm:$0xff]
  %v3931 = vld [vmem:[%s5 + $0x2c0] sm:$0xf]
  %v3932 = vld [vmem:[%s5 + $0x2c4] sm:$0xff]
  %v3933 = vld [vmem:[%s5 + $0x2cc] sm:$0xf]
  %v3934 = vld [vmem:[%s5 + $0x2d0] sm:$0xff]
  %v3935 = vld [vmem:[%s5 + $0x2d8] sm:$0xf]
  %v3936 = vld [vmem:[%s5 + $0x2dc] sm:$0xff]
  %v3937 = vld [vmem:[%s5 + $0x2e4] sm:$0xf]
  %v3938 = vld [vmem:[%s5 + $0x2e8] sm:$0xff]
  %v3939 = vld [vmem:[%s5 + $0x2f0] sm:$0xf]
  %v3940 = vld [vmem:[%s5 + $0x2f4] sm:$0xff]
  %v3941 = vld [vmem:[%s5 + $0x2fc] sm:$0xf]
  %v3942 = vld [vmem:[%s5 + $0x300] sm:$0xff]
  %v3943 = vld [vmem:[%s5 + $0x308] sm:$0xf]
  %v3944 = vld [vmem:[%s5 + $0x30c] sm:$0xff]
  %v3945 = vld [vmem:[%s5 + $0x314] sm:$0xf]
  %v3946 = vld [vmem:[%s5 + $0x318] sm:$0xff]
  %v3947 = vld [vmem:[%s5 + $0x320] sm:$0xf]
  %v3948 = vld [vmem:[%s5 + $0x324] sm:$0xff]
  %v3949 = vld [vmem:[%s5 + $0x32c] sm:$0xf]
  %v3950 = vld [vmem:[%s5 + $0x330] sm:$0xff]
  %v3951 = vld [vmem:[%s5 + $0x338] sm:$0xf]
  %v3952 = vld [vmem:[%s5 + $0x33c] sm:$0xff]
  %v3953 = vld [vmem:[%s5 + $0x344] sm:$0xf]
  %v3954 = vld [vmem:[%s5 + $0x348] sm:$0xff]
  %v3955 = vld [vmem:[%s5 + $0x350] sm:$0xf]
  %v3956 = vld [vmem:[%s5 + $0x354] sm:$0xff]
  %v3957 = vld [vmem:[%s5 + $0x35c] sm:$0xf]
  %v3958 = vld [vmem:[%s5 + $0x360] sm:$0xff]
  %v3959 = vld [vmem:[%s5 + $0x368] sm:$0xf]
  %v3960 = vld [vmem:[%s5 + $0x36c] sm:$0xff]
  %v3961 = vld [vmem:[%s5 + $0x374] sm:$0xf]
  %v3962 = vld [vmem:[%s5 + $0x378] sm:$0xff]
  %v3963 = vld [vmem:[%s5 + $0x380] sm:$0xf]
  %v3964 = vld [vmem:[%s5 + $0x384] sm:$0xff]
  %v3965 = vld [vmem:[%s5 + $0x38c] sm:$0xf]
  %v3966 = vld [vmem:[%s5 + $0x390] sm:$0xff]
  %v3967 = vld [vmem:[%s5 + $0x398] sm:$0xf]
  %v3968 = vld [vmem:[%s5 + $0x39c] sm:$0xff]
  %v3969 = vld [vmem:[%s5 + $0x3a4] sm:$0xf]
  %v3970 = vld [vmem:[%s5 + $0x3a8] sm:$0xff]
  %v3971 = vld [vmem:[%s5 + $0x3b0] sm:$0xf]
  %v3972 = vld [vmem:[%s5 + $0x3b4] sm:$0xff]
  %v3973 = vld [vmem:[%s5 + $0x3bc] sm:$0xf]
  %v3974 = vld [vmem:[%s5 + $0x3c0] sm:$0xff]
  %v3975 = vld [vmem:[%s5 + $0x3c8] sm:$0xf]
  %v3976 = vld [vmem:[%s5 + $0x3cc] sm:$0xff]
  %v3977 = vld [vmem:[%s5 + $0x3d4] sm:$0xf]
  %v3978 = vld [vmem:[%s5 + $0x3d8] sm:$0xff]
  %v3979 = vld [vmem:[%s5 + $0x3e0] sm:$0xf]
  %v3980 = vld [vmem:[%s5 + $0x3e4] sm:$0xff]
  %v3981 = vld [vmem:[%s5 + $0x3ec] sm:$0xf]
  %v3982 = vld [vmem:[%s5 + $0x3f0] sm:$0xff]
  %v3983 = vld [vmem:[%s5 + $0x3f8] sm:$0xf]
  %v3984 = vld [vmem:[%s5 + $0x3fc] sm:$0xff]
  %v3985 = vld [vmem:[%s5 + $0x404] sm:$0xf]
  %v3986 = vld [vmem:[%s5 + $0x408] sm:$0xff]
  %v3987 = vld [vmem:[%s5 + $0x410] sm:$0xf]
  %v3988 = vld [vmem:[%s5 + $0x414] sm:$0xff]
  %v3989 = vld [vmem:[%s5 + $0x41c] sm:$0xf]
  %v3990 = vld [vmem:[%s5 + $0x420] sm:$0xff]
  %v3991 = vld [vmem:[%s5 + $0x428] sm:$0xf]
  %v3992 = vld [vmem:[%s5 + $0x42c] sm:$0xff]
  %v3993 = vld [vmem:[%s5 + $0x434] sm:$0xf]
  %v3994 = vld [vmem:[%s5 + $0x438] sm:$0xff]
  %v3995 = vld [vmem:[%s5 + $0x440] sm:$0xf]
  %v3996 = vld [vmem:[%s5 + $0x444] sm:$0xff]
  %v3997 = vld [vmem:[%s5 + $0x44c] sm:$0xf]
  %v3998 = vld [vmem:[%s5 + $0x450] sm:$0xff]
  %v3999 = vld [vmem:[%s5 + $0x458] sm:$0xf]
  %v4000 = vld [vmem:[%s5 + $0x45c] sm:$0xff]
  %v4001 = vld [vmem:[%s5 + $0x464] sm:$0xf]
  %v4002 = vld [vmem:[%s5 + $0x468] sm:$0xff]
  %v4003 = vld [vmem:[%s5 + $0x470] sm:$0xf]
  %v4004 = vld [vmem:[%s5 + $0x474] sm:$0xff]
  %v4005 = vld [vmem:[%s5 + $0x47c] sm:$0xf]
  %v4006 = vld [vmem:[%s5 + $0x480] sm:$0xff]
  %v4007 = vld [vmem:[%s5 + $0x488] sm:$0xf]
  %v4008 = vld [vmem:[%s5 + $0x48c] sm:$0xff]
  %v4009 = vld [vmem:[%s5 + $0x494] sm:$0xf]
  %v4010 = vld [vmem:[%s5 + $0x498] sm:$0xff]
  %v4011 = vld [vmem:[%s5 + $0x4a0] sm:$0xf]
  %v4012 = vld [vmem:[%s5 + $0x4a4] sm:$0xff]
  %v4013 = vld [vmem:[%s5 + $0x4ac] sm:$0xf]
  %v4014 = vld [vmem:[%s5 + $0x4b0] sm:$0xff]
  %v4015 = vld [vmem:[%s5 + $0x4b8] sm:$0xf]
  %v4016 = vld [vmem:[%s5 + $0x4bc] sm:$0xff]
  %v4017 = vld [vmem:[%s5 + $0x4c4] sm:$0xf]
  %v4018 = vld [vmem:[%s5 + $0x4c8] sm:$0xff]
  %v4019 = vld [vmem:[%s5 + $0x4d0] sm:$0xf]
  %v4020 = vld [vmem:[%s5 + $0x4d4] sm:$0xff]
  %v4021 = vld [vmem:[%s5 + $0x4dc] sm:$0xf]
  %v4022 = vld [vmem:[%s5 + $0x4e0] sm:$0xff]
  %v4023 = vld [vmem:[%s5 + $0x4e8] sm:$0xf]
  %v4024 = vld [vmem:[%s5 + $0x4ec] sm:$0xff]
  %v4025 = vld [vmem:[%s5 + $0x4f4] sm:$0xf]
  %v4026 = vld [vmem:[%s5 + $0x4f8] sm:$0xff]
  %v4027 = vld [vmem:[%s5 + $0x500] sm:$0xf]
  %v4028 = vld [vmem:[%s5 + $0x504] sm:$0xff]
  %v4029 = vld [vmem:[%s5 + $0x50c] sm:$0xf]
  %v4030 = vld [vmem:[%s5 + $0x510] sm:$0xff]
  %v4031 = vld [vmem:[%s5 + $0x518] sm:$0xf]
  %v4032 = vld [vmem:[%s5 + $0x51c] sm:$0xff]
  %v4033 = vld [vmem:[%s5 + $0x524] sm:$0xf]
  %v4034 = vld [vmem:[%s5 + $0x528] sm:$0xff]
  %v4035 = vld [vmem:[%s5 + $0x530] sm:$0xf]
  %v4036 = vld [vmem:[%s5 + $0x534] sm:$0xff]
  %v4037 = vld [vmem:[%s5 + $0x53c] sm:$0xf]
  %v4038 = vld [vmem:[%s5 + $0x540] sm:$0xff]
  %v4039 = vld [vmem:[%s5 + $0x548] sm:$0xf]
  %v4040 = vld [vmem:[%s5 + $0x54c] sm:$0xff]
  %v4041 = vld [vmem:[%s5 + $0x554] sm:$0xf]
  %v4042 = vld [vmem:[%s5 + $0x558] sm:$0xff]
  %v4043 = vld [vmem:[%s5 + $0x560] sm:$0xf]
  %v4044 = vld [vmem:[%s5 + $0x564] sm:$0xff]
  %v4045 = vld [vmem:[%s5 + $0x56c] sm:$0xf]
  %v4046 = vld [vmem:[%s5 + $0x570] sm:$0xff]
  %v4047 = vld [vmem:[%s5 + $0x578] sm:$0xf]
  %v4048 = vld [vmem:[%s5 + $0x57c] sm:$0xff]
  %v4049 = vld [vmem:[%s5 + $0x584] sm:$0xf]
  %v4050 = vld [vmem:[%s5 + $0x588] sm:$0xff]
  %v4051 = vld [vmem:[%s5 + $0x590] sm:$0xf]
  %v4052 = vld [vmem:[%s5 + $0x594] sm:$0xff]
  %v4053 = vld [vmem:[%s5 + $0x59c] sm:$0xf]
  %v4054 = vld [vmem:[%s5 + $0x5a0] sm:$0xff]
  %v4055 = vld [vmem:[%s5 + $0x5a8] sm:$0xf]
  %v4056 = vld [vmem:[%s5 + $0x5ac] sm:$0xff]
  %v4057 = vld [vmem:[%s5 + $0x5b4] sm:$0xf]
  %v4058 = vld [vmem:[%s5 + $0x5b8] sm:$0xff]
  %v4059 = vld [vmem:[%s5 + $0x5c0] sm:$0xf]
  %v4060 = vld [vmem:[%s5 + $0x5c4] sm:$0xff]
  %v4061 = vld [vmem:[%s5 + $0x5cc] sm:$0xf]
  %v4062 = vld [vmem:[%s5 + $0x5d0] sm:$0xff]
  %v4063 = vld [vmem:[%s5 + $0x5d8] sm:$0xf]
  %v4064 = vld [vmem:[%s5 + $0x5dc] sm:$0xff]
  %v4065 = vld [vmem:[%s5 + $0x5e4] sm:$0xf]
  %v4066 = vld [vmem:[%s5 + $0x5e8] sm:$0xff]
  %v4067 = vld [vmem:[%s5 + $0x5f0] sm:$0xf]
  %v4068 = vld [vmem:[%s5 + $0x5f4] sm:$0xff]
  %v4069 = vld [vmem:[%s5 + $0x5fc] sm:$0xf]
  %v4070 = vld [vmem:[%s5 + $0x600] sm:$0xff]
  %v4071 = vld [vmem:[%s5 + $0x608] sm:$0xf]
  %v4072 = vld [vmem:[%s5 + $0x60c] sm:$0xff]
  %v4073 = vld [vmem:[%s5 + $0x614] sm:$0xf]
  %v4074 = vld [vmem:[%s5 + $0x618] sm:$0xff]
  %v4075 = vld [vmem:[%s5 + $0x620] sm:$0xf]
  %v4076 = vld [vmem:[%s5 + $0x624] sm:$0xff]
  %v4077 = vld [vmem:[%s5 + $0x62c] sm:$0xf]
  %v4078 = vld [vmem:[%s5 + $0x630] sm:$0xff]
  %v4079 = vld [vmem:[%s5 + $0x638] sm:$0xf]
  %v4080 = vld [vmem:[%s5 + $0x63c] sm:$0xff]
  %v4081 = vld [vmem:[%s5 + $0x644] sm:$0xf]
  %v4082 = vld [vmem:[%s5 + $0x648] sm:$0xff]
  %v4083 = vld [vmem:[%s5 + $0x650] sm:$0xf]
  %v4084 = vld [vmem:[%s5 + $0x654] sm:$0xff]
  %v4085 = vld [vmem:[%s5 + $0x65c] sm:$0xf]
  %v4086 = vld [vmem:[%s5 + $0x660] sm:$0xff]
  %v4087 = vld [vmem:[%s5 + $0x668] sm:$0xf]
  %v4088 = vld [vmem:[%s5 + $0x66c] sm:$0xff]
  %v4089 = vld [vmem:[%s5 + $0x674] sm:$0xf]
  %v4090 = vld [vmem:[%s5 + $0x678] sm:$0xff]
  %v4091 = vld [vmem:[%s5 + $0x680] sm:$0xf]
  %v4092 = vld [vmem:[%s5 + $0x684] sm:$0xff]
  %v4093 = vld [vmem:[%s5 + $0x68c] sm:$0xf]
  %v4094 = vld [vmem:[%s5 + $0x690] sm:$0xff]
  %v4095 = vld [vmem:[%s5 + $0x698] sm:$0xf]
  %v4096 = vld [vmem:[%s5 + $0x69c] sm:$0xff]
  %v4097 = vld [vmem:[%s5 + $0x6a4] sm:$0xf]
  %v4098 = vld [vmem:[%s5 + $0x6a8] sm:$0xff]
  %v4099 = vld [vmem:[%s5 + $0x6b0] sm:$0xf]
  %v4100 = vld [vmem:[%s5 + $0x6b4] sm:$0xff]
  %v4101 = vld [vmem:[%s5 + $0x6bc] sm:$0xf]
  %v4102 = vld [vmem:[%s5 + $0x6c0] sm:$0xff]
  %v4103 = vld [vmem:[%s5 + $0x6c8] sm:$0xf]
  %v4104 = vld [vmem:[%s5 + $0x6cc] sm:$0xff]
  %v4105 = vld [vmem:[%s5 + $0x6d4] sm:$0xf]
  %v4106 = vld [vmem:[%s5 + $0x6d8] sm:$0xff]
  %v4107 = vld [vmem:[%s5 + $0x6e0] sm:$0xf]
  %v4108 = vld [vmem:[%s5 + $0x6e4] sm:$0xff]
  %v4109 = vld [vmem:[%s5 + $0x6ec] sm:$0xf]
  %v4110 = vld [vmem:[%s5 + $0x6f0] sm:$0xff]
  %v4111 = vld [vmem:[%s5 + $0x6f8] sm:$0xf]
  %v4112 = vld [vmem:[%s5 + $0x6fc] sm:$0xff]
  %v4113 = vld [vmem:[%s5 + $0x704] sm:$0xf]
  %v4114 = vld [vmem:[%s5 + $0x708] sm:$0xff]
  %v4115 = vld [vmem:[%s5 + $0x710] sm:$0xf]
  %v4116 = vld [vmem:[%s5 + $0x714] sm:$0xff]
  %v4117 = vld [vmem:[%s5 + $0x71c] sm:$0xf]
  %v4118 = vld [vmem:[%s5 + $0x720] sm:$0xff]
  %v4119 = vld [vmem:[%s5 + $0x728] sm:$0xf]
  %v4120 = vld [vmem:[%s5 + $0x72c] sm:$0xff]
  %v4121 = vld [vmem:[%s5 + $0x734] sm:$0xf]
  %v4122 = vld [vmem:[%s5 + $0x738] sm:$0xff]
  %v4123 = vld [vmem:[%s5 + $0x740] sm:$0xf]
  %v4124 = vld [vmem:[%s5 + $0x744] sm:$0xff]
  %v4125 = vld [vmem:[%s5 + $0x74c] sm:$0xf]
  %v4438 = vunpack.c.l.b16 %v3814
  %v4439 = vunpack.c.h.b16 %v3814
  %v4440 = vunpack.c.l.b16 %v3815
  %v4441 = vunpack.c.l.b16 %v3816
  %v4442 = vunpack.c.h.b16 %v3816
  %v4443 = vunpack.c.l.b16 %v3817
  %v4444 = vunpack.c.l.b16 %v3818
  %v4445 = vunpack.c.h.b16 %v3818
  %v4446 = vunpack.c.l.b16 %v3819
  %v4447 = vunpack.c.l.b16 %v3820
  %v4448 = vunpack.c.h.b16 %v3820
  %v4449 = vunpack.c.l.b16 %v3821
  %v4450 = vunpack.c.l.b16 %v3822
  %v4451 = vunpack.c.h.b16 %v3822
  %v4452 = vunpack.c.l.b16 %v3823
  %v4453 = vunpack.c.l.b16 %v3824
  %v4454 = vunpack.c.h.b16 %v3824
  %v4455 = vunpack.c.l.b16 %v3825
  %v4456 = vunpack.c.l.b16 %v3826
  %v4457 = vunpack.c.h.b16 %v3826
  %v4458 = vunpack.c.l.b16 %v3827
  %v4459 = vunpack.c.l.b16 %v3828
  %v4460 = vunpack.c.h.b16 %v3828
  %v4461 = vunpack.c.l.b16 %v3829
  %v4462 = vunpack.c.l.b16 %v3830
  %v4463 = vunpack.c.h.b16 %v3830
  %v4464 = vunpack.c.l.b16 %v3831
  %v4465 = vunpack.c.l.b16 %v3832
  %v4466 = vunpack.c.h.b16 %v3832
  %v4467 = vunpack.c.l.b16 %v3833
  %v4468 = vunpack.c.l.b16 %v3834
  %v4469 = vunpack.c.h.b16 %v3834
  %v4470 = vunpack.c.l.b16 %v3835
  %v4471 = vunpack.c.l.b16 %v3836
  %v4472 = vunpack.c.h.b16 %v3836
  %v4473 = vunpack.c.l.b16 %v3837
  %v4474 = vunpack.c.l.b16 %v3838
  %v4475 = vunpack.c.h.b16 %v3838
  %v4476 = vunpack.c.l.b16 %v3839
  %v4477 = vunpack.c.l.b16 %v3840
  %v4478 = vunpack.c.h.b16 %v3840
  %v4479 = vunpack.c.l.b16 %v3841
  %v4480 = vunpack.c.l.b16 %v3842
  %v4481 = vunpack.c.h.b16 %v3842
  %v4482 = vunpack.c.l.b16 %v3843
  %v4483 = vunpack.c.l.b16 %v3844
  %v4484 = vunpack.c.h.b16 %v3844
  %v4485 = vunpack.c.l.b16 %v3845
  %v4486 = vunpack.c.l.b16 %v3846
  %v4487 = vunpack.c.h.b16 %v3846
  %v4488 = vunpack.c.l.b16 %v3847
  %v4489 = vunpack.c.l.b16 %v3848
  %v4490 = vunpack.c.h.b16 %v3848
  %v4491 = vunpack.c.l.b16 %v3849
  %v4492 = vunpack.c.l.b16 %v3850
  %v4493 = vunpack.c.h.b16 %v3850
  %v4494 = vunpack.c.l.b16 %v3851
  %v4495 = vunpack.c.l.b16 %v3852
  %v4496 = vunpack.c.h.b16 %v3852
  %v4497 = vunpack.c.l.b16 %v3853
  %v4498 = vunpack.c.l.b16 %v3854
  %v4499 = vunpack.c.h.b16 %v3854
  %v4500 = vunpack.c.l.b16 %v3855
  %v4501 = vunpack.c.l.b16 %v3856
  %v4502 = vunpack.c.h.b16 %v3856
  %v4503 = vunpack.c.l.b16 %v3857
  %v4504 = vunpack.c.l.b16 %v3858
  %v4505 = vunpack.c.h.b16 %v3858
  %v4506 = vunpack.c.l.b16 %v3859
  %v4507 = vunpack.c.l.b16 %v3860
  %v4508 = vunpack.c.h.b16 %v3860
  %v4509 = vunpack.c.l.b16 %v3861
  %v4510 = vunpack.c.l.b16 %v3862
  %v4511 = vunpack.c.h.b16 %v3862
  %v4512 = vunpack.c.l.b16 %v3863
  %v4513 = vunpack.c.l.b16 %v3864
  %v4514 = vunpack.c.h.b16 %v3864
  %v4515 = vunpack.c.l.b16 %v3865
  %v4516 = vunpack.c.l.b16 %v3866
  %v4517 = vunpack.c.h.b16 %v3866
  %v4518 = vunpack.c.l.b16 %v3867
  %v4519 = vunpack.c.l.b16 %v3868
  %v4520 = vunpack.c.h.b16 %v3868
  %v4521 = vunpack.c.l.b16 %v3869
  %v4522 = vunpack.c.l.b16 %v3870
  %v4523 = vunpack.c.h.b16 %v3870
  %v4524 = vunpack.c.l.b16 %v3871
  %v4525 = vunpack.c.l.b16 %v3872
  %v4526 = vunpack.c.h.b16 %v3872
  %v4527 = vunpack.c.l.b16 %v3873
  %v4528 = vunpack.c.l.b16 %v3874
  %v4529 = vunpack.c.h.b16 %v3874
  %v4530 = vunpack.c.l.b16 %v3875
  %v4531 = vunpack.c.l.b16 %v3876
  %v4532 = vunpack.c.h.b16 %v3876
  %v4533 = vunpack.c.l.b16 %v3877
  %v4534 = vunpack.c.l.b16 %v3878
  %v4535 = vunpack.c.h.b16 %v3878
  %v4536 = vunpack.c.l.b16 %v3879
  %v4537 = vunpack.c.l.b16 %v3880
  %v4538 = vunpack.c.h.b16 %v3880
  %v4539 = vunpack.c.l.b16 %v3881
  %v4540 = vunpack.c.l.b16 %v3882
  %v4541 = vunpack.c.h.b16 %v3882
  %v4542 = vunpack.c.l.b16 %v3883
  %v4543 = vunpack.c.l.b16 %v3884
  %v4544 = vunpack.c.h.b16 %v3884
  %v4545 = vunpack.c.l.b16 %v3885
  %v4546 = vunpack.c.l.b16 %v3886
  %v4547 = vunpack.c.h.b16 %v3886
  %v4548 = vunpack.c.l.b16 %v3887
  %v4549 = vunpack.c.l.b16 %v3888
  %v4550 = vunpack.c.h.b16 %v3888
  %v4551 = vunpack.c.l.b16 %v3889
  %v4552 = vunpack.c.l.b16 %v3890
  %v4553 = vunpack.c.h.b16 %v3890
  %v4554 = vunpack.c.l.b16 %v3891
  %v4555 = vunpack.c.l.b16 %v3892
  %v4556 = vunpack.c.h.b16 %v3892
  %v4557 = vunpack.c.l.b16 %v3893
  %v4558 = vunpack.c.l.b16 %v3894
  %v4559 = vunpack.c.h.b16 %v3894
  %v4560 = vunpack.c.l.b16 %v3895
  %v4561 = vunpack.c.l.b16 %v3896
  %v4562 = vunpack.c.h.b16 %v3896
  %v4563 = vunpack.c.l.b16 %v3897
  %v4564 = vunpack.c.l.b16 %v3898
  %v4565 = vunpack.c.h.b16 %v3898
  %v4566 = vunpack.c.l.b16 %v3899
  %v4567 = vunpack.c.l.b16 %v3900
  %v4568 = vunpack.c.h.b16 %v3900
  %v4569 = vunpack.c.l.b16 %v3901
  %v4570 = vunpack.c.l.b16 %v3902
  %v4571 = vunpack.c.h.b16 %v3902
  %v4572 = vunpack.c.l.b16 %v3903
  %v4573 = vunpack.c.l.b16 %v3904
  %v4574 = vunpack.c.h.b16 %v3904
  %v4575 = vunpack.c.l.b16 %v3905
  %v4576 = vunpack.c.l.b16 %v3906
  %v4577 = vunpack.c.h.b16 %v3906
  %v4578 = vunpack.c.l.b16 %v3907
  %v4579 = vunpack.c.l.b16 %v3908
  %v4580 = vunpack.c.h.b16 %v3908
  %v4581 = vunpack.c.l.b16 %v3909
  %v4582 = vunpack.c.l.b16 %v3910
  %v4583 = vunpack.c.h.b16 %v3910
  %v4584 = vunpack.c.l.b16 %v3911
  %v4585 = vunpack.c.l.b16 %v3912
  %v4586 = vunpack.c.h.b16 %v3912
  %v4587 = vunpack.c.l.b16 %v3913
  %v4588 = vunpack.c.l.b16 %v3914
  %v4589 = vunpack.c.h.b16 %v3914
  %v4590 = vunpack.c.l.b16 %v3915
  %v4591 = vunpack.c.l.b16 %v3916
  %v4592 = vunpack.c.h.b16 %v3916
  %v4593 = vunpack.c.l.b16 %v3917
  %v4594 = vunpack.c.l.b16 %v3918
  %v4595 = vunpack.c.h.b16 %v3918
  %v4596 = vunpack.c.l.b16 %v3919
  %v4597 = vunpack.c.l.b16 %v3920
  %v4598 = vunpack.c.h.b16 %v3920
  %v4599 = vunpack.c.l.b16 %v3921
  %v4600 = vunpack.c.l.b16 %v3922
  %v4601 = vunpack.c.h.b16 %v3922
  %v4602 = vunpack.c.l.b16 %v3923
  %v4603 = vunpack.c.l.b16 %v3924
  %v4604 = vunpack.c.h.b16 %v3924
  %v4605 = vunpack.c.l.b16 %v3925
  %v4606 = vunpack.c.l.b16 %v3926
  %v4607 = vunpack.c.h.b16 %v3926
  %v4608 = vunpack.c.l.b16 %v3927
  %v4609 = vunpack.c.l.b16 %v3928
  %v4610 = vunpack.c.h.b16 %v3928
  %v4611 = vunpack.c.l.b16 %v3929
  %v4612 = vunpack.c.l.b16 %v3930
  %v4613 = vunpack.c.h.b16 %v3930
  %v4614 = vunpack.c.l.b16 %v3931
  %v4615 = vunpack.c.l.b16 %v3932
  %v4616 = vunpack.c.h.b16 %v3932
  %v4617 = vunpack.c.l.b16 %v3933
  %v4618 = vunpack.c.l.b16 %v3934
  %v4619 = vunpack.c.h.b16 %v3934
  %v4620 = vunpack.c.l.b16 %v3935
  %v4621 = vunpack.c.l.b16 %v3936
  %v4622 = vunpack.c.h.b16 %v3936
  %v4623 = vunpack.c.l.b16 %v3937
  %v4624 = vunpack.c.l.b16 %v3938
  %v4625 = vunpack.c.h.b16 %v3938
  %v4626 = vunpack.c.l.b16 %v3939
  %v4627 = vunpack.c.l.b16 %v3940
  %v4628 = vunpack.c.h.b16 %v3940
  %v4629 = vunpack.c.l.b16 %v3941
  %v4630 = vunpack.c.l.b16 %v3942
  %v4631 = vunpack.c.h.b16 %v3942
  %v4632 = vunpack.c.l.b16 %v3943
  %v4633 = vunpack.c.l.b16 %v3944
  %v4634 = vunpack.c.h.b16 %v3944
  %v4635 = vunpack.c.l.b16 %v3945
  %v4636 = vunpack.c.l.b16 %v3946
  %v4637 = vunpack.c.h.b16 %v3946
  %v4638 = vunpack.c.l.b16 %v3947
  %v4639 = vunpack.c.l.b16 %v3948
  %v4640 = vunpack.c.h.b16 %v3948
  %v4641 = vunpack.c.l.b16 %v3949
  %v4642 = vunpack.c.l.b16 %v3950
  %v4643 = vunpack.c.h.b16 %v3950
  %v4644 = vunpack.c.l.b16 %v3951
  %v4645 = vunpack.c.l.b16 %v3952
  %v4646 = vunpack.c.h.b16 %v3952
  %v4647 = vunpack.c.l.b16 %v3953
  %v4648 = vunpack.c.l.b16 %v3954
  %v4649 = vunpack.c.h.b16 %v3954
  %v4650 = vunpack.c.l.b16 %v3955
  %v4651 = vunpack.c.l.b16 %v3956
  %v4652 = vunpack.c.h.b16 %v3956
  %v4653 = vunpack.c.l.b16 %v3957
  %v4654 = vunpack.c.l.b16 %v3958
  %v4655 = vunpack.c.h.b16 %v3958
  %v4656 = vunpack.c.l.b16 %v3959
  %v4657 = vunpack.c.l.b16 %v3960
  %v4658 = vunpack.c.h.b16 %v3960
  %v4659 = vunpack.c.l.b16 %v3961
  %v4660 = vunpack.c.l.b16 %v3962
  %v4661 = vunpack.c.h.b16 %v3962
  %v4662 = vunpack.c.l.b16 %v3963
  %v4663 = vunpack.c.l.b16 %v3964
  %v4664 = vunpack.c.h.b16 %v3964
  %v4665 = vunpack.c.l.b16 %v3965
  %v4666 = vunpack.c.l.b16 %v3966
  %v4667 = vunpack.c.h.b16 %v3966
  %v4668 = vunpack.c.l.b16 %v3967
  %v4669 = vunpack.c.l.b16 %v3968
  %v4670 = vunpack.c.h.b16 %v3968
  %v4671 = vunpack.c.l.b16 %v3969
  %v4672 = vunpack.c.l.b16 %v3970
  %v4673 = vunpack.c.h.b16 %v3970
  %v4674 = vunpack.c.l.b16 %v3971
  %v4675 = vunpack.c.l.b16 %v3972
  %v4676 = vunpack.c.h.b16 %v3972
  %v4677 = vunpack.c.l.b16 %v3973
  %v4678 = vunpack.c.l.b16 %v3974
  %v4679 = vunpack.c.h.b16 %v3974
  %v4680 = vunpack.c.l.b16 %v3975
  %v4681 = vunpack.c.l.b16 %v3976
  %v4682 = vunpack.c.h.b16 %v3976
  %v4683 = vunpack.c.l.b16 %v3977
  %v4684 = vunpack.c.l.b16 %v3978
  %v4685 = vunpack.c.h.b16 %v3978
  %v4686 = vunpack.c.l.b16 %v3979
  %v4687 = vunpack.c.l.b16 %v3980
  %v4688 = vunpack.c.h.b16 %v3980
  %v4689 = vunpack.c.l.b16 %v3981
  %v4690 = vunpack.c.l.b16 %v3982
  %v4691 = vunpack.c.h.b16 %v3982
  %v4692 = vunpack.c.l.b16 %v3983
  %v4693 = vunpack.c.l.b16 %v3984
  %v4694 = vunpack.c.h.b16 %v3984
  %v4695 = vunpack.c.l.b16 %v3985
  %v4696 = vunpack.c.l.b16 %v3986
  %v4697 = vunpack.c.h.b16 %v3986
  %v4698 = vunpack.c.l.b16 %v3987
  %v4699 = vunpack.c.l.b16 %v3988
  %v4700 = vunpack.c.h.b16 %v3988
  %v4701 = vunpack.c.l.b16 %v3989
  %v4702 = vunpack.c.l.b16 %v3990
  %v4703 = vunpack.c.h.b16 %v3990
  %v4704 = vunpack.c.l.b16 %v3991
  %v4705 = vunpack.c.l.b16 %v3992
  %v4706 = vunpack.c.h.b16 %v3992
  %v4707 = vunpack.c.l.b16 %v3993
  %v4708 = vunpack.c.l.b16 %v3994
  %v4709 = vunpack.c.h.b16 %v3994
  %v4710 = vunpack.c.l.b16 %v3995
  %v4711 = vunpack.c.l.b16 %v3996
  %v4712 = vunpack.c.h.b16 %v3996
  %v4713 = vunpack.c.l.b16 %v3997
  %v4714 = vunpack.c.l.b16 %v3998
  %v4715 = vunpack.c.h.b16 %v3998
  %v4716 = vunpack.c.l.b16 %v3999
  %v4717 = vunpack.c.l.b16 %v4000
  %v4718 = vunpack.c.h.b16 %v4000
  %v4719 = vunpack.c.l.b16 %v4001
  %v4720 = vunpack.c.l.b16 %v4002
  %v4721 = vunpack.c.h.b16 %v4002
  %v4722 = vunpack.c.l.b16 %v4003
  %v4723 = vunpack.c.l.b16 %v4004
  %v4724 = vunpack.c.h.b16 %v4004
  %v4725 = vunpack.c.l.b16 %v4005
  %v4726 = vunpack.c.l.b16 %v4006
  %v4727 = vunpack.c.h.b16 %v4006
  %v4728 = vunpack.c.l.b16 %v4007
  %v4729 = vunpack.c.l.b16 %v4008
  %v4730 = vunpack.c.h.b16 %v4008
  %v4731 = vunpack.c.l.b16 %v4009
  %v4732 = vunpack.c.l.b16 %v4010
  %v4733 = vunpack.c.h.b16 %v4010
  %v4734 = vunpack.c.l.b16 %v4011
  %v4735 = vunpack.c.l.b16 %v4012
  %v4736 = vunpack.c.h.b16 %v4012
  %v4737 = vunpack.c.l.b16 %v4013
  %v4738 = vunpack.c.l.b16 %v4014
  %v4739 = vunpack.c.h.b16 %v4014
  %v4740 = vunpack.c.l.b16 %v4015
  %v4741 = vunpack.c.l.b16 %v4016
  %v4742 = vunpack.c.h.b16 %v4016
  %v4743 = vunpack.c.l.b16 %v4017
  %v4744 = vunpack.c.l.b16 %v4018
  %v4745 = vunpack.c.h.b16 %v4018
  %v4746 = vunpack.c.l.b16 %v4019
  %v4747 = vunpack.c.l.b16 %v4020
  %v4748 = vunpack.c.h.b16 %v4020
  %v4749 = vunpack.c.l.b16 %v4021
  %v4750 = vunpack.c.l.b16 %v4022
  %v4751 = vunpack.c.h.b16 %v4022
  %v4752 = vunpack.c.l.b16 %v4023
  %v4753 = vunpack.c.l.b16 %v4024
  %v4754 = vunpack.c.h.b16 %v4024
  %v4755 = vunpack.c.l.b16 %v4025
  %v4756 = vunpack.c.l.b16 %v4026
  %v4757 = vunpack.c.h.b16 %v4026
  %v4758 = vunpack.c.l.b16 %v4027
  %v4759 = vunpack.c.l.b16 %v4028
  %v4760 = vunpack.c.h.b16 %v4028
  %v4761 = vunpack.c.l.b16 %v4029
  %v4762 = vunpack.c.l.b16 %v4030
  %v4763 = vunpack.c.h.b16 %v4030
  %v4764 = vunpack.c.l.b16 %v4031
  %v4765 = vunpack.c.l.b16 %v4032
  %v4766 = vunpack.c.h.b16 %v4032
  %v4767 = vunpack.c.l.b16 %v4033
  %v4768 = vunpack.c.l.b16 %v4034
  %v4769 = vunpack.c.h.b16 %v4034
  %v4770 = vunpack.c.l.b16 %v4035
  %v4771 = vunpack.c.l.b16 %v4036
  %v4772 = vunpack.c.h.b16 %v4036
  %v4773 = vunpack.c.l.b16 %v4037
  %v4774 = vunpack.c.l.b16 %v4038
  %v4775 = vunpack.c.h.b16 %v4038
  %v4776 = vunpack.c.l.b16 %v4039
  %v4777 = vunpack.c.l.b16 %v4040
  %v4778 = vunpack.c.h.b16 %v4040
  %v4779 = vunpack.c.l.b16 %v4041
  %v4780 = vunpack.c.l.b16 %v4042
  %v4781 = vunpack.c.h.b16 %v4042
  %v4782 = vunpack.c.l.b16 %v4043
  %v4783 = vunpack.c.l.b16 %v4044
  %v4784 = vunpack.c.h.b16 %v4044
  %v4785 = vunpack.c.l.b16 %v4045
  %v4786 = vunpack.c.l.b16 %v4046
  %v4787 = vunpack.c.h.b16 %v4046
  %v4788 = vunpack.c.l.b16 %v4047
  %v4789 = vunpack.c.l.b16 %v4048
  %v4790 = vunpack.c.h.b16 %v4048
  %v4791 = vunpack.c.l.b16 %v4049
  %v4792 = vunpack.c.l.b16 %v4050
  %v4793 = vunpack.c.h.b16 %v4050
  %v4794 = vunpack.c.l.b16 %v4051
  %v4795 = vunpack.c.l.b16 %v4052
  %v4796 = vunpack.c.h.b16 %v4052
  %v4797 = vunpack.c.l.b16 %v4053
  %v4798 = vunpack.c.l.b16 %v4054
  %v4799 = vunpack.c.h.b16 %v4054
  %v4800 = vunpack.c.l.b16 %v4055
  %v4801 = vunpack.c.l.b16 %v4056
  %v4802 = vunpack.c.h.b16 %v4056
  %v4803 = vunpack.c.l.b16 %v4057
  %v4804 = vunpack.c.l.b16 %v4058
  %v4805 = vunpack.c.h.b16 %v4058
  %v4806 = vunpack.c.l.b16 %v4059
  %v4807 = vunpack.c.l.b16 %v4060
  %v4808 = vunpack.c.h.b16 %v4060
  %v4809 = vunpack.c.l.b16 %v4061
  %v4810 = vunpack.c.l.b16 %v4062
  %v4811 = vunpack.c.h.b16 %v4062
  %v4812 = vunpack.c.l.b16 %v4063
  %v4813 = vunpack.c.l.b16 %v4064
  %v4814 = vunpack.c.h.b16 %v4064
  %v4815 = vunpack.c.l.b16 %v4065
  %v4816 = vunpack.c.l.b16 %v4066
  %v4817 = vunpack.c.h.b16 %v4066
  %v4818 = vunpack.c.l.b16 %v4067
  %v4819 = vunpack.c.l.b16 %v4068
  %v4820 = vunpack.c.h.b16 %v4068
  %v4821 = vunpack.c.l.b16 %v4069
  %v4822 = vunpack.c.l.b16 %v4070
  %v4823 = vunpack.c.h.b16 %v4070
  %v4824 = vunpack.c.l.b16 %v4071
  %v4825 = vunpack.c.l.b16 %v4072
  %v4826 = vunpack.c.h.b16 %v4072
  %v4827 = vunpack.c.l.b16 %v4073
  %v4828 = vunpack.c.l.b16 %v4074
  %v4829 = vunpack.c.h.b16 %v4074
  %v4830 = vunpack.c.l.b16 %v4075
  %v4831 = vunpack.c.l.b16 %v4076
  %v4832 = vunpack.c.h.b16 %v4076
  %v4833 = vunpack.c.l.b16 %v4077
  %v4834 = vunpack.c.l.b16 %v4078
  %v4835 = vunpack.c.h.b16 %v4078
  %v4836 = vunpack.c.l.b16 %v4079
  %v4837 = vunpack.c.l.b16 %v4080
  %v4838 = vunpack.c.h.b16 %v4080
  %v4839 = vunpack.c.l.b16 %v4081
  %v4840 = vunpack.c.l.b16 %v4082
  %v4841 = vunpack.c.h.b16 %v4082
  %v4842 = vunpack.c.l.b16 %v4083
  %v4843 = vunpack.c.l.b16 %v4084
  %v4844 = vunpack.c.h.b16 %v4084
  %v4845 = vunpack.c.l.b16 %v4085
  %v4846 = vunpack.c.l.b16 %v4086
  %v4847 = vunpack.c.h.b16 %v4086
  %v4848 = vunpack.c.l.b16 %v4087
  %v4849 = vunpack.c.l.b16 %v4088
  %v4850 = vunpack.c.h.b16 %v4088
  %v4851 = vunpack.c.l.b16 %v4089
  %v4852 = vunpack.c.l.b16 %v4090
  %v4853 = vunpack.c.h.b16 %v4090
  %v4854 = vunpack.c.l.b16 %v4091
  %v4855 = vunpack.c.l.b16 %v4092
  %v4856 = vunpack.c.h.b16 %v4092
  %v4857 = vunpack.c.l.b16 %v4093
  %v4858 = vunpack.c.l.b16 %v4094
  %v4859 = vunpack.c.h.b16 %v4094
  %v4860 = vunpack.c.l.b16 %v4095
  %v4861 = vunpack.c.l.b16 %v4096
  %v4862 = vunpack.c.h.b16 %v4096
  %v4863 = vunpack.c.l.b16 %v4097
  %v4864 = vunpack.c.l.b16 %v4098
  %v4865 = vunpack.c.h.b16 %v4098
  %v4866 = vunpack.c.l.b16 %v4099
  %v4867 = vunpack.c.l.b16 %v4100
  %v4868 = vunpack.c.h.b16 %v4100
  %v4869 = vunpack.c.l.b16 %v4101
  %v4870 = vunpack.c.l.b16 %v4102
  %v4871 = vunpack.c.h.b16 %v4102
  %v4872 = vunpack.c.l.b16 %v4103
  %v4873 = vunpack.c.l.b16 %v4104
  %v4874 = vunpack.c.h.b16 %v4104
  %v4875 = vunpack.c.l.b16 %v4105
  %v4876 = vunpack.c.l.b16 %v4106
  %v4877 = vunpack.c.h.b16 %v4106
  %v4878 = vunpack.c.l.b16 %v4107
  %v4879 = vunpack.c.l.b16 %v4108
  %v4880 = vunpack.c.h.b16 %v4108
  %v4881 = vunpack.c.l.b16 %v4109
  %v4882 = vunpack.c.l.b16 %v4110
  %v4883 = vunpack.c.h.b16 %v4110
  %v4884 = vunpack.c.l.b16 %v4111
  %v4885 = vunpack.c.l.b16 %v4112
  %v4886 = vunpack.c.h.b16 %v4112
  %v4887 = vunpack.c.l.b16 %v4113
  %v4888 = vunpack.c.l.b16 %v4114
  %v4889 = vunpack.c.h.b16 %v4114
  %v4890 = vunpack.c.l.b16 %v4115
  %v4891 = vunpack.c.l.b16 %v4116
  %v4892 = vunpack.c.h.b16 %v4116
  %v4893 = vunpack.c.l.b16 %v4117
  %v4894 = vunpack.c.l.b16 %v4118
  %v4895 = vunpack.c.h.b16 %v4118
  %v4896 = vunpack.c.l.b16 %v4119
  %v4897 = vunpack.c.l.b16 %v4120
  %v4898 = vunpack.c.h.b16 %v4120
  %v4899 = vunpack.c.l.b16 %v4121
  %v4900 = vunpack.c.l.b16 %v4122
  %v4901 = vunpack.c.h.b16 %v4122
  %v4902 = vunpack.c.l.b16 %v4123
  %v4903 = vunpack.c.l.b16 %v4124
  %v4904 = vunpack.c.h.b16 %v4124
  %v4905 = vunpack.c.l.b16 %v4125
  %v4906 = vpack.c.b16 %v4441, %v4438
  %v4907 = vpack.c.b16 %v4442, %v4439
  %v4908 = vpack.c.b16 %v4443, %v4440
  %v4909 = vpack.c.b16 %v4447, %v4444
  %v4910 = vpack.c.b16 %v4448, %v4445
  %v4911 = vpack.c.b16 %v4449, %v4446
  %v4912 = vpack.c.b16 %v4453, %v4450
  %v4913 = vpack.c.b16 %v4454, %v4451
  %v4914 = vpack.c.b16 %v4455, %v4452
  %v4915 = vpack.c.b16 %v4459, %v4456
  %v4916 = vpack.c.b16 %v4460, %v4457
  %v4917 = vpack.c.b16 %v4461, %v4458
  %v4918 = vpack.c.b16 %v4465, %v4462
  %v4919 = vpack.c.b16 %v4466, %v4463
  %v4920 = vpack.c.b16 %v4467, %v4464
  %v4921 = vpack.c.b16 %v4471, %v4468
  %v4922 = vpack.c.b16 %v4472, %v4469
  %v4923 = vpack.c.b16 %v4473, %v4470
  %v4924 = vpack.c.b16 %v4477, %v4474
  %v4925 = vpack.c.b16 %v4478, %v4475
  %v4926 = vpack.c.b16 %v4479, %v4476
  %v4927 = vpack.c.b16 %v4483, %v4480
  %v4928 = vpack.c.b16 %v4484, %v4481
  %v4929 = vpack.c.b16 %v4485, %v4482
  %v4930 = vpack.c.b16 %v4489, %v4486
  %v4931 = vpack.c.b16 %v4490, %v4487
  %v4932 = vpack.c.b16 %v4491, %v4488
  %v4933 = vpack.c.b16 %v4495, %v4492
  %v4934 = vpack.c.b16 %v4496, %v4493
  %v4935 = vpack.c.b16 %v4497, %v4494
  %v4936 = vpack.c.b16 %v4501, %v4498
  %v4937 = vpack.c.b16 %v4502, %v4499
  %v4938 = vpack.c.b16 %v4503, %v4500
  %v4939 = vpack.c.b16 %v4507, %v4504
  %v4940 = vpack.c.b16 %v4508, %v4505
  %v4941 = vpack.c.b16 %v4509, %v4506
  %v4942 = vpack.c.b16 %v4513, %v4510
  %v4943 = vpack.c.b16 %v4514, %v4511
  %v4944 = vpack.c.b16 %v4515, %v4512
  %v4945 = vpack.c.b16 %v4519, %v4516
  %v4946 = vpack.c.b16 %v4520, %v4517
  %v4947 = vpack.c.b16 %v4521, %v4518
  %v4948 = vpack.c.b16 %v4525, %v4522
  %v4949 = vpack.c.b16 %v4526, %v4523
  %v4950 = vpack.c.b16 %v4527, %v4524
  %v4951 = vpack.c.b16 %v4531, %v4528
  %v4952 = vpack.c.b16 %v4532, %v4529
  %v4953 = vpack.c.b16 %v4533, %v4530
  %v4954 = vpack.c.b16 %v4537, %v4534
  %v4955 = vpack.c.b16 %v4538, %v4535
  %v4956 = vpack.c.b16 %v4539, %v4536
  %v4957 = vpack.c.b16 %v4543, %v4540
  %v4958 = vpack.c.b16 %v4544, %v4541
  %v4959 = vpack.c.b16 %v4545, %v4542
  %v4960 = vpack.c.b16 %v4549, %v4546
  %v4961 = vpack.c.b16 %v4550, %v4547
  %v4962 = vpack.c.b16 %v4551, %v4548
  %v4963 = vpack.c.b16 %v4555, %v4552
  %v4964 = vpack.c.b16 %v4556, %v4553
  %v4965 = vpack.c.b16 %v4557, %v4554
  %v4966 = vpack.c.b16 %v4561, %v4558
  %v4967 = vpack.c.b16 %v4562, %v4559
  %v4968 = vpack.c.b16 %v4563, %v4560
  %v4969 = vpack.c.b16 %v4567, %v4564
  %v4970 = vpack.c.b16 %v4568, %v4565
  %v4971 = vpack.c.b16 %v4569, %v4566
  %v4972 = vpack.c.b16 %v4573, %v4570
  %v4973 = vpack.c.b16 %v4574, %v4571
  %v4974 = vpack.c.b16 %v4575, %v4572
  %v4975 = vpack.c.b16 %v4579, %v4576
  %v4976 = vpack.c.b16 %v4580, %v4577
  %v4977 = vpack.c.b16 %v4581, %v4578
  %v4978 = vpack.c.b16 %v4585, %v4582
  %v4979 = vpack.c.b16 %v4586, %v4583
  %v4980 = vpack.c.b16 %v4587, %v4584
  %v4981 = vpack.c.b16 %v4591, %v4588
  %v4982 = vpack.c.b16 %v4592, %v4589
  %v4983 = vpack.c.b16 %v4593, %v4590
  %v4984 = vpack.c.b16 %v4597, %v4594
  %v4985 = vpack.c.b16 %v4598, %v4595
  %v4986 = vpack.c.b16 %v4599, %v4596
  %v4987 = vpack.c.b16 %v4603, %v4600
  %v4988 = vpack.c.b16 %v4604, %v4601
  %v4989 = vpack.c.b16 %v4605, %v4602
  %v4990 = vpack.c.b16 %v4609, %v4606
  %v4991 = vpack.c.b16 %v4610, %v4607
  %v4992 = vpack.c.b16 %v4611, %v4608
  %v4993 = vpack.c.b16 %v4615, %v4612
  %v4994 = vpack.c.b16 %v4616, %v4613
  %v4995 = vpack.c.b16 %v4617, %v4614
  %v4996 = vpack.c.b16 %v4621, %v4618
  %v4997 = vpack.c.b16 %v4622, %v4619
  %v4998 = vpack.c.b16 %v4623, %v4620
  %v4999 = vpack.c.b16 %v4627, %v4624
  %v5000 = vpack.c.b16 %v4628, %v4625
  %v5001 = vpack.c.b16 %v4629, %v4626
  %v5002 = vpack.c.b16 %v4633, %v4630
  %v5003 = vpack.c.b16 %v4634, %v4631
  %v5004 = vpack.c.b16 %v4635, %v4632
  %v5005 = vpack.c.b16 %v4639, %v4636
  %v5006 = vpack.c.b16 %v4640, %v4637
  %v5007 = vpack.c.b16 %v4641, %v4638
  %v5008 = vpack.c.b16 %v4645, %v4642
  %v5009 = vpack.c.b16 %v4646, %v4643
  %v5010 = vpack.c.b16 %v4647, %v4644
  %v5011 = vpack.c.b16 %v4651, %v4648
  %v5012 = vpack.c.b16 %v4652, %v4649
  %v5013 = vpack.c.b16 %v4653, %v4650
  %v5014 = vpack.c.b16 %v4657, %v4654
  %v5015 = vpack.c.b16 %v4658, %v4655
  %v5016 = vpack.c.b16 %v4659, %v4656
  %v5017 = vpack.c.b16 %v4663, %v4660
  %v5018 = vpack.c.b16 %v4664, %v4661
  %v5019 = vpack.c.b16 %v4665, %v4662
  %v5020 = vpack.c.b16 %v4669, %v4666
  %v5021 = vpack.c.b16 %v4670, %v4667
  %v5022 = vpack.c.b16 %v4671, %v4668
  %v5023 = vpack.c.b16 %v4675, %v4672
  %v5024 = vpack.c.b16 %v4676, %v4673
  %v5025 = vpack.c.b16 %v4677, %v4674
  %v5026 = vpack.c.b16 %v4681, %v4678
  %v5027 = vpack.c.b16 %v4682, %v4679
  %v5028 = vpack.c.b16 %v4683, %v4680
  %v5029 = vpack.c.b16 %v4687, %v4684
  %v5030 = vpack.c.b16 %v4688, %v4685
  %v5031 = vpack.c.b16 %v4689, %v4686
  %v5032 = vpack.c.b16 %v4693, %v4690
  %v5033 = vpack.c.b16 %v4694, %v4691
  %v5034 = vpack.c.b16 %v4695, %v4692
  %v5035 = vpack.c.b16 %v4699, %v4696
  %v5036 = vpack.c.b16 %v4700, %v4697
  %v5037 = vpack.c.b16 %v4701, %v4698
  %v5038 = vpack.c.b16 %v4705, %v4702
  %v5039 = vpack.c.b16 %v4706, %v4703
  %v5040 = vpack.c.b16 %v4707, %v4704
  %v5041 = vpack.c.b16 %v4711, %v4708
  %v5042 = vpack.c.b16 %v4712, %v4709
  %v5043 = vpack.c.b16 %v4713, %v4710
  %v5044 = vpack.c.b16 %v4717, %v4714
  %v5045 = vpack.c.b16 %v4718, %v4715
  %v5046 = vpack.c.b16 %v4719, %v4716
  %v5047 = vpack.c.b16 %v4723, %v4720
  %v5048 = vpack.c.b16 %v4724, %v4721
  %v5049 = vpack.c.b16 %v4725, %v4722
  %v5050 = vpack.c.b16 %v4729, %v4726
  %v5051 = vpack.c.b16 %v4730, %v4727
  %v5052 = vpack.c.b16 %v4731, %v4728
  %v5053 = vpack.c.b16 %v4735, %v4732
  %v5054 = vpack.c.b16 %v4736, %v4733
  %v5055 = vpack.c.b16 %v4737, %v4734
  %v5056 = vpack.c.b16 %v4741, %v4738
  %v5057 = vpack.c.b16 %v4742, %v4739
  %v5058 = vpack.c.b16 %v4743, %v4740
  %v5059 = vpack.c.b16 %v4747, %v4744
  %v5060 = vpack.c.b16 %v4748, %v4745
  %v5061 = vpack.c.b16 %v4749, %v4746
  %v5062 = vpack.c.b16 %v4753, %v4750
  %v5063 = vpack.c.b16 %v4754, %v4751
  %v5064 = vpack.c.b16 %v4755, %v4752
  %v5065 = vpack.c.b16 %v4759, %v4756
  %v5066 = vpack.c.b16 %v4760, %v4757
  %v5067 = vpack.c.b16 %v4761, %v4758
  %v5068 = vpack.c.b16 %v4765, %v4762
  %v5069 = vpack.c.b16 %v4766, %v4763
  %v5070 = vpack.c.b16 %v4767, %v4764
  %v5071 = vpack.c.b16 %v4771, %v4768
  %v5072 = vpack.c.b16 %v4772, %v4769
  %v5073 = vpack.c.b16 %v4773, %v4770
  %v5074 = vpack.c.b16 %v4777, %v4774
  %v5075 = vpack.c.b16 %v4778, %v4775
  %v5076 = vpack.c.b16 %v4779, %v4776
  %v5077 = vpack.c.b16 %v4783, %v4780
  %v5078 = vpack.c.b16 %v4784, %v4781
  %v5079 = vpack.c.b16 %v4785, %v4782
  %v5080 = vpack.c.b16 %v4789, %v4786
  %v5081 = vpack.c.b16 %v4790, %v4787
  %v5082 = vpack.c.b16 %v4791, %v4788
  %v5083 = vpack.c.b16 %v4795, %v4792
  %v5084 = vpack.c.b16 %v4796, %v4793
  %v5085 = vpack.c.b16 %v4797, %v4794
  %v5086 = vpack.c.b16 %v4801, %v4798
  %v5087 = vpack.c.b16 %v4802, %v4799
  %v5088 = vpack.c.b16 %v4803, %v4800
  %v5089 = vpack.c.b16 %v4807, %v4804
  %v5090 = vpack.c.b16 %v4808, %v4805
  %v5091 = vpack.c.b16 %v4809, %v4806
  %v5092 = vpack.c.b16 %v4813, %v4810
  %v5093 = vpack.c.b16 %v4814, %v4811
  %v5094 = vpack.c.b16 %v4815, %v4812
  %v5095 = vpack.c.b16 %v4819, %v4816
  %v5096 = vpack.c.b16 %v4820, %v4817
  %v5097 = vpack.c.b16 %v4821, %v4818
  %v5098 = vpack.c.b16 %v4825, %v4822
  %v5099 = vpack.c.b16 %v4826, %v4823
  %v5100 = vpack.c.b16 %v4827, %v4824
  %v5101 = vpack.c.b16 %v4831, %v4828
  %v5102 = vpack.c.b16 %v4832, %v4829
  %v5103 = vpack.c.b16 %v4833, %v4830
  %v5104 = vpack.c.b16 %v4837, %v4834
  %v5105 = vpack.c.b16 %v4838, %v4835
  %v5106 = vpack.c.b16 %v4839, %v4836
  %v5107 = vpack.c.b16 %v4843, %v4840
  %v5108 = vpack.c.b16 %v4844, %v4841
  %v5109 = vpack.c.b16 %v4845, %v4842
  %v5110 = vpack.c.b16 %v4849, %v4846
  %v5111 = vpack.c.b16 %v4850, %v4847
  %v5112 = vpack.c.b16 %v4851, %v4848
  %v5113 = vpack.c.b16 %v4855, %v4852
  %v5114 = vpack.c.b16 %v4856, %v4853
  %v5115 = vpack.c.b16 %v4857, %v4854
  %v5116 = vpack.c.b16 %v4861, %v4858
  %v5117 = vpack.c.b16 %v4862, %v4859
  %v5118 = vpack.c.b16 %v4863, %v4860
  %v5119 = vpack.c.b16 %v4867, %v4864
  %v5120 = vpack.c.b16 %v4868, %v4865
  %v5121 = vpack.c.b16 %v4869, %v4866
  %v5122 = vpack.c.b16 %v4873, %v4870
  %v5123 = vpack.c.b16 %v4874, %v4871
  %v5124 = vpack.c.b16 %v4875, %v4872
  %v5125 = vpack.c.b16 %v4879, %v4876
  %v5126 = vpack.c.b16 %v4880, %v4877
  %v5127 = vpack.c.b16 %v4881, %v4878
  %v5128 = vpack.c.b16 %v4885, %v4882
  %v5129 = vpack.c.b16 %v4886, %v4883
  %v5130 = vpack.c.b16 %v4887, %v4884
  %v5131 = vpack.c.b16 %v4891, %v4888
  %v5132 = vpack.c.b16 %v4892, %v4889
  %v5133 = vpack.c.b16 %v4893, %v4890
  %v5134 = vpack.c.b16 %v4897, %v4894
  %v5135 = vpack.c.b16 %v4898, %v4895
  %v5136 = vpack.c.b16 %v4899, %v4896
  %v5137 = vpack.c.b16 %v4903, %v4900
  %v5138 = vpack.c.b16 %v4904, %v4901
  %v5139 = vpack.c.b16 %v4905, %v4902
  %vm5374 = vcmask 785408
  %v5376 = vsel %vm5374, %v3743, 0
  %v5379 = vsel %vm5374, %v3753, 0
  %v5382 = vsel %vm5374, %v3763, 0
  %v5385 = vsel %vm5374, %v3773, 0
  %v5388 = vsel %vm5374, %v3783, 0
  %v5391 = vsel %vm5374, %v3793, 0
  %v5394 = vsel %vm5374, %v3803, 0
  %v5397 = vsel %vm5374, %v3813, 0
  %5399 = vmatprep.subr.bf16.mxu0 %v4907
  %5400 = vmatpush1.bf16.msra.mxu0 %v4906
  %5401 = vmatprep.subr.bf16.mxu0 %v4910
  %5402 = vmatpush1.bf16.msra.mxu0 %v4909
  %5403 = vmatprep.subr.bf16.mxu0 %v4913
  %5404 = vmatpush1.bf16.msra.mxu0 %v4912
  %5405 = vmatprep.subr.bf16.mxu0 %v4916
  %5406 = vmatpush1.bf16.msra.mxu0 %v4915
  %5407 = vmatprep.subr.bf16.mxu0 %v4919
  %5408 = vmatpush1.bf16.msra.mxu0 %v4918
  %5409 = vmatprep.subr.bf16.mxu0 %v4922
  %5410 = vmatpush1.bf16.msra.mxu0 %v4921
  %5411 = vmatprep.subr.bf16.mxu0 %v4925
  %5412 = vmatpush1.bf16.msra.mxu0 %v4924
  %5413 = vmatprep.subr.bf16.mxu0 %v4928
  %5414 = vmatpush1.bf16.msra.mxu0 %v4927
  %5415 = vmatprep.subr.bf16.mxu0 %v4931
  %5416 = vmatpush1.bf16.msra.mxu0 %v4930
  %5417 = vmatprep.subr.bf16.mxu0 %v4934
  %5418 = vmatpush1.bf16.msra.mxu0 %v4933
  %5419 = vmatprep.subr.bf16.mxu0 %v4937
  %5420 = vmatpush1.bf16.msra.mxu0 %v4936
  %5421 = vmatprep.subr.bf16.mxu0 %v4940
  %5422 = vmatpush1.bf16.msra.mxu0 %v4939
  %5423 = vmatprep.subr.bf16.mxu0 %v4943
  %5424 = vmatpush1.bf16.msra.mxu0 %v4942
  %5425 = vmatprep.subr.bf16.mxu0 %v4946
  %5426 = vmatpush1.bf16.msra.mxu0 %v4945
  %5427 = vmatprep.subr.bf16.mxu0 %v4949
  %5428 = vmatpush1.bf16.msra.mxu0 %v4948
  %5429 = vmatprep.subr.bf16.mxu0 %v4952
  %5430 = vmatpush1.bf16.msra.mxu0 %v4951
  %5431 = vmatprep.mubr.bf16.mxu0 %v3735
  %5432 = vmatmul.mubr.bf16.gmra.mrb[0].mxu0 %v3734
  %v5433 = vpop.f32.mrb[0].mxu0
  %v5434 = vadd.f32 0.0, %v5433
  %v5435 = vpop.f32.mrb[0].mxu0
  %v5436 = vadd.f32 0.0, %v5435
  %v5437 = vpop.f32.mrb[0].mxu0
  %v5438 = vadd.f32 0.0, %v5437
  %v5439 = vpop.f32.mrb[0].mxu0
  %v5440 = vadd.f32 0.0, %v5439
  %5441 = vmatprep.mubr.bf16.mxu0 %v3745
  %5442 = vmatmul.mubr.bf16.gmra.mrb[0].mxu0 %v3744
  %v5443 = vpop.f32.mrb[0].mxu0
  %v5444 = vadd.f32 0.0, %v5443
  %v5445 = vpop.f32.mrb[0].mxu0
  %v5446 = vadd.f32 0.0, %v5445
  %v5447 = vpop.f32.mrb[0].mxu0
  %v5448 = vadd.f32 0.0, %v5447
  %v5449 = vpop.f32.mrb[0].mxu0
  %v5450 = vadd.f32 0.0, %v5449
  %5451 = vmatprep.mubr.bf16.mxu0 %v3755
  %5452 = vmatmul.mubr.bf16.gmra.mrb[0].mxu0 %v3754
  %v5453 = vpop.f32.mrb[0].mxu0
  %v5454 = vadd.f32 0.0, %v5453
  %v5455 = vpop.f32.mrb[0].mxu0
  %v5456 = vadd.f32 0.0, %v5455
  %v5457 = vpop.f32.mrb[0].mxu0
  %v5458 = vadd.f32 0.0, %v5457
  %v5459 = vpop.f32.mrb[0].mxu0
  %v5460 = vadd.f32 0.0, %v5459
  %5461 = vmatprep.mubr.bf16.mxu0 %v3765
  %5462 = vmatmul.mubr.bf16.gmra.mrb[0].mxu0 %v3764
  %v5463 = vpop.f32.mrb[0].mxu0
  %v5464 = vadd.f32 0.0, %v5463
  %v5465 = vpop.f32.mrb[0].mxu0
  %v5466 = vadd.f32 0.0, %v5465
  %v5467 = vpop.f32.mrb[0].mxu0
  %v5468 = vadd.f32 0.0, %v5467
  %v5469 = vpop.f32.mrb[0].mxu0
  %v5470 = vadd.f32 0.0, %v5469
  %5471 = vmatprep.mubr.bf16.mxu0 %v3775
  %5472 = vmatmul.mubr.bf16.gmra.mrb[0].mxu0 %v3774
  %v5473 = vpop.f32.mrb[0].mxu0
  %v5474 = vadd.f32 0.0, %v5473
  %v5475 = vpop.f32.mrb[0].mxu0
  %v5476 = vadd.f32 0.0, %v5475
  %v5477 = vpop.f32.mrb[0].mxu0
  %v5478 = vadd.f32 0.0, %v5477
  %v5479 = vpop.f32.mrb[0].mxu0
  %v5480 = vadd.f32 0.0, %v5479
  %5481 = vmatprep.mubr.bf16.mxu0 %v3785
  %5482 = vmatmul.mubr.bf16.gmra.mrb[0].mxu0 %v3784
  %v5483 = vpop.f32.mrb[0].mxu0
  %v5484 = vadd.f32 0.0, %v5483
  %v5485 = vpop.f32.mrb[0].mxu0
  %v5486 = vadd.f32 0.0, %v5485
  %v5487 = vpop.f32.mrb[0].mxu0
  %v5488 = vadd.f32 0.0, %v5487
  %v5489 = vpop.f32.mrb[0].mxu0
  %v5490 = vadd.f32 0.0, %v5489
  %5491 = vmatprep.mubr.bf16.mxu0 %v3795
  %5492 = vmatmul.mubr.bf16.gmra.mrb[0].mxu0 %v3794
  %v5493 = vpop.f32.mrb[0].mxu0
  %v5494 = vadd.f32 0.0, %v5493
  %v5495 = vpop.f32.mrb[0].mxu0
  %v5496 = vadd.f32 0.0, %v5495
  %v5497 = vpop.f32.mrb[0].mxu0
  %v5498 = vadd.f32 0.0, %v5497
  %v5499 = vpop.f32.mrb[0].mxu0
  %v5500 = vadd.f32 0.0, %v5499
  %5501 = vmatprep.mubr.bf16.mxu0 %v3805
  %5502 = vmatmul.mubr.bf16.gmra.mrb[0].mxu0 %v3804
  %v5503 = vpop.f32.mrb[0].mxu0
  %v5504 = vadd.f32 0.0, %v5503
  %v5505 = vpop.f32.mrb[0].mxu0
  %v5506 = vadd.f32 0.0, %v5505
  %v5507 = vpop.f32.mrb[0].mxu0
  %v5508 = vadd.f32 0.0, %v5507
  %v5509 = vpop.f32.mrb[0].mxu0
  %v5510 = vadd.f32 0.0, %v5509
  %5511 = vdwg.mxu0
  %5512 = vmatprep.subr.bf16.mxu0 %v4955
  %5513 = vmatpush1.bf16.msra.mxu0 %v4954
  %5514 = vmatprep.subr.bf16.mxu0 %v4958
  %5515 = vmatpush1.bf16.msra.mxu0 %v4957
  %5516 = vmatprep.subr.bf16.mxu0 %v4961
  %5517 = vmatpush1.bf16.msra.mxu0 %v4960
  %5518 = vmatprep.subr.bf16.mxu0 %v4964
  %5519 = vmatpush1.bf16.msra.mxu0 %v4963
  %5520 = vmatprep.subr.bf16.mxu0 %v4967
  %5521 = vmatpush1.bf16.msra.mxu0 %v4966
  %5522 = vmatprep.subr.bf16.mxu0 %v4970
  %5523 = vmatpush1.bf16.msra.mxu0 %v4969
  %5524 = vmatprep.subr.bf16.mxu0 %v4973
  %5525 = vmatpush1.bf16.msra.mxu0 %v4972
  %5526 = vmatprep.subr.bf16.mxu0 %v4976
  %5527 = vmatpush1.bf16.msra.mxu0 %v4975
  %5528 = vmatprep.subr.bf16.mxu0 %v4979
  %5529 = vmatpush1.bf16.msra.mxu0 %v4978
  %5530 = vmatprep.subr.bf16.mxu0 %v4982
  %5531 = vmatpush1.bf16.msra.mxu0 %v4981
  %5532 = vmatprep.subr.bf16.mxu0 %v4985
  %5533 = vmatpush1.bf16.msra.mxu0 %v4984
  %5534 = vmatprep.subr.bf16.mxu0 %v4988
  %5535 = vmatpush1.bf16.msra.mxu0 %v4987
  %5536 = vmatprep.subr.bf16.mxu0 %v4991
  %5537 = vmatpush1.bf16.msra.mxu0 %v4990
  %5538 = vmatprep.subr.bf16.mxu0 %v4994
  %5539 = vmatpush1.bf16.msra.mxu0 %v4993
  %5540 = vmatprep.subr.bf16.mxu0 %v4997
  %5541 = vmatpush1.bf16.msra.mxu0 %v4996
  %5542 = vmatprep.subr.bf16.mxu0 %v5000
  %5543 = vmatpush1.bf16.msra.mxu0 %v4999
  %5544 = vmatprep.mubr.bf16.mxu0 %v3737
  %5545 = vmatmul.mubr.bf16.gmra.mrb[0].mxu0 %v3736
  %v5546 = vpop.f32.mrb[0].mxu0
  %v5547 = vadd.f32 %v5434, %v5546
  %v5548 = vpop.f32.mrb[0].mxu0
  %v5549 = vadd.f32 %v5436, %v5548
  %v5550 = vpop.f32.mrb[0].mxu0
  %v5551 = vadd.f32 %v5438, %v5550
  %v5552 = vpop.f32.mrb[0].mxu0
  %v5553 = vadd.f32 %v5440, %v5552
  %5554 = vmatprep.mubr.bf16.mxu0 %v3747
  %5555 = vmatmul.mubr.bf16.gmra.mrb[0].mxu0 %v3746
  %v5556 = vpop.f32.mrb[0].mxu0
  %v5557 = vadd.f32 %v5444, %v5556
  %v5558 = vpop.f32.mrb[0].mxu0
  %v5559 = vadd.f32 %v5446, %v5558
  %v5560 = vpop.f32.mrb[0].mxu0
  %v5561 = vadd.f32 %v5448, %v5560
  %v5562 = vpop.f32.mrb[0].mxu0
  %v5563 = vadd.f32 %v5450, %v5562
  %5564 = vmatprep.mubr.bf16.mxu0 %v3757
  %5565 = vmatmul.mubr.bf16.gmra.mrb[0].mxu0 %v3756
  %v5566 = vpop.f32.mrb[0].mxu0
  %v5567 = vadd.f32 %v5454, %v5566
  %v5568 = vpop.f32.mrb[0].mxu0
  %v5569 = vadd.f32 %v5456, %v5568
  %v5570 = vpop.f32.mrb[0].mxu0
  %v5571 = vadd.f32 %v5458, %v5570
  %v5572 = vpop.f32.mrb[0].mxu0
  %v5573 = vadd.f32 %v5460, %v5572
  %5574 = vmatprep.mubr.bf16.mxu0 %v3767
  %5575 = vmatmul.mubr.bf16.gmra.mrb[0].mxu0 %v3766
  %v5576 = vpop.f32.mrb[0].mxu0
  %v5577 = vadd.f32 %v5464, %v5576
  %v5578 = vpop.f32.mrb[0].mxu0
  %v5579 = vadd.f32 %v5466, %v5578
  %v5580 = vpop.f32.mrb[0].mxu0
  %v5581 = vadd.f32 %v5468, %v5580
  %v5582 = vpop.f32.mrb[0].mxu0
  %v5583 = vadd.f32 %v5470, %v5582
  %5584 = vmatprep.mubr.bf16.mxu0 %v3777
  %5585 = vmatmul.mubr.bf16.gmra.mrb[0].mxu0 %v3776
  %v5586 = vpop.f32.mrb[0].mxu0
  %v5587 = vadd.f32 %v5474, %v5586
  %v5588 = vpop.f32.mrb[0].mxu0
  %v5589 = vadd.f32 %v5476, %v5588
  %v5590 = vpop.f32.mrb[0].mxu0
  %v5591 = vadd.f32 %v5478, %v5590
  %v5592 = vpop.f32.mrb[0].mxu0
  %v5593 = vadd.f32 %v5480, %v5592
  %5594 = vmatprep.mubr.bf16.mxu0 %v3787
  %5595 = vmatmul.mubr.bf16.gmra.mrb[0].mxu0 %v3786
  %v5596 = vpop.f32.mrb[0].mxu0
  %v5597 = vadd.f32 %v5484, %v5596
  %v5598 = vpop.f32.mrb[0].mxu0
  %v5599 = vadd.f32 %v5486, %v5598
  %v5600 = vpop.f32.mrb[0].mxu0
  %v5601 = vadd.f32 %v5488, %v5600
  %v5602 = vpop.f32.mrb[0].mxu0
  %v5603 = vadd.f32 %v5490, %v5602
  %5604 = vmatprep.mubr.bf16.mxu0 %v3797
  %5605 = vmatmul.mubr.bf16.gmra.mrb[0].mxu0 %v3796
  %v5606 = vpop.f32.mrb[0].mxu0
  %v5607 = vadd.f32 %v5494, %v5606
  %v5608 = vpop.f32.mrb[0].mxu0
  %v5609 = vadd.f32 %v5496, %v5608
  %v5610 = vpop.f32.mrb[0].mxu0
  %v5611 = vadd.f32 %v5498, %v5610
  %v5612 = vpop.f32.mrb[0].mxu0
  %v5613 = vadd.f32 %v5500, %v5612
  %5614 = vmatprep.mubr.bf16.mxu0 %v3807
  %5615 = vmatmul.mubr.bf16.gmra.mrb[0].mxu0 %v3806
  %v5616 = vpop.f32.mrb[0].mxu0
  %v5617 = vadd.f32 %v5504, %v5616
  %v5618 = vpop.f32.mrb[0].mxu0
  %v5619 = vadd.f32 %v5506, %v5618
  %v5620 = vpop.f32.mrb[0].mxu0
  %v5621 = vadd.f32 %v5508, %v5620
  %v5622 = vpop.f32.mrb[0].mxu0
  %v5623 = vadd.f32 %v5510, %v5622
  %5624 = vdwg.mxu0
  %5625 = vmatprep.subr.bf16.mxu0 %v5003
  %5626 = vmatpush1.bf16.msra.mxu0 %v5002
  %5627 = vmatprep.subr.bf16.mxu0 %v5006
  %5628 = vmatpush1.bf16.msra.mxu0 %v5005
  %5629 = vmatprep.subr.bf16.mxu0 %v5009
  %5630 = vmatpush1.bf16.msra.mxu0 %v5008
  %5631 = vmatprep.subr.bf16.mxu0 %v5012
  %5632 = vmatpush1.bf16.msra.mxu0 %v5011
  %5633 = vmatprep.subr.bf16.mxu0 %v5015
  %5634 = vmatpush1.bf16.msra.mxu0 %v5014
  %5635 = vmatprep.subr.bf16.mxu0 %v5018
  %5636 = vmatpush1.bf16.msra.mxu0 %v5017
  %5637 = vmatprep.subr.bf16.mxu0 %v5021
  %5638 = vmatpush1.bf16.msra.mxu0 %v5020
  %5639 = vmatprep.subr.bf16.mxu0 %v5024
  %5640 = vmatpush1.bf16.msra.mxu0 %v5023
  %5641 = vmatprep.subr.bf16.mxu0 %v5027
  %5642 = vmatpush1.bf16.msra.mxu0 %v5026
  %5643 = vmatprep.subr.bf16.mxu0 %v5030
  %5644 = vmatpush1.bf16.msra.mxu0 %v5029
  %5645 = vmatprep.subr.bf16.mxu0 %v5033
  %5646 = vmatpush1.bf16.msra.mxu0 %v5032
  %5647 = vmatprep.subr.bf16.mxu0 %v5036
  %5648 = vmatpush1.bf16.msra.mxu0 %v5035
  %5649 = vmatprep.subr.bf16.mxu0 %v5039
  %5650 = vmatpush1.bf16.msra.mxu0 %v5038
  %5651 = vmatprep.subr.bf16.mxu0 %v5042
  %5652 = vmatpush1.bf16.msra.mxu0 %v5041
  %5653 = vmatprep.subr.bf16.mxu0 %v5045
  %5654 = vmatpush1.bf16.msra.mxu0 %v5044
  %5655 = vmatprep.subr.bf16.mxu0 %v5048
  %5656 = vmatpush1.bf16.msra.mxu0 %v5047
  %5657 = vmatprep.mubr.bf16.mxu0 %v3739
  %5658 = vmatmul.mubr.bf16.gmra.mrb[0].mxu0 %v3738
  %v5659 = vpop.f32.mrb[0].mxu0
  %v5660 = vadd.f32 %v5547, %v5659
  %v5661 = vpop.f32.mrb[0].mxu0
  %v5662 = vadd.f32 %v5549, %v5661
  %v5663 = vpop.f32.mrb[0].mxu0
  %v5664 = vadd.f32 %v5551, %v5663
  %v5665 = vpop.f32.mrb[0].mxu0
  %v5666 = vadd.f32 %v5553, %v5665
  %5667 = vmatprep.mubr.bf16.mxu0 %v3749
  %5668 = vmatmul.mubr.bf16.gmra.mrb[0].mxu0 %v3748
  %v5669 = vpop.f32.mrb[0].mxu0
  %v5670 = vadd.f32 %v5557, %v5669
  %v5671 = vpop.f32.mrb[0].mxu0
  %v5672 = vadd.f32 %v5559, %v5671
  %v5673 = vpop.f32.mrb[0].mxu0
  %v5674 = vadd.f32 %v5561, %v5673
  %v5675 = vpop.f32.mrb[0].mxu0
  %v5676 = vadd.f32 %v5563, %v5675
  %5677 = vmatprep.mubr.bf16.mxu0 %v3759
  %5678 = vmatmul.mubr.bf16.gmra.mrb[0].mxu0 %v3758
  %v5679 = vpop.f32.mrb[0].mxu0
  %v5680 = vadd.f32 %v5567, %v5679
  %v5681 = vpop.f32.mrb[0].mxu0
  %v5682 = vadd.f32 %v5569, %v5681
  %v5683 = vpop.f32.mrb[0].mxu0
  %v5684 = vadd.f32 %v5571, %v5683
  %v5685 = vpop.f32.mrb[0].mxu0
  %v5686 = vadd.f32 %v5573, %v5685
  %5687 = vmatprep.mubr.bf16.mxu0 %v3769
  %5688 = vmatmul.mubr.bf16.gmra.mrb[0].mxu0 %v3768
  %v5689 = vpop.f32.mrb[0].mxu0
  %v5690 = vadd.f32 %v5577, %v5689
  %v5691 = vpop.f32.mrb[0].mxu0
  %v5692 = vadd.f32 %v5579, %v5691
  %v5693 = vpop.f32.mrb[0].mxu0
  %v5694 = vadd.f32 %v5581, %v5693
  %v5695 = vpop.f32.mrb[0].mxu0
  %v5696 = vadd.f32 %v5583, %v5695
  %5697 = vmatprep.mubr.bf16.mxu0 %v3779
  %5698 = vmatmul.mubr.bf16.gmra.mrb[0].mxu0 %v3778
  %v5699 = vpop.f32.mrb[0].mxu0
  %v5700 = vadd.f32 %v5587, %v5699
  %v5701 = vpop.f32.mrb[0].mxu0
  %v5702 = vadd.f32 %v5589, %v5701
  %v5703 = vpop.f32.mrb[0].mxu0
  %v5704 = vadd.f32 %v5591, %v5703
  %v5705 = vpop.f32.mrb[0].mxu0
  %v5706 = vadd.f32 %v5593, %v5705
  %5707 = vmatprep.mubr.bf16.mxu0 %v3789
  %5708 = vmatmul.mubr.bf16.gmra.mrb[0].mxu0 %v3788
  %v5709 = vpop.f32.mrb[0].mxu0
  %v5710 = vadd.f32 %v5597, %v5709
  %v5711 = vpop.f32.mrb[0].mxu0
  %v5712 = vadd.f32 %v5599, %v5711
  %v5713 = vpop.f32.mrb[0].mxu0
  %v5714 = vadd.f32 %v5601, %v5713
  %v5715 = vpop.f32.mrb[0].mxu0
  %v5716 = vadd.f32 %v5603, %v5715
  %5717 = vmatprep.mubr.bf16.mxu0 %v3799
  %5718 = vmatmul.mubr.bf16.gmra.mrb[0].mxu0 %v3798
  %v5719 = vpop.f32.mrb[0].mxu0
  %v5720 = vadd.f32 %v5607, %v5719
  %v5721 = vpop.f32.mrb[0].mxu0
  %v5722 = vadd.f32 %v5609, %v5721
  %v5723 = vpop.f32.mrb[0].mxu0
  %v5724 = vadd.f32 %v5611, %v5723
  %v5725 = vpop.f32.mrb[0].mxu0
  %v5726 = vadd.f32 %v5613, %v5725
  %5727 = vmatprep.mubr.bf16.mxu0 %v3809
  %5728 = vmatmul.mubr.bf16.gmra.mrb[0].mxu0 %v3808
  %v5729 = vpop.f32.mrb[0].mxu0
  %v5730 = vadd.f32 %v5617, %v5729
  %v5731 = vpop.f32.mrb[0].mxu0
  %v5732 = vadd.f32 %v5619, %v5731
  %v5733 = vpop.f32.mrb[0].mxu0
  %v5734 = vadd.f32 %v5621, %v5733
  %v5735 = vpop.f32.mrb[0].mxu0
  %v5736 = vadd.f32 %v5623, %v5735
  %5737 = vdwg.mxu0
  %5738 = vmatprep.subr.bf16.mxu0 %v5051
  %5739 = vmatpush1.bf16.msra.mxu0 %v5050
  %5740 = vmatprep.subr.bf16.mxu0 %v5054
  %5741 = vmatpush1.bf16.msra.mxu0 %v5053
  %5742 = vmatprep.subr.bf16.mxu0 %v5057
  %5743 = vmatpush1.bf16.msra.mxu0 %v5056
  %5744 = vmatprep.subr.bf16.mxu0 %v5060
  %5745 = vmatpush1.bf16.msra.mxu0 %v5059
  %5746 = vmatprep.subr.bf16.mxu0 %v5063
  %5747 = vmatpush1.bf16.msra.mxu0 %v5062
  %5748 = vmatprep.subr.bf16.mxu0 %v5066
  %5749 = vmatpush1.bf16.msra.mxu0 %v5065
  %5750 = vmatprep.subr.bf16.mxu0 %v5069
  %5751 = vmatpush1.bf16.msra.mxu0 %v5068
  %5752 = vmatprep.subr.bf16.mxu0 %v5072
  %5753 = vmatpush1.bf16.msra.mxu0 %v5071
  %5754 = vmatprep.subr.bf16.mxu0 %v5075
  %5755 = vmatpush1.bf16.msra.mxu0 %v5074
  %5756 = vmatprep.subr.bf16.mxu0 %v5078
  %5757 = vmatpush1.bf16.msra.mxu0 %v5077
  %5758 = vmatprep.subr.bf16.mxu0 %v5081
  %5759 = vmatpush1.bf16.msra.mxu0 %v5080
  %5760 = vmatprep.subr.bf16.mxu0 %v5084
  %5761 = vmatpush1.bf16.msra.mxu0 %v5083
  %5762 = vmatprep.subr.bf16.mxu0 %v5087
  %5763 = vmatpush1.bf16.msra.mxu0 %v5086
  %5764 = vmatprep.subr.bf16.mxu0 %v5090
  %5765 = vmatpush1.bf16.msra.mxu0 %v5089
  %5766 = vmatprep.subr.bf16.mxu0 %v5093
  %5767 = vmatpush1.bf16.msra.mxu0 %v5092
  %5768 = vmatprep.subr.bf16.mxu0 %v5096
  %5769 = vmatpush1.bf16.msra.mxu0 %v5095
  %5770 = vmatprep.mubr.bf16.mxu0 %v3741
  %5771 = vmatmul.mubr.bf16.gmra.mrb[0].mxu0 %v3740
  %v5772 = vpop.f32.mrb[0].mxu0
  %v5773 = vadd.f32 %v5660, %v5772
  %v5774 = vpop.f32.mrb[0].mxu0
  %v5775 = vadd.f32 %v5662, %v5774
  %v5776 = vpop.f32.mrb[0].mxu0
  %v5777 = vadd.f32 %v5664, %v5776
  %v5778 = vpop.f32.mrb[0].mxu0
  %v5779 = vadd.f32 %v5666, %v5778
  %5780 = vmatprep.mubr.bf16.mxu0 %v3751
  %5781 = vmatmul.mubr.bf16.gmra.mrb[0].mxu0 %v3750
  %v5782 = vpop.f32.mrb[0].mxu0
  %v5783 = vadd.f32 %v5670, %v5782
  %v5784 = vpop.f32.mrb[0].mxu0
  %v5785 = vadd.f32 %v5672, %v5784
  %v5786 = vpop.f32.mrb[0].mxu0
  %v5787 = vadd.f32 %v5674, %v5786
  %v5788 = vpop.f32.mrb[0].mxu0
  %v5789 = vadd.f32 %v5676, %v5788
  %5790 = vmatprep.mubr.bf16.mxu0 %v3761
  %5791 = vmatmul.mubr.bf16.gmra.mrb[0].mxu0 %v3760
  %v5792 = vpop.f32.mrb[0].mxu0
  %v5793 = vadd.f32 %v5680, %v5792
  %v5794 = vpop.f32.mrb[0].mxu0
  %v5795 = vadd.f32 %v5682, %v5794
  %v5796 = vpop.f32.mrb[0].mxu0
  %v5797 = vadd.f32 %v5684, %v5796
  %v5798 = vpop.f32.mrb[0].mxu0
  %v5799 = vadd.f32 %v5686, %v5798
  %5800 = vmatprep.mubr.bf16.mxu0 %v3771
  %5801 = vmatmul.mubr.bf16.gmra.mrb[0].mxu0 %v3770
  %v5802 = vpop.f32.mrb[0].mxu0
  %v5803 = vadd.f32 %v5690, %v5802
  %v5804 = vpop.f32.mrb[0].mxu0
  %v5805 = vadd.f32 %v5692, %v5804
  %v5806 = vpop.f32.mrb[0].mxu0
  %v5807 = vadd.f32 %v5694, %v5806
  %v5808 = vpop.f32.mrb[0].mxu0
  %v5809 = vadd.f32 %v5696, %v5808
  %5810 = vmatprep.mubr.bf16.mxu0 %v3781
  %5811 = vmatmul.mubr.bf16.gmra.mrb[0].mxu0 %v3780
  %v5812 = vpop.f32.mrb[0].mxu0
  %v5813 = vadd.f32 %v5700, %v5812
  %v5814 = vpop.f32.mrb[0].mxu0
  %v5815 = vadd.f32 %v5702, %v5814
  %v5816 = vpop.f32.mrb[0].mxu0
  %v5817 = vadd.f32 %v5704, %v5816
  %v5818 = vpop.f32.mrb[0].mxu0
  %v5819 = vadd.f32 %v5706, %v5818
  %5820 = vmatprep.mubr.bf16.mxu0 %v3791
  %5821 = vmatmul.mubr.bf16.gmra.mrb[0].mxu0 %v3790
  %v5822 = vpop.f32.mrb[0].mxu0
  %v5823 = vadd.f32 %v5710, %v5822
  %v5824 = vpop.f32.mrb[0].mxu0
  %v5825 = vadd.f32 %v5712, %v5824
  %v5826 = vpop.f32.mrb[0].mxu0
  %v5827 = vadd.f32 %v5714, %v5826
  %v5828 = vpop.f32.mrb[0].mxu0
  %v5829 = vadd.f32 %v5716, %v5828
  %5830 = vmatprep.mubr.bf16.mxu0 %v3801
  %5831 = vmatmul.mubr.bf16.gmra.mrb[0].mxu0 %v3800
  %v5832 = vpop.f32.mrb[0].mxu0
  %v5833 = vadd.f32 %v5720, %v5832
  %v5834 = vpop.f32.mrb[0].mxu0
  %v5835 = vadd.f32 %v5722, %v5834
  %v5836 = vpop.f32.mrb[0].mxu0
  %v5837 = vadd.f32 %v5724, %v5836
  %v5838 = vpop.f32.mrb[0].mxu0
  %v5839 = vadd.f32 %v5726, %v5838
  %5840 = vmatprep.mubr.bf16.mxu0 %v3811
  %5841 = vmatmul.mubr.bf16.gmra.mrb[0].mxu0 %v3810
  %v5842 = vpop.f32.mrb[0].mxu0
  %v5843 = vadd.f32 %v5730, %v5842
  %v5844 = vpop.f32.mrb[0].mxu0
  %v5845 = vadd.f32 %v5732, %v5844
  %v5846 = vpop.f32.mrb[0].mxu0
  %v5847 = vadd.f32 %v5734, %v5846
  %v5848 = vpop.f32.mrb[0].mxu0
  %v5849 = vadd.f32 %v5736, %v5848
  %5850 = vdwg.mxu0
  %5851 = vmatprep.subr.bf16.mxu0 %v5099
  %5852 = vmatpush1.bf16.msra.mxu0 %v5098
  %5853 = vmatprep.subr.bf16.mxu0 %v5102
  %5854 = vmatpush1.bf16.msra.mxu0 %v5101
  %5855 = vmatprep.subr.bf16.mxu0 %v5105
  %5856 = vmatpush1.bf16.msra.mxu0 %v5104
  %5857 = vmatprep.subr.bf16.mxu0 %v5108
  %5858 = vmatpush1.bf16.msra.mxu0 %v5107
  %5859 = vmatprep.subr.bf16.mxu0 %v5111
  %5860 = vmatpush1.bf16.msra.mxu0 %v5110
  %5861 = vmatprep.subr.bf16.mxu0 %v5114
  %5862 = vmatpush1.bf16.msra.mxu0 %v5113
  %5863 = vmatprep.subr.bf16.mxu0 %v5117
  %5864 = vmatpush1.bf16.msra.mxu0 %v5116
  %5865 = vmatprep.subr.bf16.mxu0 %v5120
  %5866 = vmatpush1.bf16.msra.mxu0 %v5119
  %5867 = vmatprep.subr.bf16.mxu0 %v5123
  %5868 = vmatpush1.bf16.msra.mxu0 %v5122
  %5869 = vmatprep.subr.bf16.mxu0 %v5126
  %5870 = vmatpush1.bf16.msra.mxu0 %v5125
  %5871 = vmatprep.subr.bf16.mxu0 %v5129
  %5872 = vmatpush1.bf16.msra.mxu0 %v5128
  %5873 = vmatprep.subr.bf16.mxu0 %v5132
  %5874 = vmatpush1.bf16.msra.mxu0 %v5131
  %5875 = vmatprep.subr.bf16.mxu0 %v5135
  %5876 = vmatpush1.bf16.msra.mxu0 %v5134
  %5877 = vmatprep.subr.bf16.mxu0 %v5138
  %5878 = vmatpush1.bf16.msra.mxu0 %v5137
  %5879 = vmatprep.subr.bf16.mxu0 0
  %5880 = vmatpush1.bf16.msra.mxu0 0
  %5881 = vmatprep.subr.bf16.mxu0 0
  %5882 = vmatpush1.bf16.msra.mxu0 0
  %5883 = vmatprep.mubr.bf16.mxu0 %v5376
  %5884 = vmatmul.mubr.bf16.gmra.mrb[0].mxu0 %v3742
  %v5885 = vpop.f32.mrb[0].mxu0
  %v5886 = vadd.f32 %v5773, %v5885
  %v5887 = vpop.f32.mrb[0].mxu0
  %v5888 = vadd.f32 %v5775, %v5887
  %v5889 = vpop.f32.mrb[0].mxu0
  %v5890 = vadd.f32 %v5777, %v5889
  %v5891 = vpop.f32.mrb[0].mxu0
  %v5892 = vadd.f32 %v5779, %v5891
  %5893 = vmatprep.mubr.bf16.mxu0 %v5379
  %5894 = vmatmul.mubr.bf16.gmra.mrb[0].mxu0 %v3752
  %v5895 = vpop.f32.mrb[0].mxu0
  %v5896 = vadd.f32 %v5783, %v5895
  %v5897 = vpop.f32.mrb[0].mxu0
  %v5898 = vadd.f32 %v5785, %v5897
  %v5899 = vpop.f32.mrb[0].mxu0
  %v5900 = vadd.f32 %v5787, %v5899
  %v5901 = vpop.f32.mrb[0].mxu0
  %v5902 = vadd.f32 %v5789, %v5901
  %5903 = vmatprep.mubr.bf16.mxu0 %v5382
  %5904 = vmatmul.mubr.bf16.gmra.mrb[0].mxu0 %v3762
  %v5905 = vpop.f32.mrb[0].mxu0
  %v5906 = vadd.f32 %v5793, %v5905
  %v5907 = vpop.f32.mrb[0].mxu0
  %v5908 = vadd.f32 %v5795, %v5907
  %v5909 = vpop.f32.mrb[0].mxu0
  %v5910 = vadd.f32 %v5797, %v5909
  %v5911 = vpop.f32.mrb[0].mxu0
  %v5912 = vadd.f32 %v5799, %v5911
  %5913 = vmatprep.mubr.bf16.mxu0 %v5385
  %5914 = vmatmul.mubr.bf16.gmra.mrb[0].mxu0 %v3772
  %v5915 = vpop.f32.mrb[0].mxu0
  %v5916 = vadd.f32 %v5803, %v5915
  %v5917 = vpop.f32.mrb[0].mxu0
  %v5918 = vadd.f32 %v5805, %v5917
  %v5919 = vpop.f32.mrb[0].mxu0
  %v5920 = vadd.f32 %v5807, %v5919
  %v5921 = vpop.f32.mrb[0].mxu0
  %v5922 = vadd.f32 %v5809, %v5921
  %5923 = vmatprep.mubr.bf16.mxu0 %v5388
  %5924 = vmatmul.mubr.bf16.gmra.mrb[0].mxu0 %v3782
  %v5925 = vpop.f32.mrb[0].mxu0
  %v5926 = vadd.f32 %v5813, %v5925
  %v5927 = vpop.f32.mrb[0].mxu0
  %v5928 = vadd.f32 %v5815, %v5927
  %v5929 = vpop.f32.mrb[0].mxu0
  %v5930 = vadd.f32 %v5817, %v5929
  %v5931 = vpop.f32.mrb[0].mxu0
  %v5932 = vadd.f32 %v5819, %v5931
  %5933 = vmatprep.mubr.bf16.mxu0 %v5391
  %5934 = vmatmul.mubr.bf16.gmra.mrb[0].mxu0 %v3792
  %v5935 = vpop.f32.mrb[0].mxu0
  %v5936 = vadd.f32 %v5823, %v5935
  %v5937 = vpop.f32.mrb[0].mxu0
  %v5938 = vadd.f32 %v5825, %v5937
  %v5939 = vpop.f32.mrb[0].mxu0
  %v5940 = vadd.f32 %v5827, %v5939
  %v5941 = vpop.f32.mrb[0].mxu0
  %v5942 = vadd.f32 %v5829, %v5941
  %5943 = vmatprep.mubr.bf16.mxu0 %v5394
  %5944 = vmatmul.mubr.bf16.gmra.mrb[0].mxu0 %v3802
  %v5945 = vpop.f32.mrb[0].mxu0
  %v5946 = vadd.f32 %v5833, %v5945
  %v5947 = vpop.f32.mrb[0].mxu0
  %v5948 = vadd.f32 %v5835, %v5947
  %v5949 = vpop.f32.mrb[0].mxu0
  %v5950 = vadd.f32 %v5837, %v5949
  %v5951 = vpop.f32.mrb[0].mxu0
  %v5952 = vadd.f32 %v5839, %v5951
  %5953 = vmatprep.mubr.bf16.mxu0 %v5397
  %5954 = vmatmul.mubr.bf16.gmra.mrb[0].mxu0 %v3812
  %v5955 = vpop.f32.mrb[0].mxu0
  %v5956 = vadd.f32 %v5843, %v5955
  %v5957 = vpop.f32.mrb[0].mxu0
  %v5958 = vadd.f32 %v5845, %v5957
  %v5959 = vpop.f32.mrb[0].mxu0
  %v5960 = vadd.f32 %v5847, %v5959
  %v5961 = vpop.f32.mrb[0].mxu0
  %v5962 = vadd.f32 %v5849, %v5961
  %5963 = vdwg.mxu0
  %5964 = vmatprep.subr.bf16.mxu0 0
  %5965 = vmatpush1.bf16.msra.mxu0 %v4908
  %5966 = vmatprep.subr.bf16.mxu0 0
  %5967 = vmatpush1.bf16.msra.mxu0 %v4911
  %5968 = vmatprep.subr.bf16.mxu0 0
  %5969 = vmatpush1.bf16.msra.mxu0 %v4914
  %5970 = vmatprep.subr.bf16.mxu0 0
  %5971 = vmatpush1.bf16.msra.mxu0 %v4917
  %5972 = vmatprep.subr.bf16.mxu0 0
  %5973 = vmatpush1.bf16.msra.mxu0 %v4920
  %5974 = vmatprep.subr.bf16.mxu0 0
  %5975 = vmatpush1.bf16.msra.mxu0 %v4923
  %5976 = vmatprep.subr.bf16.mxu0 0
  %5977 = vmatpush1.bf16.msra.mxu0 %v4926
  %5978 = vmatprep.subr.bf16.mxu0 0
  %5979 = vmatpush1.bf16.msra.mxu0 %v4929
  %5980 = vmatprep.subr.bf16.mxu0 0
  %5981 = vmatpush1.bf16.msra.mxu0 %v4932
  %5982 = vmatprep.subr.bf16.mxu0 0
  %5983 = vmatpush1.bf16.msra.mxu0 %v4935
  %5984 = vmatprep.subr.bf16.mxu0 0
  %5985 = vmatpush1.bf16.msra.mxu0 %v4938
  %5986 = vmatprep.subr.bf16.mxu0 0
  %5987 = vmatpush1.bf16.msra.mxu0 %v4941
  %5988 = vmatprep.subr.bf16.mxu0 0
  %5989 = vmatpush1.bf16.msra.mxu0 %v4944
  %5990 = vmatprep.subr.bf16.mxu0 0
  %5991 = vmatpush1.bf16.msra.mxu0 %v4947
  %5992 = vmatprep.subr.bf16.mxu0 0
  %5993 = vmatpush1.bf16.msra.mxu0 %v4950
  %5994 = vmatprep.subr.bf16.mxu0 0
  %5995 = vmatpush1.bf16.msra.mxu0 %v4953
  %5996 = vmatprep.mubr.bf16.mxu0 %v3735
  %5997 = vmatmul.mubr.bf16.gmra.mrb[0].mxu0 %v3734
  %v5998 = vpop.f32.mrb[0].mxu0
  %v5999 = vadd.f32 0.0, %v5998
  %v6000 = vpop.f32.mrb[0].mxu0
  %v6001 = vpop.f32.mrb[0].mxu0
  %v6002 = vadd.f32 0.0, %v6001
  %v6003 = vpop.f32.mrb[0].mxu0
  %6004 = vmatprep.mubr.bf16.mxu0 %v3745
  %6005 = vmatmul.mubr.bf16.gmra.mrb[0].mxu0 %v3744
  %v6006 = vpop.f32.mrb[0].mxu0
  %v6007 = vadd.f32 0.0, %v6006
  %v6008 = vpop.f32.mrb[0].mxu0
  %v6009 = vpop.f32.mrb[0].mxu0
  %v6010 = vadd.f32 0.0, %v6009
  %v6011 = vpop.f32.mrb[0].mxu0
  %6012 = vmatprep.mubr.bf16.mxu0 %v3755
  %6013 = vmatmul.mubr.bf16.gmra.mrb[0].mxu0 %v3754
  %v6014 = vpop.f32.mrb[0].mxu0
  %v6015 = vadd.f32 0.0, %v6014
  %v6016 = vpop.f32.mrb[0].mxu0
  %v6017 = vpop.f32.mrb[0].mxu0
  %v6018 = vadd.f32 0.0, %v6017
  %v6019 = vpop.f32.mrb[0].mxu0
  %6020 = vmatprep.mubr.bf16.mxu0 %v3765
  %6021 = vmatmul.mubr.bf16.gmra.mrb[0].mxu0 %v3764
  %v6022 = vpop.f32.mrb[0].mxu0
  %v6023 = vadd.f32 0.0, %v6022
  %v6024 = vpop.f32.mrb[0].mxu0
  %v6025 = vpop.f32.mrb[0].mxu0
  %v6026 = vadd.f32 0.0, %v6025
  %v6027 = vpop.f32.mrb[0].mxu0
  %6028 = vmatprep.mubr.bf16.mxu0 %v3775
  %6029 = vmatmul.mubr.bf16.gmra.mrb[0].mxu0 %v3774
  %v6030 = vpop.f32.mrb[0].mxu0
  %v6031 = vadd.f32 0.0, %v6030
  %v6032 = vpop.f32.mrb[0].mxu0
  %v6033 = vpop.f32.mrb[0].mxu0
  %v6034 = vadd.f32 0.0, %v6033
  %v6035 = vpop.f32.mrb[0].mxu0
  %6036 = vmatprep.mubr.bf16.mxu0 %v3785
  %6037 = vmatmul.mubr.bf16.gmra.mrb[0].mxu0 %v3784
  %v6038 = vpop.f32.mrb[0].mxu0
  %v6039 = vadd.f32 0.0, %v6038
  %v6040 = vpop.f32.mrb[0].mxu0
  %v6041 = vpop.f32.mrb[0].mxu0
  %v6042 = vadd.f32 0.0, %v6041
  %v6043 = vpop.f32.mrb[0].mxu0
  %6044 = vmatprep.mubr.bf16.mxu0 %v3795
  %6045 = vmatmul.mubr.bf16.gmra.mrb[0].mxu0 %v3794
  %v6046 = vpop.f32.mrb[0].mxu0
  %v6047 = vadd.f32 0.0, %v6046
  %v6048 = vpop.f32.mrb[0].mxu0
  %v6049 = vpop.f32.mrb[0].mxu0
  %v6050 = vadd.f32 0.0, %v6049
  %v6051 = vpop.f32.mrb[0].mxu0
  %6052 = vmatprep.mubr.bf16.mxu0 %v3805
  %6053 = vmatmul.mubr.bf16.gmra.mrb[0].mxu0 %v3804
  %v6054 = vpop.f32.mrb[0].mxu0
  %v6055 = vadd.f32 0.0, %v6054
  %v6056 = vpop.f32.mrb[0].mxu0
  %v6057 = vpop.f32.mrb[0].mxu0
  %v6058 = vadd.f32 0.0, %v6057
  %v6059 = vpop.f32.mrb[0].mxu0
  %6060 = vdwg.mxu0
  %6061 = vmatprep.subr.bf16.mxu0 0
  %6062 = vmatpush1.bf16.msra.mxu0 %v4956
  %6063 = vmatprep.subr.bf16.mxu0 0
  %6064 = vmatpush1.bf16.msra.mxu0 %v4959
  %6065 = vmatprep.subr.bf16.mxu0 0
  %6066 = vmatpush1.bf16.msra.mxu0 %v4962
  %6067 = vmatprep.subr.bf16.mxu0 0
  %6068 = vmatpush1.bf16.msra.mxu0 %v4965
  %6069 = vmatprep.subr.bf16.mxu0 0
  %6070 = vmatpush1.bf16.msra.mxu0 %v4968
  %6071 = vmatprep.subr.bf16.mxu0 0
  %6072 = vmatpush1.bf16.msra.mxu0 %v4971
  %6073 = vmatprep.subr.bf16.mxu0 0
  %6074 = vmatpush1.bf16.msra.mxu0 %v4974
  %6075 = vmatprep.subr.bf16.mxu0 0
  %6076 = vmatpush1.bf16.msra.mxu0 %v4977
  %6077 = vmatprep.subr.bf16.mxu0 0
  %6078 = vmatpush1.bf16.msra.mxu0 %v4980
  %6079 = vmatprep.subr.bf16.mxu0 0
  %6080 = vmatpush1.bf16.msra.mxu0 %v4983
  %6081 = vmatprep.subr.bf16.mxu0 0
  %6082 = vmatpush1.bf16.msra.mxu0 %v4986
  %6083 = vmatprep.subr.bf16.mxu0 0
  %6084 = vmatpush1.bf16.msra.mxu0 %v4989
  %6085 = vmatprep.subr.bf16.mxu0 0
  %6086 = vmatpush1.bf16.msra.mxu0 %v4992
  %6087 = vmatprep.subr.bf16.mxu0 0
  %6088 = vmatpush1.bf16.msra.mxu0 %v4995
  %6089 = vmatprep.subr.bf16.mxu0 0
  %6090 = vmatpush1.bf16.msra.mxu0 %v4998
  %6091 = vmatprep.subr.bf16.mxu0 0
  %6092 = vmatpush1.bf16.msra.mxu0 %v5001
  %6093 = vmatprep.mubr.bf16.mxu0 %v3737
  %6094 = vmatmul.mubr.bf16.gmra.mrb[0].mxu0 %v3736
  %v6095 = vpop.f32.mrb[0].mxu0
  %v6096 = vadd.f32 %v5999, %v6095
  %v6097 = vpop.f32.mrb[0].mxu0
  %v6098 = vpop.f32.mrb[0].mxu0
  %v6099 = vadd.f32 %v6002, %v6098
  %v6100 = vpop.f32.mrb[0].mxu0
  %6101 = vmatprep.mubr.bf16.mxu0 %v3747
  %6102 = vmatmul.mubr.bf16.gmra.mrb[0].mxu0 %v3746
  %v6103 = vpop.f32.mrb[0].mxu0
  %v6104 = vadd.f32 %v6007, %v6103
  %v6105 = vpop.f32.mrb[0].mxu0
  %v6106 = vpop.f32.mrb[0].mxu0
  %v6107 = vadd.f32 %v6010, %v6106
  %v6108 = vpop.f32.mrb[0].mxu0
  %6109 = vmatprep.mubr.bf16.mxu0 %v3757
  %6110 = vmatmul.mubr.bf16.gmra.mrb[0].mxu0 %v3756
  %v6111 = vpop.f32.mrb[0].mxu0
  %v6112 = vadd.f32 %v6015, %v6111
  %v6113 = vpop.f32.mrb[0].mxu0
  %v6114 = vpop.f32.mrb[0].mxu0
  %v6115 = vadd.f32 %v6018, %v6114
  %v6116 = vpop.f32.mrb[0].mxu0
  %6117 = vmatprep.mubr.bf16.mxu0 %v3767
  %6118 = vmatmul.mubr.bf16.gmra.mrb[0].mxu0 %v3766
  %v6119 = vpop.f32.mrb[0].mxu0
  %v6120 = vadd.f32 %v6023, %v6119
  %v6121 = vpop.f32.mrb[0].mxu0
  %v6122 = vpop.f32.mrb[0].mxu0
  %v6123 = vadd.f32 %v6026, %v6122
  %v6124 = vpop.f32.mrb[0].mxu0
  %6125 = vmatprep.mubr.bf16.mxu0 %v3777
  %6126 = vmatmul.mubr.bf16.gmra.mrb[0].mxu0 %v3776
  %v6127 = vpop.f32.mrb[0].mxu0
  %v6128 = vadd.f32 %v6031, %v6127
  %v6129 = vpop.f32.mrb[0].mxu0
  %v6130 = vpop.f32.mrb[0].mxu0
  %v6131 = vadd.f32 %v6034, %v6130
  %v6132 = vpop.f32.mrb[0].mxu0
  %6133 = vmatprep.mubr.bf16.mxu0 %v3787
  %6134 = vmatmul.mubr.bf16.gmra.mrb[0].mxu0 %v3786
  %v6135 = vpop.f32.mrb[0].mxu0
  %v6136 = vadd.f32 %v6039, %v6135
  %v6137 = vpop.f32.mrb[0].mxu0
  %v6138 = vpop.f32.mrb[0].mxu0
  %v6139 = vadd.f32 %v6042, %v6138
  %v6140 = vpop.f32.mrb[0].mxu0
  %6141 = vmatprep.mubr.bf16.mxu0 %v3797
  %6142 = vmatmul.mubr.bf16.gmra.mrb[0].mxu0 %v3796
  %v6143 = vpop.f32.mrb[0].mxu0
  %v6144 = vadd.f32 %v6047, %v6143
  %v6145 = vpop.f32.mrb[0].mxu0
  %v6146 = vpop.f32.mrb[0].mxu0
  %v6147 = vadd.f32 %v6050, %v6146
  %v6148 = vpop.f32.mrb[0].mxu0
  %6149 = vmatprep.mubr.bf16.mxu0 %v3807
  %6150 = vmatmul.mubr.bf16.gmra.mrb[0].mxu0 %v3806
  %v6151 = vpop.f32.mrb[0].mxu0
  %v6152 = vadd.f32 %v6055, %v6151
  %v6153 = vpop.f32.mrb[0].mxu0
  %v6154 = vpop.f32.mrb[0].mxu0
  %v6155 = vadd.f32 %v6058, %v6154
  %v6156 = vpop.f32.mrb[0].mxu0
  %6157 = vdwg.mxu0
  %6158 = vmatprep.subr.bf16.mxu0 0
  %6159 = vmatpush1.bf16.msra.mxu0 %v5004
  %6160 = vmatprep.subr.bf16.mxu0 0
  %6161 = vmatpush1.bf16.msra.mxu0 %v5007
  %6162 = vmatprep.subr.bf16.mxu0 0
  %6163 = vmatpush1.bf16.msra.mxu0 %v5010
  %6164 = vmatprep.subr.bf16.mxu0 0
  %6165 = vmatpush1.bf16.msra.mxu0 %v5013
  %6166 = vmatprep.subr.bf16.mxu0 0
  %6167 = vmatpush1.bf16.msra.mxu0 %v5016
  %6168 = vmatprep.subr.bf16.mxu0 0
  %6169 = vmatpush1.bf16.msra.mxu0 %v5019
  %6170 = vmatprep.subr.bf16.mxu0 0
  %6171 = vmatpush1.bf16.msra.mxu0 %v5022
  %6172 = vmatprep.subr.bf16.mxu0 0
  %6173 = vmatpush1.bf16.msra.mxu0 %v5025
  %6174 = vmatprep.subr.bf16.mxu0 0
  %6175 = vmatpush1.bf16.msra.mxu0 %v5028
  %6176 = vmatprep.subr.bf16.mxu0 0
  %6177 = vmatpush1.bf16.msra.mxu0 %v5031
  %6178 = vmatprep.subr.bf16.mxu0 0
  %6179 = vmatpush1.bf16.msra.mxu0 %v5034
  %6180 = vmatprep.subr.bf16.mxu0 0
  %6181 = vmatpush1.bf16.msra.mxu0 %v5037
  %6182 = vmatprep.subr.bf16.mxu0 0
  %6183 = vmatpush1.bf16.msra.mxu0 %v5040
  %6184 = vmatprep.subr.bf16.mxu0 0
  %6185 = vmatpush1.bf16.msra.mxu0 %v5043
  %6186 = vmatprep.subr.bf16.mxu0 0
  %6187 = vmatpush1.bf16.msra.mxu0 %v5046
  %6188 = vmatprep.subr.bf16.mxu0 0
  %6189 = vmatpush1.bf16.msra.mxu0 %v5049
  %6190 = vmatprep.mubr.bf16.mxu0 %v3739
  %6191 = vmatmul.mubr.bf16.gmra.mrb[0].mxu0 %v3738
  %v6192 = vpop.f32.mrb[0].mxu0
  %v6193 = vadd.f32 %v6096, %v6192
  %v6194 = vpop.f32.mrb[0].mxu0
  %v6195 = vpop.f32.mrb[0].mxu0
  %v6196 = vadd.f32 %v6099, %v6195
  %v6197 = vpop.f32.mrb[0].mxu0
  %6198 = vmatprep.mubr.bf16.mxu0 %v3749
  %6199 = vmatmul.mubr.bf16.gmra.mrb[0].mxu0 %v3748
  %v6200 = vpop.f32.mrb[0].mxu0
  %v6201 = vadd.f32 %v6104, %v6200
  %v6202 = vpop.f32.mrb[0].mxu0
  %v6203 = vpop.f32.mrb[0].mxu0
  %v6204 = vadd.f32 %v6107, %v6203
  %v6205 = vpop.f32.mrb[0].mxu0
  %6206 = vmatprep.mubr.bf16.mxu0 %v3759
  %6207 = vmatmul.mubr.bf16.gmra.mrb[0].mxu0 %v3758
  %v6208 = vpop.f32.mrb[0].mxu0
  %v6209 = vadd.f32 %v6112, %v6208
  %v6210 = vpop.f32.mrb[0].mxu0
  %v6211 = vpop.f32.mrb[0].mxu0
  %v6212 = vadd.f32 %v6115, %v6211
  %v6213 = vpop.f32.mrb[0].mxu0
  %6214 = vmatprep.mubr.bf16.mxu0 %v3769
  %6215 = vmatmul.mubr.bf16.gmra.mrb[0].mxu0 %v3768
  %v6216 = vpop.f32.mrb[0].mxu0
  %v6217 = vadd.f32 %v6120, %v6216
  %v6218 = vpop.f32.mrb[0].mxu0
  %v6219 = vpop.f32.mrb[0].mxu0
  %v6220 = vadd.f32 %v6123, %v6219
  %v6221 = vpop.f32.mrb[0].mxu0
  %6222 = vmatprep.mubr.bf16.mxu0 %v3779
  %6223 = vmatmul.mubr.bf16.gmra.mrb[0].mxu0 %v3778
  %v6224 = vpop.f32.mrb[0].mxu0
  %v6225 = vadd.f32 %v6128, %v6224
  %v6226 = vpop.f32.mrb[0].mxu0
  %v6227 = vpop.f32.mrb[0].mxu0
  %v6228 = vadd.f32 %v6131, %v6227
  %v6229 = vpop.f32.mrb[0].mxu0
  %6230 = vmatprep.mubr.bf16.mxu0 %v3789
  %6231 = vmatmul.mubr.bf16.gmra.mrb[0].mxu0 %v3788
  %v6232 = vpop.f32.mrb[0].mxu0
  %v6233 = vadd.f32 %v6136, %v6232
  %v6234 = vpop.f32.mrb[0].mxu0
  %v6235 = vpop.f32.mrb[0].mxu0
  %v6236 = vadd.f32 %v6139, %v6235
  %v6237 = vpop.f32.mrb[0].mxu0
  %6238 = vmatprep.mubr.bf16.mxu0 %v3799
  %6239 = vmatmul.mubr.bf16.gmra.mrb[0].mxu0 %v3798
  %v6240 = vpop.f32.mrb[0].mxu0
  %v6241 = vadd.f32 %v6144, %v6240
  %v6242 = vpop.f32.mrb[0].mxu0
  %v6243 = vpop.f32.mrb[0].mxu0
  %v6244 = vadd.f32 %v6147, %v6243
  %v6245 = vpop.f32.mrb[0].mxu0
  %6246 = vmatprep.mubr.bf16.mxu0 %v3809
  %6247 = vmatmul.mubr.bf16.gmra.mrb[0].mxu0 %v3808
  %v6248 = vpop.f32.mrb[0].mxu0
  %v6249 = vadd.f32 %v6152, %v6248
  %v6250 = vpop.f32.mrb[0].mxu0
  %v6251 = vpop.f32.mrb[0].mxu0
  %v6252 = vadd.f32 %v6155, %v6251
  %v6253 = vpop.f32.mrb[0].mxu0
  %6254 = vdwg.mxu0
  %6255 = vmatprep.subr.bf16.mxu0 0
  %6256 = vmatpush1.bf16.msra.mxu0 %v5052
  %6257 = vmatprep.subr.bf16.mxu0 0
  %6258 = vmatpush1.bf16.msra.mxu0 %v5055
  %6259 = vmatprep.subr.bf16.mxu0 0
  %6260 = vmatpush1.bf16.msra.mxu0 %v5058
  %6261 = vmatprep.subr.bf16.mxu0 0
  %6262 = vmatpush1.bf16.msra.mxu0 %v5061
  %6263 = vmatprep.subr.bf16.mxu0 0
  %6264 = vmatpush1.bf16.msra.mxu0 %v5064
  %6265 = vmatprep.subr.bf16.mxu0 0
  %6266 = vmatpush1.bf16.msra.mxu0 %v5067
  %6267 = vmatprep.subr.bf16.mxu0 0
  %6268 = vmatpush1.bf16.msra.mxu0 %v5070
  %6269 = vmatprep.subr.bf16.mxu0 0
  %6270 = vmatpush1.bf16.msra.mxu0 %v5073
  %6271 = vmatprep.subr.bf16.mxu0 0
  %6272 = vmatpush1.bf16.msra.mxu0 %v5076
  %6273 = vmatprep.subr.bf16.mxu0 0
  %6274 = vmatpush1.bf16.msra.mxu0 %v5079
  %6275 = vmatprep.subr.bf16.mxu0 0
  %6276 = vmatpush1.bf16.msra.mxu0 %v5082
  %6277 = vmatprep.subr.bf16.mxu0 0
  %6278 = vmatpush1.bf16.msra.mxu0 %v5085
  %6279 = vmatprep.subr.bf16.mxu0 0
  %6280 = vmatpush1.bf16.msra.mxu0 %v5088
  %6281 = vmatprep.subr.bf16.mxu0 0
  %6282 = vmatpush1.bf16.msra.mxu0 %v5091
  %6283 = vmatprep.subr.bf16.mxu0 0
  %6284 = vmatpush1.bf16.msra.mxu0 %v5094
  %6285 = vmatprep.subr.bf16.mxu0 0
  %6286 = vmatpush1.bf16.msra.mxu0 %v5097
  %6287 = vmatprep.mubr.bf16.mxu0 %v3741
  %6288 = vmatmul.mubr.bf16.gmra.mrb[0].mxu0 %v3740
  %v6289 = vpop.f32.mrb[0].mxu0
  %v6290 = vadd.f32 %v6193, %v6289
  %v6291 = vpop.f32.mrb[0].mxu0
  %v6292 = vpop.f32.mrb[0].mxu0
  %v6293 = vadd.f32 %v6196, %v6292
  %v6294 = vpop.f32.mrb[0].mxu0
  %6295 = vmatprep.mubr.bf16.mxu0 %v3751
  %6296 = vmatmul.mubr.bf16.gmra.mrb[0].mxu0 %v3750
  %v6297 = vpop.f32.mrb[0].mxu0
  %v6298 = vadd.f32 %v6201, %v6297
  %v6299 = vpop.f32.mrb[0].mxu0
  %v6300 = vpop.f32.mrb[0].mxu0
  %v6301 = vadd.f32 %v6204, %v6300
  %v6302 = vpop.f32.mrb[0].mxu0
  %6303 = vmatprep.mubr.bf16.mxu0 %v3761
  %6304 = vmatmul.mubr.bf16.gmra.mrb[0].mxu0 %v3760
  %v6305 = vpop.f32.mrb[0].mxu0
  %v6306 = vadd.f32 %v6209, %v6305
  %v6307 = vpop.f32.mrb[0].mxu0
  %v6308 = vpop.f32.mrb[0].mxu0
  %v6309 = vadd.f32 %v6212, %v6308
  %v6310 = vpop.f32.mrb[0].mxu0
  %6311 = vmatprep.mubr.bf16.mxu0 %v3771
  %6312 = vmatmul.mubr.bf16.gmra.mrb[0].mxu0 %v3770
  %v6313 = vpop.f32.mrb[0].mxu0
  %v6314 = vadd.f32 %v6217, %v6313
  %v6315 = vpop.f32.mrb[0].mxu0
  %v6316 = vpop.f32.mrb[0].mxu0
  %v6317 = vadd.f32 %v6220, %v6316
  %v6318 = vpop.f32.mrb[0].mxu0
  %6319 = vmatprep.mubr.bf16.mxu0 %v3781
  %6320 = vmatmul.mubr.bf16.gmra.mrb[0].mxu0 %v3780
  %v6321 = vpop.f32.mrb[0].mxu0
  %v6322 = vadd.f32 %v6225, %v6321
  %v6323 = vpop.f32.mrb[0].mxu0
  %v6324 = vpop.f32.mrb[0].mxu0
  %v6325 = vadd.f32 %v6228, %v6324
  %v6326 = vpop.f32.mrb[0].mxu0
  %6327 = vmatprep.mubr.bf16.mxu0 %v3791
  %6328 = vmatmul.mubr.bf16.gmra.mrb[0].mxu0 %v3790
  %v6329 = vpop.f32.mrb[0].mxu0
  %v6330 = vadd.f32 %v6233, %v6329
  %v6331 = vpop.f32.mrb[0].mxu0
  %v6332 = vpop.f32.mrb[0].mxu0
  %v6333 = vadd.f32 %v6236, %v6332
  %v6334 = vpop.f32.mrb[0].mxu0
  %6335 = vmatprep.mubr.bf16.mxu0 %v3801
  %6336 = vmatmul.mubr.bf16.gmra.mrb[0].mxu0 %v3800
  %v6337 = vpop.f32.mrb[0].mxu0
  %v6338 = vadd.f32 %v6241, %v6337
  %v6339 = vpop.f32.mrb[0].mxu0
  %v6340 = vpop.f32.mrb[0].mxu0
  %v6341 = vadd.f32 %v6244, %v6340
  %v6342 = vpop.f32.mrb[0].mxu0
  %6343 = vmatprep.mubr.bf16.mxu0 %v3811
  %6344 = vmatmul.mubr.bf16.gmra.mrb[0].mxu0 %v3810
  %v6345 = vpop.f32.mrb[0].mxu0
  %v6346 = vadd.f32 %v6249, %v6345
  %v6347 = vpop.f32.mrb[0].mxu0
  %v6348 = vpop.f32.mrb[0].mxu0
  %v6349 = vadd.f32 %v6252, %v6348
  %v6350 = vpop.f32.mrb[0].mxu0
  %6351 = vdwg.mxu0
  %6352 = vmatprep.subr.bf16.mxu0 0
  %6353 = vmatpush1.bf16.msra.mxu0 %v5100
  %6354 = vmatprep.subr.bf16.mxu0 0
  %6355 = vmatpush1.bf16.msra.mxu0 %v5103
  %6356 = vmatprep.subr.bf16.mxu0 0
  %6357 = vmatpush1.bf16.msra.mxu0 %v5106
  %6358 = vmatprep.subr.bf16.mxu0 0
  %6359 = vmatpush1.bf16.msra.mxu0 %v5109
  %6360 = vmatprep.subr.bf16.mxu0 0
  %6361 = vmatpush1.bf16.msra.mxu0 %v5112
  %6362 = vmatprep.subr.bf16.mxu0 0
  %6363 = vmatpush1.bf16.msra.mxu0 %v5115
  %6364 = vmatprep.subr.bf16.mxu0 0
  %6365 = vmatpush1.bf16.msra.mxu0 %v5118
  %6366 = vmatprep.subr.bf16.mxu0 0
  %6367 = vmatpush1.bf16.msra.mxu0 %v5121
  %6368 = vmatprep.subr.bf16.mxu0 0
  %6369 = vmatpush1.bf16.msra.mxu0 %v5124
  %6370 = vmatprep.subr.bf16.mxu0 0
  %6371 = vmatpush1.bf16.msra.mxu0 %v5127
  %6372 = vmatprep.subr.bf16.mxu0 0
  %6373 = vmatpush1.bf16.msra.mxu0 %v5130
  %6374 = vmatprep.subr.bf16.mxu0 0
  %6375 = vmatpush1.bf16.msra.mxu0 %v5133
  %6376 = vmatprep.subr.bf16.mxu0 0
  %6377 = vmatpush1.bf16.msra.mxu0 %v5136
  %6378 = vmatprep.subr.bf16.mxu0 0
  %6379 = vmatpush1.bf16.msra.mxu0 %v5139
  %6380 = vmatprep.subr.bf16.mxu0 0
  %6381 = vmatpush1.bf16.msra.mxu0 0
  %6382 = vmatprep.subr.bf16.mxu0 0
  %6383 = vmatpush1.bf16.msra.mxu0 0
  %6384 = vmatprep.mubr.bf16.mxu0 %v5376
  %6385 = vmatmul.mubr.bf16.gmra.mrb[0].mxu0 %v3742
  %v6386 = vpop.f32.mrb[0].mxu0
  %v6387 = vadd.f32 %v6290, %v6386
  %v6388 = vpop.f32.mrb[0].mxu0
  %v6389 = vpop.f32.mrb[0].mxu0
  %v6390 = vadd.f32 %v6293, %v6389
  %v6391 = vpop.f32.mrb[0].mxu0
  %6392 = vmatprep.mubr.bf16.mxu0 %v5379
  %6393 = vmatmul.mubr.bf16.gmra.mrb[0].mxu0 %v3752
  %v6394 = vpop.f32.mrb[0].mxu0
  %v6395 = vadd.f32 %v6298, %v6394
  %v6396 = vpop.f32.mrb[0].mxu0
  %v6397 = vpop.f32.mrb[0].mxu0
  %v6398 = vadd.f32 %v6301, %v6397
  %v6399 = vpop.f32.mrb[0].mxu0
  %6400 = vmatprep.mubr.bf16.mxu0 %v5382
  %6401 = vmatmul.mubr.bf16.gmra.mrb[0].mxu0 %v3762
  %v6402 = vpop.f32.mrb[0].mxu0
  %v6403 = vadd.f32 %v6306, %v6402
  %v6404 = vpop.f32.mrb[0].mxu0
  %v6405 = vpop.f32.mrb[0].mxu0
  %v6406 = vadd.f32 %v6309, %v6405
  %v6407 = vpop.f32.mrb[0].mxu0
  %6408 = vmatprep.mubr.bf16.mxu0 %v5385
  %6409 = vmatmul.mubr.bf16.gmra.mrb[0].mxu0 %v3772
  %v6410 = vpop.f32.mrb[0].mxu0
  %v6411 = vadd.f32 %v6314, %v6410
  %v6412 = vpop.f32.mrb[0].mxu0
  %v6413 = vpop.f32.mrb[0].mxu0
  %v6414 = vadd.f32 %v6317, %v6413
  %v6415 = vpop.f32.mrb[0].mxu0
  %6416 = vmatprep.mubr.bf16.mxu0 %v5388
  %6417 = vmatmul.mubr.bf16.gmra.mrb[0].mxu0 %v3782
  %v6418 = vpop.f32.mrb[0].mxu0
  %v6419 = vadd.f32 %v6322, %v6418
  %v6420 = vpop.f32.mrb[0].mxu0
  %v6421 = vpop.f32.mrb[0].mxu0
  %v6422 = vadd.f32 %v6325, %v6421
  %v6423 = vpop.f32.mrb[0].mxu0
  %6424 = vmatprep.mubr.bf16.mxu0 %v5391
  %6425 = vmatmul.mubr.bf16.gmra.mrb[0].mxu0 %v3792
  %v6426 = vpop.f32.mrb[0].mxu0
  %v6427 = vadd.f32 %v6330, %v6426
  %v6428 = vpop.f32.mrb[0].mxu0
  %v6429 = vpop.f32.mrb[0].mxu0
  %v6430 = vadd.f32 %v6333, %v6429
  %v6431 = vpop.f32.mrb[0].mxu0
  %6432 = vmatprep.mubr.bf16.mxu0 %v5394
  %6433 = vmatmul.mubr.bf16.gmra.mrb[0].mxu0 %v3802
  %v6434 = vpop.f32.mrb[0].mxu0
  %v6435 = vadd.f32 %v6338, %v6434
  %v6436 = vpop.f32.mrb[0].mxu0
  %v6437 = vpop.f32.mrb[0].mxu0
  %v6438 = vadd.f32 %v6341, %v6437
  %v6439 = vpop.f32.mrb[0].mxu0
  %6440 = vmatprep.mubr.bf16.mxu0 %v5397
  %6441 = vmatmul.mubr.bf16.gmra.mrb[0].mxu0 %v3812
  %v6442 = vpop.f32.mrb[0].mxu0
  %v6443 = vadd.f32 %v6346, %v6442
  %v6444 = vpop.f32.mrb[0].mxu0
  %v6445 = vpop.f32.mrb[0].mxu0
  %v6446 = vadd.f32 %v6349, %v6445
  %v6447 = vpop.f32.mrb[0].mxu0
  %6448 = vdwg.mxu0
  %v6449 = vld [vmem:[%s6] sm:$0xff]
  %v6450 = vld [vmem:[%s6 + $0x8] sm:$0xf]
  %v6451 = vld [vmem:[%s6 + $0xc] sm:$0xff]
  %v6452 = vld [vmem:[%s6 + $0x14] sm:$0xf]
  %v6453 = vld [vmem:[%s6 + $0x18] sm:$0xff]
  %v6454 = vld [vmem:[%s6 + $0x20] sm:$0xf]
  %v6455 = vld [vmem:[%s6 + $0x24] sm:$0xff]
  %v6456 = vld [vmem:[%s6 + $0x2c] sm:$0xf]
  %v6457 = vld [vmem:[%s6 + $0x30] sm:$0xff]
  %v6458 = vld [vmem:[%s6 + $0x38] sm:$0xf]
  %v6459 = vld [vmem:[%s6 + $0x3c] sm:$0xff]
  %v6460 = vld [vmem:[%s6 + $0x44] sm:$0xf]
  %v6461 = vld [vmem:[%s6 + $0x48] sm:$0xff]
  %v6462 = vld [vmem:[%s6 + $0x50] sm:$0xf]
  %v6463 = vld [vmem:[%s6 + $0x54] sm:$0xff]
  %v6464 = vld [vmem:[%s6 + $0x5c] sm:$0xf]
  %v6465 = vld [vmem:[%s6 + $0x60] sm:$0xff]
  %v6466 = vld [vmem:[%s6 + $0x68] sm:$0xf]
  %v6467 = vld [vmem:[%s6 + $0x6c] sm:$0xff]
  %v6468 = vld [vmem:[%s6 + $0x74] sm:$0xf]
  %v6469 = vld [vmem:[%s6 + $0x78] sm:$0xff]
  %v6470 = vld [vmem:[%s6 + $0x80] sm:$0xf]
  %v6471 = vld [vmem:[%s6 + $0x84] sm:$0xff]
  %v6472 = vld [vmem:[%s6 + $0x8c] sm:$0xf]
  %v6473 = vld [vmem:[%s6 + $0x90] sm:$0xff]
  %v6474 = vld [vmem:[%s6 + $0x98] sm:$0xf]
  %v6475 = vld [vmem:[%s6 + $0x9c] sm:$0xff]
  %v6476 = vld [vmem:[%s6 + $0xa4] sm:$0xf]
  %v6477 = vld [vmem:[%s6 + $0xa8] sm:$0xff]
  %v6478 = vld [vmem:[%s6 + $0xb0] sm:$0xf]
  %v6479 = vld [vmem:[%s6 + $0xb4] sm:$0xff]
  %v6480 = vld [vmem:[%s6 + $0xbc] sm:$0xf]
  %v6481 = vld [vmem:[%s6 + $0xc0] sm:$0xff]
  %v6482 = vld [vmem:[%s6 + $0xc8] sm:$0xf]
  %v6483 = vld [vmem:[%s6 + $0xcc] sm:$0xff]
  %v6484 = vld [vmem:[%s6 + $0xd4] sm:$0xf]
  %v6485 = vld [vmem:[%s6 + $0xd8] sm:$0xff]
  %v6486 = vld [vmem:[%s6 + $0xe0] sm:$0xf]
  %v6487 = vld [vmem:[%s6 + $0xe4] sm:$0xff]
  %v6488 = vld [vmem:[%s6 + $0xec] sm:$0xf]
  %v6489 = vld [vmem:[%s6 + $0xf0] sm:$0xff]
  %v6490 = vld [vmem:[%s6 + $0xf8] sm:$0xf]
  %v6491 = vld [vmem:[%s6 + $0xfc] sm:$0xff]
  %v6492 = vld [vmem:[%s6 + $0x104] sm:$0xf]
  %v6493 = vld [vmem:[%s6 + $0x108] sm:$0xff]
  %v6494 = vld [vmem:[%s6 + $0x110] sm:$0xf]
  %v6495 = vld [vmem:[%s6 + $0x114] sm:$0xff]
  %v6496 = vld [vmem:[%s6 + $0x11c] sm:$0xf]
  %v6497 = vld [vmem:[%s6 + $0x120] sm:$0xff]
  %v6498 = vld [vmem:[%s6 + $0x128] sm:$0xf]
  %v6499 = vld [vmem:[%s6 + $0x12c] sm:$0xff]
  %v6500 = vld [vmem:[%s6 + $0x134] sm:$0xf]
  %v6501 = vld [vmem:[%s6 + $0x138] sm:$0xff]
  %v6502 = vld [vmem:[%s6 + $0x140] sm:$0xf]
  %v6503 = vld [vmem:[%s6 + $0x144] sm:$0xff]
  %v6504 = vld [vmem:[%s6 + $0x14c] sm:$0xf]
  %v6505 = vld [vmem:[%s6 + $0x150] sm:$0xff]
  %v6506 = vld [vmem:[%s6 + $0x158] sm:$0xf]
  %v6507 = vld [vmem:[%s6 + $0x15c] sm:$0xff]
  %v6508 = vld [vmem:[%s6 + $0x164] sm:$0xf]
  %v6509 = vld [vmem:[%s6 + $0x168] sm:$0xff]
  %v6510 = vld [vmem:[%s6 + $0x170] sm:$0xf]
  %v6511 = vld [vmem:[%s6 + $0x174] sm:$0xff]
  %v6512 = vld [vmem:[%s6 + $0x17c] sm:$0xf]
  %v6513 = vld [vmem:[%s6 + $0x180] sm:$0xff]
  %v6514 = vld [vmem:[%s6 + $0x188] sm:$0xf]
  %v6515 = vld [vmem:[%s6 + $0x18c] sm:$0xff]
  %v6516 = vld [vmem:[%s6 + $0x194] sm:$0xf]
  %v6517 = vld [vmem:[%s6 + $0x198] sm:$0xff]
  %v6518 = vld [vmem:[%s6 + $0x1a0] sm:$0xf]
  %v6519 = vld [vmem:[%s6 + $0x1a4] sm:$0xff]
  %v6520 = vld [vmem:[%s6 + $0x1ac] sm:$0xf]
  %v6521 = vld [vmem:[%s6 + $0x1b0] sm:$0xff]
  %v6522 = vld [vmem:[%s6 + $0x1b8] sm:$0xf]
  %v6523 = vld [vmem:[%s6 + $0x1bc] sm:$0xff]
  %v6524 = vld [vmem:[%s6 + $0x1c4] sm:$0xf]
  %v6525 = vld [vmem:[%s6 + $0x1c8] sm:$0xff]
  %v6526 = vld [vmem:[%s6 + $0x1d0] sm:$0xf]
  %v6527 = vld [vmem:[%s6 + $0x1d4] sm:$0xff]
  %v6528 = vld [vmem:[%s6 + $0x1dc] sm:$0xf]
  %v6529 = vld [vmem:[%s6 + $0x1e0] sm:$0xff]
  %v6530 = vld [vmem:[%s6 + $0x1e8] sm:$0xf]
  %v6531 = vld [vmem:[%s6 + $0x1ec] sm:$0xff]
  %v6532 = vld [vmem:[%s6 + $0x1f4] sm:$0xf]
  %v6533 = vld [vmem:[%s6 + $0x1f8] sm:$0xff]
  %v6534 = vld [vmem:[%s6 + $0x200] sm:$0xf]
  %v6535 = vld [vmem:[%s6 + $0x204] sm:$0xff]
  %v6536 = vld [vmem:[%s6 + $0x20c] sm:$0xf]
  %v6537 = vld [vmem:[%s6 + $0x210] sm:$0xff]
  %v6538 = vld [vmem:[%s6 + $0x218] sm:$0xf]
  %v6539 = vld [vmem:[%s6 + $0x21c] sm:$0xff]
  %v6540 = vld [vmem:[%s6 + $0x224] sm:$0xf]
  %v6541 = vld [vmem:[%s6 + $0x228] sm:$0xff]
  %v6542 = vld [vmem:[%s6 + $0x230] sm:$0xf]
  %v6543 = vld [vmem:[%s6 + $0x234] sm:$0xff]
  %v6544 = vld [vmem:[%s6 + $0x23c] sm:$0xf]
  %v6545 = vld [vmem:[%s6 + $0x240] sm:$0xff]
  %v6546 = vld [vmem:[%s6 + $0x248] sm:$0xf]
  %v6547 = vld [vmem:[%s6 + $0x24c] sm:$0xff]
  %v6548 = vld [vmem:[%s6 + $0x254] sm:$0xf]
  %v6549 = vld [vmem:[%s6 + $0x258] sm:$0xff]
  %v6550 = vld [vmem:[%s6 + $0x260] sm:$0xf]
  %v6551 = vld [vmem:[%s6 + $0x264] sm:$0xff]
  %v6552 = vld [vmem:[%s6 + $0x26c] sm:$0xf]
  %v6553 = vld [vmem:[%s6 + $0x270] sm:$0xff]
  %v6554 = vld [vmem:[%s6 + $0x278] sm:$0xf]
  %v6555 = vld [vmem:[%s6 + $0x27c] sm:$0xff]
  %v6556 = vld [vmem:[%s6 + $0x284] sm:$0xf]
  %v6557 = vld [vmem:[%s6 + $0x288] sm:$0xff]
  %v6558 = vld [vmem:[%s6 + $0x290] sm:$0xf]
  %v6559 = vld [vmem:[%s6 + $0x294] sm:$0xff]
  %v6560 = vld [vmem:[%s6 + $0x29c] sm:$0xf]
  %v6561 = vld [vmem:[%s6 + $0x2a0] sm:$0xff]
  %v6562 = vld [vmem:[%s6 + $0x2a8] sm:$0xf]
  %v6563 = vld [vmem:[%s6 + $0x2ac] sm:$0xff]
  %v6564 = vld [vmem:[%s6 + $0x2b4] sm:$0xf]
  %v6565 = vld [vmem:[%s6 + $0x2b8] sm:$0xff]
  %v6566 = vld [vmem:[%s6 + $0x2c0] sm:$0xf]
  %v6567 = vld [vmem:[%s6 + $0x2c4] sm:$0xff]
  %v6568 = vld [vmem:[%s6 + $0x2cc] sm:$0xf]
  %v6569 = vld [vmem:[%s6 + $0x2d0] sm:$0xff]
  %v6570 = vld [vmem:[%s6 + $0x2d8] sm:$0xf]
  %v6571 = vld [vmem:[%s6 + $0x2dc] sm:$0xff]
  %v6572 = vld [vmem:[%s6 + $0x2e4] sm:$0xf]
  %v6573 = vld [vmem:[%s6 + $0x2e8] sm:$0xff]
  %v6574 = vld [vmem:[%s6 + $0x2f0] sm:$0xf]
  %v6575 = vld [vmem:[%s6 + $0x2f4] sm:$0xff]
  %v6576 = vld [vmem:[%s6 + $0x2fc] sm:$0xf]
  %v6577 = vld [vmem:[%s6 + $0x300] sm:$0xff]
  %v6578 = vld [vmem:[%s6 + $0x308] sm:$0xf]
  %v6579 = vld [vmem:[%s6 + $0x30c] sm:$0xff]
  %v6580 = vld [vmem:[%s6 + $0x314] sm:$0xf]
  %v6581 = vld [vmem:[%s6 + $0x318] sm:$0xff]
  %v6582 = vld [vmem:[%s6 + $0x320] sm:$0xf]
  %v6583 = vld [vmem:[%s6 + $0x324] sm:$0xff]
  %v6584 = vld [vmem:[%s6 + $0x32c] sm:$0xf]
  %v6585 = vld [vmem:[%s6 + $0x330] sm:$0xff]
  %v6586 = vld [vmem:[%s6 + $0x338] sm:$0xf]
  %v6587 = vld [vmem:[%s6 + $0x33c] sm:$0xff]
  %v6588 = vld [vmem:[%s6 + $0x344] sm:$0xf]
  %v6589 = vld [vmem:[%s6 + $0x348] sm:$0xff]
  %v6590 = vld [vmem:[%s6 + $0x350] sm:$0xf]
  %v6591 = vld [vmem:[%s6 + $0x354] sm:$0xff]
  %v6592 = vld [vmem:[%s6 + $0x35c] sm:$0xf]
  %v6593 = vld [vmem:[%s6 + $0x360] sm:$0xff]
  %v6594 = vld [vmem:[%s6 + $0x368] sm:$0xf]
  %v6595 = vld [vmem:[%s6 + $0x36c] sm:$0xff]
  %v6596 = vld [vmem:[%s6 + $0x374] sm:$0xf]
  %v6597 = vld [vmem:[%s6 + $0x378] sm:$0xff]
  %v6598 = vld [vmem:[%s6 + $0x380] sm:$0xf]
  %v6599 = vld [vmem:[%s6 + $0x384] sm:$0xff]
  %v6600 = vld [vmem:[%s6 + $0x38c] sm:$0xf]
  %v6601 = vld [vmem:[%s6 + $0x390] sm:$0xff]
  %v6602 = vld [vmem:[%s6 + $0x398] sm:$0xf]
  %v6603 = vld [vmem:[%s6 + $0x39c] sm:$0xff]
  %v6604 = vld [vmem:[%s6 + $0x3a4] sm:$0xf]
  %v6605 = vld [vmem:[%s6 + $0x3a8] sm:$0xff]
  %v6606 = vld [vmem:[%s6 + $0x3b0] sm:$0xf]
  %v6607 = vld [vmem:[%s6 + $0x3b4] sm:$0xff]
  %v6608 = vld [vmem:[%s6 + $0x3bc] sm:$0xf]
  %v6609 = vld [vmem:[%s6 + $0x3c0] sm:$0xff]
  %v6610 = vld [vmem:[%s6 + $0x3c8] sm:$0xf]
  %v6611 = vld [vmem:[%s6 + $0x3cc] sm:$0xff]
  %v6612 = vld [vmem:[%s6 + $0x3d4] sm:$0xf]
  %v6613 = vld [vmem:[%s6 + $0x3d8] sm:$0xff]
  %v6614 = vld [vmem:[%s6 + $0x3e0] sm:$0xf]
  %v6615 = vld [vmem:[%s6 + $0x3e4] sm:$0xff]
  %v6616 = vld [vmem:[%s6 + $0x3ec] sm:$0xf]
  %v6617 = vld [vmem:[%s6 + $0x3f0] sm:$0xff]
  %v6618 = vld [vmem:[%s6 + $0x3f8] sm:$0xf]
  %v6619 = vld [vmem:[%s6 + $0x3fc] sm:$0xff]
  %v6620 = vld [vmem:[%s6 + $0x404] sm:$0xf]
  %v6621 = vld [vmem:[%s6 + $0x408] sm:$0xff]
  %v6622 = vld [vmem:[%s6 + $0x410] sm:$0xf]
  %v6623 = vld [vmem:[%s6 + $0x414] sm:$0xff]
  %v6624 = vld [vmem:[%s6 + $0x41c] sm:$0xf]
  %v6625 = vld [vmem:[%s6 + $0x420] sm:$0xff]
  %v6626 = vld [vmem:[%s6 + $0x428] sm:$0xf]
  %v6627 = vld [vmem:[%s6 + $0x42c] sm:$0xff]
  %v6628 = vld [vmem:[%s6 + $0x434] sm:$0xf]
  %v6629 = vld [vmem:[%s6 + $0x438] sm:$0xff]
  %v6630 = vld [vmem:[%s6 + $0x440] sm:$0xf]
  %v6631 = vld [vmem:[%s6 + $0x444] sm:$0xff]
  %v6632 = vld [vmem:[%s6 + $0x44c] sm:$0xf]
  %v6633 = vld [vmem:[%s6 + $0x450] sm:$0xff]
  %v6634 = vld [vmem:[%s6 + $0x458] sm:$0xf]
  %v6635 = vld [vmem:[%s6 + $0x45c] sm:$0xff]
  %v6636 = vld [vmem:[%s6 + $0x464] sm:$0xf]
  %v6637 = vld [vmem:[%s6 + $0x468] sm:$0xff]
  %v6638 = vld [vmem:[%s6 + $0x470] sm:$0xf]
  %v6639 = vld [vmem:[%s6 + $0x474] sm:$0xff]
  %v6640 = vld [vmem:[%s6 + $0x47c] sm:$0xf]
  %v6641 = vld [vmem:[%s6 + $0x480] sm:$0xff]
  %v6642 = vld [vmem:[%s6 + $0x488] sm:$0xf]
  %v6643 = vld [vmem:[%s6 + $0x48c] sm:$0xff]
  %v6644 = vld [vmem:[%s6 + $0x494] sm:$0xf]
  %v6645 = vld [vmem:[%s6 + $0x498] sm:$0xff]
  %v6646 = vld [vmem:[%s6 + $0x4a0] sm:$0xf]
  %v6647 = vld [vmem:[%s6 + $0x4a4] sm:$0xff]
  %v6648 = vld [vmem:[%s6 + $0x4ac] sm:$0xf]
  %v6649 = vld [vmem:[%s6 + $0x4b0] sm:$0xff]
  %v6650 = vld [vmem:[%s6 + $0x4b8] sm:$0xf]
  %v6651 = vld [vmem:[%s6 + $0x4bc] sm:$0xff]
  %v6652 = vld [vmem:[%s6 + $0x4c4] sm:$0xf]
  %v6653 = vld [vmem:[%s6 + $0x4c8] sm:$0xff]
  %v6654 = vld [vmem:[%s6 + $0x4d0] sm:$0xf]
  %v6655 = vld [vmem:[%s6 + $0x4d4] sm:$0xff]
  %v6656 = vld [vmem:[%s6 + $0x4dc] sm:$0xf]
  %v6657 = vld [vmem:[%s6 + $0x4e0] sm:$0xff]
  %v6658 = vld [vmem:[%s6 + $0x4e8] sm:$0xf]
  %v6659 = vld [vmem:[%s6 + $0x4ec] sm:$0xff]
  %v6660 = vld [vmem:[%s6 + $0x4f4] sm:$0xf]
  %v6661 = vld [vmem:[%s6 + $0x4f8] sm:$0xff]
  %v6662 = vld [vmem:[%s6 + $0x500] sm:$0xf]
  %v6663 = vld [vmem:[%s6 + $0x504] sm:$0xff]
  %v6664 = vld [vmem:[%s6 + $0x50c] sm:$0xf]
  %v6665 = vld [vmem:[%s6 + $0x510] sm:$0xff]
  %v6666 = vld [vmem:[%s6 + $0x518] sm:$0xf]
  %v6667 = vld [vmem:[%s6 + $0x51c] sm:$0xff]
  %v6668 = vld [vmem:[%s6 + $0x524] sm:$0xf]
  %v6669 = vld [vmem:[%s6 + $0x528] sm:$0xff]
  %v6670 = vld [vmem:[%s6 + $0x530] sm:$0xf]
  %v6671 = vld [vmem:[%s6 + $0x534] sm:$0xff]
  %v6672 = vld [vmem:[%s6 + $0x53c] sm:$0xf]
  %v6673 = vld [vmem:[%s6 + $0x540] sm:$0xff]
  %v6674 = vld [vmem:[%s6 + $0x548] sm:$0xf]
  %v6675 = vld [vmem:[%s6 + $0x54c] sm:$0xff]
  %v6676 = vld [vmem:[%s6 + $0x554] sm:$0xf]
  %v6677 = vld [vmem:[%s6 + $0x558] sm:$0xff]
  %v6678 = vld [vmem:[%s6 + $0x560] sm:$0xf]
  %v6679 = vld [vmem:[%s6 + $0x564] sm:$0xff]
  %v6680 = vld [vmem:[%s6 + $0x56c] sm:$0xf]
  %v6681 = vld [vmem:[%s6 + $0x570] sm:$0xff]
  %v6682 = vld [vmem:[%s6 + $0x578] sm:$0xf]
  %v6683 = vld [vmem:[%s6 + $0x57c] sm:$0xff]
  %v6684 = vld [vmem:[%s6 + $0x584] sm:$0xf]
  %v6685 = vld [vmem:[%s6 + $0x588] sm:$0xff]
  %v6686 = vld [vmem:[%s6 + $0x590] sm:$0xf]
  %v6687 = vld [vmem:[%s6 + $0x594] sm:$0xff]
  %v6688 = vld [vmem:[%s6 + $0x59c] sm:$0xf]
  %v6689 = vld [vmem:[%s6 + $0x5a0] sm:$0xff]
  %v6690 = vld [vmem:[%s6 + $0x5a8] sm:$0xf]
  %v6691 = vld [vmem:[%s6 + $0x5ac] sm:$0xff]
  %v6692 = vld [vmem:[%s6 + $0x5b4] sm:$0xf]
  %v6693 = vld [vmem:[%s6 + $0x5b8] sm:$0xff]
  %v6694 = vld [vmem:[%s6 + $0x5c0] sm:$0xf]
  %v6695 = vld [vmem:[%s6 + $0x5c4] sm:$0xff]
  %v6696 = vld [vmem:[%s6 + $0x5cc] sm:$0xf]
  %v6697 = vld [vmem:[%s6 + $0x5d0] sm:$0xff]
  %v6698 = vld [vmem:[%s6 + $0x5d8] sm:$0xf]
  %v6699 = vld [vmem:[%s6 + $0x5dc] sm:$0xff]
  %v6700 = vld [vmem:[%s6 + $0x5e4] sm:$0xf]
  %v6701 = vld [vmem:[%s6 + $0x5e8] sm:$0xff]
  %v6702 = vld [vmem:[%s6 + $0x5f0] sm:$0xf]
  %v6703 = vld [vmem:[%s6 + $0x5f4] sm:$0xff]
  %v6704 = vld [vmem:[%s6 + $0x5fc] sm:$0xf]
  %v6705 = vld [vmem:[%s6 + $0x600] sm:$0xff]
  %v6706 = vld [vmem:[%s6 + $0x608] sm:$0xf]
  %v6707 = vld [vmem:[%s6 + $0x60c] sm:$0xff]
  %v6708 = vld [vmem:[%s6 + $0x614] sm:$0xf]
  %v6709 = vld [vmem:[%s6 + $0x618] sm:$0xff]
  %v6710 = vld [vmem:[%s6 + $0x620] sm:$0xf]
  %v6711 = vld [vmem:[%s6 + $0x624] sm:$0xff]
  %v6712 = vld [vmem:[%s6 + $0x62c] sm:$0xf]
  %v6713 = vld [vmem:[%s6 + $0x630] sm:$0xff]
  %v6714 = vld [vmem:[%s6 + $0x638] sm:$0xf]
  %v6715 = vld [vmem:[%s6 + $0x63c] sm:$0xff]
  %v6716 = vld [vmem:[%s6 + $0x644] sm:$0xf]
  %v6717 = vld [vmem:[%s6 + $0x648] sm:$0xff]
  %v6718 = vld [vmem:[%s6 + $0x650] sm:$0xf]
  %v6719 = vld [vmem:[%s6 + $0x654] sm:$0xff]
  %v6720 = vld [vmem:[%s6 + $0x65c] sm:$0xf]
  %v6721 = vld [vmem:[%s6 + $0x660] sm:$0xff]
  %v6722 = vld [vmem:[%s6 + $0x668] sm:$0xf]
  %v6723 = vld [vmem:[%s6 + $0x66c] sm:$0xff]
  %v6724 = vld [vmem:[%s6 + $0x674] sm:$0xf]
  %v6725 = vld [vmem:[%s6 + $0x678] sm:$0xff]
  %v6726 = vld [vmem:[%s6 + $0x680] sm:$0xf]
  %v6727 = vld [vmem:[%s6 + $0x684] sm:$0xff]
  %v6728 = vld [vmem:[%s6 + $0x68c] sm:$0xf]
  %v6729 = vld [vmem:[%s6 + $0x690] sm:$0xff]
  %v6730 = vld [vmem:[%s6 + $0x698] sm:$0xf]
  %v6731 = vld [vmem:[%s6 + $0x69c] sm:$0xff]
  %v6732 = vld [vmem:[%s6 + $0x6a4] sm:$0xf]
  %v6733 = vld [vmem:[%s6 + $0x6a8] sm:$0xff]
  %v6734 = vld [vmem:[%s6 + $0x6b0] sm:$0xf]
  %v6735 = vld [vmem:[%s6 + $0x6b4] sm:$0xff]
  %v6736 = vld [vmem:[%s6 + $0x6bc] sm:$0xf]
  %v6737 = vld [vmem:[%s6 + $0x6c0] sm:$0xff]
  %v6738 = vld [vmem:[%s6 + $0x6c8] sm:$0xf]
  %v6739 = vld [vmem:[%s6 + $0x6cc] sm:$0xff]
  %v6740 = vld [vmem:[%s6 + $0x6d4] sm:$0xf]
  %v6741 = vld [vmem:[%s6 + $0x6d8] sm:$0xff]
  %v6742 = vld [vmem:[%s6 + $0x6e0] sm:$0xf]
  %v6743 = vld [vmem:[%s6 + $0x6e4] sm:$0xff]
  %v6744 = vld [vmem:[%s6 + $0x6ec] sm:$0xf]
  %v6745 = vld [vmem:[%s6 + $0x6f0] sm:$0xff]
  %v6746 = vld [vmem:[%s6 + $0x6f8] sm:$0xf]
  %v6747 = vld [vmem:[%s6 + $0x6fc] sm:$0xff]
  %v6748 = vld [vmem:[%s6 + $0x704] sm:$0xf]
  %v6749 = vld [vmem:[%s6 + $0x708] sm:$0xff]
  %v6750 = vld [vmem:[%s6 + $0x710] sm:$0xf]
  %v6751 = vld [vmem:[%s6 + $0x714] sm:$0xff]
  %v6752 = vld [vmem:[%s6 + $0x71c] sm:$0xf]
  %v6753 = vld [vmem:[%s6 + $0x720] sm:$0xff]
  %v6754 = vld [vmem:[%s6 + $0x728] sm:$0xf]
  %v6755 = vld [vmem:[%s6 + $0x72c] sm:$0xff]
  %v6756 = vld [vmem:[%s6 + $0x734] sm:$0xf]
  %v6757 = vld [vmem:[%s6 + $0x738] sm:$0xff]
  %v6758 = vld [vmem:[%s6 + $0x740] sm:$0xf]
  %v6759 = vld [vmem:[%s6 + $0x744] sm:$0xff]
  %v6760 = vld [vmem:[%s6 + $0x74c] sm:$0xf]
  %v7073 = vunpack.c.l.b16 %v6449
  %v7074 = vunpack.c.h.b16 %v6449
  %v7075 = vunpack.c.l.b16 %v6450
  %v7076 = vunpack.c.l.b16 %v6451
  %v7077 = vunpack.c.h.b16 %v6451
  %v7078 = vunpack.c.l.b16 %v6452
  %v7079 = vunpack.c.l.b16 %v6453
  %v7080 = vunpack.c.h.b16 %v6453
  %v7081 = vunpack.c.l.b16 %v6454
  %v7082 = vunpack.c.l.b16 %v6455
  %v7083 = vunpack.c.h.b16 %v6455
  %v7084 = vunpack.c.l.b16 %v6456
  %v7085 = vunpack.c.l.b16 %v6457
  %v7086 = vunpack.c.h.b16 %v6457
  %v7087 = vunpack.c.l.b16 %v6458
  %v7088 = vunpack.c.l.b16 %v6459
  %v7089 = vunpack.c.h.b16 %v6459
  %v7090 = vunpack.c.l.b16 %v6460
  %v7091 = vunpack.c.l.b16 %v6461
  %v7092 = vunpack.c.h.b16 %v6461
  %v7093 = vunpack.c.l.b16 %v6462
  %v7094 = vunpack.c.l.b16 %v6463
  %v7095 = vunpack.c.h.b16 %v6463
  %v7096 = vunpack.c.l.b16 %v6464
  %v7097 = vunpack.c.l.b16 %v6465
  %v7098 = vunpack.c.h.b16 %v6465
  %v7099 = vunpack.c.l.b16 %v6466
  %v7100 = vunpack.c.l.b16 %v6467
  %v7101 = vunpack.c.h.b16 %v6467
  %v7102 = vunpack.c.l.b16 %v6468
  %v7103 = vunpack.c.l.b16 %v6469
  %v7104 = vunpack.c.h.b16 %v6469
  %v7105 = vunpack.c.l.b16 %v6470
  %v7106 = vunpack.c.l.b16 %v6471
  %v7107 = vunpack.c.h.b16 %v6471
  %v7108 = vunpack.c.l.b16 %v6472
  %v7109 = vunpack.c.l.b16 %v6473
  %v7110 = vunpack.c.h.b16 %v6473
  %v7111 = vunpack.c.l.b16 %v6474
  %v7112 = vunpack.c.l.b16 %v6475
  %v7113 = vunpack.c.h.b16 %v6475
  %v7114 = vunpack.c.l.b16 %v6476
  %v7115 = vunpack.c.l.b16 %v6477
  %v7116 = vunpack.c.h.b16 %v6477
  %v7117 = vunpack.c.l.b16 %v6478
  %v7118 = vunpack.c.l.b16 %v6479
  %v7119 = vunpack.c.h.b16 %v6479
  %v7120 = vunpack.c.l.b16 %v6480
  %v7121 = vunpack.c.l.b16 %v6481
  %v7122 = vunpack.c.h.b16 %v6481
  %v7123 = vunpack.c.l.b16 %v6482
  %v7124 = vunpack.c.l.b16 %v6483
  %v7125 = vunpack.c.h.b16 %v6483
  %v7126 = vunpack.c.l.b16 %v6484
  %v7127 = vunpack.c.l.b16 %v6485
  %v7128 = vunpack.c.h.b16 %v6485
  %v7129 = vunpack.c.l.b16 %v6486
  %v7130 = vunpack.c.l.b16 %v6487
  %v7131 = vunpack.c.h.b16 %v6487
  %v7132 = vunpack.c.l.b16 %v6488
  %v7133 = vunpack.c.l.b16 %v6489
  %v7134 = vunpack.c.h.b16 %v6489
  %v7135 = vunpack.c.l.b16 %v6490
  %v7136 = vunpack.c.l.b16 %v6491
  %v7137 = vunpack.c.h.b16 %v6491
  %v7138 = vunpack.c.l.b16 %v6492
  %v7139 = vunpack.c.l.b16 %v6493
  %v7140 = vunpack.c.h.b16 %v6493
  %v7141 = vunpack.c.l.b16 %v6494
  %v7142 = vunpack.c.l.b16 %v6495
  %v7143 = vunpack.c.h.b16 %v6495
  %v7144 = vunpack.c.l.b16 %v6496
  %v7145 = vunpack.c.l.b16 %v6497
  %v7146 = vunpack.c.h.b16 %v6497
  %v7147 = vunpack.c.l.b16 %v6498
  %v7148 = vunpack.c.l.b16 %v6499
  %v7149 = vunpack.c.h.b16 %v6499
  %v7150 = vunpack.c.l.b16 %v6500
  %v7151 = vunpack.c.l.b16 %v6501
  %v7152 = vunpack.c.h.b16 %v6501
  %v7153 = vunpack.c.l.b16 %v6502
  %v7154 = vunpack.c.l.b16 %v6503
  %v7155 = vunpack.c.h.b16 %v6503
  %v7156 = vunpack.c.l.b16 %v6504
  %v7157 = vunpack.c.l.b16 %v6505
  %v7158 = vunpack.c.h.b16 %v6505
  %v7159 = vunpack.c.l.b16 %v6506
  %v7160 = vunpack.c.l.b16 %v6507
  %v7161 = vunpack.c.h.b16 %v6507
  %v7162 = vunpack.c.l.b16 %v6508
  %v7163 = vunpack.c.l.b16 %v6509
  %v7164 = vunpack.c.h.b16 %v6509
  %v7165 = vunpack.c.l.b16 %v6510
  %v7166 = vunpack.c.l.b16 %v6511
  %v7167 = vunpack.c.h.b16 %v6511
  %v7168 = vunpack.c.l.b16 %v6512
  %v7169 = vunpack.c.l.b16 %v6513
  %v7170 = vunpack.c.h.b16 %v6513
  %v7171 = vunpack.c.l.b16 %v6514
  %v7172 = vunpack.c.l.b16 %v6515
  %v7173 = vunpack.c.h.b16 %v6515
  %v7174 = vunpack.c.l.b16 %v6516
  %v7175 = vunpack.c.l.b16 %v6517
  %v7176 = vunpack.c.h.b16 %v6517
  %v7177 = vunpack.c.l.b16 %v6518
  %v7178 = vunpack.c.l.b16 %v6519
  %v7179 = vunpack.c.h.b16 %v6519
  %v7180 = vunpack.c.l.b16 %v6520
  %v7181 = vunpack.c.l.b16 %v6521
  %v7182 = vunpack.c.h.b16 %v6521
  %v7183 = vunpack.c.l.b16 %v6522
  %v7184 = vunpack.c.l.b16 %v6523
  %v7185 = vunpack.c.h.b16 %v6523
  %v7186 = vunpack.c.l.b16 %v6524
  %v7187 = vunpack.c.l.b16 %v6525
  %v7188 = vunpack.c.h.b16 %v6525
  %v7189 = vunpack.c.l.b16 %v6526
  %v7190 = vunpack.c.l.b16 %v6527
  %v7191 = vunpack.c.h.b16 %v6527
  %v7192 = vunpack.c.l.b16 %v6528
  %v7193 = vunpack.c.l.b16 %v6529
  %v7194 = vunpack.c.h.b16 %v6529
  %v7195 = vunpack.c.l.b16 %v6530
  %v7196 = vunpack.c.l.b16 %v6531
  %v7197 = vunpack.c.h.b16 %v6531
  %v7198 = vunpack.c.l.b16 %v6532
  %v7199 = vunpack.c.l.b16 %v6533
  %v7200 = vunpack.c.h.b16 %v6533
  %v7201 = vunpack.c.l.b16 %v6534
  %v7202 = vunpack.c.l.b16 %v6535
  %v7203 = vunpack.c.h.b16 %v6535
  %v7204 = vunpack.c.l.b16 %v6536
  %v7205 = vunpack.c.l.b16 %v6537
  %v7206 = vunpack.c.h.b16 %v6537
  %v7207 = vunpack.c.l.b16 %v6538
  %v7208 = vunpack.c.l.b16 %v6539
  %v7209 = vunpack.c.h.b16 %v6539
  %v7210 = vunpack.c.l.b16 %v6540
  %v7211 = vunpack.c.l.b16 %v6541
  %v7212 = vunpack.c.h.b16 %v6541
  %v7213 = vunpack.c.l.b16 %v6542
  %v7214 = vunpack.c.l.b16 %v6543
  %v7215 = vunpack.c.h.b16 %v6543
  %v7216 = vunpack.c.l.b16 %v6544
  %v7217 = vunpack.c.l.b16 %v6545
  %v7218 = vunpack.c.h.b16 %v6545
  %v7219 = vunpack.c.l.b16 %v6546
  %v7220 = vunpack.c.l.b16 %v6547
  %v7221 = vunpack.c.h.b16 %v6547
  %v7222 = vunpack.c.l.b16 %v6548
  %v7223 = vunpack.c.l.b16 %v6549
  %v7224 = vunpack.c.h.b16 %v6549
  %v7225 = vunpack.c.l.b16 %v6550
  %v7226 = vunpack.c.l.b16 %v6551
  %v7227 = vunpack.c.h.b16 %v6551
  %v7228 = vunpack.c.l.b16 %v6552
  %v7229 = vunpack.c.l.b16 %v6553
  %v7230 = vunpack.c.h.b16 %v6553
  %v7231 = vunpack.c.l.b16 %v6554
  %v7232 = vunpack.c.l.b16 %v6555
  %v7233 = vunpack.c.h.b16 %v6555
  %v7234 = vunpack.c.l.b16 %v6556
  %v7235 = vunpack.c.l.b16 %v6557
  %v7236 = vunpack.c.h.b16 %v6557
  %v7237 = vunpack.c.l.b16 %v6558
  %v7238 = vunpack.c.l.b16 %v6559
  %v7239 = vunpack.c.h.b16 %v6559
  %v7240 = vunpack.c.l.b16 %v6560
  %v7241 = vunpack.c.l.b16 %v6561
  %v7242 = vunpack.c.h.b16 %v6561
  %v7243 = vunpack.c.l.b16 %v6562
  %v7244 = vunpack.c.l.b16 %v6563
  %v7245 = vunpack.c.h.b16 %v6563
  %v7246 = vunpack.c.l.b16 %v6564
  %v7247 = vunpack.c.l.b16 %v6565
  %v7248 = vunpack.c.h.b16 %v6565
  %v7249 = vunpack.c.l.b16 %v6566
  %v7250 = vunpack.c.l.b16 %v6567
  %v7251 = vunpack.c.h.b16 %v6567
  %v7252 = vunpack.c.l.b16 %v6568
  %v7253 = vunpack.c.l.b16 %v6569
  %v7254 = vunpack.c.h.b16 %v6569
  %v7255 = vunpack.c.l.b16 %v6570
  %v7256 = vunpack.c.l.b16 %v6571
  %v7257 = vunpack.c.h.b16 %v6571
  %v7258 = vunpack.c.l.b16 %v6572
  %v7259 = vunpack.c.l.b16 %v6573
  %v7260 = vunpack.c.h.b16 %v6573
  %v7261 = vunpack.c.l.b16 %v6574
  %v7262 = vunpack.c.l.b16 %v6575
  %v7263 = vunpack.c.h.b16 %v6575
  %v7264 = vunpack.c.l.b16 %v6576
  %v7265 = vunpack.c.l.b16 %v6577
  %v7266 = vunpack.c.h.b16 %v6577
  %v7267 = vunpack.c.l.b16 %v6578
  %v7268 = vunpack.c.l.b16 %v6579
  %v7269 = vunpack.c.h.b16 %v6579
  %v7270 = vunpack.c.l.b16 %v6580
  %v7271 = vunpack.c.l.b16 %v6581
  %v7272 = vunpack.c.h.b16 %v6581
  %v7273 = vunpack.c.l.b16 %v6582
  %v7274 = vunpack.c.l.b16 %v6583
  %v7275 = vunpack.c.h.b16 %v6583
  %v7276 = vunpack.c.l.b16 %v6584
  %v7277 = vunpack.c.l.b16 %v6585
  %v7278 = vunpack.c.h.b16 %v6585
  %v7279 = vunpack.c.l.b16 %v6586
  %v7280 = vunpack.c.l.b16 %v6587
  %v7281 = vunpack.c.h.b16 %v6587
  %v7282 = vunpack.c.l.b16 %v6588
  %v7283 = vunpack.c.l.b16 %v6589
  %v7284 = vunpack.c.h.b16 %v6589
  %v7285 = vunpack.c.l.b16 %v6590
  %v7286 = vunpack.c.l.b16 %v6591
  %v7287 = vunpack.c.h.b16 %v6591
  %v7288 = vunpack.c.l.b16 %v6592
  %v7289 = vunpack.c.l.b16 %v6593
  %v7290 = vunpack.c.h.b16 %v6593
  %v7291 = vunpack.c.l.b16 %v6594
  %v7292 = vunpack.c.l.b16 %v6595
  %v7293 = vunpack.c.h.b16 %v6595
  %v7294 = vunpack.c.l.b16 %v6596
  %v7295 = vunpack.c.l.b16 %v6597
  %v7296 = vunpack.c.h.b16 %v6597
  %v7297 = vunpack.c.l.b16 %v6598
  %v7298 = vunpack.c.l.b16 %v6599
  %v7299 = vunpack.c.h.b16 %v6599
  %v7300 = vunpack.c.l.b16 %v6600
  %v7301 = vunpack.c.l.b16 %v6601
  %v7302 = vunpack.c.h.b16 %v6601
  %v7303 = vunpack.c.l.b16 %v6602
  %v7304 = vunpack.c.l.b16 %v6603
  %v7305 = vunpack.c.h.b16 %v6603
  %v7306 = vunpack.c.l.b16 %v6604
  %v7307 = vunpack.c.l.b16 %v6605
  %v7308 = vunpack.c.h.b16 %v6605
  %v7309 = vunpack.c.l.b16 %v6606
  %v7310 = vunpack.c.l.b16 %v6607
  %v7311 = vunpack.c.h.b16 %v6607
  %v7312 = vunpack.c.l.b16 %v6608
  %v7313 = vunpack.c.l.b16 %v6609
  %v7314 = vunpack.c.h.b16 %v6609
  %v7315 = vunpack.c.l.b16 %v6610
  %v7316 = vunpack.c.l.b16 %v6611
  %v7317 = vunpack.c.h.b16 %v6611
  %v7318 = vunpack.c.l.b16 %v6612
  %v7319 = vunpack.c.l.b16 %v6613
  %v7320 = vunpack.c.h.b16 %v6613
  %v7321 = vunpack.c.l.b16 %v6614
  %v7322 = vunpack.c.l.b16 %v6615
  %v7323 = vunpack.c.h.b16 %v6615
  %v7324 = vunpack.c.l.b16 %v6616
  %v7325 = vunpack.c.l.b16 %v6617
  %v7326 = vunpack.c.h.b16 %v6617
  %v7327 = vunpack.c.l.b16 %v6618
  %v7328 = vunpack.c.l.b16 %v6619
  %v7329 = vunpack.c.h.b16 %v6619
  %v7330 = vunpack.c.l.b16 %v6620
  %v7331 = vunpack.c.l.b16 %v6621
  %v7332 = vunpack.c.h.b16 %v6621
  %v7333 = vunpack.c.l.b16 %v6622
  %v7334 = vunpack.c.l.b16 %v6623
  %v7335 = vunpack.c.h.b16 %v6623
  %v7336 = vunpack.c.l.b16 %v6624
  %v7337 = vunpack.c.l.b16 %v6625
  %v7338 = vunpack.c.h.b16 %v6625
  %v7339 = vunpack.c.l.b16 %v6626
  %v7340 = vunpack.c.l.b16 %v6627
  %v7341 = vunpack.c.h.b16 %v6627
  %v7342 = vunpack.c.l.b16 %v6628
  %v7343 = vunpack.c.l.b16 %v6629
  %v7344 = vunpack.c.h.b16 %v6629
  %v7345 = vunpack.c.l.b16 %v6630
  %v7346 = vunpack.c.l.b16 %v6631
  %v7347 = vunpack.c.h.b16 %v6631
  %v7348 = vunpack.c.l.b16 %v6632
  %v7349 = vunpack.c.l.b16 %v6633
  %v7350 = vunpack.c.h.b16 %v6633
  %v7351 = vunpack.c.l.b16 %v6634
  %v7352 = vunpack.c.l.b16 %v6635
  %v7353 = vunpack.c.h.b16 %v6635
  %v7354 = vunpack.c.l.b16 %v6636
  %v7355 = vunpack.c.l.b16 %v6637
  %v7356 = vunpack.c.h.b16 %v6637
  %v7357 = vunpack.c.l.b16 %v6638
  %v7358 = vunpack.c.l.b16 %v6639
  %v7359 = vunpack.c.h.b16 %v6639
  %v7360 = vunpack.c.l.b16 %v6640
  %v7361 = vunpack.c.l.b16 %v6641
  %v7362 = vunpack.c.h.b16 %v6641
  %v7363 = vunpack.c.l.b16 %v6642
  %v7364 = vunpack.c.l.b16 %v6643
  %v7365 = vunpack.c.h.b16 %v6643
  %v7366 = vunpack.c.l.b16 %v6644
  %v7367 = vunpack.c.l.b16 %v6645
  %v7368 = vunpack.c.h.b16 %v6645
  %v7369 = vunpack.c.l.b16 %v6646
  %v7370 = vunpack.c.l.b16 %v6647
  %v7371 = vunpack.c.h.b16 %v6647
  %v7372 = vunpack.c.l.b16 %v6648
  %v7373 = vunpack.c.l.b16 %v6649
  %v7374 = vunpack.c.h.b16 %v6649
  %v7375 = vunpack.c.l.b16 %v6650
  %v7376 = vunpack.c.l.b16 %v6651
  %v7377 = vunpack.c.h.b16 %v6651
  %v7378 = vunpack.c.l.b16 %v6652
  %v7379 = vunpack.c.l.b16 %v6653
  %v7380 = vunpack.c.h.b16 %v6653
  %v7381 = vunpack.c.l.b16 %v6654
  %v7382 = vunpack.c.l.b16 %v6655
  %v7383 = vunpack.c.h.b16 %v6655
  %v7384 = vunpack.c.l.b16 %v6656
  %v7385 = vunpack.c.l.b16 %v6657
  %v7386 = vunpack.c.h.b16 %v6657
  %v7387 = vunpack.c.l.b16 %v6658
  %v7388 = vunpack.c.l.b16 %v6659
  %v7389 = vunpack.c.h.b16 %v6659
  %v7390 = vunpack.c.l.b16 %v6660
  %v7391 = vunpack.c.l.b16 %v6661
  %v7392 = vunpack.c.h.b16 %v6661
  %v7393 = vunpack.c.l.b16 %v6662
  %v7394 = vunpack.c.l.b16 %v6663
  %v7395 = vunpack.c.h.b16 %v6663
  %v7396 = vunpack.c.l.b16 %v6664
  %v7397 = vunpack.c.l.b16 %v6665
  %v7398 = vunpack.c.h.b16 %v6665
  %v7399 = vunpack.c.l.b16 %v6666
  %v7400 = vunpack.c.l.b16 %v6667
  %v7401 = vunpack.c.h.b16 %v6667
  %v7402 = vunpack.c.l.b16 %v6668
  %v7403 = vunpack.c.l.b16 %v6669
  %v7404 = vunpack.c.h.b16 %v6669
  %v7405 = vunpack.c.l.b16 %v6670
  %v7406 = vunpack.c.l.b16 %v6671
  %v7407 = vunpack.c.h.b16 %v6671
  %v7408 = vunpack.c.l.b16 %v6672
  %v7409 = vunpack.c.l.b16 %v6673
  %v7410 = vunpack.c.h.b16 %v6673
  %v7411 = vunpack.c.l.b16 %v6674
  %v7412 = vunpack.c.l.b16 %v6675
  %v7413 = vunpack.c.h.b16 %v6675
  %v7414 = vunpack.c.l.b16 %v6676
  %v7415 = vunpack.c.l.b16 %v6677
  %v7416 = vunpack.c.h.b16 %v6677
  %v7417 = vunpack.c.l.b16 %v6678
  %v7418 = vunpack.c.l.b16 %v6679
  %v7419 = vunpack.c.h.b16 %v6679
  %v7420 = vunpack.c.l.b16 %v6680
  %v7421 = vunpack.c.l.b16 %v6681
  %v7422 = vunpack.c.h.b16 %v6681
  %v7423 = vunpack.c.l.b16 %v6682
  %v7424 = vunpack.c.l.b16 %v6683
  %v7425 = vunpack.c.h.b16 %v6683
  %v7426 = vunpack.c.l.b16 %v6684
  %v7427 = vunpack.c.l.b16 %v6685
  %v7428 = vunpack.c.h.b16 %v6685
  %v7429 = vunpack.c.l.b16 %v6686
  %v7430 = vunpack.c.l.b16 %v6687
  %v7431 = vunpack.c.h.b16 %v6687
  %v7432 = vunpack.c.l.b16 %v6688
  %v7433 = vunpack.c.l.b16 %v6689
  %v7434 = vunpack.c.h.b16 %v6689
  %v7435 = vunpack.c.l.b16 %v6690
  %v7436 = vunpack.c.l.b16 %v6691
  %v7437 = vunpack.c.h.b16 %v6691
  %v7438 = vunpack.c.l.b16 %v6692
  %v7439 = vunpack.c.l.b16 %v6693
  %v7440 = vunpack.c.h.b16 %v6693
  %v7441 = vunpack.c.l.b16 %v6694
  %v7442 = vunpack.c.l.b16 %v6695
  %v7443 = vunpack.c.h.b16 %v6695
  %v7444 = vunpack.c.l.b16 %v6696
  %v7445 = vunpack.c.l.b16 %v6697
  %v7446 = vunpack.c.h.b16 %v6697
  %v7447 = vunpack.c.l.b16 %v6698
  %v7448 = vunpack.c.l.b16 %v6699
  %v7449 = vunpack.c.h.b16 %v6699
  %v7450 = vunpack.c.l.b16 %v6700
  %v7451 = vunpack.c.l.b16 %v6701
  %v7452 = vunpack.c.h.b16 %v6701
  %v7453 = vunpack.c.l.b16 %v6702
  %v7454 = vunpack.c.l.b16 %v6703
  %v7455 = vunpack.c.h.b16 %v6703
  %v7456 = vunpack.c.l.b16 %v6704
  %v7457 = vunpack.c.l.b16 %v6705
  %v7458 = vunpack.c.h.b16 %v6705
  %v7459 = vunpack.c.l.b16 %v6706
  %v7460 = vunpack.c.l.b16 %v6707
  %v7461 = vunpack.c.h.b16 %v6707
  %v7462 = vunpack.c.l.b16 %v6708
  %v7463 = vunpack.c.l.b16 %v6709
  %v7464 = vunpack.c.h.b16 %v6709
  %v7465 = vunpack.c.l.b16 %v6710
  %v7466 = vunpack.c.l.b16 %v6711
  %v7467 = vunpack.c.h.b16 %v6711
  %v7468 = vunpack.c.l.b16 %v6712
  %v7469 = vunpack.c.l.b16 %v6713
  %v7470 = vunpack.c.h.b16 %v6713
  %v7471 = vunpack.c.l.b16 %v6714
  %v7472 = vunpack.c.l.b16 %v6715
  %v7473 = vunpack.c.h.b16 %v6715
  %v7474 = vunpack.c.l.b16 %v6716
  %v7475 = vunpack.c.l.b16 %v6717
  %v7476 = vunpack.c.h.b16 %v6717
  %v7477 = vunpack.c.l.b16 %v6718
  %v7478 = vunpack.c.l.b16 %v6719
  %v7479 = vunpack.c.h.b16 %v6719
  %v7480 = vunpack.c.l.b16 %v6720
  %v7481 = vunpack.c.l.b16 %v6721
  %v7482 = vunpack.c.h.b16 %v6721
  %v7483 = vunpack.c.l.b16 %v6722
  %v7484 = vunpack.c.l.b16 %v6723
  %v7485 = vunpack.c.h.b16 %v6723
  %v7486 = vunpack.c.l.b16 %v6724
  %v7487 = vunpack.c.l.b16 %v6725
  %v7488 = vunpack.c.h.b16 %v6725
  %v7489 = vunpack.c.l.b16 %v6726
  %v7490 = vunpack.c.l.b16 %v6727
  %v7491 = vunpack.c.h.b16 %v6727
  %v7492 = vunpack.c.l.b16 %v6728
  %v7493 = vunpack.c.l.b16 %v6729
  %v7494 = vunpack.c.h.b16 %v6729
  %v7495 = vunpack.c.l.b16 %v6730
  %v7496 = vunpack.c.l.b16 %v6731
  %v7497 = vunpack.c.h.b16 %v6731
  %v7498 = vunpack.c.l.b16 %v6732
  %v7499 = vunpack.c.l.b16 %v6733
  %v7500 = vunpack.c.h.b16 %v6733
  %v7501 = vunpack.c.l.b16 %v6734
  %v7502 = vunpack.c.l.b16 %v6735
  %v7503 = vunpack.c.h.b16 %v6735
  %v7504 = vunpack.c.l.b16 %v6736
  %v7505 = vunpack.c.l.b16 %v6737
  %v7506 = vunpack.c.h.b16 %v6737
  %v7507 = vunpack.c.l.b16 %v6738
  %v7508 = vunpack.c.l.b16 %v6739
  %v7509 = vunpack.c.h.b16 %v6739
  %v7510 = vunpack.c.l.b16 %v6740
  %v7511 = vunpack.c.l.b16 %v6741
  %v7512 = vunpack.c.h.b16 %v6741
  %v7513 = vunpack.c.l.b16 %v6742
  %v7514 = vunpack.c.l.b16 %v6743
  %v7515 = vunpack.c.h.b16 %v6743
  %v7516 = vunpack.c.l.b16 %v6744
  %v7517 = vunpack.c.l.b16 %v6745
  %v7518 = vunpack.c.h.b16 %v6745
  %v7519 = vunpack.c.l.b16 %v6746
  %v7520 = vunpack.c.l.b16 %v6747
  %v7521 = vunpack.c.h.b16 %v6747
  %v7522 = vunpack.c.l.b16 %v6748
  %v7523 = vunpack.c.l.b16 %v6749
  %v7524 = vunpack.c.h.b16 %v6749
  %v7525 = vunpack.c.l.b16 %v6750
  %v7526 = vunpack.c.l.b16 %v6751
  %v7527 = vunpack.c.h.b16 %v6751
  %v7528 = vunpack.c.l.b16 %v6752
  %v7529 = vunpack.c.l.b16 %v6753
  %v7530 = vunpack.c.h.b16 %v6753
  %v7531 = vunpack.c.l.b16 %v6754
  %v7532 = vunpack.c.l.b16 %v6755
  %v7533 = vunpack.c.h.b16 %v6755
  %v7534 = vunpack.c.l.b16 %v6756
  %v7535 = vunpack.c.l.b16 %v6757
  %v7536 = vunpack.c.h.b16 %v6757
  %v7537 = vunpack.c.l.b16 %v6758
  %v7538 = vunpack.c.l.b16 %v6759
  %v7539 = vunpack.c.h.b16 %v6759
  %v7540 = vunpack.c.l.b16 %v6760
  %v7541 = vpack.c.b16 %v7076, %v7073
  %v7542 = vpack.c.b16 %v7077, %v7074
  %v7543 = vpack.c.b16 %v7078, %v7075
  %v7544 = vpack.c.b16 %v7082, %v7079
  %v7545 = vpack.c.b16 %v7083, %v7080
  %v7546 = vpack.c.b16 %v7084, %v7081
  %v7547 = vpack.c.b16 %v7088, %v7085
  %v7548 = vpack.c.b16 %v7089, %v7086
  %v7549 = vpack.c.b16 %v7090, %v7087
  %v7550 = vpack.c.b16 %v7094, %v7091
  %v7551 = vpack.c.b16 %v7095, %v7092
  %v7552 = vpack.c.b16 %v7096, %v7093
  %v7553 = vpack.c.b16 %v7100, %v7097
  %v7554 = vpack.c.b16 %v7101, %v7098
  %v7555 = vpack.c.b16 %v7102, %v7099
  %v7556 = vpack.c.b16 %v7106, %v7103
  %v7557 = vpack.c.b16 %v7107, %v7104
  %v7558 = vpack.c.b16 %v7108, %v7105
  %v7559 = vpack.c.b16 %v7112, %v7109
  %v7560 = vpack.c.b16 %v7113, %v7110
  %v7561 = vpack.c.b16 %v7114, %v7111
  %v7562 = vpack.c.b16 %v7118, %v7115
  %v7563 = vpack.c.b16 %v7119, %v7116
  %v7564 = vpack.c.b16 %v7120, %v7117
  %v7565 = vpack.c.b16 %v7124, %v7121
  %v7566 = vpack.c.b16 %v7125, %v7122
  %v7567 = vpack.c.b16 %v7126, %v7123
  %v7568 = vpack.c.b16 %v7130, %v7127
  %v7569 = vpack.c.b16 %v7131, %v7128
  %v7570 = vpack.c.b16 %v7132, %v7129
  %v7571 = vpack.c.b16 %v7136, %v7133
  %v7572 = vpack.c.b16 %v7137, %v7134
  %v7573 = vpack.c.b16 %v7138, %v7135
  %v7574 = vpack.c.b16 %v7142, %v7139
  %v7575 = vpack.c.b16 %v7143, %v7140
  %v7576 = vpack.c.b16 %v7144, %v7141
  %v7577 = vpack.c.b16 %v7148, %v7145
  %v7578 = vpack.c.b16 %v7149, %v7146
  %v7579 = vpack.c.b16 %v7150, %v7147
  %v7580 = vpack.c.b16 %v7154, %v7151
  %v7581 = vpack.c.b16 %v7155, %v7152
  %v7582 = vpack.c.b16 %v7156, %v7153
  %v7583 = vpack.c.b16 %v7160, %v7157
  %v7584 = vpack.c.b16 %v7161, %v7158
  %v7585 = vpack.c.b16 %v7162, %v7159
  %v7586 = vpack.c.b16 %v7166, %v7163
  %v7587 = vpack.c.b16 %v7167, %v7164
  %v7588 = vpack.c.b16 %v7168, %v7165
  %v7589 = vpack.c.b16 %v7172, %v7169
  %v7590 = vpack.c.b16 %v7173, %v7170
  %v7591 = vpack.c.b16 %v7174, %v7171
  %v7592 = vpack.c.b16 %v7178, %v7175
  %v7593 = vpack.c.b16 %v7179, %v7176
  %v7594 = vpack.c.b16 %v7180, %v7177
  %v7595 = vpack.c.b16 %v7184, %v7181
  %v7596 = vpack.c.b16 %v7185, %v7182
  %v7597 = vpack.c.b16 %v7186, %v7183
  %v7598 = vpack.c.b16 %v7190, %v7187
  %v7599 = vpack.c.b16 %v7191, %v7188
  %v7600 = vpack.c.b16 %v7192, %v7189
  %v7601 = vpack.c.b16 %v7196, %v7193
  %v7602 = vpack.c.b16 %v7197, %v7194
  %v7603 = vpack.c.b16 %v7198, %v7195
  %v7604 = vpack.c.b16 %v7202, %v7199
  %v7605 = vpack.c.b16 %v7203, %v7200
  %v7606 = vpack.c.b16 %v7204, %v7201
  %v7607 = vpack.c.b16 %v7208, %v7205
  %v7608 = vpack.c.b16 %v7209, %v7206
  %v7609 = vpack.c.b16 %v7210, %v7207
  %v7610 = vpack.c.b16 %v7214, %v7211
  %v7611 = vpack.c.b16 %v7215, %v7212
  %v7612 = vpack.c.b16 %v7216, %v7213
  %v7613 = vpack.c.b16 %v7220, %v7217
  %v7614 = vpack.c.b16 %v7221, %v7218
  %v7615 = vpack.c.b16 %v7222, %v7219
  %v7616 = vpack.c.b16 %v7226, %v7223
  %v7617 = vpack.c.b16 %v7227, %v7224
  %v7618 = vpack.c.b16 %v7228, %v7225
  %v7619 = vpack.c.b16 %v7232, %v7229
  %v7620 = vpack.c.b16 %v7233, %v7230
  %v7621 = vpack.c.b16 %v7234, %v7231
  %v7622 = vpack.c.b16 %v7238, %v7235
  %v7623 = vpack.c.b16 %v7239, %v7236
  %v7624 = vpack.c.b16 %v7240, %v7237
  %v7625 = vpack.c.b16 %v7244, %v7241
  %v7626 = vpack.c.b16 %v7245, %v7242
  %v7627 = vpack.c.b16 %v7246, %v7243
  %v7628 = vpack.c.b16 %v7250, %v7247
  %v7629 = vpack.c.b16 %v7251, %v7248
  %v7630 = vpack.c.b16 %v7252, %v7249
  %v7631 = vpack.c.b16 %v7256, %v7253
  %v7632 = vpack.c.b16 %v7257, %v7254
  %v7633 = vpack.c.b16 %v7258, %v7255
  %v7634 = vpack.c.b16 %v7262, %v7259
  %v7635 = vpack.c.b16 %v7263, %v7260
  %v7636 = vpack.c.b16 %v7264, %v7261
  %v7637 = vpack.c.b16 %v7268, %v7265
  %v7638 = vpack.c.b16 %v7269, %v7266
  %v7639 = vpack.c.b16 %v7270, %v7267
  %v7640 = vpack.c.b16 %v7274, %v7271
  %v7641 = vpack.c.b16 %v7275, %v7272
  %v7642 = vpack.c.b16 %v7276, %v7273
  %v7643 = vpack.c.b16 %v7280, %v7277
  %v7644 = vpack.c.b16 %v7281, %v7278
  %v7645 = vpack.c.b16 %v7282, %v7279
  %v7646 = vpack.c.b16 %v7286, %v7283
  %v7647 = vpack.c.b16 %v7287, %v7284
  %v7648 = vpack.c.b16 %v7288, %v7285
  %v7649 = vpack.c.b16 %v7292, %v7289
  %v7650 = vpack.c.b16 %v7293, %v7290
  %v7651 = vpack.c.b16 %v7294, %v7291
  %v7652 = vpack.c.b16 %v7298, %v7295
  %v7653 = vpack.c.b16 %v7299, %v7296
  %v7654 = vpack.c.b16 %v7300, %v7297
  %v7655 = vpack.c.b16 %v7304, %v7301
  %v7656 = vpack.c.b16 %v7305, %v7302
  %v7657 = vpack.c.b16 %v7306, %v7303
  %v7658 = vpack.c.b16 %v7310, %v7307
  %v7659 = vpack.c.b16 %v7311, %v7308
  %v7660 = vpack.c.b16 %v7312, %v7309
  %v7661 = vpack.c.b16 %v7316, %v7313
  %v7662 = vpack.c.b16 %v7317, %v7314
  %v7663 = vpack.c.b16 %v7318, %v7315
  %v7664 = vpack.c.b16 %v7322, %v7319
  %v7665 = vpack.c.b16 %v7323, %v7320
  %v7666 = vpack.c.b16 %v7324, %v7321
  %v7667 = vpack.c.b16 %v7328, %v7325
  %v7668 = vpack.c.b16 %v7329, %v7326
  %v7669 = vpack.c.b16 %v7330, %v7327
  %v7670 = vpack.c.b16 %v7334, %v7331
  %v7671 = vpack.c.b16 %v7335, %v7332
  %v7672 = vpack.c.b16 %v7336, %v7333
  %v7673 = vpack.c.b16 %v7340, %v7337
  %v7674 = vpack.c.b16 %v7341, %v7338
  %v7675 = vpack.c.b16 %v7342, %v7339
  %v7676 = vpack.c.b16 %v7346, %v7343
  %v7677 = vpack.c.b16 %v7347, %v7344
  %v7678 = vpack.c.b16 %v7348, %v7345
  %v7679 = vpack.c.b16 %v7352, %v7349
  %v7680 = vpack.c.b16 %v7353, %v7350
  %v7681 = vpack.c.b16 %v7354, %v7351
  %v7682 = vpack.c.b16 %v7358, %v7355
  %v7683 = vpack.c.b16 %v7359, %v7356
  %v7684 = vpack.c.b16 %v7360, %v7357
  %v7685 = vpack.c.b16 %v7364, %v7361
  %v7686 = vpack.c.b16 %v7365, %v7362
  %v7687 = vpack.c.b16 %v7366, %v7363
  %v7688 = vpack.c.b16 %v7370, %v7367
  %v7689 = vpack.c.b16 %v7371, %v7368
  %v7690 = vpack.c.b16 %v7372, %v7369
  %v7691 = vpack.c.b16 %v7376, %v7373
  %v7692 = vpack.c.b16 %v7377, %v7374
  %v7693 = vpack.c.b16 %v7378, %v7375
  %v7694 = vpack.c.b16 %v7382, %v7379
  %v7695 = vpack.c.b16 %v7383, %v7380
  %v7696 = vpack.c.b16 %v7384, %v7381
  %v7697 = vpack.c.b16 %v7388, %v7385
  %v7698 = vpack.c.b16 %v7389, %v7386
  %v7699 = vpack.c.b16 %v7390, %v7387
  %v7700 = vpack.c.b16 %v7394, %v7391
  %v7701 = vpack.c.b16 %v7395, %v7392
  %v7702 = vpack.c.b16 %v7396, %v7393
  %v7703 = vpack.c.b16 %v7400, %v7397
  %v7704 = vpack.c.b16 %v7401, %v7398
  %v7705 = vpack.c.b16 %v7402, %v7399
  %v7706 = vpack.c.b16 %v7406, %v7403
  %v7707 = vpack.c.b16 %v7407, %v7404
  %v7708 = vpack.c.b16 %v7408, %v7405
  %v7709 = vpack.c.b16 %v7412, %v7409
  %v7710 = vpack.c.b16 %v7413, %v7410
  %v7711 = vpack.c.b16 %v7414, %v7411
  %v7712 = vpack.c.b16 %v7418, %v7415
  %v7713 = vpack.c.b16 %v7419, %v7416
  %v7714 = vpack.c.b16 %v7420, %v7417
  %v7715 = vpack.c.b16 %v7424, %v7421
  %v7716 = vpack.c.b16 %v7425, %v7422
  %v7717 = vpack.c.b16 %v7426, %v7423
  %v7718 = vpack.c.b16 %v7430, %v7427
  %v7719 = vpack.c.b16 %v7431, %v7428
  %v7720 = vpack.c.b16 %v7432, %v7429
  %v7721 = vpack.c.b16 %v7436, %v7433
  %v7722 = vpack.c.b16 %v7437, %v7434
  %v7723 = vpack.c.b16 %v7438, %v7435
  %v7724 = vpack.c.b16 %v7442, %v7439
  %v7725 = vpack.c.b16 %v7443, %v7440
  %v7726 = vpack.c.b16 %v7444, %v7441
  %v7727 = vpack.c.b16 %v7448, %v7445
  %v7728 = vpack.c.b16 %v7449, %v7446
  %v7729 = vpack.c.b16 %v7450, %v7447
  %v7730 = vpack.c.b16 %v7454, %v7451
  %v7731 = vpack.c.b16 %v7455, %v7452
  %v7732 = vpack.c.b16 %v7456, %v7453
  %v7733 = vpack.c.b16 %v7460, %v7457
  %v7734 = vpack.c.b16 %v7461, %v7458
  %v7735 = vpack.c.b16 %v7462, %v7459
  %v7736 = vpack.c.b16 %v7466, %v7463
  %v7737 = vpack.c.b16 %v7467, %v7464
  %v7738 = vpack.c.b16 %v7468, %v7465
  %v7739 = vpack.c.b16 %v7472, %v7469
  %v7740 = vpack.c.b16 %v7473, %v7470
  %v7741 = vpack.c.b16 %v7474, %v7471
  %v7742 = vpack.c.b16 %v7478, %v7475
  %v7743 = vpack.c.b16 %v7479, %v7476
  %v7744 = vpack.c.b16 %v7480, %v7477
  %v7745 = vpack.c.b16 %v7484, %v7481
  %v7746 = vpack.c.b16 %v7485, %v7482
  %v7747 = vpack.c.b16 %v7486, %v7483
  %v7748 = vpack.c.b16 %v7490, %v7487
  %v7749 = vpack.c.b16 %v7491, %v7488
  %v7750 = vpack.c.b16 %v7492, %v7489
  %v7751 = vpack.c.b16 %v7496, %v7493
  %v7752 = vpack.c.b16 %v7497, %v7494
  %v7753 = vpack.c.b16 %v7498, %v7495
  %v7754 = vpack.c.b16 %v7502, %v7499
  %v7755 = vpack.c.b16 %v7503, %v7500
  %v7756 = vpack.c.b16 %v7504, %v7501
  %v7757 = vpack.c.b16 %v7508, %v7505
  %v7758 = vpack.c.b16 %v7509, %v7506
  %v7759 = vpack.c.b16 %v7510, %v7507
  %v7760 = vpack.c.b16 %v7514, %v7511
  %v7761 = vpack.c.b16 %v7515, %v7512
  %v7762 = vpack.c.b16 %v7516, %v7513
  %v7763 = vpack.c.b16 %v7520, %v7517
  %v7764 = vpack.c.b16 %v7521, %v7518
  %v7765 = vpack.c.b16 %v7522, %v7519
  %v7766 = vpack.c.b16 %v7526, %v7523
  %v7767 = vpack.c.b16 %v7527, %v7524
  %v7768 = vpack.c.b16 %v7528, %v7525
  %v7769 = vpack.c.b16 %v7532, %v7529
  %v7770 = vpack.c.b16 %v7533, %v7530
  %v7771 = vpack.c.b16 %v7534, %v7531
  %v7772 = vpack.c.b16 %v7538, %v7535
  %v7773 = vpack.c.b16 %v7539, %v7536
  %v7774 = vpack.c.b16 %v7540, %v7537
  %8009 = vmatprep.subr.bf16.mxu0 %v7542
  %8010 = vmatpush1.bf16.msra.mxu0 %v7541
  %8011 = vmatprep.subr.bf16.mxu0 %v7545
  %8012 = vmatpush1.bf16.msra.mxu0 %v7544
  %8013 = vmatprep.subr.bf16.mxu0 %v7548
  %8014 = vmatpush1.bf16.msra.mxu0 %v7547
  %8015 = vmatprep.subr.bf16.mxu0 %v7551
  %8016 = vmatpush1.bf16.msra.mxu0 %v7550
  %8017 = vmatprep.subr.bf16.mxu0 %v7554
  %8018 = vmatpush1.bf16.msra.mxu0 %v7553
  %8019 = vmatprep.subr.bf16.mxu0 %v7557
  %8020 = vmatpush1.bf16.msra.mxu0 %v7556
  %8021 = vmatprep.subr.bf16.mxu0 %v7560
  %8022 = vmatpush1.bf16.msra.mxu0 %v7559
  %8023 = vmatprep.subr.bf16.mxu0 %v7563
  %8024 = vmatpush1.bf16.msra.mxu0 %v7562
  %8025 = vmatprep.subr.bf16.mxu0 %v7566
  %8026 = vmatpush1.bf16.msra.mxu0 %v7565
  %8027 = vmatprep.subr.bf16.mxu0 %v7569
  %8028 = vmatpush1.bf16.msra.mxu0 %v7568
  %8029 = vmatprep.subr.bf16.mxu0 %v7572
  %8030 = vmatpush1.bf16.msra.mxu0 %v7571
  %8031 = vmatprep.subr.bf16.mxu0 %v7575
  %8032 = vmatpush1.bf16.msra.mxu0 %v7574
  %8033 = vmatprep.subr.bf16.mxu0 %v7578
  %8034 = vmatpush1.bf16.msra.mxu0 %v7577
  %8035 = vmatprep.subr.bf16.mxu0 %v7581
  %8036 = vmatpush1.bf16.msra.mxu0 %v7580
  %8037 = vmatprep.subr.bf16.mxu0 %v7584
  %8038 = vmatpush1.bf16.msra.mxu0 %v7583
  %8039 = vmatprep.subr.bf16.mxu0 %v7587
  %8040 = vmatpush1.bf16.msra.mxu0 %v7586
  %8041 = vmatprep.mubr.bf16.mxu0 %v3735
  %8042 = vmatmul.mubr.bf16.gmra.mrb[0].mxu0 %v3734
  %v8043 = vpop.f32.mrb[0].mxu0
  %v8044 = vadd.f32 0.0, %v8043
  %v8045 = vpop.f32.mrb[0].mxu0
  %v8046 = vadd.f32 0.0, %v8045
  %v8047 = vpop.f32.mrb[0].mxu0
  %v8048 = vadd.f32 0.0, %v8047
  %v8049 = vpop.f32.mrb[0].mxu0
  %v8050 = vadd.f32 0.0, %v8049
  %8051 = vmatprep.mubr.bf16.mxu0 %v3745
  %8052 = vmatmul.mubr.bf16.gmra.mrb[0].mxu0 %v3744
  %v8053 = vpop.f32.mrb[0].mxu0
  %v8054 = vadd.f32 0.0, %v8053
  %v8055 = vpop.f32.mrb[0].mxu0
  %v8056 = vadd.f32 0.0, %v8055
  %v8057 = vpop.f32.mrb[0].mxu0
  %v8058 = vadd.f32 0.0, %v8057
  %v8059 = vpop.f32.mrb[0].mxu0
  %v8060 = vadd.f32 0.0, %v8059
  %8061 = vmatprep.mubr.bf16.mxu0 %v3755
  %8062 = vmatmul.mubr.bf16.gmra.mrb[0].mxu0 %v3754
  %v8063 = vpop.f32.mrb[0].mxu0
  %v8064 = vadd.f32 0.0, %v8063
  %v8065 = vpop.f32.mrb[0].mxu0
  %v8066 = vadd.f32 0.0, %v8065
  %v8067 = vpop.f32.mrb[0].mxu0
  %v8068 = vadd.f32 0.0, %v8067
  %v8069 = vpop.f32.mrb[0].mxu0
  %v8070 = vadd.f32 0.0, %v8069
  %8071 = vmatprep.mubr.bf16.mxu0 %v3765
  %8072 = vmatmul.mubr.bf16.gmra.mrb[0].mxu0 %v3764
  %v8073 = vpop.f32.mrb[0].mxu0
  %v8074 = vadd.f32 0.0, %v8073
  %v8075 = vpop.f32.mrb[0].mxu0
  %v8076 = vadd.f32 0.0, %v8075
  %v8077 = vpop.f32.mrb[0].mxu0
  %v8078 = vadd.f32 0.0, %v8077
  %v8079 = vpop.f32.mrb[0].mxu0
  %v8080 = vadd.f32 0.0, %v8079
  %8081 = vmatprep.mubr.bf16.mxu0 %v3775
  %8082 = vmatmul.mubr.bf16.gmra.mrb[0].mxu0 %v3774
  %v8083 = vpop.f32.mrb[0].mxu0
  %v8084 = vadd.f32 0.0, %v8083
  %v8085 = vpop.f32.mrb[0].mxu0
  %v8086 = vadd.f32 0.0, %v8085
  %v8087 = vpop.f32.mrb[0].mxu0
  %v8088 = vadd.f32 0.0, %v8087
  %v8089 = vpop.f32.mrb[0].mxu0
  %v8090 = vadd.f32 0.0, %v8089
  %8091 = vmatprep.mubr.bf16.mxu0 %v3785
  %8092 = vmatmul.mubr.bf16.gmra.mrb[0].mxu0 %v3784
  %v8093 = vpop.f32.mrb[0].mxu0
  %v8094 = vadd.f32 0.0, %v8093
  %v8095 = vpop.f32.mrb[0].mxu0
  %v8096 = vadd.f32 0.0, %v8095
  %v8097 = vpop.f32.mrb[0].mxu0
  %v8098 = vadd.f32 0.0, %v8097
  %v8099 = vpop.f32.mrb[0].mxu0
  %v8100 = vadd.f32 0.0, %v8099
  %8101 = vmatprep.mubr.bf16.mxu0 %v3795
  %8102 = vmatmul.mubr.bf16.gmra.mrb[0].mxu0 %v3794
  %v8103 = vpop.f32.mrb[0].mxu0
  %v8104 = vadd.f32 0.0, %v8103
  %v8105 = vpop.f32.mrb[0].mxu0
  %v8106 = vadd.f32 0.0, %v8105
  %v8107 = vpop.f32.mrb[0].mxu0
  %v8108 = vadd.f32 0.0, %v8107
  %v8109 = vpop.f32.mrb[0].mxu0
  %v8110 = vadd.f32 0.0, %v8109
  %8111 = vmatprep.mubr.bf16.mxu0 %v3805
  %8112 = vmatmul.mubr.bf16.gmra.mrb[0].mxu0 %v3804
  %v8113 = vpop.f32.mrb[0].mxu0
  %v8114 = vadd.f32 0.0, %v8113
  %v8115 = vpop.f32.mrb[0].mxu0
  %v8116 = vadd.f32 0.0, %v8115
  %v8117 = vpop.f32.mrb[0].mxu0
  %v8118 = vadd.f32 0.0, %v8117
  %v8119 = vpop.f32.mrb[0].mxu0
  %v8120 = vadd.f32 0.0, %v8119
  %8121 = vdwg.mxu0
  %8122 = vmatprep.subr.bf16.mxu0 %v7590
  %8123 = vmatpush1.bf16.msra.mxu0 %v7589
  %8124 = vmatprep.subr.bf16.mxu0 %v7593
  %8125 = vmatpush1.bf16.msra.mxu0 %v7592
  %8126 = vmatprep.subr.bf16.mxu0 %v7596
  %8127 = vmatpush1.bf16.msra.mxu0 %v7595
  %8128 = vmatprep.subr.bf16.mxu0 %v7599
  %8129 = vmatpush1.bf16.msra.mxu0 %v7598
  %8130 = vmatprep.subr.bf16.mxu0 %v7602
  %8131 = vmatpush1.bf16.msra.mxu0 %v7601
  %8132 = vmatprep.subr.bf16.mxu0 %v7605
  %8133 = vmatpush1.bf16.msra.mxu0 %v7604
  %8134 = vmatprep.subr.bf16.mxu0 %v7608
  %8135 = vmatpush1.bf16.msra.mxu0 %v7607
  %8136 = vmatprep.subr.bf16.mxu0 %v7611
  %8137 = vmatpush1.bf16.msra.mxu0 %v7610
  %8138 = vmatprep.subr.bf16.mxu0 %v7614
  %8139 = vmatpush1.bf16.msra.mxu0 %v7613
  %8140 = vmatprep.subr.bf16.mxu0 %v7617
  %8141 = vmatpush1.bf16.msra.mxu0 %v7616
  %8142 = vmatprep.subr.bf16.mxu0 %v7620
  %8143 = vmatpush1.bf16.msra.mxu0 %v7619
  %8144 = vmatprep.subr.bf16.mxu0 %v7623
  %8145 = vmatpush1.bf16.msra.mxu0 %v7622
  %8146 = vmatprep.subr.bf16.mxu0 %v7626
  %8147 = vmatpush1.bf16.msra.mxu0 %v7625
  %8148 = vmatprep.subr.bf16.mxu0 %v7629
  %8149 = vmatpush1.bf16.msra.mxu0 %v7628
  %8150 = vmatprep.subr.bf16.mxu0 %v7632
  %8151 = vmatpush1.bf16.msra.mxu0 %v7631
  %8152 = vmatprep.subr.bf16.mxu0 %v7635
  %8153 = vmatpush1.bf16.msra.mxu0 %v7634
  %8154 = vmatprep.mubr.bf16.mxu0 %v3737
  %8155 = vmatmul.mubr.bf16.gmra.mrb[0].mxu0 %v3736
  %v8156 = vpop.f32.mrb[0].mxu0
  %v8157 = vadd.f32 %v8044, %v8156
  %v8158 = vpop.f32.mrb[0].mxu0
  %v8159 = vadd.f32 %v8046, %v8158
  %v8160 = vpop.f32.mrb[0].mxu0
  %v8161 = vadd.f32 %v8048, %v8160
  %v8162 = vpop.f32.mrb[0].mxu0
  %v8163 = vadd.f32 %v8050, %v8162
  %8164 = vmatprep.mubr.bf16.mxu0 %v3747
  %8165 = vmatmul.mubr.bf16.gmra.mrb[0].mxu0 %v3746
  %v8166 = vpop.f32.mrb[0].mxu0
  %v8167 = vadd.f32 %v8054, %v8166
  %v8168 = vpop.f32.mrb[0].mxu0
  %v8169 = vadd.f32 %v8056, %v8168
  %v8170 = vpop.f32.mrb[0].mxu0
  %v8171 = vadd.f32 %v8058, %v8170
  %v8172 = vpop.f32.mrb[0].mxu0
  %v8173 = vadd.f32 %v8060, %v8172
  %8174 = vmatprep.mubr.bf16.mxu0 %v3757
  %8175 = vmatmul.mubr.bf16.gmra.mrb[0].mxu0 %v3756
  %v8176 = vpop.f32.mrb[0].mxu0
  %v8177 = vadd.f32 %v8064, %v8176
  %v8178 = vpop.f32.mrb[0].mxu0
  %v8179 = vadd.f32 %v8066, %v8178
  %v8180 = vpop.f32.mrb[0].mxu0
  %v8181 = vadd.f32 %v8068, %v8180
  %v8182 = vpop.f32.mrb[0].mxu0
  %v8183 = vadd.f32 %v8070, %v8182
  %8184 = vmatprep.mubr.bf16.mxu0 %v3767
  %8185 = vmatmul.mubr.bf16.gmra.mrb[0].mxu0 %v3766
  %v8186 = vpop.f32.mrb[0].mxu0
  %v8187 = vadd.f32 %v8074, %v8186
  %v8188 = vpop.f32.mrb[0].mxu0
  %v8189 = vadd.f32 %v8076, %v8188
  %v8190 = vpop.f32.mrb[0].mxu0
  %v8191 = vadd.f32 %v8078, %v8190
  %v8192 = vpop.f32.mrb[0].mxu0
  %v8193 = vadd.f32 %v8080, %v8192
  %8194 = vmatprep.mubr.bf16.mxu0 %v3777
  %8195 = vmatmul.mubr.bf16.gmra.mrb[0].mxu0 %v3776
  %v8196 = vpop.f32.mrb[0].mxu0
  %v8197 = vadd.f32 %v8084, %v8196
  %v8198 = vpop.f32.mrb[0].mxu0
  %v8199 = vadd.f32 %v8086, %v8198
  %v8200 = vpop.f32.mrb[0].mxu0
  %v8201 = vadd.f32 %v8088, %v8200
  %v8202 = vpop.f32.mrb[0].mxu0
  %v8203 = vadd.f32 %v8090, %v8202
  %8204 = vmatprep.mubr.bf16.mxu0 %v3787
  %8205 = vmatmul.mubr.bf16.gmra.mrb[0].mxu0 %v3786
  %v8206 = vpop.f32.mrb[0].mxu0
  %v8207 = vadd.f32 %v8094, %v8206
  %v8208 = vpop.f32.mrb[0].mxu0
  %v8209 = vadd.f32 %v8096, %v8208
  %v8210 = vpop.f32.mrb[0].mxu0
  %v8211 = vadd.f32 %v8098, %v8210
  %v8212 = vpop.f32.mrb[0].mxu0
  %v8213 = vadd.f32 %v8100, %v8212
  %8214 = vmatprep.mubr.bf16.mxu0 %v3797
  %8215 = vmatmul.mubr.bf16.gmra.mrb[0].mxu0 %v3796
  %v8216 = vpop.f32.mrb[0].mxu0
  %v8217 = vadd.f32 %v8104, %v8216
  %v8218 = vpop.f32.mrb[0].mxu0
  %v8219 = vadd.f32 %v8106, %v8218
  %v8220 = vpop.f32.mrb[0].mxu0
  %v8221 = vadd.f32 %v8108, %v8220
  %v8222 = vpop.f32.mrb[0].mxu0
  %v8223 = vadd.f32 %v8110, %v8222
  %8224 = vmatprep.mubr.bf16.mxu0 %v3807
  %8225 = vmatmul.mubr.bf16.gmra.mrb[0].mxu0 %v3806
  %v8226 = vpop.f32.mrb[0].mxu0
  %v8227 = vadd.f32 %v8114, %v8226
  %v8228 = vpop.f32.mrb[0].mxu0
  %v8229 = vadd.f32 %v8116, %v8228
  %v8230 = vpop.f32.mrb[0].mxu0
  %v8231 = vadd.f32 %v8118, %v8230
  %v8232 = vpop.f32.mrb[0].mxu0
  %v8233 = vadd.f32 %v8120, %v8232
  %8234 = vdwg.mxu0
  %8235 = vmatprep.subr.bf16.mxu0 %v7638
  %8236 = vmatpush1.bf16.msra.mxu0 %v7637
  %8237 = vmatprep.subr.bf16.mxu0 %v7641
  %8238 = vmatpush1.bf16.msra.mxu0 %v7640
  %8239 = vmatprep.subr.bf16.mxu0 %v7644
  %8240 = vmatpush1.bf16.msra.mxu0 %v7643
  %8241 = vmatprep.subr.bf16.mxu0 %v7647
  %8242 = vmatpush1.bf16.msra.mxu0 %v7646
  %8243 = vmatprep.subr.bf16.mxu0 %v7650
  %8244 = vmatpush1.bf16.msra.mxu0 %v7649
  %8245 = vmatprep.subr.bf16.mxu0 %v7653
  %8246 = vmatpush1.bf16.msra.mxu0 %v7652
  %8247 = vmatprep.subr.bf16.mxu0 %v7656
  %8248 = vmatpush1.bf16.msra.mxu0 %v7655
  %8249 = vmatprep.subr.bf16.mxu0 %v7659
  %8250 = vmatpush1.bf16.msra.mxu0 %v7658
  %8251 = vmatprep.subr.bf16.mxu0 %v7662
  %8252 = vmatpush1.bf16.msra.mxu0 %v7661
  %8253 = vmatprep.subr.bf16.mxu0 %v7665
  %8254 = vmatpush1.bf16.msra.mxu0 %v7664
  %8255 = vmatprep.subr.bf16.mxu0 %v7668
  %8256 = vmatpush1.bf16.msra.mxu0 %v7667
  %8257 = vmatprep.subr.bf16.mxu0 %v7671
  %8258 = vmatpush1.bf16.msra.mxu0 %v7670
  %8259 = vmatprep.subr.bf16.mxu0 %v7674
  %8260 = vmatpush1.bf16.msra.mxu0 %v7673
  %8261 = vmatprep.subr.bf16.mxu0 %v7677
  %8262 = vmatpush1.bf16.msra.mxu0 %v7676
  %8263 = vmatprep.subr.bf16.mxu0 %v7680
  %8264 = vmatpush1.bf16.msra.mxu0 %v7679
  %8265 = vmatprep.subr.bf16.mxu0 %v7683
  %8266 = vmatpush1.bf16.msra.mxu0 %v7682
  %8267 = vmatprep.mubr.bf16.mxu0 %v3739
  %8268 = vmatmul.mubr.bf16.gmra.mrb[0].mxu0 %v3738
  %v8269 = vpop.f32.mrb[0].mxu0
  %v8270 = vadd.f32 %v8157, %v8269
  %v8271 = vpop.f32.mrb[0].mxu0
  %v8272 = vadd.f32 %v8159, %v8271
  %v8273 = vpop.f32.mrb[0].mxu0
  %v8274 = vadd.f32 %v8161, %v8273
  %v8275 = vpop.f32.mrb[0].mxu0
  %v8276 = vadd.f32 %v8163, %v8275
  %8277 = vmatprep.mubr.bf16.mxu0 %v3749
  %8278 = vmatmul.mubr.bf16.gmra.mrb[0].mxu0 %v3748
  %v8279 = vpop.f32.mrb[0].mxu0
  %v8280 = vadd.f32 %v8167, %v8279
  %v8281 = vpop.f32.mrb[0].mxu0
  %v8282 = vadd.f32 %v8169, %v8281
  %v8283 = vpop.f32.mrb[0].mxu0
  %v8284 = vadd.f32 %v8171, %v8283
  %v8285 = vpop.f32.mrb[0].mxu0
  %v8286 = vadd.f32 %v8173, %v8285
  %8287 = vmatprep.mubr.bf16.mxu0 %v3759
  %8288 = vmatmul.mubr.bf16.gmra.mrb[0].mxu0 %v3758
  %v8289 = vpop.f32.mrb[0].mxu0
  %v8290 = vadd.f32 %v8177, %v8289
  %v8291 = vpop.f32.mrb[0].mxu0
  %v8292 = vadd.f32 %v8179, %v8291
  %v8293 = vpop.f32.mrb[0].mxu0
  %v8294 = vadd.f32 %v8181, %v8293
  %v8295 = vpop.f32.mrb[0].mxu0
  %v8296 = vadd.f32 %v8183, %v8295
  %8297 = vmatprep.mubr.bf16.mxu0 %v3769
  %8298 = vmatmul.mubr.bf16.gmra.mrb[0].mxu0 %v3768
  %v8299 = vpop.f32.mrb[0].mxu0
  %v8300 = vadd.f32 %v8187, %v8299
  %v8301 = vpop.f32.mrb[0].mxu0
  %v8302 = vadd.f32 %v8189, %v8301
  %v8303 = vpop.f32.mrb[0].mxu0
  %v8304 = vadd.f32 %v8191, %v8303
  %v8305 = vpop.f32.mrb[0].mxu0
  %v8306 = vadd.f32 %v8193, %v8305
  %8307 = vmatprep.mubr.bf16.mxu0 %v3779
  %8308 = vmatmul.mubr.bf16.gmra.mrb[0].mxu0 %v3778
  %v8309 = vpop.f32.mrb[0].mxu0
  %v8310 = vadd.f32 %v8197, %v8309
  %v8311 = vpop.f32.mrb[0].mxu0
  %v8312 = vadd.f32 %v8199, %v8311
  %v8313 = vpop.f32.mrb[0].mxu0
  %v8314 = vadd.f32 %v8201, %v8313
  %v8315 = vpop.f32.mrb[0].mxu0
  %v8316 = vadd.f32 %v8203, %v8315
  %8317 = vmatprep.mubr.bf16.mxu0 %v3789
  %8318 = vmatmul.mubr.bf16.gmra.mrb[0].mxu0 %v3788
  %v8319 = vpop.f32.mrb[0].mxu0
  %v8320 = vadd.f32 %v8207, %v8319
  %v8321 = vpop.f32.mrb[0].mxu0
  %v8322 = vadd.f32 %v8209, %v8321
  %v8323 = vpop.f32.mrb[0].mxu0
  %v8324 = vadd.f32 %v8211, %v8323
  %v8325 = vpop.f32.mrb[0].mxu0
  %v8326 = vadd.f32 %v8213, %v8325
  %8327 = vmatprep.mubr.bf16.mxu0 %v3799
  %8328 = vmatmul.mubr.bf16.gmra.mrb[0].mxu0 %v3798
  %v8329 = vpop.f32.mrb[0].mxu0
  %v8330 = vadd.f32 %v8217, %v8329
  %v8331 = vpop.f32.mrb[0].mxu0
  %v8332 = vadd.f32 %v8219, %v8331
  %v8333 = vpop.f32.mrb[0].mxu0
  %v8334 = vadd.f32 %v8221, %v8333
  %v8335 = vpop.f32.mrb[0].mxu0
  %v8336 = vadd.f32 %v8223, %v8335
  %8337 = vmatprep.mubr.bf16.mxu0 %v3809
  %8338 = vmatmul.mubr.bf16.gmra.mrb[0].mxu0 %v3808
  %v8339 = vpop.f32.mrb[0].mxu0
  %v8340 = vadd.f32 %v8227, %v8339
  %v8341 = vpop.f32.mrb[0].mxu0
  %v8342 = vadd.f32 %v8229, %v8341
  %v8343 = vpop.f32.mrb[0].mxu0
  %v8344 = vadd.f32 %v8231, %v8343
  %v8345 = vpop.f32.mrb[0].mxu0
  %v8346 = vadd.f32 %v8233, %v8345
  %8347 = vdwg.mxu0
  %8348 = vmatprep.subr.bf16.mxu0 %v7686
  %8349 = vmatpush1.bf16.msra.mxu0 %v7685
  %8350 = vmatprep.subr.bf16.mxu0 %v7689
  %8351 = vmatpush1.bf16.msra.mxu0 %v7688
  %8352 = vmatprep.subr.bf16.mxu0 %v7692
  %8353 = vmatpush1.bf16.msra.mxu0 %v7691
  %8354 = vmatprep.subr.bf16.mxu0 %v7695
  %8355 = vmatpush1.bf16.msra.mxu0 %v7694
  %8356 = vmatprep.subr.bf16.mxu0 %v7698
  %8357 = vmatpush1.bf16.msra.mxu0 %v7697
  %8358 = vmatprep.subr.bf16.mxu0 %v7701
  %8359 = vmatpush1.bf16.msra.mxu0 %v7700
  %8360 = vmatprep.subr.bf16.mxu0 %v7704
  %8361 = vmatpush1.bf16.msra.mxu0 %v7703
  %8362 = vmatprep.subr.bf16.mxu0 %v7707
  %8363 = vmatpush1.bf16.msra.mxu0 %v7706
  %8364 = vmatprep.subr.bf16.mxu0 %v7710
  %8365 = vmatpush1.bf16.msra.mxu0 %v7709
  %8366 = vmatprep.subr.bf16.mxu0 %v7713
  %8367 = vmatpush1.bf16.msra.mxu0 %v7712
  %8368 = vmatprep.subr.bf16.mxu0 %v7716
  %8369 = vmatpush1.bf16.msra.mxu0 %v7715
  %8370 = vmatprep.subr.bf16.mxu0 %v7719
  %8371 = vmatpush1.bf16.msra.mxu0 %v7718
  %8372 = vmatprep.subr.bf16.mxu0 %v7722
  %8373 = vmatpush1.bf16.msra.mxu0 %v7721
  %8374 = vmatprep.subr.bf16.mxu0 %v7725
  %8375 = vmatpush1.bf16.msra.mxu0 %v7724
  %8376 = vmatprep.subr.bf16.mxu0 %v7728
  %8377 = vmatpush1.bf16.msra.mxu0 %v7727
  %8378 = vmatprep.subr.bf16.mxu0 %v7731
  %8379 = vmatpush1.bf16.msra.mxu0 %v7730
  %8380 = vmatprep.mubr.bf16.mxu0 %v3741
  %8381 = vmatmul.mubr.bf16.gmra.mrb[0].mxu0 %v3740
  %v8382 = vpop.f32.mrb[0].mxu0
  %v8383 = vadd.f32 %v8270, %v8382
  %v8384 = vpop.f32.mrb[0].mxu0
  %v8385 = vadd.f32 %v8272, %v8384
  %v8386 = vpop.f32.mrb[0].mxu0
  %v8387 = vadd.f32 %v8274, %v8386
  %v8388 = vpop.f32.mrb[0].mxu0
  %v8389 = vadd.f32 %v8276, %v8388
  %8390 = vmatprep.mubr.bf16.mxu0 %v3751
  %8391 = vmatmul.mubr.bf16.gmra.mrb[0].mxu0 %v3750
  %v8392 = vpop.f32.mrb[0].mxu0
  %v8393 = vadd.f32 %v8280, %v8392
  %v8394 = vpop.f32.mrb[0].mxu0
  %v8395 = vadd.f32 %v8282, %v8394
  %v8396 = vpop.f32.mrb[0].mxu0
  %v8397 = vadd.f32 %v8284, %v8396
  %v8398 = vpop.f32.mrb[0].mxu0
  %v8399 = vadd.f32 %v8286, %v8398
  %8400 = vmatprep.mubr.bf16.mxu0 %v3761
  %8401 = vmatmul.mubr.bf16.gmra.mrb[0].mxu0 %v3760
  %v8402 = vpop.f32.mrb[0].mxu0
  %v8403 = vadd.f32 %v8290, %v8402
  %v8404 = vpop.f32.mrb[0].mxu0
  %v8405 = vadd.f32 %v8292, %v8404
  %v8406 = vpop.f32.mrb[0].mxu0
  %v8407 = vadd.f32 %v8294, %v8406
  %v8408 = vpop.f32.mrb[0].mxu0
  %v8409 = vadd.f32 %v8296, %v8408
  %8410 = vmatprep.mubr.bf16.mxu0 %v3771
  %8411 = vmatmul.mubr.bf16.gmra.mrb[0].mxu0 %v3770
  %v8412 = vpop.f32.mrb[0].mxu0
  %v8413 = vadd.f32 %v8300, %v8412
  %v8414 = vpop.f32.mrb[0].mxu0
  %v8415 = vadd.f32 %v8302, %v8414
  %v8416 = vpop.f32.mrb[0].mxu0
  %v8417 = vadd.f32 %v8304, %v8416
  %v8418 = vpop.f32.mrb[0].mxu0
  %v8419 = vadd.f32 %v8306, %v8418
  %8420 = vmatprep.mubr.bf16.mxu0 %v3781
  %8421 = vmatmul.mubr.bf16.gmra.mrb[0].mxu0 %v3780
  %v8422 = vpop.f32.mrb[0].mxu0
  %v8423 = vadd.f32 %v8310, %v8422
  %v8424 = vpop.f32.mrb[0].mxu0
  %v8425 = vadd.f32 %v8312, %v8424
  %v8426 = vpop.f32.mrb[0].mxu0
  %v8427 = vadd.f32 %v8314, %v8426
  %v8428 = vpop.f32.mrb[0].mxu0
  %v8429 = vadd.f32 %v8316, %v8428
  %8430 = vmatprep.mubr.bf16.mxu0 %v3791
  %8431 = vmatmul.mubr.bf16.gmra.mrb[0].mxu0 %v3790
  %v8432 = vpop.f32.mrb[0].mxu0
  %v8433 = vadd.f32 %v8320, %v8432
  %v8434 = vpop.f32.mrb[0].mxu0
  %v8435 = vadd.f32 %v8322, %v8434
  %v8436 = vpop.f32.mrb[0].mxu0
  %v8437 = vadd.f32 %v8324, %v8436
  %v8438 = vpop.f32.mrb[0].mxu0
  %v8439 = vadd.f32 %v8326, %v8438
  %8440 = vmatprep.mubr.bf16.mxu0 %v3801
  %8441 = vmatmul.mubr.bf16.gmra.mrb[0].mxu0 %v3800
  %v8442 = vpop.f32.mrb[0].mxu0
  %v8443 = vadd.f32 %v8330, %v8442
  %v8444 = vpop.f32.mrb[0].mxu0
  %v8445 = vadd.f32 %v8332, %v8444
  %v8446 = vpop.f32.mrb[0].mxu0
  %v8447 = vadd.f32 %v8334, %v8446
  %v8448 = vpop.f32.mrb[0].mxu0
  %v8449 = vadd.f32 %v8336, %v8448
  %8450 = vmatprep.mubr.bf16.mxu0 %v3811
  %8451 = vmatmul.mubr.bf16.gmra.mrb[0].mxu0 %v3810
  %v8452 = vpop.f32.mrb[0].mxu0
  %v8453 = vadd.f32 %v8340, %v8452
  %v8454 = vpop.f32.mrb[0].mxu0
  %v8455 = vadd.f32 %v8342, %v8454
  %v8456 = vpop.f32.mrb[0].mxu0
  %v8457 = vadd.f32 %v8344, %v8456
  %v8458 = vpop.f32.mrb[0].mxu0
  %v8459 = vadd.f32 %v8346, %v8458
  %8460 = vdwg.mxu0
  %8461 = vmatprep.subr.bf16.mxu0 %v7734
  %8462 = vmatpush1.bf16.msra.mxu0 %v7733
  %8463 = vmatprep.subr.bf16.mxu0 %v7737
  %8464 = vmatpush1.bf16.msra.mxu0 %v7736
  %8465 = vmatprep.subr.bf16.mxu0 %v7740
  %8466 = vmatpush1.bf16.msra.mxu0 %v7739
  %8467 = vmatprep.subr.bf16.mxu0 %v7743
  %8468 = vmatpush1.bf16.msra.mxu0 %v7742
  %8469 = vmatprep.subr.bf16.mxu0 %v7746
  %8470 = vmatpush1.bf16.msra.mxu0 %v7745
  %8471 = vmatprep.subr.bf16.mxu0 %v7749
  %8472 = vmatpush1.bf16.msra.mxu0 %v7748
  %8473 = vmatprep.subr.bf16.mxu0 %v7752
  %8474 = vmatpush1.bf16.msra.mxu0 %v7751
  %8475 = vmatprep.subr.bf16.mxu0 %v7755
  %8476 = vmatpush1.bf16.msra.mxu0 %v7754
  %8477 = vmatprep.subr.bf16.mxu0 %v7758
  %8478 = vmatpush1.bf16.msra.mxu0 %v7757
  %8479 = vmatprep.subr.bf16.mxu0 %v7761
  %8480 = vmatpush1.bf16.msra.mxu0 %v7760
  %8481 = vmatprep.subr.bf16.mxu0 %v7764
  %8482 = vmatpush1.bf16.msra.mxu0 %v7763
  %8483 = vmatprep.subr.bf16.mxu0 %v7767
  %8484 = vmatpush1.bf16.msra.mxu0 %v7766
  %8485 = vmatprep.subr.bf16.mxu0 %v7770
  %8486 = vmatpush1.bf16.msra.mxu0 %v7769
  %8487 = vmatprep.subr.bf16.mxu0 %v7773
  %8488 = vmatpush1.bf16.msra.mxu0 %v7772
  %8489 = vmatprep.subr.bf16.mxu0 0
  %8490 = vmatpush1.bf16.msra.mxu0 0
  %8491 = vmatprep.subr.bf16.mxu0 0
  %8492 = vmatpush1.bf16.msra.mxu0 0
  %8493 = vmatprep.mubr.bf16.mxu0 %v5376
  %8494 = vmatmul.mubr.bf16.gmra.mrb[0].mxu0 %v3742
  %v8495 = vpop.f32.mrb[0].mxu0
  %v8496 = vadd.f32 %v8383, %v8495
  %v8497 = vpop.f32.mrb[0].mxu0
  %v8498 = vadd.f32 %v8385, %v8497
  %v8499 = vpop.f32.mrb[0].mxu0
  %v8500 = vadd.f32 %v8387, %v8499
  %v8501 = vpop.f32.mrb[0].mxu0
  %v8502 = vadd.f32 %v8389, %v8501
  %8503 = vmatprep.mubr.bf16.mxu0 %v5379
  %8504 = vmatmul.mubr.bf16.gmra.mrb[0].mxu0 %v3752
  %v8505 = vpop.f32.mrb[0].mxu0
  %v8506 = vadd.f32 %v8393, %v8505
  %v8507 = vpop.f32.mrb[0].mxu0
  %v8508 = vadd.f32 %v8395, %v8507
  %v8509 = vpop.f32.mrb[0].mxu0
  %v8510 = vadd.f32 %v8397, %v8509
  %v8511 = vpop.f32.mrb[0].mxu0
  %v8512 = vadd.f32 %v8399, %v8511
  %8513 = vmatprep.mubr.bf16.mxu0 %v5382
  %8514 = vmatmul.mubr.bf16.gmra.mrb[0].mxu0 %v3762
  %v8515 = vpop.f32.mrb[0].mxu0
  %v8516 = vadd.f32 %v8403, %v8515
  %v8517 = vpop.f32.mrb[0].mxu0
  %v8518 = vadd.f32 %v8405, %v8517
  %v8519 = vpop.f32.mrb[0].mxu0
  %v8520 = vadd.f32 %v8407, %v8519
  %v8521 = vpop.f32.mrb[0].mxu0
  %v8522 = vadd.f32 %v8409, %v8521
  %8523 = vmatprep.mubr.bf16.mxu0 %v5385
  %8524 = vmatmul.mubr.bf16.gmra.mrb[0].mxu0 %v3772
  %v8525 = vpop.f32.mrb[0].mxu0
  %v8526 = vadd.f32 %v8413, %v8525
  %v8527 = vpop.f32.mrb[0].mxu0
  %v8528 = vadd.f32 %v8415, %v8527
  %v8529 = vpop.f32.mrb[0].mxu0
  %v8530 = vadd.f32 %v8417, %v8529
  %v8531 = vpop.f32.mrb[0].mxu0
  %v8532 = vadd.f32 %v8419, %v8531
  %8533 = vmatprep.mubr.bf16.mxu0 %v5388
  %8534 = vmatmul.mubr.bf16.gmra.mrb[0].mxu0 %v3782
  %v8535 = vpop.f32.mrb[0].mxu0
  %v8536 = vadd.f32 %v8423, %v8535
  %v8537 = vpop.f32.mrb[0].mxu0
  %v8538 = vadd.f32 %v8425, %v8537
  %v8539 = vpop.f32.mrb[0].mxu0
  %v8540 = vadd.f32 %v8427, %v8539
  %v8541 = vpop.f32.mrb[0].mxu0
  %v8542 = vadd.f32 %v8429, %v8541
  %8543 = vmatprep.mubr.bf16.mxu0 %v5391
  %8544 = vmatmul.mubr.bf16.gmra.mrb[0].mxu0 %v3792
  %v8545 = vpop.f32.mrb[0].mxu0
  %v8546 = vadd.f32 %v8433, %v8545
  %v8547 = vpop.f32.mrb[0].mxu0
  %v8548 = vadd.f32 %v8435, %v8547
  %v8549 = vpop.f32.mrb[0].mxu0
  %v8550 = vadd.f32 %v8437, %v8549
  %v8551 = vpop.f32.mrb[0].mxu0
  %v8552 = vadd.f32 %v8439, %v8551
  %8553 = vmatprep.mubr.bf16.mxu0 %v5394
  %8554 = vmatmul.mubr.bf16.gmra.mrb[0].mxu0 %v3802
  %v8555 = vpop.f32.mrb[0].mxu0
  %v8556 = vadd.f32 %v8443, %v8555
  %v8557 = vpop.f32.mrb[0].mxu0
  %v8558 = vadd.f32 %v8445, %v8557
  %v8559 = vpop.f32.mrb[0].mxu0
  %v8560 = vadd.f32 %v8447, %v8559
  %v8561 = vpop.f32.mrb[0].mxu0
  %v8562 = vadd.f32 %v8449, %v8561
  %8563 = vmatprep.mubr.bf16.mxu0 %v5397
  %8564 = vmatmul.mubr.bf16.gmra.mrb[0].mxu0 %v3812
  %v8565 = vpop.f32.mrb[0].mxu0
  %v8566 = vadd.f32 %v8453, %v8565
  %v8567 = vpop.f32.mrb[0].mxu0
  %v8568 = vadd.f32 %v8455, %v8567
  %v8569 = vpop.f32.mrb[0].mxu0
  %v8570 = vadd.f32 %v8457, %v8569
  %v8571 = vpop.f32.mrb[0].mxu0
  %v8572 = vadd.f32 %v8459, %v8571
  %8573 = vdwg.mxu0
  %8574 = vmatprep.subr.bf16.mxu0 0
  %8575 = vmatpush1.bf16.msra.mxu0 %v7543
  %8576 = vmatprep.subr.bf16.mxu0 0
  %8577 = vmatpush1.bf16.msra.mxu0 %v7546
  %8578 = vmatprep.subr.bf16.mxu0 0
  %8579 = vmatpush1.bf16.msra.mxu0 %v7549
  %8580 = vmatprep.subr.bf16.mxu0 0
  %8581 = vmatpush1.bf16.msra.mxu0 %v7552
  %8582 = vmatprep.subr.bf16.mxu0 0
  %8583 = vmatpush1.bf16.msra.mxu0 %v7555
  %8584 = vmatprep.subr.bf16.mxu0 0
  %8585 = vmatpush1.bf16.msra.mxu0 %v7558
  %8586 = vmatprep.subr.bf16.mxu0 0
  %8587 = vmatpush1.bf16.msra.mxu0 %v7561
  %8588 = vmatprep.subr.bf16.mxu0 0
  %8589 = vmatpush1.bf16.msra.mxu0 %v7564
  %8590 = vmatprep.subr.bf16.mxu0 0
  %8591 = vmatpush1.bf16.msra.mxu0 %v7567
  %8592 = vmatprep.subr.bf16.mxu0 0
  %8593 = vmatpush1.bf16.msra.mxu0 %v7570
  %8594 = vmatprep.subr.bf16.mxu0 0
  %8595 = vmatpush1.bf16.msra.mxu0 %v7573
  %8596 = vmatprep.subr.bf16.mxu0 0
  %8597 = vmatpush1.bf16.msra.mxu0 %v7576
  %8598 = vmatprep.subr.bf16.mxu0 0
  %8599 = vmatpush1.bf16.msra.mxu0 %v7579
  %8600 = vmatprep.subr.bf16.mxu0 0
  %8601 = vmatpush1.bf16.msra.mxu0 %v7582
  %8602 = vmatprep.subr.bf16.mxu0 0
  %8603 = vmatpush1.bf16.msra.mxu0 %v7585
  %8604 = vmatprep.subr.bf16.mxu0 0
  %8605 = vmatpush1.bf16.msra.mxu0 %v7588
  %8606 = vmatprep.mubr.bf16.mxu0 %v3735
  %8607 = vmatmul.mubr.bf16.gmra.mrb[0].mxu0 %v3734
  %v8608 = vpop.f32.mrb[0].mxu0
  %v8609 = vadd.f32 0.0, %v8608
  %v8610 = vpop.f32.mrb[0].mxu0
  %v8611 = vpop.f32.mrb[0].mxu0
  %v8612 = vadd.f32 0.0, %v8611
  %v8613 = vpop.f32.mrb[0].mxu0
  %8614 = vmatprep.mubr.bf16.mxu0 %v3745
  %8615 = vmatmul.mubr.bf16.gmra.mrb[0].mxu0 %v3744
  %v8616 = vpop.f32.mrb[0].mxu0
  %v8617 = vadd.f32 0.0, %v8616
  %v8618 = vpop.f32.mrb[0].mxu0
  %v8619 = vpop.f32.mrb[0].mxu0
  %v8620 = vadd.f32 0.0, %v8619
  %v8621 = vpop.f32.mrb[0].mxu0
  %8622 = vmatprep.mubr.bf16.mxu0 %v3755
  %8623 = vmatmul.mubr.bf16.gmra.mrb[0].mxu0 %v3754
  %v8624 = vpop.f32.mrb[0].mxu0
  %v8625 = vadd.f32 0.0, %v8624
  %v8626 = vpop.f32.mrb[0].mxu0
  %v8627 = vpop.f32.mrb[0].mxu0
  %v8628 = vadd.f32 0.0, %v8627
  %v8629 = vpop.f32.mrb[0].mxu0
  %8630 = vmatprep.mubr.bf16.mxu0 %v3765
  %8631 = vmatmul.mubr.bf16.gmra.mrb[0].mxu0 %v3764
  %v8632 = vpop.f32.mrb[0].mxu0
  %v8633 = vadd.f32 0.0, %v8632
  %v8634 = vpop.f32.mrb[0].mxu0
  %v8635 = vpop.f32.mrb[0].mxu0
  %v8636 = vadd.f32 0.0, %v8635
  %v8637 = vpop.f32.mrb[0].mxu0
  %8638 = vmatprep.mubr.bf16.mxu0 %v3775
  %8639 = vmatmul.mubr.bf16.gmra.mrb[0].mxu0 %v3774
  %v8640 = vpop.f32.mrb[0].mxu0
  %v8641 = vadd.f32 0.0, %v8640
  %v8642 = vpop.f32.mrb[0].mxu0
  %v8643 = vpop.f32.mrb[0].mxu0
  %v8644 = vadd.f32 0.0, %v8643
  %v8645 = vpop.f32.mrb[0].mxu0
  %8646 = vmatprep.mubr.bf16.mxu0 %v3785
  %8647 = vmatmul.mubr.bf16.gmra.mrb[0].mxu0 %v3784
  %v8648 = vpop.f32.mrb[0].mxu0
  %v8649 = vadd.f32 0.0, %v8648
  %v8650 = vpop.f32.mrb[0].mxu0
  %v8651 = vpop.f32.mrb[0].mxu0
  %v8652 = vadd.f32 0.0, %v8651
  %v8653 = vpop.f32.mrb[0].mxu0
  %8654 = vmatprep.mubr.bf16.mxu0 %v3795
  %8655 = vmatmul.mubr.bf16.gmra.mrb[0].mxu0 %v3794
  %v8656 = vpop.f32.mrb[0].mxu0
  %v8657 = vadd.f32 0.0, %v8656
  %v8658 = vpop.f32.mrb[0].mxu0
  %v8659 = vpop.f32.mrb[0].mxu0
  %v8660 = vadd.f32 0.0, %v8659
  %v8661 = vpop.f32.mrb[0].mxu0
  %8662 = vmatprep.mubr.bf16.mxu0 %v3805
  %8663 = vmatmul.mubr.bf16.gmra.mrb[0].mxu0 %v3804
  %v8664 = vpop.f32.mrb[0].mxu0
  %v8665 = vadd.f32 0.0, %v8664
  %v8666 = vpop.f32.mrb[0].mxu0
  %v8667 = vpop.f32.mrb[0].mxu0
  %v8668 = vadd.f32 0.0, %v8667
  %v8669 = vpop.f32.mrb[0].mxu0
  %8670 = vdwg.mxu0
  %8671 = vmatprep.subr.bf16.mxu0 0
  %8672 = vmatpush1.bf16.msra.mxu0 %v7591
  %8673 = vmatprep.subr.bf16.mxu0 0
  %8674 = vmatpush1.bf16.msra.mxu0 %v7594
  %8675 = vmatprep.subr.bf16.mxu0 0
  %8676 = vmatpush1.bf16.msra.mxu0 %v7597
  %8677 = vmatprep.subr.bf16.mxu0 0
  %8678 = vmatpush1.bf16.msra.mxu0 %v7600
  %8679 = vmatprep.subr.bf16.mxu0 0
  %8680 = vmatpush1.bf16.msra.mxu0 %v7603
  %8681 = vmatprep.subr.bf16.mxu0 0
  %8682 = vmatpush1.bf16.msra.mxu0 %v7606
  %8683 = vmatprep.subr.bf16.mxu0 0
  %8684 = vmatpush1.bf16.msra.mxu0 %v7609
  %8685 = vmatprep.subr.bf16.mxu0 0
  %8686 = vmatpush1.bf16.msra.mxu0 %v7612
  %8687 = vmatprep.subr.bf16.mxu0 0
  %8688 = vmatpush1.bf16.msra.mxu0 %v7615
  %8689 = vmatprep.subr.bf16.mxu0 0
  %8690 = vmatpush1.bf16.msra.mxu0 %v7618
  %8691 = vmatprep.subr.bf16.mxu0 0
  %8692 = vmatpush1.bf16.msra.mxu0 %v7621
  %8693 = vmatprep.subr.bf16.mxu0 0
  %8694 = vmatpush1.bf16.msra.mxu0 %v7624
  %8695 = vmatprep.subr.bf16.mxu0 0
  %8696 = vmatpush1.bf16.msra.mxu0 %v7627
  %8697 = vmatprep.subr.bf16.mxu0 0
  %8698 = vmatpush1.bf16.msra.mxu0 %v7630
  %8699 = vmatprep.subr.bf16.mxu0 0
  %8700 = vmatpush1.bf16.msra.mxu0 %v7633
  %8701 = vmatprep.subr.bf16.mxu0 0
  %8702 = vmatpush1.bf16.msra.mxu0 %v7636
  %8703 = vmatprep.mubr.bf16.mxu0 %v3737
  %8704 = vmatmul.mubr.bf16.gmra.mrb[0].mxu0 %v3736
  %v8705 = vpop.f32.mrb[0].mxu0
  %v8706 = vadd.f32 %v8609, %v8705
  %v8707 = vpop.f32.mrb[0].mxu0
  %v8708 = vpop.f32.mrb[0].mxu0
  %v8709 = vadd.f32 %v8612, %v8708
  %v8710 = vpop.f32.mrb[0].mxu0
  %8711 = vmatprep.mubr.bf16.mxu0 %v3747
  %8712 = vmatmul.mubr.bf16.gmra.mrb[0].mxu0 %v3746
  %v8713 = vpop.f32.mrb[0].mxu0
  %v8714 = vadd.f32 %v8617, %v8713
  %v8715 = vpop.f32.mrb[0].mxu0
  %v8716 = vpop.f32.mrb[0].mxu0
  %v8717 = vadd.f32 %v8620, %v8716
  %v8718 = vpop.f32.mrb[0].mxu0
  %8719 = vmatprep.mubr.bf16.mxu0 %v3757
  %8720 = vmatmul.mubr.bf16.gmra.mrb[0].mxu0 %v3756
  %v8721 = vpop.f32.mrb[0].mxu0
  %v8722 = vadd.f32 %v8625, %v8721
  %v8723 = vpop.f32.mrb[0].mxu0
  %v8724 = vpop.f32.mrb[0].mxu0
  %v8725 = vadd.f32 %v8628, %v8724
  %v8726 = vpop.f32.mrb[0].mxu0
  %8727 = vmatprep.mubr.bf16.mxu0 %v3767
  %8728 = vmatmul.mubr.bf16.gmra.mrb[0].mxu0 %v3766
  %v8729 = vpop.f32.mrb[0].mxu0
  %v8730 = vadd.f32 %v8633, %v8729
  %v8731 = vpop.f32.mrb[0].mxu0
  %v8732 = vpop.f32.mrb[0].mxu0
  %v8733 = vadd.f32 %v8636, %v8732
  %v8734 = vpop.f32.mrb[0].mxu0
  %8735 = vmatprep.mubr.bf16.mxu0 %v3777
  %8736 = vmatmul.mubr.bf16.gmra.mrb[0].mxu0 %v3776
  %v8737 = vpop.f32.mrb[0].mxu0
  %v8738 = vadd.f32 %v8641, %v8737
  %v8739 = vpop.f32.mrb[0].mxu0
  %v8740 = vpop.f32.mrb[0].mxu0
  %v8741 = vadd.f32 %v8644, %v8740
  %v8742 = vpop.f32.mrb[0].mxu0
  %8743 = vmatprep.mubr.bf16.mxu0 %v3787
  %8744 = vmatmul.mubr.bf16.gmra.mrb[0].mxu0 %v3786
  %v8745 = vpop.f32.mrb[0].mxu0
  %v8746 = vadd.f32 %v8649, %v8745
  %v8747 = vpop.f32.mrb[0].mxu0
  %v8748 = vpop.f32.mrb[0].mxu0
  %v8749 = vadd.f32 %v8652, %v8748
  %v8750 = vpop.f32.mrb[0].mxu0
  %8751 = vmatprep.mubr.bf16.mxu0 %v3797
  %8752 = vmatmul.mubr.bf16.gmra.mrb[0].mxu0 %v3796
  %v8753 = vpop.f32.mrb[0].mxu0
  %v8754 = vadd.f32 %v8657, %v8753
  %v8755 = vpop.f32.mrb[0].mxu0
  %v8756 = vpop.f32.mrb[0].mxu0
  %v8757 = vadd.f32 %v8660, %v8756
  %v8758 = vpop.f32.mrb[0].mxu0
  %8759 = vmatprep.mubr.bf16.mxu0 %v3807
  %8760 = vmatmul.mubr.bf16.gmra.mrb[0].mxu0 %v3806
  %v8761 = vpop.f32.mrb[0].mxu0
  %v8762 = vadd.f32 %v8665, %v8761
  %v8763 = vpop.f32.mrb[0].mxu0
  %v8764 = vpop.f32.mrb[0].mxu0
  %v8765 = vadd.f32 %v8668, %v8764
  %v8766 = vpop.f32.mrb[0].mxu0
  %8767 = vdwg.mxu0
  %8768 = vmatprep.subr.bf16.mxu0 0
  %8769 = vmatpush1.bf16.msra.mxu0 %v7639
  %8770 = vmatprep.subr.bf16.mxu0 0
  %8771 = vmatpush1.bf16.msra.mxu0 %v7642
  %8772 = vmatprep.subr.bf16.mxu0 0
  %8773 = vmatpush1.bf16.msra.mxu0 %v7645
  %8774 = vmatprep.subr.bf16.mxu0 0
  %8775 = vmatpush1.bf16.msra.mxu0 %v7648
  %8776 = vmatprep.subr.bf16.mxu0 0
  %8777 = vmatpush1.bf16.msra.mxu0 %v7651
  %8778 = vmatprep.subr.bf16.mxu0 0
  %8779 = vmatpush1.bf16.msra.mxu0 %v7654
  %8780 = vmatprep.subr.bf16.mxu0 0
  %8781 = vmatpush1.bf16.msra.mxu0 %v7657
  %8782 = vmatprep.subr.bf16.mxu0 0
  %8783 = vmatpush1.bf16.msra.mxu0 %v7660
  %8784 = vmatprep.subr.bf16.mxu0 0
  %8785 = vmatpush1.bf16.msra.mxu0 %v7663
  %8786 = vmatprep.subr.bf16.mxu0 0
  %8787 = vmatpush1.bf16.msra.mxu0 %v7666
  %8788 = vmatprep.subr.bf16.mxu0 0
  %8789 = vmatpush1.bf16.msra.mxu0 %v7669
  %8790 = vmatprep.subr.bf16.mxu0 0
  %8791 = vmatpush1.bf16.msra.mxu0 %v7672
  %8792 = vmatprep.subr.bf16.mxu0 0
  %8793 = vmatpush1.bf16.msra.mxu0 %v7675
  %8794 = vmatprep.subr.bf16.mxu0 0
  %8795 = vmatpush1.bf16.msra.mxu0 %v7678
  %8796 = vmatprep.subr.bf16.mxu0 0
  %8797 = vmatpush1.bf16.msra.mxu0 %v7681
  %8798 = vmatprep.subr.bf16.mxu0 0
  %8799 = vmatpush1.bf16.msra.mxu0 %v7684
  %8800 = vmatprep.mubr.bf16.mxu0 %v3739
  %8801 = vmatmul.mubr.bf16.gmra.mrb[0].mxu0 %v3738
  %v8802 = vpop.f32.mrb[0].mxu0
  %v8803 = vadd.f32 %v8706, %v8802
  %v8804 = vpop.f32.mrb[0].mxu0
  %v8805 = vpop.f32.mrb[0].mxu0
  %v8806 = vadd.f32 %v8709, %v8805
  %v8807 = vpop.f32.mrb[0].mxu0
  %8808 = vmatprep.mubr.bf16.mxu0 %v3749
  %8809 = vmatmul.mubr.bf16.gmra.mrb[0].mxu0 %v3748
  %v8810 = vpop.f32.mrb[0].mxu0
  %v8811 = vadd.f32 %v8714, %v8810
  %v8812 = vpop.f32.mrb[0].mxu0
  %v8813 = vpop.f32.mrb[0].mxu0
  %v8814 = vadd.f32 %v8717, %v8813
  %v8815 = vpop.f32.mrb[0].mxu0
  %8816 = vmatprep.mubr.bf16.mxu0 %v3759
  %8817 = vmatmul.mubr.bf16.gmra.mrb[0].mxu0 %v3758
  %v8818 = vpop.f32.mrb[0].mxu0
  %v8819 = vadd.f32 %v8722, %v8818
  %v8820 = vpop.f32.mrb[0].mxu0
  %v8821 = vpop.f32.mrb[0].mxu0
  %v8822 = vadd.f32 %v8725, %v8821
  %v8823 = vpop.f32.mrb[0].mxu0
  %8824 = vmatprep.mubr.bf16.mxu0 %v3769
  %8825 = vmatmul.mubr.bf16.gmra.mrb[0].mxu0 %v3768
  %v8826 = vpop.f32.mrb[0].mxu0
  %v8827 = vadd.f32 %v8730, %v8826
  %v8828 = vpop.f32.mrb[0].mxu0
  %v8829 = vpop.f32.mrb[0].mxu0
  %v8830 = vadd.f32 %v8733, %v8829
  %v8831 = vpop.f32.mrb[0].mxu0
  %8832 = vmatprep.mubr.bf16.mxu0 %v3779
  %8833 = vmatmul.mubr.bf16.gmra.mrb[0].mxu0 %v3778
  %v8834 = vpop.f32.mrb[0].mxu0
  %v8835 = vadd.f32 %v8738, %v8834
  %v8836 = vpop.f32.mrb[0].mxu0
  %v8837 = vpop.f32.mrb[0].mxu0
  %v8838 = vadd.f32 %v8741, %v8837
  %v8839 = vpop.f32.mrb[0].mxu0
  %8840 = vmatprep.mubr.bf16.mxu0 %v3789
  %8841 = vmatmul.mubr.bf16.gmra.mrb[0].mxu0 %v3788
  %v8842 = vpop.f32.mrb[0].mxu0
  %v8843 = vadd.f32 %v8746, %v8842
  %v8844 = vpop.f32.mrb[0].mxu0
  %v8845 = vpop.f32.mrb[0].mxu0
  %v8846 = vadd.f32 %v8749, %v8845
  %v8847 = vpop.f32.mrb[0].mxu0
  %8848 = vmatprep.mubr.bf16.mxu0 %v3799
  %8849 = vmatmul.mubr.bf16.gmra.mrb[0].mxu0 %v3798
  %v8850 = vpop.f32.mrb[0].mxu0
  %v8851 = vadd.f32 %v8754, %v8850
  %v8852 = vpop.f32.mrb[0].mxu0
  %v8853 = vpop.f32.mrb[0].mxu0
  %v8854 = vadd.f32 %v8757, %v8853
  %v8855 = vpop.f32.mrb[0].mxu0
  %8856 = vmatprep.mubr.bf16.mxu0 %v3809
  %8857 = vmatmul.mubr.bf16.gmra.mrb[0].mxu0 %v3808
  %v8858 = vpop.f32.mrb[0].mxu0
  %v8859 = vadd.f32 %v8762, %v8858
  %v8860 = vpop.f32.mrb[0].mxu0
  %v8861 = vpop.f32.mrb[0].mxu0
  %v8862 = vadd.f32 %v8765, %v8861
  %v8863 = vpop.f32.mrb[0].mxu0
  %8864 = vdwg.mxu0
  %8865 = vmatprep.subr.bf16.mxu0 0
  %8866 = vmatpush1.bf16.msra.mxu0 %v7687
  %8867 = vmatprep.subr.bf16.mxu0 0
  %8868 = vmatpush1.bf16.msra.mxu0 %v7690
  %8869 = vmatprep.subr.bf16.mxu0 0
  %8870 = vmatpush1.bf16.msra.mxu0 %v7693
  %8871 = vmatprep.subr.bf16.mxu0 0
  %8872 = vmatpush1.bf16.msra.mxu0 %v7696
  %8873 = vmatprep.subr.bf16.mxu0 0
  %8874 = vmatpush1.bf16.msra.mxu0 %v7699
  %8875 = vmatprep.subr.bf16.mxu0 0
  %8876 = vmatpush1.bf16.msra.mxu0 %v7702
  %8877 = vmatprep.subr.bf16.mxu0 0
  %8878 = vmatpush1.bf16.msra.mxu0 %v7705
  %8879 = vmatprep.subr.bf16.mxu0 0
  %8880 = vmatpush1.bf16.msra.mxu0 %v7708
  %8881 = vmatprep.subr.bf16.mxu0 0
  %8882 = vmatpush1.bf16.msra.mxu0 %v7711
  %8883 = vmatprep.subr.bf16.mxu0 0
  %8884 = vmatpush1.bf16.msra.mxu0 %v7714
  %8885 = vmatprep.subr.bf16.mxu0 0
  %8886 = vmatpush1.bf16.msra.mxu0 %v7717
  %8887 = vmatprep.subr.bf16.mxu0 0
  %8888 = vmatpush1.bf16.msra.mxu0 %v7720
  %8889 = vmatprep.subr.bf16.mxu0 0
  %8890 = vmatpush1.bf16.msra.mxu0 %v7723
  %8891 = vmatprep.subr.bf16.mxu0 0
  %8892 = vmatpush1.bf16.msra.mxu0 %v7726
  %8893 = vmatprep.subr.bf16.mxu0 0
  %8894 = vmatpush1.bf16.msra.mxu0 %v7729
  %8895 = vmatprep.subr.bf16.mxu0 0
  %8896 = vmatpush1.bf16.msra.mxu0 %v7732
  %8897 = vmatprep.mubr.bf16.mxu0 %v3741
  %8898 = vmatmul.mubr.bf16.gmra.mrb[0].mxu0 %v3740
  %v8899 = vpop.f32.mrb[0].mxu0
  %v8900 = vadd.f32 %v8803, %v8899
  %v8901 = vpop.f32.mrb[0].mxu0
  %v8902 = vpop.f32.mrb[0].mxu0
  %v8903 = vadd.f32 %v8806, %v8902
  %v8904 = vpop.f32.mrb[0].mxu0
  %8905 = vmatprep.mubr.bf16.mxu0 %v3751
  %8906 = vmatmul.mubr.bf16.gmra.mrb[0].mxu0 %v3750
  %v8907 = vpop.f32.mrb[0].mxu0
  %v8908 = vadd.f32 %v8811, %v8907
  %v8909 = vpop.f32.mrb[0].mxu0
  %v8910 = vpop.f32.mrb[0].mxu0
  %v8911 = vadd.f32 %v8814, %v8910
  %v8912 = vpop.f32.mrb[0].mxu0
  %8913 = vmatprep.mubr.bf16.mxu0 %v3761
  %8914 = vmatmul.mubr.bf16.gmra.mrb[0].mxu0 %v3760
  %v8915 = vpop.f32.mrb[0].mxu0
  %v8916 = vadd.f32 %v8819, %v8915
  %v8917 = vpop.f32.mrb[0].mxu0
  %v8918 = vpop.f32.mrb[0].mxu0
  %v8919 = vadd.f32 %v8822, %v8918
  %v8920 = vpop.f32.mrb[0].mxu0
  %8921 = vmatprep.mubr.bf16.mxu0 %v3771
  %8922 = vmatmul.mubr.bf16.gmra.mrb[0].mxu0 %v3770
  %v8923 = vpop.f32.mrb[0].mxu0
  %v8924 = vadd.f32 %v8827, %v8923
  %v8925 = vpop.f32.mrb[0].mxu0
  %v8926 = vpop.f32.mrb[0].mxu0
  %v8927 = vadd.f32 %v8830, %v8926
  %v8928 = vpop.f32.mrb[0].mxu0
  %8929 = vmatprep.mubr.bf16.mxu0 %v3781
  %8930 = vmatmul.mubr.bf16.gmra.mrb[0].mxu0 %v3780
  %v8931 = vpop.f32.mrb[0].mxu0
  %v8932 = vadd.f32 %v8835, %v8931
  %v8933 = vpop.f32.mrb[0].mxu0
  %v8934 = vpop.f32.mrb[0].mxu0
  %v8935 = vadd.f32 %v8838, %v8934
  %v8936 = vpop.f32.mrb[0].mxu0
  %8937 = vmatprep.mubr.bf16.mxu0 %v3791
  %8938 = vmatmul.mubr.bf16.gmra.mrb[0].mxu0 %v3790
  %v8939 = vpop.f32.mrb[0].mxu0
  %v8940 = vadd.f32 %v8843, %v8939
  %v8941 = vpop.f32.mrb[0].mxu0
  %v8942 = vpop.f32.mrb[0].mxu0
  %v8943 = vadd.f32 %v8846, %v8942
  %v8944 = vpop.f32.mrb[0].mxu0
  %8945 = vmatprep.mubr.bf16.mxu0 %v3801
  %8946 = vmatmul.mubr.bf16.gmra.mrb[0].mxu0 %v3800
  %v8947 = vpop.f32.mrb[0].mxu0
  %v8948 = vadd.f32 %v8851, %v8947
  %v8949 = vpop.f32.mrb[0].mxu0
  %v8950 = vpop.f32.mrb[0].mxu0
  %v8951 = vadd.f32 %v8854, %v8950
  %v8952 = vpop.f32.mrb[0].mxu0
  %8953 = vmatprep.mubr.bf16.mxu0 %v3811
  %8954 = vmatmul.mubr.bf16.gmra.mrb[0].mxu0 %v3810
  %v8955 = vpop.f32.mrb[0].mxu0
  %v8956 = vadd.f32 %v8859, %v8955
  %v8957 = vpop.f32.mrb[0].mxu0
  %v8958 = vpop.f32.mrb[0].mxu0
  %v8959 = vadd.f32 %v8862, %v8958
  %v8960 = vpop.f32.mrb[0].mxu0
  %8961 = vdwg.mxu0
  %8962 = vmatprep.subr.bf16.mxu0 0
  %8963 = vmatpush1.bf16.msra.mxu0 %v7735
  %8964 = vmatprep.subr.bf16.mxu0 0
  %8965 = vmatpush1.bf16.msra.mxu0 %v7738
  %8966 = vmatprep.subr.bf16.mxu0 0
  %8967 = vmatpush1.bf16.msra.mxu0 %v7741
  %8968 = vmatprep.subr.bf16.mxu0 0
  %8969 = vmatpush1.bf16.msra.mxu0 %v7744
  %8970 = vmatprep.subr.bf16.mxu0 0
  %8971 = vmatpush1.bf16.msra.mxu0 %v7747
  %8972 = vmatprep.subr.bf16.mxu0 0
  %8973 = vmatpush1.bf16.msra.mxu0 %v7750
  %8974 = vmatprep.subr.bf16.mxu0 0
  %8975 = vmatpush1.bf16.msra.mxu0 %v7753
  %8976 = vmatprep.subr.bf16.mxu0 0
  %8977 = vmatpush1.bf16.msra.mxu0 %v7756
  %8978 = vmatprep.subr.bf16.mxu0 0
  %8979 = vmatpush1.bf16.msra.mxu0 %v7759
  %8980 = vmatprep.subr.bf16.mxu0 0
  %8981 = vmatpush1.bf16.msra.mxu0 %v7762
  %8982 = vmatprep.subr.bf16.mxu0 0
  %8983 = vmatpush1.bf16.msra.mxu0 %v7765
  %8984 = vmatprep.subr.bf16.mxu0 0
  %8985 = vmatpush1.bf16.msra.mxu0 %v7768
  %8986 = vmatprep.subr.bf16.mxu0 0
  %8987 = vmatpush1.bf16.msra.mxu0 %v7771
  %8988 = vmatprep.subr.bf16.mxu0 0
  %8989 = vmatpush1.bf16.msra.mxu0 %v7774
  %8990 = vmatprep.subr.bf16.mxu0 0
  %8991 = vmatpush1.bf16.msra.mxu0 0
  %8992 = vmatprep.subr.bf16.mxu0 0
  %8993 = vmatpush1.bf16.msra.mxu0 0
  %8994 = vmatprep.mubr.bf16.mxu0 %v5376
  %8995 = vmatmul.mubr.bf16.gmra.mrb[0].mxu0 %v3742
  %v8996 = vpop.f32.mrb[0].mxu0
  %v8997 = vadd.f32 %v8900, %v8996
  %v8998 = vpop.f32.mrb[0].mxu0
  %v8999 = vpop.f32.mrb[0].mxu0
  %v9000 = vadd.f32 %v8903, %v8999
  %v9001 = vpop.f32.mrb[0].mxu0
  %9002 = vmatprep.mubr.bf16.mxu0 %v5379
  %9003 = vmatmul.mubr.bf16.gmra.mrb[0].mxu0 %v3752
  %v9004 = vpop.f32.mrb[0].mxu0
  %v9005 = vadd.f32 %v8908, %v9004
  %v9006 = vpop.f32.mrb[0].mxu0
  %v9007 = vpop.f32.mrb[0].mxu0
  %v9008 = vadd.f32 %v8911, %v9007
  %v9009 = vpop.f32.mrb[0].mxu0
  %9010 = vmatprep.mubr.bf16.mxu0 %v5382
  %9011 = vmatmul.mubr.bf16.gmra.mrb[0].mxu0 %v3762
  %v9012 = vpop.f32.mrb[0].mxu0
  %v9013 = vadd.f32 %v8916, %v9012
  %v9014 = vpop.f32.mrb[0].mxu0
  %v9015 = vpop.f32.mrb[0].mxu0
  %v9016 = vadd.f32 %v8919, %v9015
  %v9017 = vpop.f32.mrb[0].mxu0
  %9018 = vmatprep.mubr.bf16.mxu0 %v5385
  %9019 = vmatmul.mubr.bf16.gmra.mrb[0].mxu0 %v3772
  %v9020 = vpop.f32.mrb[0].mxu0
  %v9021 = vadd.f32 %v8924, %v9020
  %v9022 = vpop.f32.mrb[0].mxu0
  %v9023 = vpop.f32.mrb[0].mxu0
  %v9024 = vadd.f32 %v8927, %v9023
  %v9025 = vpop.f32.mrb[0].mxu0
  %9026 = vmatprep.mubr.bf16.mxu0 %v5388
  %9027 = vmatmul.mubr.bf16.gmra.mrb[0].mxu0 %v3782
  %v9028 = vpop.f32.mrb[0].mxu0
  %v9029 = vadd.f32 %v8932, %v9028
  %v9030 = vpop.f32.mrb[0].mxu0
  %v9031 = vpop.f32.mrb[0].mxu0
  %v9032 = vadd.f32 %v8935, %v9031
  %v9033 = vpop.f32.mrb[0].mxu0
  %9034 = vmatprep.mubr.bf16.mxu0 %v5391
  %9035 = vmatmul.mubr.bf16.gmra.mrb[0].mxu0 %v3792
  %v9036 = vpop.f32.mrb[0].mxu0
  %v9037 = vadd.f32 %v8940, %v9036
  %v9038 = vpop.f32.mrb[0].mxu0
  %v9039 = vpop.f32.mrb[0].mxu0
  %v9040 = vadd.f32 %v8943, %v9039
  %v9041 = vpop.f32.mrb[0].mxu0
  %9042 = vmatprep.mubr.bf16.mxu0 %v5394
  %9043 = vmatmul.mubr.bf16.gmra.mrb[0].mxu0 %v3802
  %v9044 = vpop.f32.mrb[0].mxu0
  %v9045 = vadd.f32 %v8948, %v9044
  %v9046 = vpop.f32.mrb[0].mxu0
  %v9047 = vpop.f32.mrb[0].mxu0
  %v9048 = vadd.f32 %v8951, %v9047
  %v9049 = vpop.f32.mrb[0].mxu0
  %9050 = vmatprep.mubr.bf16.mxu0 %v5397
  %9051 = vmatmul.mubr.bf16.gmra.mrb[0].mxu0 %v3812
  %v9052 = vpop.f32.mrb[0].mxu0
  %v9053 = vadd.f32 %v8956, %v9052
  %v9054 = vpop.f32.mrb[0].mxu0
  %v9055 = vpop.f32.mrb[0].mxu0
  %v9056 = vadd.f32 %v8959, %v9055
  %v9057 = vpop.f32.mrb[0].mxu0
  %9058 = vdwg.mxu0
  %v9059 = vmax.f32 %v5886, %v8496
  %v9060 = vmax.f32 %v5888, %v8498
  %v9061 = vmax.f32 %v6387, %v8997
  %v9062 = vmax.f32 %v5890, %v8500
  %v9063 = vmax.f32 %v5892, %v8502
  %v9064 = vmax.f32 %v6390, %v9000
  %v9065 = vmax.f32 %v5896, %v8506
  %v9066 = vmax.f32 %v5898, %v8508
  %v9067 = vmax.f32 %v6395, %v9005
  %v9068 = vmax.f32 %v5900, %v8510
  %v9069 = vmax.f32 %v5902, %v8512
  %v9070 = vmax.f32 %v6398, %v9008
  %v9071 = vmax.f32 %v5906, %v8516
  %v9072 = vmax.f32 %v5908, %v8518
  %v9073 = vmax.f32 %v6403, %v9013
  %v9074 = vmax.f32 %v5910, %v8520
  %v9075 = vmax.f32 %v5912, %v8522
  %v9076 = vmax.f32 %v6406, %v9016
  %v9077 = vmax.f32 %v5916, %v8526
  %v9078 = vmax.f32 %v5918, %v8528
  %v9079 = vmax.f32 %v6411, %v9021
  %v9080 = vmax.f32 %v5920, %v8530
  %v9081 = vmax.f32 %v5922, %v8532
  %v9082 = vmax.f32 %v6414, %v9024
  %v9083 = vmax.f32 %v5926, %v8536
  %v9084 = vmax.f32 %v5928, %v8538
  %v9085 = vmax.f32 %v6419, %v9029
  %v9086 = vmax.f32 %v5930, %v8540
  %v9087 = vmax.f32 %v5932, %v8542
  %v9088 = vmax.f32 %v6422, %v9032
  %v9089 = vmax.f32 %v5936, %v8546
  %v9090 = vmax.f32 %v5938, %v8548
  %v9091 = vmax.f32 %v6427, %v9037
  %v9092 = vmax.f32 %v5940, %v8550
  %v9093 = vmax.f32 %v5942, %v8552
  %v9094 = vmax.f32 %v6430, %v9040
  %v9095 = vmax.f32 %v5946, %v8556
  %v9096 = vmax.f32 %v5948, %v8558
  %v9097 = vmax.f32 %v6435, %v9045
  %v9098 = vmax.f32 %v5950, %v8560
  %v9099 = vmax.f32 %v5952, %v8562
  %v9100 = vmax.f32 %v6438, %v9048
  %v9101 = vmax.f32 %v5956, %v8566
  %v9102 = vmax.f32 %v5958, %v8568
  %v9103 = vmax.f32 %v6443, %v9053
  %v9104 = vmax.f32 %v5960, %v8570
  %v9105 = vmax.f32 %v5962, %v8572
  %v9106 = vmax.f32 %v6446, %v9056
  %v9155 = vrot.slane %v9059, 1
  %v9156 = vrot.slane %v9062, 1
  %v9157 = vsel %vm112, %v9155, %v9156
  %v9158 = vrot.slane %v9060, 1
  %v9159 = vrot.slane %v9063, 1
  %v9160 = vsel %vm112, %v9158, %v9159
  %v9161 = vrot.slane %v9061, 1
  %v9162 = vrot.slane %v9064, 1
  %v9163 = vsel %vm112, %v9161, %v9162
  %v9164 = vrot.slane %v9065, 1
  %v9165 = vsel %vm112, %v9156, %v9164
  %v9166 = vrot.slane %v9066, 1
  %v9167 = vsel %vm112, %v9159, %v9166
  %v9168 = vrot.slane %v9067, 1
  %v9169 = vsel %vm112, %v9162, %v9168
  %v9170 = vrot.slane %v9068, 1
  %v9171 = vsel %vm112, %v9164, %v9170
  %v9172 = vrot.slane %v9069, 1
  %v9173 = vsel %vm112, %v9166, %v9172
  %v9174 = vrot.slane %v9070, 1
  %v9175 = vsel %vm112, %v9168, %v9174
  %v9176 = vrot.slane %v9071, 1
  %v9177 = vsel %vm112, %v9170, %v9176
  %v9178 = vrot.slane %v9072, 1
  %v9179 = vsel %vm112, %v9172, %v9178
  %v9180 = vrot.slane %v9073, 1
  %v9181 = vsel %vm112, %v9174, %v9180
  %v9182 = vrot.slane %v9074, 1
  %v9183 = vsel %vm112, %v9176, %v9182
  %v9184 = vrot.slane %v9075, 1
  %v9185 = vsel %vm112, %v9178, %v9184
  %v9186 = vrot.slane %v9076, 1
  %v9187 = vsel %vm112, %v9180, %v9186
  %v9188 = vrot.slane %v9077, 1
  %v9189 = vsel %vm112, %v9182, %v9188
  %v9190 = vrot.slane %v9078, 1
  %v9191 = vsel %vm112, %v9184, %v9190
  %v9192 = vrot.slane %v9079, 1
  %v9193 = vsel %vm112, %v9186, %v9192
  %v9194 = vrot.slane %v9080, 1
  %v9195 = vsel %vm112, %v9188, %v9194
  %v9196 = vrot.slane %v9081, 1
  %v9197 = vsel %vm112, %v9190, %v9196
  %v9198 = vrot.slane %v9082, 1
  %v9199 = vsel %vm112, %v9192, %v9198
  %v9200 = vrot.slane %v9083, 1
  %v9201 = vsel %vm112, %v9194, %v9200
  %v9202 = vrot.slane %v9084, 1
  %v9203 = vsel %vm112, %v9196, %v9202
  %v9204 = vrot.slane %v9085, 1
  %v9205 = vsel %vm112, %v9198, %v9204
  %v9206 = vrot.slane %v9086, 1
  %v9207 = vsel %vm112, %v9200, %v9206
  %v9208 = vrot.slane %v9087, 1
  %v9209 = vsel %vm112, %v9202, %v9208
  %v9210 = vrot.slane %v9088, 1
  %v9211 = vsel %vm112, %v9204, %v9210
  %v9212 = vrot.slane %v9089, 1
  %v9213 = vsel %vm112, %v9206, %v9212
  %v9214 = vrot.slane %v9090, 1
  %v9215 = vsel %vm112, %v9208, %v9214
  %v9216 = vrot.slane %v9091, 1
  %v9217 = vsel %vm112, %v9210, %v9216
  %v9218 = vrot.slane %v9092, 1
  %v9219 = vsel %vm112, %v9212, %v9218
  %v9220 = vrot.slane %v9093, 1
  %v9221 = vsel %vm112, %v9214, %v9220
  %v9222 = vrot.slane %v9094, 1
  %v9223 = vsel %vm112, %v9216, %v9222
  %v9224 = vrot.slane %v9095, 1
  %v9225 = vsel %vm112, %v9218, %v9224
  %v9226 = vrot.slane %v9096, 1
  %v9227 = vsel %vm112, %v9220, %v9226
  %v9228 = vrot.slane %v9097, 1
  %v9229 = vsel %vm112, %v9222, %v9228
  %v9230 = vrot.slane %v9098, 1
  %v9231 = vsel %vm112, %v9224, %v9230
  %v9232 = vrot.slane %v9099, 1
  %v9233 = vsel %vm112, %v9226, %v9232
  %v9234 = vrot.slane %v9100, 1
  %v9235 = vsel %vm112, %v9228, %v9234
  %v9236 = vrot.slane %v9101, 1
  %v9237 = vsel %vm112, %v9230, %v9236
  %v9238 = vrot.slane %v9102, 1
  %v9239 = vsel %vm112, %v9232, %v9238
  %v9240 = vrot.slane %v9103, 1
  %v9241 = vsel %vm112, %v9234, %v9240
  %v9242 = vrot.slane %v9104, 1
  %v9243 = vsel %vm112, %v9236, %v9242
  %v9244 = vrot.slane %v9105, 1
  %v9245 = vsel %vm112, %v9238, %v9244
  %v9246 = vrot.slane %v9106, 1
  %v9247 = vsel %vm112, %v9240, %v9246
  %v9299 = vsel %vm112, %v9242, %v9155
  %v9300 = vsel %vm112, %v9244, %v9158
  %v9301 = vsel %vm112, %v9246, %v9161
  %v9302 = vmax.f32 %v9059, %v9157
  %v9303 = vmax.f32 %v9060, %v9160
  %v9304 = vmax.f32 %v9061, %v9163
  %v9305 = vmax.f32 %v9062, %v9165
  %v9306 = vmax.f32 %v9063, %v9167
  %v9307 = vmax.f32 %v9064, %v9169
  %v9308 = vmax.f32 %v9065, %v9171
  %v9309 = vmax.f32 %v9066, %v9173
  %v9310 = vmax.f32 %v9067, %v9175
  %v9311 = vmax.f32 %v9068, %v9177
  %v9312 = vmax.f32 %v9069, %v9179
  %v9313 = vmax.f32 %v9070, %v9181
  %v9314 = vmax.f32 %v9071, %v9183
  %v9315 = vmax.f32 %v9072, %v9185
  %v9316 = vmax.f32 %v9073, %v9187
  %v9317 = vmax.f32 %v9074, %v9189
  %v9318 = vmax.f32 %v9075, %v9191
  %v9319 = vmax.f32 %v9076, %v9193
  %v9320 = vmax.f32 %v9077, %v9195
  %v9321 = vmax.f32 %v9078, %v9197
  %v9322 = vmax.f32 %v9079, %v9199
  %v9323 = vmax.f32 %v9080, %v9201
  %v9324 = vmax.f32 %v9081, %v9203
  %v9325 = vmax.f32 %v9082, %v9205
  %v9326 = vmax.f32 %v9083, %v9207
  %v9327 = vmax.f32 %v9084, %v9209
  %v9328 = vmax.f32 %v9085, %v9211
  %v9329 = vmax.f32 %v9086, %v9213
  %v9330 = vmax.f32 %v9087, %v9215
  %v9331 = vmax.f32 %v9088, %v9217
  %v9332 = vmax.f32 %v9089, %v9219
  %v9333 = vmax.f32 %v9090, %v9221
  %v9334 = vmax.f32 %v9091, %v9223
  %v9335 = vmax.f32 %v9092, %v9225
  %v9336 = vmax.f32 %v9093, %v9227
  %v9337 = vmax.f32 %v9094, %v9229
  %v9338 = vmax.f32 %v9095, %v9231
  %v9339 = vmax.f32 %v9096, %v9233
  %v9340 = vmax.f32 %v9097, %v9235
  %v9341 = vmax.f32 %v9098, %v9237
  %v9342 = vmax.f32 %v9099, %v9239
  %v9343 = vmax.f32 %v9100, %v9241
  %v9344 = vmax.f32 %v9101, %v9243
  %v9345 = vmax.f32 %v9102, %v9245
  %v9346 = vmax.f32 %v9103, %v9247
  %v9347 = vmax.f32 %v9104, %v9299
  %v9348 = vmax.f32 %v9105, %v9300
  %v9349 = vmax.f32 %v9106, %v9301
  %v9350 = vld [vmem:[%s8] sm:$0xf]
  %v9351 = vld [vmem:[%s8 + $0x4] sm:$0xf]
  %v9352 = vld [vmem:[%s8 + $0x8] sm:$0xf]
  %v9353 = vld [vmem:[%s8 + $0xc] sm:$0xf]
  %v9354 = vld [vmem:[%s8 + $0x10] sm:$0xf]
  %v9355 = vld [vmem:[%s8 + $0x14] sm:$0xf]
  %v9356 = vld [vmem:[%s8 + $0x18] sm:$0xf]
  %v9357 = vld [vmem:[%s8 + $0x1c] sm:$0xf]
  %v9358 = vpack.c.bf16 %v9305, %v9302
  %v9359 = vpack.c.bf16 %v9306, %v9303
  %v9360 = vpack.c.bf16 %v9307, %v9304
  %v9361 = vpack.c.bf16 %v9311, %v9308
  %v9362 = vpack.c.bf16 %v9312, %v9309
  %v9363 = vpack.c.bf16 %v9313, %v9310
  %v9364 = vpack.c.bf16 %v9317, %v9314
  %v9365 = vpack.c.bf16 %v9318, %v9315
  %v9366 = vpack.c.bf16 %v9319, %v9316
  %v9367 = vpack.c.bf16 %v9323, %v9320
  %v9368 = vpack.c.bf16 %v9324, %v9321
  %v9369 = vpack.c.bf16 %v9325, %v9322
  %v9370 = vpack.c.bf16 %v9329, %v9326
  %v9371 = vpack.c.bf16 %v9330, %v9327
  %v9372 = vpack.c.bf16 %v9331, %v9328
  %v9373 = vpack.c.bf16 %v9335, %v9332
  %v9374 = vpack.c.bf16 %v9336, %v9333
  %v9375 = vpack.c.bf16 %v9337, %v9334
  %v9376 = vpack.c.bf16 %v9341, %v9338
  %v9377 = vpack.c.bf16 %v9342, %v9339
  %v9378 = vpack.c.bf16 %v9343, %v9340
  %v9379 = vpack.c.bf16 %v9347, %v9344
  %v9380 = vpack.c.bf16 %v9348, %v9345
  %v9381 = vpack.c.bf16 %v9349, %v9346
  %v9382 = vld [vmem:[%s7] sm:$0x7]
  %v9384 = vlaneseq
  %v9385 = vshrl.u32 %v9384, 7
  %v9386 = vsub.s32 0, %v9385
  %v9387 = vrot.slane %v9382, %v9386
  %v9388 = vlaneseq
  %v9389 = vshrl.u32 %v9388, 7
  %v9390 = vsub.s32 1, %v9389
  %v9391 = vrot.slane %v9382, %v9390
  %v9392 = vlaneseq
  %v9393 = vshrl.u32 %v9392, 7
  %v9394 = vsub.s32 2, %v9393
  %v9395 = vrot.slane %v9382, %v9394
  %v9407 = vunpack.c.l.b16 %v9350
  %v9408 = vunpack.c.l.b16 %v9351
  %v9409 = vunpack.c.l.b16 %v9352
  %v9410 = vunpack.c.l.b16 %v9353
  %v9411 = vunpack.c.l.b16 %v9354
  %v9412 = vunpack.c.l.b16 %v9355
  %v9413 = vunpack.c.l.b16 %v9356
  %v9414 = vunpack.c.l.b16 %v9357
  %v9415 = vpack.c.b16 %v9408, %v9407
  %v9416 = vpack.c.b16 %v9410, %v9409
  %v9417 = vpack.c.b16 %v9412, %v9411
  %v9418 = vpack.c.b16 %v9414, %v9413
  %9423 = vmatprep.subr.bf16.mxu0 %v9359
  %9424 = vmatpush1.bf16.msra.mxu0 %v9358
  %9425 = vmatprep.subr.bf16.mxu0 %v9362
  %9426 = vmatpush1.bf16.msra.mxu0 %v9361
  %9427 = vmatprep.subr.bf16.mxu0 %v9365
  %9428 = vmatpush1.bf16.msra.mxu0 %v9364
  %9429 = vmatprep.subr.bf16.mxu0 %v9368
  %9430 = vmatpush1.bf16.msra.mxu0 %v9367
  %9431 = vmatprep.subr.bf16.mxu0 %v9371
  %9432 = vmatpush1.bf16.msra.mxu0 %v9370
  %9433 = vmatprep.subr.bf16.mxu0 %v9374
  %9434 = vmatpush1.bf16.msra.mxu0 %v9373
  %9435 = vmatprep.subr.bf16.mxu0 %v9377
  %9436 = vmatpush1.bf16.msra.mxu0 %v9376
  %9437 = vmatprep.subr.bf16.mxu0 %v9380
  %9438 = vmatpush1.bf16.msra.mxu0 %v9379
  %9439 = vmatprep.subr.bf16.mxu0 0
  %9440 = vmatpush1.bf16.msra.mxu0 0
  %9441 = vmatprep.subr.bf16.mxu0 0
  %9442 = vmatpush1.bf16.msra.mxu0 0
  %9443 = vmatprep.subr.bf16.mxu0 0
  %9444 = vmatpush1.bf16.msra.mxu0 0
  %9445 = vmatprep.subr.bf16.mxu0 0
  %9446 = vmatpush1.bf16.msra.mxu0 0
  %9447 = vmatprep.subr.bf16.mxu0 0
  %9448 = vmatpush1.bf16.msra.mxu0 0
  %9449 = vmatprep.subr.bf16.mxu0 0
  %9450 = vmatpush1.bf16.msra.mxu0 0
  %9451 = vmatprep.subr.bf16.mxu0 0
  %9452 = vmatpush1.bf16.msra.mxu0 0
  %9453 = vmatprep.subr.bf16.mxu0 0
  %9454 = vmatpush1.bf16.msra.mxu0 0
  %9455 = vmatprep.mubr.bf16.mxu0 0
  %9456 = vmatmul.mubr.bf16.gmra.mrb[0].mxu0 %v9415
  %v9457 = vpop.f32.mrb[0].mxu0
  %v9458 = vadd.f32 %v9387, %v9457
  %v9459 = vpop.f32.mrb[0].mxu0
  %v9460 = vadd.f32 %v9391, %v9459
  %v9461 = vpop.f32.mrb[0].mxu0
  %v9462 = vadd.f32 %v9387, %v9461
  %v9463 = vpop.f32.mrb[0].mxu0
  %v9464 = vadd.f32 %v9391, %v9463
  %9465 = vmatprep.mubr.bf16.mxu0 0
  %9466 = vmatmul.mubr.bf16.gmra.mrb[0].mxu0 %v9416
  %v9467 = vpop.f32.mrb[0].mxu0
  %v9468 = vadd.f32 %v9387, %v9467
  %v9469 = vpop.f32.mrb[0].mxu0
  %v9470 = vadd.f32 %v9391, %v9469
  %v9471 = vpop.f32.mrb[0].mxu0
  %v9472 = vadd.f32 %v9387, %v9471
  %v9473 = vpop.f32.mrb[0].mxu0
  %v9474 = vadd.f32 %v9391, %v9473
  %9475 = vmatprep.mubr.bf16.mxu0 0
  %9476 = vmatmul.mubr.bf16.gmra.mrb[0].mxu0 %v9417
  %v9477 = vpop.f32.mrb[0].mxu0
  %v9478 = vadd.f32 %v9387, %v9477
  %v9479 = vpop.f32.mrb[0].mxu0
  %v9480 = vadd.f32 %v9391, %v9479
  %v9481 = vpop.f32.mrb[0].mxu0
  %v9482 = vadd.f32 %v9387, %v9481
  %v9483 = vpop.f32.mrb[0].mxu0
  %v9484 = vadd.f32 %v9391, %v9483
  %9485 = vmatprep.mubr.bf16.mxu0 0
  %9486 = vmatmul.mubr.bf16.gmra.mrb[0].mxu0 %v9418
  %v9487 = vpop.f32.mrb[0].mxu0
  %v9488 = vadd.f32 %v9387, %v9487
  %v9489 = vpop.f32.mrb[0].mxu0
  %v9490 = vadd.f32 %v9391, %v9489
  %v9491 = vpop.f32.mrb[0].mxu0
  %v9492 = vadd.f32 %v9387, %v9491
  %v9493 = vpop.f32.mrb[0].mxu0
  %v9494 = vadd.f32 %v9391, %v9493
  %9495 = vdwg.mxu0
  %9496 = vmatprep.subr.bf16.mxu0 0
  %9497 = vmatpush1.bf16.msra.mxu0 %v9360
  %9498 = vmatprep.subr.bf16.mxu0 0
  %9499 = vmatpush1.bf16.msra.mxu0 %v9363
  %9500 = vmatprep.subr.bf16.mxu0 0
  %9501 = vmatpush1.bf16.msra.mxu0 %v9366
  %9502 = vmatprep.subr.bf16.mxu0 0
  %9503 = vmatpush1.bf16.msra.mxu0 %v9369
  %9504 = vmatprep.subr.bf16.mxu0 0
  %9505 = vmatpush1.bf16.msra.mxu0 %v9372
  %9506 = vmatprep.subr.bf16.mxu0 0
  %9507 = vmatpush1.bf16.msra.mxu0 %v9375
  %9508 = vmatprep.subr.bf16.mxu0 0
  %9509 = vmatpush1.bf16.msra.mxu0 %v9378
  %9510 = vmatprep.subr.bf16.mxu0 0
  %9511 = vmatpush1.bf16.msra.mxu0 %v9381
  %9512 = vmatprep.subr.bf16.mxu0 0
  %9513 = vmatpush1.bf16.msra.mxu0 0
  %9514 = vmatprep.subr.bf16.mxu0 0
  %9515 = vmatpush1.bf16.msra.mxu0 0
  %9516 = vmatprep.subr.bf16.mxu0 0
  %9517 = vmatpush1.bf16.msra.mxu0 0
  %9518 = vmatprep.subr.bf16.mxu0 0
  %9519 = vmatpush1.bf16.msra.mxu0 0
  %9520 = vmatprep.subr.bf16.mxu0 0
  %9521 = vmatpush1.bf16.msra.mxu0 0
  %9522 = vmatprep.subr.bf16.mxu0 0
  %9523 = vmatpush1.bf16.msra.mxu0 0
  %9524 = vmatprep.subr.bf16.mxu0 0
  %9525 = vmatpush1.bf16.msra.mxu0 0
  %9526 = vmatprep.subr.bf16.mxu0 0
  %9527 = vmatpush1.bf16.msra.mxu0 0
  %9528 = vmatprep.mubr.bf16.mxu0 0
  %9529 = vmatmul.mubr.bf16.gmra.mrb[0].mxu0 %v9415
  %v9530 = vpop.f32.mrb[0].mxu0
  %v9531 = vadd.f32 %v9395, %v9530
  %v9532 = vpop.f32.mrb[0].mxu0
  %v9533 = vpop.f32.mrb[0].mxu0
  %v9534 = vadd.f32 %v9395, %v9533
  %v9535 = vpop.f32.mrb[0].mxu0
  %9536 = vmatprep.mubr.bf16.mxu0 0
  %9537 = vmatmul.mubr.bf16.gmra.mrb[0].mxu0 %v9416
  %v9538 = vpop.f32.mrb[0].mxu0
  %v9539 = vadd.f32 %v9395, %v9538
  %v9540 = vpop.f32.mrb[0].mxu0
  %v9541 = vpop.f32.mrb[0].mxu0
  %v9542 = vadd.f32 %v9395, %v9541
  %v9543 = vpop.f32.mrb[0].mxu0
  %9544 = vmatprep.mubr.bf16.mxu0 0
  %9545 = vmatmul.mubr.bf16.gmra.mrb[0].mxu0 %v9417
  %v9546 = vpop.f32.mrb[0].mxu0
  %v9547 = vadd.f32 %v9395, %v9546
  %v9548 = vpop.f32.mrb[0].mxu0
  %v9549 = vpop.f32.mrb[0].mxu0
  %v9550 = vadd.f32 %v9395, %v9549
  %v9551 = vpop.f32.mrb[0].mxu0
  %9552 = vmatprep.mubr.bf16.mxu0 0
  %9553 = vmatmul.mubr.bf16.gmra.mrb[0].mxu0 %v9418
  %v9554 = vpop.f32.mrb[0].mxu0
  %v9555 = vadd.f32 %v9395, %v9554
  %v9556 = vpop.f32.mrb[0].mxu0
  %v9557 = vpop.f32.mrb[0].mxu0
  %v9558 = vadd.f32 %v9395, %v9557
  %v9559 = vpop.f32.mrb[0].mxu0
  %9560 = vdwg.mxu0
  %v9561 = vmax.f32 %v9458, 0.0
  %v9562 = vmax.f32 %v9460, 0.0
  %v9563 = vmax.f32 %v9531, 0.0
  %v9564 = vmax.f32 %v9462, 0.0
  %v9565 = vmax.f32 %v9464, 0.0
  %v9566 = vmax.f32 %v9534, 0.0
  %v9567 = vmax.f32 %v9468, 0.0
  %v9568 = vmax.f32 %v9470, 0.0
  %v9569 = vmax.f32 %v9539, 0.0
  %v9570 = vmax.f32 %v9472, 0.0
  %v9571 = vmax.f32 %v9474, 0.0
  %v9572 = vmax.f32 %v9542, 0.0
  %v9573 = vmax.f32 %v9478, 0.0
  %v9574 = vmax.f32 %v9480, 0.0
  %v9575 = vmax.f32 %v9547, 0.0
  %v9576 = vmax.f32 %v9482, 0.0
  %v9577 = vmax.f32 %v9484, 0.0
  %v9578 = vmax.f32 %v9550, 0.0
  %v9579 = vmax.f32 %v9488, 0.0
  %v9580 = vmax.f32 %v9490, 0.0
  %v9581 = vmax.f32 %v9555, 0.0
  %v9582 = vmax.f32 %v9492, 0.0
  %v9583 = vmax.f32 %v9494, 0.0
  %v9584 = vmax.f32 %v9558, 0.0
  %v9609 = vrot.slane %v9561, 1
  %v9610 = vrot.slane %v9564, 1
  %v9611 = vsel %vm112, %v9609, %v9610
  %v9612 = vrot.slane %v9562, 1
  %v9613 = vrot.slane %v9565, 1
  %v9614 = vsel %vm112, %v9612, %v9613
  %v9615 = vrot.slane %v9563, 1
  %v9616 = vrot.slane %v9566, 1
  %v9617 = vsel %vm112, %v9615, %v9616
  %v9618 = vrot.slane %v9567, 1
  %v9619 = vsel %vm112, %v9610, %v9618
  %v9620 = vrot.slane %v9568, 1
  %v9621 = vsel %vm112, %v9613, %v9620
  %v9622 = vrot.slane %v9569, 1
  %v9623 = vsel %vm112, %v9616, %v9622
  %v9624 = vrot.slane %v9570, 1
  %v9625 = vsel %vm112, %v9618, %v9624
  %v9626 = vrot.slane %v9571, 1
  %v9627 = vsel %vm112, %v9620, %v9626
  %v9628 = vrot.slane %v9572, 1
  %v9629 = vsel %vm112, %v9622, %v9628
  %v9630 = vrot.slane %v9573, 1
  %v9631 = vsel %vm112, %v9624, %v9630
  %v9632 = vrot.slane %v9574, 1
  %v9633 = vsel %vm112, %v9626, %v9632
  %v9634 = vrot.slane %v9575, 1
  %v9635 = vsel %vm112, %v9628, %v9634
  %v9636 = vrot.slane %v9576, 1
  %v9637 = vsel %vm112, %v9630, %v9636
  %v9638 = vrot.slane %v9577, 1
  %v9639 = vsel %vm112, %v9632, %v9638
  %v9640 = vrot.slane %v9578, 1
  %v9641 = vsel %vm112, %v9634, %v9640
  %v9642 = vrot.slane %v9579, 1
  %v9643 = vsel %vm112, %v9636, %v9642
  %v9644 = vrot.slane %v9580, 1
  %v9645 = vsel %vm112, %v9638, %v9644
  %v9646 = vrot.slane %v9581, 1
  %v9647 = vsel %vm112, %v9640, %v9646
  %v9648 = vrot.slane %v9582, 1
  %v9649 = vsel %vm112, %v9642, %v9648
  %v9650 = vrot.slane %v9583, 1
  %v9651 = vsel %vm112, %v9644, %v9650
  %v9652 = vrot.slane %v9584, 1
  %v9653 = vsel %vm112, %v9646, %v9652
  %v9660 = vsel %vm112, %v9648, %v9609
  %v9661 = vsel %vm112, %v9650, %v9612
  %v9662 = vsel %vm112, %v9652, %v9615
  %v9663 = vrot.slane %v9561, 2
  %v9664 = vrot.slane %v9564, 2
  %v9665 = vsel %vm179, %v9663, %v9664
  %v9666 = vrot.slane %v9562, 2
  %v9667 = vrot.slane %v9565, 2
  %v9668 = vsel %vm179, %v9666, %v9667
  %v9669 = vrot.slane %v9563, 2
  %v9670 = vrot.slane %v9566, 2
  %v9671 = vsel %vm179, %v9669, %v9670
  %v9672 = vrot.slane %v9567, 2
  %v9673 = vsel %vm179, %v9664, %v9672
  %v9674 = vrot.slane %v9568, 2
  %v9675 = vsel %vm179, %v9667, %v9674
  %v9676 = vrot.slane %v9569, 2
  %v9677 = vsel %vm179, %v9670, %v9676
  %v9678 = vrot.slane %v9570, 2
  %v9679 = vsel %vm179, %v9672, %v9678
  %v9680 = vrot.slane %v9571, 2
  %v9681 = vsel %vm179, %v9674, %v9680
  %v9682 = vrot.slane %v9572, 2
  %v9683 = vsel %vm179, %v9676, %v9682
  %v9684 = vrot.slane %v9573, 2
  %v9685 = vsel %vm179, %v9678, %v9684
  %v9686 = vrot.slane %v9574, 2
  %v9687 = vsel %vm179, %v9680, %v9686
  %v9688 = vrot.slane %v9575, 2
  %v9689 = vsel %vm179, %v9682, %v9688
  %v9690 = vrot.slane %v9576, 2
  %v9691 = vsel %vm179, %v9684, %v9690
  %v9692 = vrot.slane %v9577, 2
  %v9693 = vsel %vm179, %v9686, %v9692
  %v9694 = vrot.slane %v9578, 2
  %v9695 = vsel %vm179, %v9688, %v9694
  %v9696 = vrot.slane %v9579, 2
  %v9697 = vsel %vm179, %v9690, %v9696
  %v9698 = vrot.slane %v9580, 2
  %v9699 = vsel %vm179, %v9692, %v9698
  %v9700 = vrot.slane %v9581, 2
  %v9701 = vsel %vm179, %v9694, %v9700
  %v9702 = vrot.slane %v9582, 2
  %v9703 = vsel %vm179, %v9696, %v9702
  %v9704 = vrot.slane %v9583, 2
  %v9705 = vsel %vm179, %v9698, %v9704
  %v9706 = vrot.slane %v9584, 2
  %v9707 = vsel %vm179, %v9700, %v9706
  %v9735 = vsel %vm179, %v9702, %v9663
  %v9736 = vsel %vm179, %v9704, %v9666
  %v9737 = vsel %vm179, %v9706, %v9669
  %vm9738 = vcmask 1044480
  %v9739 = vrot.slane %v9561, 3
  %v9740 = vrot.slane %v9564, 3
  %v9741 = vsel %vm9738, %v9739, %v9740
  %v9742 = vrot.slane %v9562, 3
  %v9743 = vrot.slane %v9565, 3
  %v9744 = vsel %vm9738, %v9742, %v9743
  %v9745 = vrot.slane %v9563, 3
  %v9746 = vrot.slane %v9566, 3
  %v9747 = vsel %vm9738, %v9745, %v9746
  %v9748 = vrot.slane %v9567, 3
  %v9749 = vsel %vm9738, %v9740, %v9748
  %v9750 = vrot.slane %v9568, 3
  %v9751 = vsel %vm9738, %v9743, %v9750
  %v9752 = vrot.slane %v9569, 3
  %v9753 = vsel %vm9738, %v9746, %v9752
  %v9754 = vrot.slane %v9570, 3
  %v9755 = vsel %vm9738, %v9748, %v9754
  %v9756 = vrot.slane %v9571, 3
  %v9757 = vsel %vm9738, %v9750, %v9756
  %v9758 = vrot.slane %v9572, 3
  %v9759 = vsel %vm9738, %v9752, %v9758
  %v9760 = vrot.slane %v9573, 3
  %v9761 = vsel %vm9738, %v9754, %v9760
  %v9762 = vrot.slane %v9574, 3
  %v9763 = vsel %vm9738, %v9756, %v9762
  %v9764 = vrot.slane %v9575, 3
  %v9765 = vsel %vm9738, %v9758, %v9764
  %v9766 = vrot.slane %v9576, 3
  %v9767 = vsel %vm9738, %v9760, %v9766
  %v9768 = vrot.slane %v9577, 3
  %v9769 = vsel %vm9738, %v9762, %v9768
  %v9770 = vrot.slane %v9578, 3
  %v9771 = vsel %vm9738, %v9764, %v9770
  %v9772 = vrot.slane %v9579, 3
  %v9773 = vsel %vm9738, %v9766, %v9772
  %v9774 = vrot.slane %v9580, 3
  %v9775 = vsel %vm9738, %v9768, %v9774
  %v9776 = vrot.slane %v9581, 3
  %v9777 = vsel %vm9738, %v9770, %v9776
  %v9778 = vrot.slane %v9582, 3
  %v9779 = vsel %vm9738, %v9772, %v9778
  %v9780 = vrot.slane %v9583, 3
  %v9781 = vsel %vm9738, %v9774, %v9780
  %v9782 = vrot.slane %v9584, 3
  %v9783 = vsel %vm9738, %v9776, %v9782
  %v9790 = vsel %vm9738, %v9778, %v9739
  %v9791 = vsel %vm9738, %v9780, %v9742
  %v9792 = vsel %vm9738, %v9782, %v9745
  %vm9793 = vcmask 1043456
  %v9794 = vrot.slane %v9561, 4
  %v9795 = vrot.slane %v9564, 4
  %v9796 = vsel %vm9793, %v9794, %v9795
  %v9797 = vrot.slane %v9562, 4
  %v9798 = vrot.slane %v9565, 4
  %v9799 = vsel %vm9793, %v9797, %v9798
  %v9800 = vrot.slane %v9563, 4
  %v9801 = vrot.slane %v9566, 4
  %v9802 = vsel %vm9793, %v9800, %v9801
  %v9803 = vrot.slane %v9567, 4
  %v9804 = vsel %vm9793, %v9795, %v9803
  %v9805 = vrot.slane %v9568, 4
  %v9806 = vsel %vm9793, %v9798, %v9805
  %v9807 = vrot.slane %v9569, 4
  %v9808 = vsel %vm9793, %v9801, %v9807
  %v9809 = vrot.slane %v9570, 4
  %v9810 = vsel %vm9793, %v9803, %v9809
  %v9811 = vrot.slane %v9571, 4
  %v9812 = vsel %vm9793, %v9805, %v9811
  %v9813 = vrot.slane %v9572, 4
  %v9814 = vsel %vm9793, %v9807, %v9813
  %v9815 = vrot.slane %v9573, 4
  %v9816 = vsel %vm9793, %v9809, %v9815
  %v9817 = vrot.slane %v9574, 4
  %v9818 = vsel %vm9793, %v9811, %v9817
  %v9819 = vrot.slane %v9575, 4
  %v9820 = vsel %vm9793, %v9813, %v9819
  %v9821 = vrot.slane %v9576, 4
  %v9822 = vsel %vm9793, %v9815, %v9821
  %v9823 = vrot.slane %v9577, 4
  %v9824 = vsel %vm9793, %v9817, %v9823
  %v9825 = vrot.slane %v9578, 4
  %v9826 = vsel %vm9793, %v9819, %v9825
  %v9827 = vrot.slane %v9579, 4
  %v9828 = vsel %vm9793, %v9821, %v9827
  %v9829 = vrot.slane %v9580, 4
  %v9830 = vsel %vm9793, %v9823, %v9829
  %v9831 = vrot.slane %v9581, 4
  %v9832 = vsel %vm9793, %v9825, %v9831
  %v9833 = vrot.slane %v9582, 4
  %v9834 = vsel %vm9793, %v9827, %v9833
  %v9835 = vrot.slane %v9583, 4
  %v9836 = vsel %vm9793, %v9829, %v9835
  %v9837 = vrot.slane %v9584, 4
  %v9838 = vsel %vm9793, %v9831, %v9837
  %v9866 = vsel %vm9793, %v9833, %v9794
  %v9867 = vsel %vm9793, %v9835, %v9797
  %v9868 = vsel %vm9793, %v9837, %v9800
  %9872 = vrot.lane.b32.xlu0 %v9611, 64
  %v9873 = vpop.permute.xlu0 %9872
  %9874 = vrot.lane.b32.xlu0 %v9614, 64
  %v9875 = vpop.permute.xlu0 %9874
  %9876 = vrot.lane.b32.xlu0 %v9617, 64
  %v9877 = vpop.permute.xlu0 %9876
  %9878 = vrot.lane.b32.xlu0 %v9619, 64
  %v9879 = vpop.permute.xlu0 %9878
  %9880 = vrot.lane.b32.xlu0 %v9621, 64
  %v9881 = vpop.permute.xlu0 %9880
  %9882 = vrot.lane.b32.xlu0 %v9623, 64
  %v9883 = vpop.permute.xlu0 %9882
  %9884 = vrot.lane.b32.xlu0 %v9625, 64
  %v9885 = vpop.permute.xlu0 %9884
  %9886 = vrot.lane.b32.xlu0 %v9627, 64
  %v9887 = vpop.permute.xlu0 %9886
  %9888 = vrot.lane.b32.xlu0 %v9629, 64
  %v9889 = vpop.permute.xlu0 %9888
  %9890 = vrot.lane.b32.xlu0 %v9631, 64
  %v9891 = vpop.permute.xlu0 %9890
  %9892 = vrot.lane.b32.xlu0 %v9633, 64
  %v9893 = vpop.permute.xlu0 %9892
  %9894 = vrot.lane.b32.xlu0 %v9635, 64
  %v9895 = vpop.permute.xlu0 %9894
  %9896 = vrot.lane.b32.xlu0 %v9637, 64
  %v9897 = vpop.permute.xlu0 %9896
  %9898 = vrot.lane.b32.xlu0 %v9639, 64
  %v9899 = vpop.permute.xlu0 %9898
  %9900 = vrot.lane.b32.xlu0 %v9641, 64
  %v9901 = vpop.permute.xlu0 %9900
  %9902 = vrot.lane.b32.xlu0 %v9643, 64
  %v9903 = vpop.permute.xlu0 %9902
  %9904 = vrot.lane.b32.xlu0 %v9645, 64
  %v9905 = vpop.permute.xlu0 %9904
  %9906 = vrot.lane.b32.xlu0 %v9647, 64
  %v9907 = vpop.permute.xlu0 %9906
  %9908 = vrot.lane.b32.xlu0 %v9649, 64
  %v9909 = vpop.permute.xlu0 %9908
  %9910 = vrot.lane.b32.xlu0 %v9651, 64
  %v9911 = vpop.permute.xlu0 %9910
  %9912 = vrot.lane.b32.xlu0 %v9653, 64
  %v9913 = vpop.permute.xlu0 %9912
  %9914 = vrot.lane.b32.xlu0 %v9660, 64
  %v9915 = vpop.permute.xlu0 %9914
  %9916 = vrot.lane.b32.xlu0 %v9661, 64
  %v9917 = vpop.permute.xlu0 %9916
  %9918 = vrot.lane.b32.xlu0 %v9662, 64
  %v9919 = vpop.permute.xlu0 %9918
  %v9920 = vsel %vm3589, %v9873, %v9875
  %v9921 = vsel %vm3589, %v9875, %v9877
  %v9922 = vsel %vm3589, %v9879, %v9881
  %v9923 = vsel %vm3589, %v9881, %v9883
  %v9924 = vsel %vm3589, %v9885, %v9887
  %v9925 = vsel %vm3589, %v9887, %v9889
  %v9926 = vsel %vm3589, %v9891, %v9893
  %v9927 = vsel %vm3589, %v9893, %v9895
  %v9928 = vsel %vm3589, %v9897, %v9899
  %v9929 = vsel %vm3589, %v9899, %v9901
  %v9930 = vsel %vm3589, %v9903, %v9905
  %v9931 = vsel %vm3589, %v9905, %v9907
  %v9932 = vsel %vm3589, %v9909, %v9911
  %v9933 = vsel %vm3589, %v9911, %v9913
  %v9934 = vsel %vm3589, %v9915, %v9917
  %v9935 = vsel %vm3589, %v9917, %v9919
  %9963 = vrot.lane.b32.xlu0 %v9741, 64
  %v9964 = vpop.permute.xlu0 %9963
  %9965 = vrot.lane.b32.xlu0 %v9744, 64
  %v9966 = vpop.permute.xlu0 %9965
  %9967 = vrot.lane.b32.xlu0 %v9747, 64
  %v9968 = vpop.permute.xlu0 %9967
  %9969 = vrot.lane.b32.xlu0 %v9749, 64
  %v9970 = vpop.permute.xlu0 %9969
  %9971 = vrot.lane.b32.xlu0 %v9751, 64
  %v9972 = vpop.permute.xlu0 %9971
  %9973 = vrot.lane.b32.xlu0 %v9753, 64
  %v9974 = vpop.permute.xlu0 %9973
  %9975 = vrot.lane.b32.xlu0 %v9755, 64
  %v9976 = vpop.permute.xlu0 %9975
  %9977 = vrot.lane.b32.xlu0 %v9757, 64
  %v9978 = vpop.permute.xlu0 %9977
  %9979 = vrot.lane.b32.xlu0 %v9759, 64
  %v9980 = vpop.permute.xlu0 %9979
  %9981 = vrot.lane.b32.xlu0 %v9761, 64
  %v9982 = vpop.permute.xlu0 %9981
  %9983 = vrot.lane.b32.xlu0 %v9763, 64
  %v9984 = vpop.permute.xlu0 %9983
  %9985 = vrot.lane.b32.xlu0 %v9765, 64
  %v9986 = vpop.permute.xlu0 %9985
  %9987 = vrot.lane.b32.xlu0 %v9767, 64
  %v9988 = vpop.permute.xlu0 %9987
  %9989 = vrot.lane.b32.xlu0 %v9769, 64
  %v9990 = vpop.permute.xlu0 %9989
  %9991 = vrot.lane.b32.xlu0 %v9771, 64
  %v9992 = vpop.permute.xlu0 %9991
  %9993 = vrot.lane.b32.xlu0 %v9773, 64
  %v9994 = vpop.permute.xlu0 %9993
  %9995 = vrot.lane.b32.xlu0 %v9775, 64
  %v9996 = vpop.permute.xlu0 %9995
  %9997 = vrot.lane.b32.xlu0 %v9777, 64
  %v9998 = vpop.permute.xlu0 %9997
  %9999 = vrot.lane.b32.xlu0 %v9779, 64
  %v10000 = vpop.permute.xlu0 %9999
  %10001 = vrot.lane.b32.xlu0 %v9781, 64
  %v10002 = vpop.permute.xlu0 %10001
  %10003 = vrot.lane.b32.xlu0 %v9783, 64
  %v10004 = vpop.permute.xlu0 %10003
  %10005 = vrot.lane.b32.xlu0 %v9790, 64
  %v10006 = vpop.permute.xlu0 %10005
  %10007 = vrot.lane.b32.xlu0 %v9791, 64
  %v10008 = vpop.permute.xlu0 %10007
  %10009 = vrot.lane.b32.xlu0 %v9792, 64
  %v10010 = vpop.permute.xlu0 %10009
  %v10011 = vsel %vm3589, %v9964, %v9966
  %v10012 = vsel %vm3589, %v9966, %v9968
  %v10013 = vsel %vm3589, %v9970, %v9972
  %v10014 = vsel %vm3589, %v9972, %v9974
  %v10015 = vsel %vm3589, %v9976, %v9978
  %v10016 = vsel %vm3589, %v9978, %v9980
  %v10017 = vsel %vm3589, %v9982, %v9984
  %v10018 = vsel %vm3589, %v9984, %v9986
  %v10019 = vsel %vm3589, %v9988, %v9990
  %v10020 = vsel %vm3589, %v9990, %v9992
  %v10021 = vsel %vm3589, %v9994, %v9996
  %v10022 = vsel %vm3589, %v9996, %v9998
  %v10023 = vsel %vm3589, %v10000, %v10002
  %v10024 = vsel %vm3589, %v10002, %v10004
  %v10025 = vsel %vm3589, %v10006, %v10008
  %v10026 = vsel %vm3589, %v10008, %v10010
  %v10051 = vsel %vm3589, %v9563, %v9873
  %v10052 = vsel %vm3589, %v9566, %v9879
  %v10053 = vsel %vm3589, %v9569, %v9885
  %v10054 = vsel %vm3589, %v9572, %v9891
  %v10055 = vsel %vm3589, %v9575, %v9897
  %v10056 = vsel %vm3589, %v9578, %v9903
  %v10057 = vsel %vm3589, %v9581, %v9909
  %v10058 = vsel %vm3589, %v9584, %v9915
  %v10059 = vsel %vm3589, %v9671, %v9964
  %v10060 = vsel %vm3589, %v9677, %v9970
  %v10061 = vsel %vm3589, %v9683, %v9976
  %v10062 = vsel %vm3589, %v9689, %v9982
  %v10063 = vsel %vm3589, %v9695, %v9988
  %v10064 = vsel %vm3589, %v9701, %v9994
  %v10065 = vsel %vm3589, %v9707, %v10000
  %v10066 = vsel %vm3589, %v9737, %v10006
  %v10067 = vpack.c.bf16 %v9564, %v9561
  %v10068 = vpack.c.bf16 %v9565, %v9562
  %v10069 = vpack.c.bf16 %v10052, %v10051
  %v10070 = vpack.c.bf16 %v9922, %v9920
  %v10071 = vpack.c.bf16 %v9923, %v9921
  %v10072 = vpack.c.bf16 %v9673, %v9665
  %v10073 = vpack.c.bf16 %v9675, %v9668
  %v10074 = vpack.c.bf16 %v10060, %v10059
  %v10075 = vpack.c.bf16 %v10013, %v10011
  %v10076 = vpack.c.bf16 %v10014, %v10012
  %v10077 = vpack.c.bf16 %v9804, %v9796
  %v10078 = vpack.c.bf16 %v9806, %v9799
  %v10079 = vpack.c.bf16 %v9808, %v9802
  %v10080 = vpack.c.bf16 %v9570, %v9567
  %v10081 = vpack.c.bf16 %v9571, %v9568
  %v10082 = vpack.c.bf16 %v10054, %v10053
  %v10083 = vpack.c.bf16 %v9926, %v9924
  %v10084 = vpack.c.bf16 %v9927, %v9925
  %v10085 = vpack.c.bf16 %v9685, %v9679
  %v10086 = vpack.c.bf16 %v9687, %v9681
  %v10087 = vpack.c.bf16 %v10062, %v10061
  %v10088 = vpack.c.bf16 %v10017, %v10015
  %v10089 = vpack.c.bf16 %v10018, %v10016
  %v10090 = vpack.c.bf16 %v9816, %v9810
  %v10091 = vpack.c.bf16 %v9818, %v9812
  %v10092 = vpack.c.bf16 %v9820, %v9814
  %v10093 = vpack.c.bf16 %v9576, %v9573
  %v10094 = vpack.c.bf16 %v9577, %v9574
  %v10095 = vpack.c.bf16 %v10056, %v10055
  %v10096 = vpack.c.bf16 %v9930, %v9928
  %v10097 = vpack.c.bf16 %v9931, %v9929
  %v10098 = vpack.c.bf16 %v9697, %v9691
  %v10099 = vpack.c.bf16 %v9699, %v9693
  %v10100 = vpack.c.bf16 %v10064, %v10063
  %v10101 = vpack.c.bf16 %v10021, %v10019
  %v10102 = vpack.c.bf16 %v10022, %v10020
  %v10103 = vpack.c.bf16 %v9828, %v9822
  %v10104 = vpack.c.bf16 %v9830, %v9824
  %v10105 = vpack.c.bf16 %v9832, %v9826
  %v10106 = vpack.c.bf16 %v9582, %v9579
  %v10107 = vpack.c.bf16 %v9583, %v9580
  %v10108 = vpack.c.bf16 %v10058, %v10057
  %v10109 = vpack.c.bf16 %v9934, %v9932
  %v10110 = vpack.c.bf16 %v9935, %v9933
  %v10111 = vpack.c.bf16 %v9735, %v9703
  %v10112 = vpack.c.bf16 %v9736, %v9705
  %v10113 = vpack.c.bf16 %v10066, %v10065
  %v10114 = vpack.c.bf16 %v10025, %v10023
  %v10115 = vpack.c.bf16 %v10026, %v10024
  %v10116 = vpack.c.bf16 %v9866, %v9834
  %v10117 = vpack.c.bf16 %v9867, %v9836
  %v10118 = vpack.c.bf16 %v9868, %v9838
  %v10119 = vld [vmem:[%s9] sm:$0xf]
  %v10121 = vsel %vm3589, %v10119, 0
  %10123 = vmatprep.subr.bf16.mxu0 %v10068
  %10124 = vmatpush1.bf16.msra.mxu0 %v10067
  %10125 = vmatprep.subr.bf16.mxu0 %v10081
  %10126 = vmatpush1.bf16.msra.mxu0 %v10080
  %10127 = vmatprep.subr.bf16.mxu0 %v10094
  %10128 = vmatpush1.bf16.msra.mxu0 %v10093
  %10129 = vmatprep.subr.bf16.mxu0 %v10107
  %10130 = vmatpush1.bf16.msra.mxu0 %v10106
  %10131 = vmatprep.subr.bf16.mxu0 0
  %10132 = vmatpush1.bf16.msra.mxu0 0
  %10133 = vmatprep.subr.bf16.mxu0 0
  %10134 = vmatpush1.bf16.msra.mxu0 0
  %10135 = vmatprep.subr.bf16.mxu0 0
  %10136 = vmatpush1.bf16.msra.mxu0 0
  %10137 = vmatprep.subr.bf16.mxu0 0
  %10138 = vmatpush1.bf16.msra.mxu0 0
  %10139 = vmatprep.subr.bf16.mxu0 0
  %10140 = vmatpush1.bf16.msra.mxu0 0
  %10141 = vmatprep.subr.bf16.mxu0 0
  %10142 = vmatpush1.bf16.msra.mxu0 0
  %10143 = vmatprep.subr.bf16.mxu0 0
  %10144 = vmatpush1.bf16.msra.mxu0 0
  %10145 = vmatprep.subr.bf16.mxu0 0
  %10146 = vmatpush1.bf16.msra.mxu0 0
  %10147 = vmatprep.subr.bf16.mxu0 0
  %10148 = vmatpush1.bf16.msra.mxu0 0
  %10149 = vmatprep.subr.bf16.mxu0 0
  %10150 = vmatpush1.bf16.msra.mxu0 0
  %10151 = vmatprep.subr.bf16.mxu0 0
  %10152 = vmatpush1.bf16.msra.mxu0 0
  %10153 = vmatprep.subr.bf16.mxu0 0
  %10154 = vmatpush1.bf16.msra.mxu0 0
  %10155 = vmatprep.mubr.bf16.mxu0 0
  %10156 = vmatmul.mubr.bf16.gmra.mrb[0].mxu0 %v10121
  %v10157 = vpop.f32.mrb[0].mxu0
  %v10158 = vadd.f32 0.0, %v10157
  %v10159 = vpop.f32.mrb[0].mxu0
  %v10160 = vadd.f32 0.0, %v10159
  %v10161 = vpop.f32.mrb[0].mxu0
  %v10162 = vpop.f32.mrb[0].mxu0
  %10163 = vdwg.mxu0
  %10164 = vmatprep.subr.bf16.mxu0 %v10070
  %10165 = vmatpush1.bf16.msra.mxu0 %v10069
  %10166 = vmatprep.subr.bf16.mxu0 %v10083
  %10167 = vmatpush1.bf16.msra.mxu0 %v10082
  %10168 = vmatprep.subr.bf16.mxu0 %v10096
  %10169 = vmatpush1.bf16.msra.mxu0 %v10095
  %10170 = vmatprep.subr.bf16.mxu0 %v10109
  %10171 = vmatpush1.bf16.msra.mxu0 %v10108
  %10172 = vmatprep.subr.bf16.mxu0 0
  %10173 = vmatpush1.bf16.msra.mxu0 0
  %10174 = vmatprep.subr.bf16.mxu0 0
  %10175 = vmatpush1.bf16.msra.mxu0 0
  %10176 = vmatprep.subr.bf16.mxu0 0
  %10177 = vmatpush1.bf16.msra.mxu0 0
  %10178 = vmatprep.subr.bf16.mxu0 0
  %10179 = vmatpush1.bf16.msra.mxu0 0
  %10180 = vmatprep.subr.bf16.mxu0 0
  %10181 = vmatpush1.bf16.msra.mxu0 0
  %10182 = vmatprep.subr.bf16.mxu0 0
  %10183 = vmatpush1.bf16.msra.mxu0 0
  %10184 = vmatprep.subr.bf16.mxu0 0
  %10185 = vmatpush1.bf16.msra.mxu0 0
  %10186 = vmatprep.subr.bf16.mxu0 0
  %10187 = vmatpush1.bf16.msra.mxu0 0
  %10188 = vmatprep.subr.bf16.mxu0 0
  %10189 = vmatpush1.bf16.msra.mxu0 0
  %10190 = vmatprep.subr.bf16.mxu0 0
  %10191 = vmatpush1.bf16.msra.mxu0 0
  %10192 = vmatprep.subr.bf16.mxu0 0
  %10193 = vmatpush1.bf16.msra.mxu0 0
  %10194 = vmatprep.subr.bf16.mxu0 0
  %10195 = vmatpush1.bf16.msra.mxu0 0
  %10196 = vmatprep.mubr.bf16.mxu0 0
  %10197 = vmatmul.mubr.bf16.gmra.mrb[0].mxu0 %v10121
  %v10198 = vpop.f32.mrb[0].mxu0
  %v10199 = vadd.f32 0.0, %v10198
  %v10200 = vpop.f32.mrb[0].mxu0
  %v10201 = vadd.f32 0.0, %v10200
  %v10202 = vpop.f32.mrb[0].mxu0
  %v10203 = vpop.f32.mrb[0].mxu0
  %10204 = vdwg.mxu0
  %10205 = vmatprep.subr.bf16.mxu0 %v10072
  %10206 = vmatpush1.bf16.msra.mxu0 %v10071
  %10207 = vmatprep.subr.bf16.mxu0 %v10085
  %10208 = vmatpush1.bf16.msra.mxu0 %v10084
  %10209 = vmatprep.subr.bf16.mxu0 %v10098
  %10210 = vmatpush1.bf16.msra.mxu0 %v10097
  %10211 = vmatprep.subr.bf16.mxu0 %v10111
  %10212 = vmatpush1.bf16.msra.mxu0 %v10110
  %10213 = vmatprep.subr.bf16.mxu0 0
  %10214 = vmatpush1.bf16.msra.mxu0 0
  %10215 = vmatprep.subr.bf16.mxu0 0
  %10216 = vmatpush1.bf16.msra.mxu0 0
  %10217 = vmatprep.subr.bf16.mxu0 0
  %10218 = vmatpush1.bf16.msra.mxu0 0
  %10219 = vmatprep.subr.bf16.mxu0 0
  %10220 = vmatpush1.bf16.msra.mxu0 0
  %10221 = vmatprep.subr.bf16.mxu0 0
  %10222 = vmatpush1.bf16.msra.mxu0 0
  %10223 = vmatprep.subr.bf16.mxu0 0
  %10224 = vmatpush1.bf16.msra.mxu0 0
  %10225 = vmatprep.subr.bf16.mxu0 0
  %10226 = vmatpush1.bf16.msra.mxu0 0
  %10227 = vmatprep.subr.bf16.mxu0 0
  %10228 = vmatpush1.bf16.msra.mxu0 0
  %10229 = vmatprep.subr.bf16.mxu0 0
  %10230 = vmatpush1.bf16.msra.mxu0 0
  %10231 = vmatprep.subr.bf16.mxu0 0
  %10232 = vmatpush1.bf16.msra.mxu0 0
  %10233 = vmatprep.subr.bf16.mxu0 0
  %10234 = vmatpush1.bf16.msra.mxu0 0
  %10235 = vmatprep.subr.bf16.mxu0 0
  %10236 = vmatpush1.bf16.msra.mxu0 0
  %10237 = vmatprep.mubr.bf16.mxu0 0
  %10238 = vmatmul.mubr.bf16.gmra.mrb[0].mxu0 %v10121
  %v10239 = vpop.f32.mrb[0].mxu0
  %v10240 = vadd.f32 0.0, %v10239
  %v10241 = vpop.f32.mrb[0].mxu0
  %v10242 = vadd.f32 0.0, %v10241
  %v10243 = vpop.f32.mrb[0].mxu0
  %v10244 = vpop.f32.mrb[0].mxu0
  %10245 = vdwg.mxu0
  %10246 = vmatprep.subr.bf16.mxu0 %v10074
  %10247 = vmatpush1.bf16.msra.mxu0 %v10073
  %10248 = vmatprep.subr.bf16.mxu0 %v10087
  %10249 = vmatpush1.bf16.msra.mxu0 %v10086
  %10250 = vmatprep.subr.bf16.mxu0 %v10100
  %10251 = vmatpush1.bf16.msra.mxu0 %v10099
  %10252 = vmatprep.subr.bf16.mxu0 %v10113
  %10253 = vmatpush1.bf16.msra.mxu0 %v10112
  %10254 = vmatprep.subr.bf16.mxu0 0
  %10255 = vmatpush1.bf16.msra.mxu0 0
  %10256 = vmatprep.subr.bf16.mxu0 0
  %10257 = vmatpush1.bf16.msra.mxu0 0
  %10258 = vmatprep.subr.bf16.mxu0 0
  %10259 = vmatpush1.bf16.msra.mxu0 0
  %10260 = vmatprep.subr.bf16.mxu0 0
  %10261 = vmatpush1.bf16.msra.mxu0 0
  %10262 = vmatprep.subr.bf16.mxu0 0
  %10263 = vmatpush1.bf16.msra.mxu0 0
  %10264 = vmatprep.subr.bf16.mxu0 0
  %10265 = vmatpush1.bf16.msra.mxu0 0
  %10266 = vmatprep.subr.bf16.mxu0 0
  %10267 = vmatpush1.bf16.msra.mxu0 0
  %10268 = vmatprep.subr.bf16.mxu0 0
  %10269 = vmatpush1.bf16.msra.mxu0 0
  %10270 = vmatprep.subr.bf16.mxu0 0
  %10271 = vmatpush1.bf16.msra.mxu0 0
  %10272 = vmatprep.subr.bf16.mxu0 0
  %10273 = vmatpush1.bf16.msra.mxu0 0
  %10274 = vmatprep.subr.bf16.mxu0 0
  %10275 = vmatpush1.bf16.msra.mxu0 0
  %10276 = vmatprep.subr.bf16.mxu0 0
  %10277 = vmatpush1.bf16.msra.mxu0 0
  %10278 = vmatprep.mubr.bf16.mxu0 0
  %10279 = vmatmul.mubr.bf16.gmra.mrb[0].mxu0 %v10121
  %v10280 = vpop.f32.mrb[0].mxu0
  %v10281 = vadd.f32 0.0, %v10280
  %v10282 = vpop.f32.mrb[0].mxu0
  %v10283 = vadd.f32 0.0, %v10282
  %v10284 = vpop.f32.mrb[0].mxu0
  %v10285 = vpop.f32.mrb[0].mxu0
  %10286 = vdwg.mxu0
  %10287 = vmatprep.subr.bf16.mxu0 %v10076
  %10288 = vmatpush1.bf16.msra.mxu0 %v10075
  %10289 = vmatprep.subr.bf16.mxu0 %v10089
  %10290 = vmatpush1.bf16.msra.mxu0 %v10088
  %10291 = vmatprep.subr.bf16.mxu0 %v10102
  %10292 = vmatpush1.bf16.msra.mxu0 %v10101
  %10293 = vmatprep.subr.bf16.mxu0 %v10115
  %10294 = vmatpush1.bf16.msra.mxu0 %v10114
  %10295 = vmatprep.subr.bf16.mxu0 0
  %10296 = vmatpush1.bf16.msra.mxu0 0
  %10297 = vmatprep.subr.bf16.mxu0 0
  %10298 = vmatpush1.bf16.msra.mxu0 0
  %10299 = vmatprep.subr.bf16.mxu0 0
  %10300 = vmatpush1.bf16.msra.mxu0 0
  %10301 = vmatprep.subr.bf16.mxu0 0
  %10302 = vmatpush1.bf16.msra.mxu0 0
  %10303 = vmatprep.subr.bf16.mxu0 0
  %10304 = vmatpush1.bf16.msra.mxu0 0
  %10305 = vmatprep.subr.bf16.mxu0 0
  %10306 = vmatpush1.bf16.msra.mxu0 0
  %10307 = vmatprep.subr.bf16.mxu0 0
  %10308 = vmatpush1.bf16.msra.mxu0 0
  %10309 = vmatprep.subr.bf16.mxu0 0
  %10310 = vmatpush1.bf16.msra.mxu0 0
  %10311 = vmatprep.subr.bf16.mxu0 0
  %10312 = vmatpush1.bf16.msra.mxu0 0
  %10313 = vmatprep.subr.bf16.mxu0 0
  %10314 = vmatpush1.bf16.msra.mxu0 0
  %10315 = vmatprep.subr.bf16.mxu0 0
  %10316 = vmatpush1.bf16.msra.mxu0 0
  %10317 = vmatprep.subr.bf16.mxu0 0
  %10318 = vmatpush1.bf16.msra.mxu0 0
  %10319 = vmatprep.mubr.bf16.mxu0 0
  %10320 = vmatmul.mubr.bf16.gmra.mrb[0].mxu0 %v10121
  %v10321 = vpop.f32.mrb[0].mxu0
  %v10322 = vadd.f32 0.0, %v10321
  %v10323 = vpop.f32.mrb[0].mxu0
  %v10324 = vadd.f32 0.0, %v10323
  %v10325 = vpop.f32.mrb[0].mxu0
  %v10326 = vpop.f32.mrb[0].mxu0
  %10327 = vdwg.mxu0
  %10328 = vmatprep.subr.bf16.mxu0 %v10078
  %10329 = vmatpush1.bf16.msra.mxu0 %v10077
  %10330 = vmatprep.subr.bf16.mxu0 %v10091
  %10331 = vmatpush1.bf16.msra.mxu0 %v10090
  %10332 = vmatprep.subr.bf16.mxu0 %v10104
  %10333 = vmatpush1.bf16.msra.mxu0 %v10103
  %10334 = vmatprep.subr.bf16.mxu0 %v10117
  %10335 = vmatpush1.bf16.msra.mxu0 %v10116
  %10336 = vmatprep.subr.bf16.mxu0 0
  %10337 = vmatpush1.bf16.msra.mxu0 0
  %10338 = vmatprep.subr.bf16.mxu0 0
  %10339 = vmatpush1.bf16.msra.mxu0 0
  %10340 = vmatprep.subr.bf16.mxu0 0
  %10341 = vmatpush1.bf16.msra.mxu0 0
  %10342 = vmatprep.subr.bf16.mxu0 0
  %10343 = vmatpush1.bf16.msra.mxu0 0
  %10344 = vmatprep.subr.bf16.mxu0 0
  %10345 = vmatpush1.bf16.msra.mxu0 0
  %10346 = vmatprep.subr.bf16.mxu0 0
  %10347 = vmatpush1.bf16.msra.mxu0 0
  %10348 = vmatprep.subr.bf16.mxu0 0
  %10349 = vmatpush1.bf16.msra.mxu0 0
  %10350 = vmatprep.subr.bf16.mxu0 0
  %10351 = vmatpush1.bf16.msra.mxu0 0
  %10352 = vmatprep.subr.bf16.mxu0 0
  %10353 = vmatpush1.bf16.msra.mxu0 0
  %10354 = vmatprep.subr.bf16.mxu0 0
  %10355 = vmatpush1.bf16.msra.mxu0 0
  %10356 = vmatprep.subr.bf16.mxu0 0
  %10357 = vmatpush1.bf16.msra.mxu0 0
  %10358 = vmatprep.subr.bf16.mxu0 0
  %10359 = vmatpush1.bf16.msra.mxu0 0
  %10360 = vmatprep.mubr.bf16.mxu0 0
  %10361 = vmatmul.mubr.bf16.gmra.mrb[0].mxu0 %v10121
  %v10362 = vpop.f32.mrb[0].mxu0
  %v10363 = vadd.f32 0.0, %v10362
  %v10364 = vpop.f32.mrb[0].mxu0
  %v10365 = vadd.f32 0.0, %v10364
  %v10366 = vpop.f32.mrb[0].mxu0
  %v10367 = vpop.f32.mrb[0].mxu0
  %10368 = vdwg.mxu0
  %10369 = vmatprep.subr.bf16.mxu0 0
  %10370 = vmatpush1.bf16.msra.mxu0 %v10079
  %10371 = vmatprep.subr.bf16.mxu0 0
  %10372 = vmatpush1.bf16.msra.mxu0 %v10092
  %10373 = vmatprep.subr.bf16.mxu0 0
  %10374 = vmatpush1.bf16.msra.mxu0 %v10105
  %10375 = vmatprep.subr.bf16.mxu0 0
  %10376 = vmatpush1.bf16.msra.mxu0 %v10118
  %10377 = vmatprep.subr.bf16.mxu0 0
  %10378 = vmatpush1.bf16.msra.mxu0 0
  %10379 = vmatprep.subr.bf16.mxu0 0
  %10380 = vmatpush1.bf16.msra.mxu0 0
  %10381 = vmatprep.subr.bf16.mxu0 0
  %10382 = vmatpush1.bf16.msra.mxu0 0
  %10383 = vmatprep.subr.bf16.mxu0 0
  %10384 = vmatpush1.bf16.msra.mxu0 0
  %10385 = vmatprep.subr.bf16.mxu0 0
  %10386 = vmatpush1.bf16.msra.mxu0 0
  %10387 = vmatprep.subr.bf16.mxu0 0
  %10388 = vmatpush1.bf16.msra.mxu0 0
  %10389 = vmatprep.subr.bf16.mxu0 0
  %10390 = vmatpush1.bf16.msra.mxu0 0
  %10391 = vmatprep.subr.bf16.mxu0 0
  %10392 = vmatpush1.bf16.msra.mxu0 0
  %10393 = vmatprep.subr.bf16.mxu0 0
  %10394 = vmatpush1.bf16.msra.mxu0 0
  %10395 = vmatprep.subr.bf16.mxu0 0
  %10396 = vmatpush1.bf16.msra.mxu0 0
  %10397 = vmatprep.subr.bf16.mxu0 0
  %10398 = vmatpush1.bf16.msra.mxu0 0
  %10399 = vmatprep.subr.bf16.mxu0 0
  %10400 = vmatpush1.bf16.msra.mxu0 0
  %10401 = vmatprep.mubr.bf16.mxu0 0
  %10402 = vmatmul.mubr.bf16.gmra.mrb[0].mxu0 %v10121
  %v10403 = vpop.f32.mrb[0].mxu0
  %v10404 = vadd.f32 0.0, %v10403
  %v10405 = vpop.f32.mrb[0].mxu0
  %v10406 = vpop.f32.mrb[0].mxu0
  %v10407 = vpop.f32.mrb[0].mxu0
  %10408 = vdwg.mxu0
  %v10409 = vpack.c.bf16 %v10158, %v10158
  %v10410 = vpack.c.bf16 %v10160, %v10160
  %v10411 = vpack.c.bf16 %v10199, %v10199
  %v10412 = vpack.c.bf16 %v10201, %v10201
  %v10413 = vpack.c.bf16 %v10240, %v10240
  %v10414 = vpack.c.bf16 %v10242, %v10242
  %v10415 = vpack.c.bf16 %v10281, %v10281
  %v10416 = vpack.c.bf16 %v10283, %v10283
  %v10417 = vpack.c.bf16 %v10322, %v10322
  %v10418 = vpack.c.bf16 %v10324, %v10324
  %v10419 = vpack.c.bf16 %v10363, %v10363
  %v10420 = vpack.c.bf16 %v10365, %v10365
  %v10421 = vpack.c.bf16 %v10404, %v10404
  %v10422 = vld [vmem:[%s10] sm:$0xf]
  %v10423 = vld [vmem:[%s10 + $0x4] sm:$0xf]
  %v10424 = vld [vmem:[%s10 + $0x8] sm:$0xf]
  %v10425 = vld [vmem:[%s10 + $0xc] sm:$0xf]
  %v10426 = vld [vmem:[%s10 + $0x10] sm:$0xf]
  %v10427 = vld [vmem:[%s10 + $0x14] sm:$0xf]
  %v10428 = vld [vmem:[%s10 + $0x18] sm:$0xf]
  %v10429 = vld [vmem:[%s10 + $0x1c] sm:$0xf]
  %v10430 = vld [vmem:[%s10 + $0x20] sm:$0xf]
  %v10431 = vld [vmem:[%s10 + $0x24] sm:$0xf]
  %v10432 = vld [vmem:[%s10 + $0x28] sm:$0xf]
  %v10433 = vld [vmem:[%s10 + $0x2c] sm:$0xf]
  %v10434 = vld [vmem:[%s10 + $0x30] sm:$0xf]
  %v10435 = vld [vmem:[%s10 + $0x34] sm:$0xf]
  %v10436 = vld [vmem:[%s10 + $0x38] sm:$0xf]
  %v10437 = vld [vmem:[%s10 + $0x3c] sm:$0xf]
  %v10438 = vld [vmem:[%s10 + $0x40] sm:$0xf]
  %v10439 = vld [vmem:[%s10 + $0x44] sm:$0xf]
  %v10440 = vld [vmem:[%s10 + $0x48] sm:$0xf]
  %v10441 = vld [vmem:[%s10 + $0x4c] sm:$0xf]
  %v10442 = vld [vmem:[%s10 + $0x50] sm:$0xf]
  %v10443 = vld [vmem:[%s10 + $0x54] sm:$0xf]
  %v10444 = vld [vmem:[%s10 + $0x58] sm:$0xf]
  %v10445 = vld [vmem:[%s10 + $0x5c] sm:$0xf]
  %v10446 = vld [vmem:[%s10 + $0x60] sm:$0xf]
  %v10447 = vld [vmem:[%s10 + $0x64] sm:$0xf]
  %v10448 = vld [vmem:[%s10 + $0x68] sm:$0xf]
  %v10449 = vld [vmem:[%s10 + $0x6c] sm:$0xf]
  %v10450 = vld [vmem:[%s10 + $0x70] sm:$0xf]
  %v10451 = vld [vmem:[%s10 + $0x74] sm:$0xf]
  %v10452 = vld [vmem:[%s10 + $0x78] sm:$0xf]
  %v10453 = vld [vmem:[%s10 + $0x7c] sm:$0xf]
  %v10454 = vld [vmem:[%s10 + $0x80] sm:$0xf]
  %v10455 = vld [vmem:[%s10 + $0x84] sm:$0xf]
  %v10456 = vld [vmem:[%s10 + $0x88] sm:$0xf]
  %v10457 = vld [vmem:[%s10 + $0x8c] sm:$0xf]
  %v10458 = vld [vmem:[%s10 + $0x90] sm:$0xf]
  %v10459 = vld [vmem:[%s10 + $0x94] sm:$0xf]
  %v10460 = vld [vmem:[%s10 + $0x98] sm:$0xf]
  %v10461 = vld [vmem:[%s10 + $0x9c] sm:$0xf]
  %v10462 = vld [vmem:[%s10 + $0xa0] sm:$0xf]
  %v10463 = vld [vmem:[%s10 + $0xa4] sm:$0xf]
  %v10464 = vld [vmem:[%s10 + $0xa8] sm:$0xf]
  %v10465 = vld [vmem:[%s10 + $0xac] sm:$0xf]
  %v10466 = vld [vmem:[%s10 + $0xb0] sm:$0xf]
  %v10467 = vld [vmem:[%s10 + $0xb4] sm:$0xf]
  %v10468 = vld [vmem:[%s10 + $0xb8] sm:$0xf]
  %v10469 = vld [vmem:[%s10 + $0xbc] sm:$0xf]
  %v10470 = vld [vmem:[%s10 + $0xc0] sm:$0xf]
  %v10471 = vld [vmem:[%s10 + $0xc4] sm:$0xf]
  %v10472 = vld [vmem:[%s10 + $0xc8] sm:$0xf]
  %v10473 = vld [vmem:[%s10 + $0xcc] sm:$0xf]
  %v10474 = vld [vmem:[%s10 + $0xd0] sm:$0xf]
  %v10475 = vld [vmem:[%s10 + $0xd4] sm:$0xf]
  %v10476 = vld [vmem:[%s10 + $0xd8] sm:$0xf]
  %v10477 = vld [vmem:[%s10 + $0xdc] sm:$0xf]
  %v10478 = vld [vmem:[%s10 + $0xe0] sm:$0xf]
  %v10479 = vld [vmem:[%s10 + $0xe4] sm:$0xf]
  %v10480 = vld [vmem:[%s10 + $0xe8] sm:$0xf]
  %v10481 = vld [vmem:[%s10 + $0xec] sm:$0xf]
  %v10482 = vld [vmem:[%s10 + $0xf0] sm:$0xf]
  %v10483 = vld [vmem:[%s10 + $0xf4] sm:$0xf]
  %v10484 = vld [vmem:[%s10 + $0xf8] sm:$0xf]
  %v10485 = vld [vmem:[%s10 + $0xfc] sm:$0xf]
  %v10486 = vld [vmem:[%s10 + $0x100] sm:$0xf]
  %v10487 = vld [vmem:[%s10 + $0x104] sm:$0xf]
  %v10488 = vld [vmem:[%s10 + $0x108] sm:$0xf]
  %v10489 = vld [vmem:[%s10 + $0x10c] sm:$0xf]
  %v10490 = vld [vmem:[%s10 + $0x110] sm:$0xf]
  %v10491 = vld [vmem:[%s10 + $0x114] sm:$0xf]
  %v10492 = vld [vmem:[%s10 + $0x118] sm:$0xf]
  %v10493 = vld [vmem:[%s10 + $0x11c] sm:$0xf]
  %v10494 = vld [vmem:[%s10 + $0x120] sm:$0xf]
  %v10495 = vld [vmem:[%s10 + $0x124] sm:$0xf]
  %v10496 = vld [vmem:[%s10 + $0x128] sm:$0xf]
  %v10497 = vld [vmem:[%s10 + $0x12c] sm:$0xf]
  %v10498 = vld [vmem:[%s10 + $0x130] sm:$0xf]
  %v10499 = vld [vmem:[%s10 + $0x134] sm:$0xf]
  %v10500 = vld [vmem:[%s10 + $0x138] sm:$0xf]
  %v10501 = vld [vmem:[%s10 + $0x13c] sm:$0xf]
  %v10502 = vld [vmem:[%s10 + $0x140] sm:$0xf]
  %v10503 = vld [vmem:[%s10 + $0x144] sm:$0xf]
  %v10504 = vld [vmem:[%s10 + $0x148] sm:$0xf]
  %v10505 = vld [vmem:[%s10 + $0x14c] sm:$0xf]
  %v10506 = vld [vmem:[%s10 + $0x150] sm:$0xf]
  %v10507 = vld [vmem:[%s10 + $0x154] sm:$0xf]
  %v10508 = vld [vmem:[%s10 + $0x158] sm:$0xf]
  %v10509 = vld [vmem:[%s10 + $0x15c] sm:$0xf]
  %v10510 = vld [vmem:[%s10 + $0x160] sm:$0xf]
  %v10511 = vld [vmem:[%s10 + $0x164] sm:$0xf]
  %v10512 = vld [vmem:[%s10 + $0x168] sm:$0xf]
  %v10513 = vld [vmem:[%s10 + $0x16c] sm:$0xf]
  %v10514 = vld [vmem:[%s10 + $0x170] sm:$0xf]
  %v10515 = vld [vmem:[%s10 + $0x174] sm:$0xf]
  %v10516 = vld [vmem:[%s10 + $0x178] sm:$0xf]
  %v10517 = vld [vmem:[%s10 + $0x17c] sm:$0xf]
  %v10518 = vld [vmem:[%s10 + $0x180] sm:$0xf]
  %v10519 = vld [vmem:[%s10 + $0x184] sm:$0xf]
  %v10520 = vld [vmem:[%s10 + $0x188] sm:$0xf]
  %v10521 = vld [vmem:[%s10 + $0x18c] sm:$0xf]
  %v10522 = vld [vmem:[%s10 + $0x190] sm:$0xf]
  %v10523 = vld [vmem:[%s10 + $0x194] sm:$0xf]
  %v10524 = vld [vmem:[%s10 + $0x198] sm:$0xf]
  %v10525 = vld [vmem:[%s10 + $0x19c] sm:$0xf]
  %v10526 = vld [vmem:[%s10 + $0x1a0] sm:$0xf]
  %v10527 = vld [vmem:[%s10 + $0x1a4] sm:$0xf]
  %v10528 = vld [vmem:[%s10 + $0x1a8] sm:$0xf]
  %v10529 = vld [vmem:[%s10 + $0x1ac] sm:$0xf]
  %v10530 = vld [vmem:[%s10 + $0x1b0] sm:$0xf]
  %v10531 = vld [vmem:[%s10 + $0x1b4] sm:$0xf]
  %v10532 = vld [vmem:[%s10 + $0x1b8] sm:$0xf]
  %v10533 = vld [vmem:[%s10 + $0x1bc] sm:$0xf]
  %v10534 = vld [vmem:[%s10 + $0x1c0] sm:$0xf]
  %v10535 = vld [vmem:[%s10 + $0x1c4] sm:$0xf]
  %v10536 = vld [vmem:[%s10 + $0x1c8] sm:$0xf]
  %v10537 = vld [vmem:[%s10 + $0x1cc] sm:$0xf]
  %v10538 = vld [vmem:[%s10 + $0x1d0] sm:$0xf]
  %v10539 = vld [vmem:[%s10 + $0x1d4] sm:$0xf]
  %v10540 = vld [vmem:[%s10 + $0x1d8] sm:$0xf]
  %v10541 = vld [vmem:[%s10 + $0x1dc] sm:$0xf]
  %v10542 = vld [vmem:[%s10 + $0x1e0] sm:$0xf]
  %v10543 = vld [vmem:[%s10 + $0x1e4] sm:$0xf]
  %v10544 = vld [vmem:[%s10 + $0x1e8] sm:$0xf]
  %v10545 = vld [vmem:[%s10 + $0x1ec] sm:$0xf]
  %v10546 = vld [vmem:[%s10 + $0x1f0] sm:$0xf]
  %v10547 = vld [vmem:[%s10 + $0x1f4] sm:$0xf]
  %v10548 = vld [vmem:[%s10 + $0x1f8] sm:$0xf]
  %v10549 = vld [vmem:[%s10 + $0x1fc] sm:$0xf]
  %v10550 = vld [vmem:[%s10 + $0x200] sm:$0xf]
  %v10551 = vld [vmem:[%s10 + $0x204] sm:$0xf]
  %v10552 = vld [vmem:[%s10 + $0x208] sm:$0xf]
  %v10553 = vld [vmem:[%s10 + $0x20c] sm:$0xf]
  %v10554 = vld [vmem:[%s10 + $0x210] sm:$0xf]
  %v10555 = vld [vmem:[%s10 + $0x214] sm:$0xf]
  %v10556 = vld [vmem:[%s10 + $0x218] sm:$0xf]
  %v10557 = vld [vmem:[%s10 + $0x21c] sm:$0xf]
  %v10558 = vld [vmem:[%s10 + $0x220] sm:$0xf]
  %v10559 = vld [vmem:[%s10 + $0x224] sm:$0xf]
  %v10560 = vld [vmem:[%s10 + $0x228] sm:$0xf]
  %v10561 = vld [vmem:[%s10 + $0x22c] sm:$0xf]
  %v10562 = vld [vmem:[%s10 + $0x230] sm:$0xf]
  %v10563 = vld [vmem:[%s10 + $0x234] sm:$0xf]
  %v10564 = vld [vmem:[%s10 + $0x238] sm:$0xf]
  %v10565 = vld [vmem:[%s10 + $0x23c] sm:$0xf]
  %v10566 = vld [vmem:[%s10 + $0x240] sm:$0xf]
  %v10567 = vld [vmem:[%s10 + $0x244] sm:$0xf]
  %v10568 = vld [vmem:[%s10 + $0x248] sm:$0xf]
  %v10569 = vld [vmem:[%s10 + $0x24c] sm:$0xf]
  %v10570 = vld [vmem:[%s10 + $0x250] sm:$0xf]
  %v10571 = vld [vmem:[%s10 + $0x254] sm:$0xf]
  %v10572 = vld [vmem:[%s10 + $0x258] sm:$0xf]
  %v10573 = vld [vmem:[%s10 + $0x25c] sm:$0xf]
  %v10574 = vld [vmem:[%s10 + $0x260] sm:$0xf]
  %v10575 = vld [vmem:[%s10 + $0x264] sm:$0xf]
  %v10576 = vld [vmem:[%s10 + $0x268] sm:$0xf]
  %v10577 = vld [vmem:[%s10 + $0x26c] sm:$0xf]
  %v10578 = vld [vmem:[%s10 + $0x270] sm:$0xf]
  %v10579 = vld [vmem:[%s10 + $0x274] sm:$0xf]
  %v10580 = vld [vmem:[%s10 + $0x278] sm:$0xf]
  %v10581 = vld [vmem:[%s10 + $0x27c] sm:$0xf]
  %v10582 = vld [vmem:[%s10 + $0x280] sm:$0xf]
  %v10583 = vld [vmem:[%s10 + $0x284] sm:$0xf]
  %v10584 = vld [vmem:[%s10 + $0x288] sm:$0xf]
  %v10585 = vld [vmem:[%s10 + $0x28c] sm:$0xf]
  %v10586 = vld [vmem:[%s10 + $0x290] sm:$0xf]
  %v10587 = vld [vmem:[%s10 + $0x294] sm:$0xf]
  %v10588 = vld [vmem:[%s10 + $0x298] sm:$0xf]
  %v10589 = vld [vmem:[%s10 + $0x29c] sm:$0xf]
  %v10590 = vld [vmem:[%s10 + $0x2a0] sm:$0xf]
  %v10591 = vld [vmem:[%s10 + $0x2a4] sm:$0xf]
  %v10592 = vld [vmem:[%s10 + $0x2a8] sm:$0xf]
  %v10593 = vld [vmem:[%s10 + $0x2ac] sm:$0xf]
  %v10594 = vld [vmem:[%s10 + $0x2b0] sm:$0xf]
  %v10595 = vld [vmem:[%s10 + $0x2b4] sm:$0xf]
  %v10596 = vld [vmem:[%s10 + $0x2b8] sm:$0xf]
  %v10597 = vld [vmem:[%s10 + $0x2bc] sm:$0xf]
  %v10598 = vld [vmem:[%s10 + $0x2c0] sm:$0xf]
  %v10599 = vld [vmem:[%s10 + $0x2c4] sm:$0xf]
  %v10600 = vld [vmem:[%s10 + $0x2c8] sm:$0xf]
  %v10601 = vld [vmem:[%s10 + $0x2cc] sm:$0xf]
  %v10602 = vld [vmem:[%s10 + $0x2d0] sm:$0xf]
  %v10603 = vld [vmem:[%s10 + $0x2d4] sm:$0xf]
  %v10604 = vld [vmem:[%s10 + $0x2d8] sm:$0xf]
  %v10605 = vld [vmem:[%s10 + $0x2dc] sm:$0xf]
  %v10606 = vld [vmem:[%s10 + $0x2e0] sm:$0xf]
  %v10607 = vld [vmem:[%s10 + $0x2e4] sm:$0xf]
  %v10608 = vld [vmem:[%s10 + $0x2e8] sm:$0xf]
  %v10609 = vld [vmem:[%s10 + $0x2ec] sm:$0xf]
  %v10610 = vld [vmem:[%s10 + $0x2f0] sm:$0xf]
  %v10611 = vld [vmem:[%s10 + $0x2f4] sm:$0xf]
  %v10612 = vld [vmem:[%s10 + $0x2f8] sm:$0xf]
  %v10613 = vld [vmem:[%s10 + $0x2fc] sm:$0xf]
  %v10614 = vld [vmem:[%s10 + $0x300] sm:$0xf]
  %v10615 = vld [vmem:[%s10 + $0x304] sm:$0xf]
  %v10616 = vld [vmem:[%s10 + $0x308] sm:$0xf]
  %v10617 = vld [vmem:[%s10 + $0x30c] sm:$0xf]
  %v10618 = vld [vmem:[%s10 + $0x310] sm:$0xf]
  %v10619 = vld [vmem:[%s10 + $0x314] sm:$0xf]
  %v10620 = vld [vmem:[%s10 + $0x318] sm:$0xf]
  %v10621 = vld [vmem:[%s10 + $0x31c] sm:$0xf]
  %v10622 = vld [vmem:[%s11] sm:$0x1]
  %v10624 = vlaneseq
  %v10625 = vshrl.u32 %v10624, 7
  %v10626 = vsub.s32 0, %v10625
  %v10627 = vrot.slane %v10622, %v10626
  %v10829 = vunpack.c.l.b16 %v10422
  %v10830 = vunpack.c.l.b16 %v10423
  %v10831 = vunpack.c.l.b16 %v10424
  %v10832 = vunpack.c.l.b16 %v10425
  %v10833 = vunpack.c.l.b16 %v10426
  %v10834 = vunpack.c.l.b16 %v10427
  %v10835 = vunpack.c.l.b16 %v10428
  %v10836 = vunpack.c.l.b16 %v10429
  %v10837 = vunpack.c.l.b16 %v10430
  %v10838 = vunpack.c.l.b16 %v10431
  %v10839 = vunpack.c.l.b16 %v10432
  %v10840 = vunpack.c.l.b16 %v10433
  %v10841 = vunpack.c.l.b16 %v10434
  %v10842 = vunpack.c.l.b16 %v10435
  %v10843 = vunpack.c.l.b16 %v10436
  %v10844 = vunpack.c.l.b16 %v10437
  %v10845 = vunpack.c.l.b16 %v10438
  %v10846 = vunpack.c.l.b16 %v10439
  %v10847 = vunpack.c.l.b16 %v10440
  %v10848 = vunpack.c.l.b16 %v10441
  %v10849 = vunpack.c.l.b16 %v10442
  %v10850 = vunpack.c.l.b16 %v10443
  %v10851 = vunpack.c.l.b16 %v10444
  %v10852 = vunpack.c.l.b16 %v10445
  %v10853 = vunpack.c.l.b16 %v10446
  %v10854 = vunpack.c.l.b16 %v10447
  %v10855 = vunpack.c.l.b16 %v10448
  %v10856 = vunpack.c.l.b16 %v10449
  %v10857 = vunpack.c.l.b16 %v10450
  %v10858 = vunpack.c.l.b16 %v10451
  %v10859 = vunpack.c.l.b16 %v10452
  %v10860 = vunpack.c.l.b16 %v10453
  %v10861 = vunpack.c.l.b16 %v10454
  %v10862 = vunpack.c.l.b16 %v10455
  %v10863 = vunpack.c.l.b16 %v10456
  %v10864 = vunpack.c.l.b16 %v10457
  %v10865 = vunpack.c.l.b16 %v10458
  %v10866 = vunpack.c.l.b16 %v10459
  %v10867 = vunpack.c.l.b16 %v10460
  %v10868 = vunpack.c.l.b16 %v10461
  %v10869 = vunpack.c.l.b16 %v10462
  %v10870 = vunpack.c.l.b16 %v10463
  %v10871 = vunpack.c.l.b16 %v10464
  %v10872 = vunpack.c.l.b16 %v10465
  %v10873 = vunpack.c.l.b16 %v10466
  %v10874 = vunpack.c.l.b16 %v10467
  %v10875 = vunpack.c.l.b16 %v10468
  %v10876 = vunpack.c.l.b16 %v10469
  %v10877 = vunpack.c.l.b16 %v10470
  %v10878 = vunpack.c.l.b16 %v10471
  %v10879 = vunpack.c.l.b16 %v10472
  %v10880 = vunpack.c.l.b16 %v10473
  %v10881 = vunpack.c.l.b16 %v10474
  %v10882 = vunpack.c.l.b16 %v10475
  %v10883 = vunpack.c.l.b16 %v10476
  %v10884 = vunpack.c.l.b16 %v10477
  %v10885 = vunpack.c.l.b16 %v10478
  %v10886 = vunpack.c.l.b16 %v10479
  %v10887 = vunpack.c.l.b16 %v10480
  %v10888 = vunpack.c.l.b16 %v10481
  %v10889 = vunpack.c.l.b16 %v10482
  %v10890 = vunpack.c.l.b16 %v10483
  %v10891 = vunpack.c.l.b16 %v10484
  %v10892 = vunpack.c.l.b16 %v10485
  %v10893 = vunpack.c.l.b16 %v10486
  %v10894 = vunpack.c.l.b16 %v10487
  %v10895 = vunpack.c.l.b16 %v10488
  %v10896 = vunpack.c.l.b16 %v10489
  %v10897 = vunpack.c.l.b16 %v10490
  %v10898 = vunpack.c.l.b16 %v10491
  %v10899 = vunpack.c.l.b16 %v10492
  %v10900 = vunpack.c.l.b16 %v10493
  %v10901 = vunpack.c.l.b16 %v10494
  %v10902 = vunpack.c.l.b16 %v10495
  %v10903 = vunpack.c.l.b16 %v10496
  %v10904 = vunpack.c.l.b16 %v10497
  %v10905 = vunpack.c.l.b16 %v10498
  %v10906 = vunpack.c.l.b16 %v10499
  %v10907 = vunpack.c.l.b16 %v10500
  %v10908 = vunpack.c.l.b16 %v10501
  %v10909 = vunpack.c.l.b16 %v10502
  %v10910 = vunpack.c.l.b16 %v10503
  %v10911 = vunpack.c.l.b16 %v10504
  %v10912 = vunpack.c.l.b16 %v10505
  %v10913 = vunpack.c.l.b16 %v10506
  %v10914 = vunpack.c.l.b16 %v10507
  %v10915 = vunpack.c.l.b16 %v10508
  %v10916 = vunpack.c.l.b16 %v10509
  %v10917 = vunpack.c.l.b16 %v10510
  %v10918 = vunpack.c.l.b16 %v10511
  %v10919 = vunpack.c.l.b16 %v10512
  %v10920 = vunpack.c.l.b16 %v10513
  %v10921 = vunpack.c.l.b16 %v10514
  %v10922 = vunpack.c.l.b16 %v10515
  %v10923 = vunpack.c.l.b16 %v10516
  %v10924 = vunpack.c.l.b16 %v10517
  %v10925 = vunpack.c.l.b16 %v10518
  %v10926 = vunpack.c.l.b16 %v10519
  %v10927 = vunpack.c.l.b16 %v10520
  %v10928 = vunpack.c.l.b16 %v10521
  %v10929 = vunpack.c.l.b16 %v10522
  %v10930 = vunpack.c.l.b16 %v10523
  %v10931 = vunpack.c.l.b16 %v10524
  %v10932 = vunpack.c.l.b16 %v10525
  %v10933 = vunpack.c.l.b16 %v10526
  %v10934 = vunpack.c.l.b16 %v10527
  %v10935 = vunpack.c.l.b16 %v10528
  %v10936 = vunpack.c.l.b16 %v10529
  %v10937 = vunpack.c.l.b16 %v10530
  %v10938 = vunpack.c.l.b16 %v10531
  %v10939 = vunpack.c.l.b16 %v10532
  %v10940 = vunpack.c.l.b16 %v10533
  %v10941 = vunpack.c.l.b16 %v10534
  %v10942 = vunpack.c.l.b16 %v10535
  %v10943 = vunpack.c.l.b16 %v10536
  %v10944 = vunpack.c.l.b16 %v10537
  %v10945 = vunpack.c.l.b16 %v10538
  %v10946 = vunpack.c.l.b16 %v10539
  %v10947 = vunpack.c.l.b16 %v10540
  %v10948 = vunpack.c.l.b16 %v10541
  %v10949 = vunpack.c.l.b16 %v10542
  %v10950 = vunpack.c.l.b16 %v10543
  %v10951 = vunpack.c.l.b16 %v10544
  %v10952 = vunpack.c.l.b16 %v10545
  %v10953 = vunpack.c.l.b16 %v10546
  %v10954 = vunpack.c.l.b16 %v10547
  %v10955 = vunpack.c.l.b16 %v10548
  %v10956 = vunpack.c.l.b16 %v10549
  %v10957 = vunpack.c.l.b16 %v10550
  %v10958 = vunpack.c.l.b16 %v10551
  %v10959 = vunpack.c.l.b16 %v10552
  %v10960 = vunpack.c.l.b16 %v10553
  %v10961 = vunpack.c.l.b16 %v10554
  %v10962 = vunpack.c.l.b16 %v10555
  %v10963 = vunpack.c.l.b16 %v10556
  %v10964 = vunpack.c.l.b16 %v10557
  %v10965 = vunpack.c.l.b16 %v10558
  %v10966 = vunpack.c.l.b16 %v10559
  %v10967 = vunpack.c.l.b16 %v10560
  %v10968 = vunpack.c.l.b16 %v10561
  %v10969 = vunpack.c.l.b16 %v10562
  %v10970 = vunpack.c.l.b16 %v10563
  %v10971 = vunpack.c.l.b16 %v10564
  %v10972 = vunpack.c.l.b16 %v10565
  %v10973 = vunpack.c.l.b16 %v10566
  %v10974 = vunpack.c.l.b16 %v10567
  %v10975 = vunpack.c.l.b16 %v10568
  %v10976 = vunpack.c.l.b16 %v10569
  %v10977 = vunpack.c.l.b16 %v10570
  %v10978 = vunpack.c.l.b16 %v10571
  %v10979 = vunpack.c.l.b16 %v10572
  %v10980 = vunpack.c.l.b16 %v10573
  %v10981 = vunpack.c.l.b16 %v10574
  %v10982 = vunpack.c.l.b16 %v10575
  %v10983 = vunpack.c.l.b16 %v10576
  %v10984 = vunpack.c.l.b16 %v10577
  %v10985 = vunpack.c.l.b16 %v10578
  %v10986 = vunpack.c.l.b16 %v10579
  %v10987 = vunpack.c.l.b16 %v10580
  %v10988 = vunpack.c.l.b16 %v10581
  %v10989 = vunpack.c.l.b16 %v10582
  %v10990 = vunpack.c.l.b16 %v10583
  %v10991 = vunpack.c.l.b16 %v10584
  %v10992 = vunpack.c.l.b16 %v10585
  %v10993 = vunpack.c.l.b16 %v10586
  %v10994 = vunpack.c.l.b16 %v10587
  %v10995 = vunpack.c.l.b16 %v10588
  %v10996 = vunpack.c.l.b16 %v10589
  %v10997 = vunpack.c.l.b16 %v10590
  %v10998 = vunpack.c.l.b16 %v10591
  %v10999 = vunpack.c.l.b16 %v10592
  %v11000 = vunpack.c.l.b16 %v10593
  %v11001 = vunpack.c.l.b16 %v10594
  %v11002 = vunpack.c.l.b16 %v10595
  %v11003 = vunpack.c.l.b16 %v10596
  %v11004 = vunpack.c.l.b16 %v10597
  %v11005 = vunpack.c.l.b16 %v10598
  %v11006 = vunpack.c.l.b16 %v10599
  %v11007 = vunpack.c.l.b16 %v10600
  %v11008 = vunpack.c.l.b16 %v10601
  %v11009 = vunpack.c.l.b16 %v10602
  %v11010 = vunpack.c.l.b16 %v10603
  %v11011 = vunpack.c.l.b16 %v10604
  %v11012 = vunpack.c.l.b16 %v10605
  %v11013 = vunpack.c.l.b16 %v10606
  %v11014 = vunpack.c.l.b16 %v10607
  %v11015 = vunpack.c.l.b16 %v10608
  %v11016 = vunpack.c.l.b16 %v10609
  %v11017 = vunpack.c.l.b16 %v10610
  %v11018 = vunpack.c.l.b16 %v10611
  %v11019 = vunpack.c.l.b16 %v10612
  %v11020 = vunpack.c.l.b16 %v10613
  %v11021 = vunpack.c.l.b16 %v10614
  %v11022 = vunpack.c.l.b16 %v10615
  %v11023 = vunpack.c.l.b16 %v10616
  %v11024 = vunpack.c.l.b16 %v10617
  %v11025 = vunpack.c.l.b16 %v10618
  %v11026 = vunpack.c.l.b16 %v10619
  %v11027 = vunpack.c.l.b16 %v10620
  %v11028 = vunpack.c.l.b16 %v10621
  %v11029 = vpack.c.b16 %v10830, %v10829
  %v11030 = vpack.c.b16 %v10832, %v10831
  %v11031 = vpack.c.b16 %v10834, %v10833
  %v11032 = vpack.c.b16 %v10836, %v10835
  %v11033 = vpack.c.b16 %v10838, %v10837
  %v11034 = vpack.c.b16 %v10840, %v10839
  %v11035 = vpack.c.b16 %v10842, %v10841
  %v11036 = vpack.c.b16 %v10844, %v10843
  %v11037 = vpack.c.b16 %v10846, %v10845
  %v11038 = vpack.c.b16 %v10848, %v10847
  %v11039 = vpack.c.b16 %v10850, %v10849
  %v11040 = vpack.c.b16 %v10852, %v10851
  %v11041 = vpack.c.b16 %v10854, %v10853
  %v11042 = vpack.c.b16 %v10856, %v10855
  %v11043 = vpack.c.b16 %v10858, %v10857
  %v11044 = vpack.c.b16 %v10860, %v10859
  %v11045 = vpack.c.b16 %v10862, %v10861
  %v11046 = vpack.c.b16 %v10864, %v10863
  %v11047 = vpack.c.b16 %v10866, %v10865
  %v11048 = vpack.c.b16 %v10868, %v10867
  %v11049 = vpack.c.b16 %v10870, %v10869
  %v11050 = vpack.c.b16 %v10872, %v10871
  %v11051 = vpack.c.b16 %v10874, %v10873
  %v11052 = vpack.c.b16 %v10876, %v10875
  %v11053 = vpack.c.b16 %v10878, %v10877
  %v11054 = vpack.c.b16 %v10880, %v10879
  %v11055 = vpack.c.b16 %v10882, %v10881
  %v11056 = vpack.c.b16 %v10884, %v10883
  %v11057 = vpack.c.b16 %v10886, %v10885
  %v11058 = vpack.c.b16 %v10888, %v10887
  %v11059 = vpack.c.b16 %v10890, %v10889
  %v11060 = vpack.c.b16 %v10892, %v10891
  %v11061 = vpack.c.b16 %v10894, %v10893
  %v11062 = vpack.c.b16 %v10896, %v10895
  %v11063 = vpack.c.b16 %v10898, %v10897
  %v11064 = vpack.c.b16 %v10900, %v10899
  %v11065 = vpack.c.b16 %v10902, %v10901
  %v11066 = vpack.c.b16 %v10904, %v10903
  %v11067 = vpack.c.b16 %v10906, %v10905
  %v11068 = vpack.c.b16 %v10908, %v10907
  %v11069 = vpack.c.b16 %v10910, %v10909
  %v11070 = vpack.c.b16 %v10912, %v10911
  %v11071 = vpack.c.b16 %v10914, %v10913
  %v11072 = vpack.c.b16 %v10916, %v10915
  %v11073 = vpack.c.b16 %v10918, %v10917
  %v11074 = vpack.c.b16 %v10920, %v10919
  %v11075 = vpack.c.b16 %v10922, %v10921
  %v11076 = vpack.c.b16 %v10924, %v10923
  %v11077 = vpack.c.b16 %v10926, %v10925
  %v11078 = vpack.c.b16 %v10928, %v10927
  %v11079 = vpack.c.b16 %v10930, %v10929
  %v11080 = vpack.c.b16 %v10932, %v10931
  %v11081 = vpack.c.b16 %v10934, %v10933
  %v11082 = vpack.c.b16 %v10936, %v10935
  %v11083 = vpack.c.b16 %v10938, %v10937
  %v11084 = vpack.c.b16 %v10940, %v10939
  %v11085 = vpack.c.b16 %v10942, %v10941
  %v11086 = vpack.c.b16 %v10944, %v10943
  %v11087 = vpack.c.b16 %v10946, %v10945
  %v11088 = vpack.c.b16 %v10948, %v10947
  %v11089 = vpack.c.b16 %v10950, %v10949
  %v11090 = vpack.c.b16 %v10952, %v10951
  %v11091 = vpack.c.b16 %v10954, %v10953
  %v11092 = vpack.c.b16 %v10956, %v10955
  %v11093 = vpack.c.b16 %v10958, %v10957
  %v11094 = vpack.c.b16 %v10960, %v10959
  %v11095 = vpack.c.b16 %v10962, %v10961
  %v11096 = vpack.c.b16 %v10964, %v10963
  %v11097 = vpack.c.b16 %v10966, %v10965
  %v11098 = vpack.c.b16 %v10968, %v10967
  %v11099 = vpack.c.b16 %v10970, %v10969
  %v11100 = vpack.c.b16 %v10972, %v10971
  %v11101 = vpack.c.b16 %v10974, %v10973
  %v11102 = vpack.c.b16 %v10976, %v10975
  %v11103 = vpack.c.b16 %v10978, %v10977
  %v11104 = vpack.c.b16 %v10980, %v10979
  %v11105 = vpack.c.b16 %v10982, %v10981
  %v11106 = vpack.c.b16 %v10984, %v10983
  %v11107 = vpack.c.b16 %v10986, %v10985
  %v11108 = vpack.c.b16 %v10988, %v10987
  %v11109 = vpack.c.b16 %v10990, %v10989
  %v11110 = vpack.c.b16 %v10992, %v10991
  %v11111 = vpack.c.b16 %v10994, %v10993
  %v11112 = vpack.c.b16 %v10996, %v10995
  %v11113 = vpack.c.b16 %v10998, %v10997
  %v11114 = vpack.c.b16 %v11000, %v10999
  %v11115 = vpack.c.b16 %v11002, %v11001
  %v11116 = vpack.c.b16 %v11004, %v11003
  %v11117 = vpack.c.b16 %v11006, %v11005
  %v11118 = vpack.c.b16 %v11008, %v11007
  %v11119 = vpack.c.b16 %v11010, %v11009
  %v11120 = vpack.c.b16 %v11012, %v11011
  %v11121 = vpack.c.b16 %v11014, %v11013
  %v11122 = vpack.c.b16 %v11016, %v11015
  %v11123 = vpack.c.b16 %v11018, %v11017
  %v11124 = vpack.c.b16 %v11020, %v11019
  %v11125 = vpack.c.b16 %v11022, %v11021
  %v11126 = vpack.c.b16 %v11024, %v11023
  %v11127 = vpack.c.b16 %v11026, %v11025
  %v11128 = vpack.c.b16 %v11028, %v11027
  %v11230 = vsel %vm3589, %v10421, 0
  %11232 = vmatprep.subr.bf16.mxu0 0
  %11233 = vmatpush1.bf16.msra.mxu0 %v11029
  %11234 = vmatprep.subr.bf16.mxu0 0
  %11235 = vmatpush1.bf16.msra.mxu0 %v11030
  %11236 = vmatprep.subr.bf16.mxu0 0
  %11237 = vmatpush1.bf16.msra.mxu0 %v11031
  %11238 = vmatprep.subr.bf16.mxu0 0
  %11239 = vmatpush1.bf16.msra.mxu0 %v11032
  %11240 = vmatprep.subr.bf16.mxu0 0
  %11241 = vmatpush1.bf16.msra.mxu0 %v11033
  %11242 = vmatprep.subr.bf16.mxu0 0
  %11243 = vmatpush1.bf16.msra.mxu0 %v11034
  %11244 = vmatprep.subr.bf16.mxu0 0
  %11245 = vmatpush1.bf16.msra.mxu0 %v11035
  %11246 = vmatprep.subr.bf16.mxu0 0
  %11247 = vmatpush1.bf16.msra.mxu0 %v11036
  %11248 = vmatprep.subr.bf16.mxu0 0
  %11249 = vmatpush1.bf16.msra.mxu0 %v11037
  %11250 = vmatprep.subr.bf16.mxu0 0
  %11251 = vmatpush1.bf16.msra.mxu0 %v11038
  %11252 = vmatprep.subr.bf16.mxu0 0
  %11253 = vmatpush1.bf16.msra.mxu0 %v11039
  %11254 = vmatprep.subr.bf16.mxu0 0
  %11255 = vmatpush1.bf16.msra.mxu0 %v11040
  %11256 = vmatprep.subr.bf16.mxu0 0
  %11257 = vmatpush1.bf16.msra.mxu0 %v11041
  %11258 = vmatprep.subr.bf16.mxu0 0
  %11259 = vmatpush1.bf16.msra.mxu0 %v11042
  %11260 = vmatprep.subr.bf16.mxu0 0
  %11261 = vmatpush1.bf16.msra.mxu0 %v11043
  %11262 = vmatprep.subr.bf16.mxu0 0
  %11263 = vmatpush1.bf16.msra.mxu0 %v11044
  %11264 = vmatprep.mubr.bf16.mxu0 %v10410
  %11265 = vmatmul.mubr.bf16.gmra.mrb[0].mxu0 %v10409
  %v11266 = vpop.f32.mrb[0].mxu0
  %v11267 = vadd.f32 %v10627, %v11266
  %v11268 = vpop.f32.mrb[0].mxu0
  %v11269 = vpop.f32.mrb[0].mxu0
  %v11270 = vpop.f32.mrb[0].mxu0
  %11271 = vdwg.mxu0
  %11272 = vmatprep.subr.bf16.mxu0 0
  %11273 = vmatpush1.bf16.msra.mxu0 %v11045
  %11274 = vmatprep.subr.bf16.mxu0 0
  %11275 = vmatpush1.bf16.msra.mxu0 %v11046
  %11276 = vmatprep.subr.bf16.mxu0 0
  %11277 = vmatpush1.bf16.msra.mxu0 %v11047
  %11278 = vmatprep.subr.bf16.mxu0 0
  %11279 = vmatpush1.bf16.msra.mxu0 %v11048
  %11280 = vmatprep.subr.bf16.mxu0 0
  %11281 = vmatpush1.bf16.msra.mxu0 %v11049
  %11282 = vmatprep.subr.bf16.mxu0 0
  %11283 = vmatpush1.bf16.msra.mxu0 %v11050
  %11284 = vmatprep.subr.bf16.mxu0 0
  %11285 = vmatpush1.bf16.msra.mxu0 %v11051
  %11286 = vmatprep.subr.bf16.mxu0 0
  %11287 = vmatpush1.bf16.msra.mxu0 %v11052
  %11288 = vmatprep.subr.bf16.mxu0 0
  %11289 = vmatpush1.bf16.msra.mxu0 %v11053
  %11290 = vmatprep.subr.bf16.mxu0 0
  %11291 = vmatpush1.bf16.msra.mxu0 %v11054
  %11292 = vmatprep.subr.bf16.mxu0 0
  %11293 = vmatpush1.bf16.msra.mxu0 %v11055
  %11294 = vmatprep.subr.bf16.mxu0 0
  %11295 = vmatpush1.bf16.msra.mxu0 %v11056
  %11296 = vmatprep.subr.bf16.mxu0 0
  %11297 = vmatpush1.bf16.msra.mxu0 %v11057
  %11298 = vmatprep.subr.bf16.mxu0 0
  %11299 = vmatpush1.bf16.msra.mxu0 %v11058
  %11300 = vmatprep.subr.bf16.mxu0 0
  %11301 = vmatpush1.bf16.msra.mxu0 %v11059
  %11302 = vmatprep.subr.bf16.mxu0 0
  %11303 = vmatpush1.bf16.msra.mxu0 %v11060
  %11304 = vmatprep.mubr.bf16.mxu0 %v10412
  %11305 = vmatmul.mubr.bf16.gmra.mrb[0].mxu0 %v10411
  %v11306 = vpop.f32.mrb[0].mxu0
  %v11307 = vadd.f32 %v11267, %v11306
  %v11308 = vpop.f32.mrb[0].mxu0
  %v11309 = vpop.f32.mrb[0].mxu0
  %v11310 = vpop.f32.mrb[0].mxu0
  %11311 = vdwg.mxu0
  %11312 = vmatprep.subr.bf16.mxu0 0
  %11313 = vmatpush1.bf16.msra.mxu0 %v11061
  %11314 = vmatprep.subr.bf16.mxu0 0
  %11315 = vmatpush1.bf16.msra.mxu0 %v11062
  %11316 = vmatprep.subr.bf16.mxu0 0
  %11317 = vmatpush1.bf16.msra.mxu0 %v11063
  %11318 = vmatprep.subr.bf16.mxu0 0
  %11319 = vmatpush1.bf16.msra.mxu0 %v11064
  %11320 = vmatprep.subr.bf16.mxu0 0
  %11321 = vmatpush1.bf16.msra.mxu0 %v11065
  %11322 = vmatprep.subr.bf16.mxu0 0
  %11323 = vmatpush1.bf16.msra.mxu0 %v11066
  %11324 = vmatprep.subr.bf16.mxu0 0
  %11325 = vmatpush1.bf16.msra.mxu0 %v11067
  %11326 = vmatprep.subr.bf16.mxu0 0
  %11327 = vmatpush1.bf16.msra.mxu0 %v11068
  %11328 = vmatprep.subr.bf16.mxu0 0
  %11329 = vmatpush1.bf16.msra.mxu0 %v11069
  %11330 = vmatprep.subr.bf16.mxu0 0
  %11331 = vmatpush1.bf16.msra.mxu0 %v11070
  %11332 = vmatprep.subr.bf16.mxu0 0
  %11333 = vmatpush1.bf16.msra.mxu0 %v11071
  %11334 = vmatprep.subr.bf16.mxu0 0
  %11335 = vmatpush1.bf16.msra.mxu0 %v11072
  %11336 = vmatprep.subr.bf16.mxu0 0
  %11337 = vmatpush1.bf16.msra.mxu0 %v11073
  %11338 = vmatprep.subr.bf16.mxu0 0
  %11339 = vmatpush1.bf16.msra.mxu0 %v11074
  %11340 = vmatprep.subr.bf16.mxu0 0
  %11341 = vmatpush1.bf16.msra.mxu0 %v11075
  %11342 = vmatprep.subr.bf16.mxu0 0
  %11343 = vmatpush1.bf16.msra.mxu0 %v11076
  %11344 = vmatprep.mubr.bf16.mxu0 %v10414
  %11345 = vmatmul.mubr.bf16.gmra.mrb[0].mxu0 %v10413
  %v11346 = vpop.f32.mrb[0].mxu0
  %v11347 = vadd.f32 %v11307, %v11346
  %v11348 = vpop.f32.mrb[0].mxu0
  %v11349 = vpop.f32.mrb[0].mxu0
  %v11350 = vpop.f32.mrb[0].mxu0
  %11351 = vdwg.mxu0
  %11352 = vmatprep.subr.bf16.mxu0 0
  %11353 = vmatpush1.bf16.msra.mxu0 %v11077
  %11354 = vmatprep.subr.bf16.mxu0 0
  %11355 = vmatpush1.bf16.msra.mxu0 %v11078
  %11356 = vmatprep.subr.bf16.mxu0 0
  %11357 = vmatpush1.bf16.msra.mxu0 %v11079
  %11358 = vmatprep.subr.bf16.mxu0 0
  %11359 = vmatpush1.bf16.msra.mxu0 %v11080
  %11360 = vmatprep.subr.bf16.mxu0 0
  %11361 = vmatpush1.bf16.msra.mxu0 %v11081
  %11362 = vmatprep.subr.bf16.mxu0 0
  %11363 = vmatpush1.bf16.msra.mxu0 %v11082
  %11364 = vmatprep.subr.bf16.mxu0 0
  %11365 = vmatpush1.bf16.msra.mxu0 %v11083
  %11366 = vmatprep.subr.bf16.mxu0 0
  %11367 = vmatpush1.bf16.msra.mxu0 %v11084
  %11368 = vmatprep.subr.bf16.mxu0 0
  %11369 = vmatpush1.bf16.msra.mxu0 %v11085
  %11370 = vmatprep.subr.bf16.mxu0 0
  %11371 = vmatpush1.bf16.msra.mxu0 %v11086
  %11372 = vmatprep.subr.bf16.mxu0 0
  %11373 = vmatpush1.bf16.msra.mxu0 %v11087
  %11374 = vmatprep.subr.bf16.mxu0 0
  %11375 = vmatpush1.bf16.msra.mxu0 %v11088
  %11376 = vmatprep.subr.bf16.mxu0 0
  %11377 = vmatpush1.bf16.msra.mxu0 %v11089
  %11378 = vmatprep.subr.bf16.mxu0 0
  %11379 = vmatpush1.bf16.msra.mxu0 %v11090
  %11380 = vmatprep.subr.bf16.mxu0 0
  %11381 = vmatpush1.bf16.msra.mxu0 %v11091
  %11382 = vmatprep.subr.bf16.mxu0 0
  %11383 = vmatpush1.bf16.msra.mxu0 %v11092
  %11384 = vmatprep.mubr.bf16.mxu0 %v10416
  %11385 = vmatmul.mubr.bf16.gmra.mrb[0].mxu0 %v10415
  %v11386 = vpop.f32.mrb[0].mxu0
  %v11387 = vadd.f32 %v11347, %v11386
  %v11388 = vpop.f32.mrb[0].mxu0
  %v11389 = vpop.f32.mrb[0].mxu0
  %v11390 = vpop.f32.mrb[0].mxu0
  %11391 = vdwg.mxu0
  %11392 = vmatprep.subr.bf16.mxu0 0
  %11393 = vmatpush1.bf16.msra.mxu0 %v11093
  %11394 = vmatprep.subr.bf16.mxu0 0
  %11395 = vmatpush1.bf16.msra.mxu0 %v11094
  %11396 = vmatprep.subr.bf16.mxu0 0
  %11397 = vmatpush1.bf16.msra.mxu0 %v11095
  %11398 = vmatprep.subr.bf16.mxu0 0
  %11399 = vmatpush1.bf16.msra.mxu0 %v11096
  %11400 = vmatprep.subr.bf16.mxu0 0
  %11401 = vmatpush1.bf16.msra.mxu0 %v11097
  %11402 = vmatprep.subr.bf16.mxu0 0
  %11403 = vmatpush1.bf16.msra.mxu0 %v11098
  %11404 = vmatprep.subr.bf16.mxu0 0
  %11405 = vmatpush1.bf16.msra.mxu0 %v11099
  %11406 = vmatprep.subr.bf16.mxu0 0
  %11407 = vmatpush1.bf16.msra.mxu0 %v11100
  %11408 = vmatprep.subr.bf16.mxu0 0
  %11409 = vmatpush1.bf16.msra.mxu0 %v11101
  %11410 = vmatprep.subr.bf16.mxu0 0
  %11411 = vmatpush1.bf16.msra.mxu0 %v11102
  %11412 = vmatprep.subr.bf16.mxu0 0
  %11413 = vmatpush1.bf16.msra.mxu0 %v11103
  %11414 = vmatprep.subr.bf16.mxu0 0
  %11415 = vmatpush1.bf16.msra.mxu0 %v11104
  %11416 = vmatprep.subr.bf16.mxu0 0
  %11417 = vmatpush1.bf16.msra.mxu0 %v11105
  %11418 = vmatprep.subr.bf16.mxu0 0
  %11419 = vmatpush1.bf16.msra.mxu0 %v11106
  %11420 = vmatprep.subr.bf16.mxu0 0
  %11421 = vmatpush1.bf16.msra.mxu0 %v11107
  %11422 = vmatprep.subr.bf16.mxu0 0
  %11423 = vmatpush1.bf16.msra.mxu0 %v11108
  %11424 = vmatprep.mubr.bf16.mxu0 %v10418
  %11425 = vmatmul.mubr.bf16.gmra.mrb[0].mxu0 %v10417
  %v11426 = vpop.f32.mrb[0].mxu0
  %v11427 = vadd.f32 %v11387, %v11426
  %v11428 = vpop.f32.mrb[0].mxu0
  %v11429 = vpop.f32.mrb[0].mxu0
  %v11430 = vpop.f32.mrb[0].mxu0
  %11431 = vdwg.mxu0
  %11432 = vmatprep.subr.bf16.mxu0 0
  %11433 = vmatpush1.bf16.msra.mxu0 %v11109
  %11434 = vmatprep.subr.bf16.mxu0 0
  %11435 = vmatpush1.bf16.msra.mxu0 %v11110
  %11436 = vmatprep.subr.bf16.mxu0 0
  %11437 = vmatpush1.bf16.msra.mxu0 %v11111
  %11438 = vmatprep.subr.bf16.mxu0 0
  %11439 = vmatpush1.bf16.msra.mxu0 %v11112
  %11440 = vmatprep.subr.bf16.mxu0 0
  %11441 = vmatpush1.bf16.msra.mxu0 %v11113
  %11442 = vmatprep.subr.bf16.mxu0 0
  %11443 = vmatpush1.bf16.msra.mxu0 %v11114
  %11444 = vmatprep.subr.bf16.mxu0 0
  %11445 = vmatpush1.bf16.msra.mxu0 %v11115
  %11446 = vmatprep.subr.bf16.mxu0 0
  %11447 = vmatpush1.bf16.msra.mxu0 %v11116
  %11448 = vmatprep.subr.bf16.mxu0 0
  %11449 = vmatpush1.bf16.msra.mxu0 %v11117
  %11450 = vmatprep.subr.bf16.mxu0 0
  %11451 = vmatpush1.bf16.msra.mxu0 %v11118
  %11452 = vmatprep.subr.bf16.mxu0 0
  %11453 = vmatpush1.bf16.msra.mxu0 %v11119
  %11454 = vmatprep.subr.bf16.mxu0 0
  %11455 = vmatpush1.bf16.msra.mxu0 %v11120
  %11456 = vmatprep.subr.bf16.mxu0 0
  %11457 = vmatpush1.bf16.msra.mxu0 %v11121
  %11458 = vmatprep.subr.bf16.mxu0 0
  %11459 = vmatpush1.bf16.msra.mxu0 %v11122
  %11460 = vmatprep.subr.bf16.mxu0 0
  %11461 = vmatpush1.bf16.msra.mxu0 %v11123
  %11462 = vmatprep.subr.bf16.mxu0 0
  %11463 = vmatpush1.bf16.msra.mxu0 %v11124
  %11464 = vmatprep.mubr.bf16.mxu0 %v10420
  %11465 = vmatmul.mubr.bf16.gmra.mrb[0].mxu0 %v10419
  %v11466 = vpop.f32.mrb[0].mxu0
  %v11467 = vadd.f32 %v11427, %v11466
  %v11468 = vpop.f32.mrb[0].mxu0
  %v11469 = vpop.f32.mrb[0].mxu0
  %v11470 = vpop.f32.mrb[0].mxu0
  %11471 = vdwg.mxu0
  %11472 = vmatprep.subr.bf16.mxu0 0
  %11473 = vmatpush1.bf16.msra.mxu0 %v11125
  %11474 = vmatprep.subr.bf16.mxu0 0
  %11475 = vmatpush1.bf16.msra.mxu0 %v11126
  %11476 = vmatprep.subr.bf16.mxu0 0
  %11477 = vmatpush1.bf16.msra.mxu0 %v11127
  %11478 = vmatprep.subr.bf16.mxu0 0
  %11479 = vmatpush1.bf16.msra.mxu0 %v11128
  %11480 = vmatprep.subr.bf16.mxu0 0
  %11481 = vmatpush1.bf16.msra.mxu0 0
  %11482 = vmatprep.subr.bf16.mxu0 0
  %11483 = vmatpush1.bf16.msra.mxu0 0
  %11484 = vmatprep.subr.bf16.mxu0 0
  %11485 = vmatpush1.bf16.msra.mxu0 0
  %11486 = vmatprep.subr.bf16.mxu0 0
  %11487 = vmatpush1.bf16.msra.mxu0 0
  %11488 = vmatprep.subr.bf16.mxu0 0
  %11489 = vmatpush1.bf16.msra.mxu0 0
  %11490 = vmatprep.subr.bf16.mxu0 0
  %11491 = vmatpush1.bf16.msra.mxu0 0
  %11492 = vmatprep.subr.bf16.mxu0 0
  %11493 = vmatpush1.bf16.msra.mxu0 0
  %11494 = vmatprep.subr.bf16.mxu0 0
  %11495 = vmatpush1.bf16.msra.mxu0 0
  %11496 = vmatprep.subr.bf16.mxu0 0
  %11497 = vmatpush1.bf16.msra.mxu0 0
  %11498 = vmatprep.subr.bf16.mxu0 0
  %11499 = vmatpush1.bf16.msra.mxu0 0
  %11500 = vmatprep.subr.bf16.mxu0 0
  %11501 = vmatpush1.bf16.msra.mxu0 0
  %11502 = vmatprep.subr.bf16.mxu0 0
  %11503 = vmatpush1.bf16.msra.mxu0 0
  %11504 = vmatprep.mubr.bf16.mxu0 0
  %11505 = vmatmul.mubr.bf16.gmra.mrb[0].mxu0 %v11230
  %v11506 = vpop.f32.mrb[0].mxu0
  %v11507 = vadd.f32 %v11467, %v11506
  %v11508 = vpop.f32.mrb[0].mxu0
  %v11509 = vpop.f32.mrb[0].mxu0
  %v11510 = vpop.f32.mrb[0].mxu0
  %11511 = vdwg.mxu0
  %v11512 = vmax.f32 %v11507, 0.0
  %v11513 = vpack.c.bf16 %v11512, %v11512
  %v11514 = vld [vmem:[%s12] sm:$0xf]
  %v11515 = vld [vmem:[%s12 + $0x4] sm:$0xf]
  %v11516 = vld [vmem:[%s12 + $0x8] sm:$0xf]
  %v11517 = vld [vmem:[%s12 + $0xc] sm:$0xf]
  %v11518 = vld [vmem:[%s12 + $0x10] sm:$0xf]
  %v11519 = vld [vmem:[%s12 + $0x14] sm:$0xf]
  %v11520 = vld [vmem:[%s12 + $0x18] sm:$0xf]
  %v11521 = vld [vmem:[%s12 + $0x1c] sm:$0xf]
  %v11522 = vld [vmem:[%s12 + $0x20] sm:$0xf]
  %v11523 = vld [vmem:[%s12 + $0x24] sm:$0xf]
  %v11524 = vld [vmem:[%s12 + $0x28] sm:$0xf]
  %v11525 = vld [vmem:[%s12 + $0x2c] sm:$0xf]
  %v11526 = vld [vmem:[%s12 + $0x30] sm:$0xf]
  %v11527 = vld [vmem:[%s12 + $0x34] sm:$0xf]
  %v11528 = vld [vmem:[%s12 + $0x38] sm:$0xf]
  %v11529 = vld [vmem:[%s12 + $0x3c] sm:$0xf]
  %v11530 = vld [vmem:[%s13] sm:$0x1]
  %v11532 = vlaneseq
  %v11533 = vshrl.u32 %v11532, 7
  %v11534 = vsub.s32 0, %v11533
  %v11535 = vrot.slane %v11530, %v11534
  %v11553 = vunpack.c.l.b16 %v11514
  %v11554 = vunpack.c.l.b16 %v11515
  %v11555 = vunpack.c.l.b16 %v11516
  %v11556 = vunpack.c.l.b16 %v11517
  %v11557 = vunpack.c.l.b16 %v11518
  %v11558 = vunpack.c.l.b16 %v11519
  %v11559 = vunpack.c.l.b16 %v11520
  %v11560 = vunpack.c.l.b16 %v11521
  %v11561 = vunpack.c.l.b16 %v11522
  %v11562 = vunpack.c.l.b16 %v11523
  %v11563 = vunpack.c.l.b16 %v11524
  %v11564 = vunpack.c.l.b16 %v11525
  %v11565 = vunpack.c.l.b16 %v11526
  %v11566 = vunpack.c.l.b16 %v11527
  %v11567 = vunpack.c.l.b16 %v11528
  %v11568 = vunpack.c.l.b16 %v11529
  %v11569 = vpack.c.b16 %v11554, %v11553
  %v11570 = vpack.c.b16 %v11556, %v11555
  %v11571 = vpack.c.b16 %v11558, %v11557
  %v11572 = vpack.c.b16 %v11560, %v11559
  %v11573 = vpack.c.b16 %v11562, %v11561
  %v11574 = vpack.c.b16 %v11564, %v11563
  %v11575 = vpack.c.b16 %v11566, %v11565
  %v11576 = vpack.c.b16 %v11568, %v11567
  %11585 = vmatprep.subr.bf16.mxu0 0
  %11586 = vmatpush1.bf16.msra.mxu0 %v11569
  %11587 = vmatprep.subr.bf16.mxu0 0
  %11588 = vmatpush1.bf16.msra.mxu0 %v11570
  %11589 = vmatprep.subr.bf16.mxu0 0
  %11590 = vmatpush1.bf16.msra.mxu0 %v11571
  %11591 = vmatprep.subr.bf16.mxu0 0
  %11592 = vmatpush1.bf16.msra.mxu0 %v11572
  %11593 = vmatprep.subr.bf16.mxu0 0
  %11594 = vmatpush1.bf16.msra.mxu0 %v11573
  %11595 = vmatprep.subr.bf16.mxu0 0
  %11596 = vmatpush1.bf16.msra.mxu0 %v11574
  %11597 = vmatprep.subr.bf16.mxu0 0
  %11598 = vmatpush1.bf16.msra.mxu0 %v11575
  %11599 = vmatprep.subr.bf16.mxu0 0
  %11600 = vmatpush1.bf16.msra.mxu0 %v11576
  %11601 = vmatprep.subr.bf16.mxu0 0
  %11602 = vmatpush1.bf16.msra.mxu0 0
  %11603 = vmatprep.subr.bf16.mxu0 0
  %11604 = vmatpush1.bf16.msra.mxu0 0
  %11605 = vmatprep.subr.bf16.mxu0 0
  %11606 = vmatpush1.bf16.msra.mxu0 0
  %11607 = vmatprep.subr.bf16.mxu0 0
  %11608 = vmatpush1.bf16.msra.mxu0 0
  %11609 = vmatprep.subr.bf16.mxu0 0
  %11610 = vmatpush1.bf16.msra.mxu0 0
  %11611 = vmatprep.subr.bf16.mxu0 0
  %11612 = vmatpush1.bf16.msra.mxu0 0
  %11613 = vmatprep.subr.bf16.mxu0 0
  %11614 = vmatpush1.bf16.msra.mxu0 0
  %11615 = vmatprep.subr.bf16.mxu0 0
  %11616 = vmatpush1.bf16.msra.mxu0 0
  %11617 = vmatprep.mubr.bf16.mxu0 0
  %11618 = vmatmul.mubr.bf16.gmra.mrb[0].mxu0 %v11513
  %v11619 = vpop.f32.mrb[0].mxu0
  %v11620 = vadd.f32 %v11535, %v11619
  %v11621 = vpop.f32.mrb[0].mxu0
  %v11622 = vpop.f32.mrb[0].mxu0
  %v11623 = vpop.f32.mrb[0].mxu0
  %11624 = vdwg.mxu0
  %11625 = vst [vmem:[%s14] sm:$0xff] %v11620
  // Predicated region
  $region58: #{simple_cnn_forward.1} parent=0 // pred_check
    _
  $region59: #{simple_cnn_forward.1} parent=0 // pred_check_branch
    %11627 = sbr.rel (0) target = $region61
  $region60: #{simple_cnn_forward.1} parent=0 // pred_region
    _
  $region61: #{simple_cnn_forward.1} parent=0 // pred_fallthru
    _
  // Predicated region
  $region62: #{simple_cnn_forward.1} parent=0 // pred_check
    _
  $region63: #{simple_cnn_forward.1} parent=0 // pred_check_branch
    %11629 = sbr.rel (0) target = $region65
  $region64: #{simple_cnn_forward.1} parent=0 // pred_region
    _
  $region65: #{simple_cnn_forward.1} parent=0 // pred_fallthru
    _

</llo_original>
